<compile_context>
chip_gen: v5e
topology: v5e:2x2
jax: 0.10.0
libtpu: 0.0.40
codegen_flags: <defaults>
</compile_context>

<pallas_src>
import jax
import jax.numpy as jnp
from jax import lax
from jax.experimental import pallas as pl
from jax.experimental.pallas import tpu as pltpu

# ----------------------------- problem sizes --------------------------------
B = 2
N = 256            # number of points (== TILE_N, grid is just (B,))
C_PT = 32          # bev_context_layer[0]  (raw point-branch channels)
C_BEV = 32         # bev_channels
C_RV = 32          # rv_channels
C_CAT = C_PT + C_BEV + C_RV
C_OUT = 64         # point_feat_out_channels
N_CLS = 8          # class_num
HB, WB = 16, 16    # BEV feature-map spatial size
HR, WR = 8, 32     # RV  feature-map spatial size
HW = HB * WB
assert HR * WR == HW, "kernel shares one iota / G slab layout for both views"

# packed-output lane layout (lane-dense 128-wide slab)
OUT_LANES = 2 * C_OUT          # 128
SEM_LO, SEM_HI = C_OUT, C_OUT + N_CLS          # 64:72  pred_sem logits
OFF_LO, OFF_HI = SEM_HI, SEM_HI + 3            # 72:75  pred_offset
HMAP_LANE = OFF_HI                             # 75     pred_hmap (sigmoid)

# packed-weight-slab row layout (sublane-aligned sections)
R_WPT = 0                      # rows 0:32    W_pt (sem||ins)       (32, 128)
R_BCAT = C_PT                  # row 32       fused-conv bias       (1, 128)
R_WOUT = 40                    # rows 40:168  block head matrix     (128, 128)
R_BOUT = R_WOUT + OUT_LANES    # row 168      head bias             (1, 128)
W_ROWS = R_BOUT + 8            # 176 rows total (8-aligned)


# ------------------------------- kernel --------------------------------------
def mvfuse_kernel(pt_ref, coord_ref, g_ref, w_ref, out_ref):
    pt = pt_ref[0]               # (N, C_PT)
    coords = coord_ref[0]        # (N, 4)  = [x_bev, y_bev, x_rv, y_rv]

    # Hoisted: one iota shared by both views (HB*WB == HR*WR).
    hw_iota = lax.broadcasted_iota(jnp.int32, (N, HW), 1)

    def onehot_wmat(x, y, H, W):
        """Sparse (N, HW) bilinear interpolation matrix (zero outside map)."""
        x0f = jnp.floor(x)
        y0f = jnp.floor(y)
        wx1 = x - x0f
        wy1 = y - y0f
        wx0 = 1.0 - wx1
        wy0 = 1.0 - wy1
        x0 = x0f.astype(jnp.int32)
        y0 = y0f.astype(jnp.int32)
        x1 = x0 + 1
        y1 = y0 + 1

        def corner(xi, yi, w):
            valid = (xi >= 0) & (xi < W) & (yi >= 0) & (yi < H)
            idx = jnp.where(valid, yi * W + xi, -1)           # (N, 1)
            return (hw_iota == idx).astype(jnp.float32) * w   # (N, HW)

        return (corner(x0, y0, wx0 * wy0) + corner(x1, y0, wx1 * wy0) +
                corner(x0, y1, wx0 * wy1) + corner(x1, y1, wx1 * wy1))

    # One wmat per view, shared by the sem and ins branches.
    wmat_bev = onehot_wmat(coords[:, 0:1], coords[:, 1:2], HB, WB)   # (N, HW)
    wmat_rv = onehot_wmat(coords[:, 2:3], coords[:, 3:4], HR, WR)    # (N, HW)

    w_pt = w_ref[R_WPT:R_WPT + C_PT, :]            # (32, 128)
    b_cat = w_ref[R_BCAT:R_BCAT + 1, :]            # (1, 128)
    w_out = w_ref[R_WOUT:R_WOUT + OUT_LANES, :]    # (128, 128)
    b_out = w_ref[R_BOUT:R_BOUT + 1, :]            # (1, 128)

    # Fused CatFusion for both branches at once: f[:, 0:64]=f_sem, [:, 64:]=f_ins
    f = jnp.dot(pt, w_pt, preferred_element_type=jnp.float32)
    f = f + jnp.dot(wmat_bev, g_ref[0, 0:HW, :],
                    preferred_element_type=jnp.float32)
    f = f + jnp.dot(wmat_rv, g_ref[0, HW:2 * HW, :],
                    preferred_element_type=jnp.float32)
    f = jnp.maximum(f + b_cat, 0.0)                # ReLU (BN folded, eval mode)

    # Single block-structured head matmul -> lane-dense packed output slab.
    slab = jnp.dot(f, w_out, preferred_element_type=jnp.float32) + b_out

    # Sigmoid only on the hmap lane (stable tanh form -> EUP).
    lane = lax.broadcasted_iota(jnp.int32, (N, OUT_LANES), 1)
    sig = 0.5 * (jnp.tanh(0.5 * slab) + 1.0)
    out_ref[0] = jnp.where(lane == HMAP_LANE, sig, slab)


# ------------------------------ wrapper ---------------------------------------
def mvfuse_forward(point_feat_tmp, bev_feat_sem, bev_feat_ins, pc_coord_bev,
                   rv_feat_sem, rv_feat_ins, pc_coord_rv, params):
    # PyTorch-convention inputs:
    #   point_feat_tmp: (B, C_PT, N, 1)
    #   bev_feat_*:     (B, C_BEV, HB, WB)  NCHW
    #   rv_feat_*:      (B, C_RV,  HR, WR)  NCHW
    #   pc_coord_*:     (B, N, 1, 2) pixel coordinates (x, y)
    hp = jax.lax.Precision.HIGHEST
    pt = jnp.transpose(point_feat_tmp[..., 0], (0, 2, 1))                 # (B, N, C_PT)
    bev_sem = jnp.transpose(bev_feat_sem, (0, 2, 3, 1)).reshape(B, HW, C_BEV)
    bev_ins = jnp.transpose(bev_feat_ins, (0, 2, 3, 1)).reshape(B, HW, C_BEV)
    rv_sem = jnp.transpose(rv_feat_sem, (0, 2, 3, 1)).reshape(B, HW, C_RV)
    rv_ins = jnp.transpose(rv_feat_ins, (0, 2, 3, 1)).reshape(B, HW, C_RV)
    coords = jnp.concatenate([pc_coord_bev[:, :, 0, :],
                              pc_coord_rv[:, :, 0, :]], axis=-1)          # (B, N, 4)

    ws = params["w_fuse_sem"]      # (C_CAT, C_OUT)
    wi = params["w_fuse_ins"]

    # Fold bev/rv fusion-conv weights into the feature maps (associativity),
    # sem and ins projections concatenated along channels.
    w_pt_cat = jnp.concatenate([ws[:C_PT], wi[:C_PT]], axis=1)            # (32, 128)
    g_bev = jnp.concatenate(
        [jnp.einsum("bpc,co->bpo", bev_sem, ws[C_PT:C_PT + C_BEV], precision=hp),
         jnp.einsum("bpc,co->bpo", bev_ins, wi[C_PT:C_PT + C_BEV], precision=hp)],
        axis=-1)                                                          # (B, HW, 128)
    g_rv = jnp.concatenate(
        [jnp.einsum("bpc,co->bpo", rv_sem, ws[C_PT + C_BEV:], precision=hp),
         jnp.einsum("bpc,co->bpo", rv_ins, wi[C_PT + C_BEV:], precision=hp)],
        axis=-1)                                                          # (B, HW, 128)
    g = jnp.concatenate([g_bev, g_rv], axis=1)                            # (B, 2*HW, 128)

    b_cat = jnp.concatenate([params["b_fuse_sem"], params["b_fuse_ins"]],
                            axis=-1)                                      # (1, 128)

    # Block-structured head matrix: identity pass-through for f_sem plus the
    # three prediction heads packed into lanes 64:76; lanes 76:128 are padding.
    w_out = jnp.zeros((OUT_LANES, OUT_LANES), jnp.float32)
    w_out = w_out.at[0:C_OUT, 0:C_OUT].set(jnp.eye(C_OUT, dtype=jnp.float32))
    w_out = w_out.at[0:C_OUT, SEM_LO:SEM_HI].set(params["w_sem"])
    w_out = w_out.at[C_OUT:, OFF_LO:OFF_HI].set(params["w_off"])
    w_out = w_out.at[C_OUT:, HMAP_LANE:HMAP_LANE + 1].set(params["w_hmap"])
    b_out = jnp.zeros((1, OUT_LANES), jnp.float32)
    b_out = b_out.at[:, SEM_LO:SEM_HI].set(params["b_sem"])
    b_out = b_out.at[:, OFF_LO:OFF_HI].set(params["b_off"])
    b_out = b_out.at[:, HMAP_LANE:HMAP_LANE + 1].set(params["b_hmap"])

    # Pack all weights/biases into one sublane-aligned slab.
    w_slab = jnp.zeros((W_ROWS, OUT_LANES), jnp.float32)
    w_slab = w_slab.at[R_WPT:R_WPT + C_PT].set(w_pt_cat)
    w_slab = w_slab.at[R_BCAT:R_BCAT + 1].set(b_cat)
    w_slab = w_slab.at[R_WOUT:R_WOUT + OUT_LANES].set(w_out)
    w_slab = w_slab.at[R_BOUT:R_BOUT + 1].set(b_out)

    slab = pl.pallas_call(
        mvfuse_kernel,
        out_shape=jax.ShapeDtypeStruct((B, N, OUT_LANES), jnp.float32),
        grid=(B,),
        in_specs=[
            pl.BlockSpec((1, N, C_PT), lambda b: (b, 0, 0)),        # pt
            pl.BlockSpec((1, N, 4), lambda b: (b, 0, 0)),           # coords
            pl.BlockSpec((1, 2 * HW, OUT_LANES), lambda b: (b, 0, 0)),  # G
            pl.BlockSpec((W_ROWS, OUT_LANES), lambda b: (0, 0)),    # weights
        ],
        out_specs=pl.BlockSpec((1, N, OUT_LANES), lambda b: (b, 0, 0)),
        compiler_params=pltpu.CompilerParams(
            dimension_semantics=("parallel",)),
    )(pt, coords, g, w_slab)

    # Unpack back to the PyTorch output conventions.
    point_feat_sem = jnp.transpose(slab[:, :, 0:C_OUT], (0, 2, 1))[..., None]
    pred_sem = jnp.transpose(slab[:, :, SEM_LO:SEM_HI], (0, 2, 1))[..., None]
    pred_offset = slab[:, :, OFF_LO:OFF_HI]                 # (B, N, 3)
    pred_hmap = slab[:, :, HMAP_LANE:HMAP_LANE + 1]         # (B, N, 1)
    return point_feat_sem, pred_sem, pred_offset, pred_hmap


# --------------------------- pure-JAX reference -------------------------------
def _bilinear_ref(feat_nchw, coord, H, W):
    feat = jnp.transpose(feat_nchw, (0, 2, 3, 1)).reshape(B, H * W, -1)
    x = coord[..., 0]
    y = coord[..., 1]
    x0f = jnp.floor(x)
    y0f = jnp.floor(y)
    wx1 = x - x0f
    wy1 = y - y0f
    x0 = x0f.astype(jnp.int32)
    y0 = y0f.astype(jnp.int32)
    x1 = x0 + 1
    y1 = y0 + 1

    def corner(xi, yi, w):
        valid = ((xi >= 0) & (xi < W) & (yi >= 0) & (yi < H)).astype(jnp.float32)
        idx = jnp.clip(yi, 0, H - 1) * W + jnp.clip(xi, 0, W - 1)
        g = jax.vmap(lambda f, i: f[i])(feat, idx)          # (B, N, C)
        return g * (w * valid)[..., None]

    return (corner(x0, y0, (1 - wx1) * (1 - wy1)) + corner(x1, y0, wx1 * (1 - wy1)) +
            corner(x0, y1, (1 - wx1) * wy1) + corner(x1, y1, wx1 * wy1))


def mvfuse_ref(point_feat_tmp, bev_feat_sem, bev_feat_ins, pc_coord_bev,
               rv_feat_sem, rv_feat_ins, pc_coord_rv, params):
    hp = jax.lax.Precision.HIGHEST
    pt = jnp.transpose(point_feat_tmp[..., 0], (0, 2, 1))
    cb = pc_coord_bev[:, :, 0, :]
    cr = pc_coord_rv[:, :, 0, :]

    def fuse(bev, rv, wk, bk):
        pb = _bilinear_ref(bev, cb, HB, WB)
        pr = _bilinear_ref(rv, cr, HR, WR)
        x = jnp.concatenate([pt, pb, pr], axis=-1)
        f = jnp.einsum("bnc,co->bno", x, params[wk], precision=hp) + params[bk]
        return jnp.maximum(f, 0.0)

    f_sem = fuse(bev_feat_sem, rv_feat_sem, "w_fuse_sem", "b_fuse_sem")
    f_ins = fuse(bev_feat_ins, rv_feat_ins, "w_fuse_ins", "b_fuse_ins")
    sem = jnp.einsum("bno,ok->bnk", f_sem, params["w_sem"], precision=hp) + params["b_sem"]
    off = jnp.einsum("bno,ok->bnk", f_ins, params["w_off"], precision=hp) + params["b_off"]
    hm = jnp.einsum("bno,ok->bnk", f_ins, params["w_hmap"], precision=hp) + params["b_hmap"]
    hm = jax.nn.sigmoid(hm)
    point_feat_sem = jnp.transpose(f_sem, (0, 2, 1))[..., None]
    pred_sem = jnp.transpose(sem, (0, 2, 1))[..., None]
    return point_feat_sem, pred_sem, off, hm


# --------------------------------- main ---------------------------------------
def init_params(key):
    ks = jax.random.split(key, 10)

    def w(k, shape, fan_in):
        return jax.random.normal(k, shape, jnp.float32) / jnp.sqrt(float(fan_in))

    return {
        "w_fuse_sem": w(ks[0], (C_CAT, C_OUT), C_CAT),
        "b_fuse_sem": w(ks[1], (1, C_OUT), C_CAT),
        "w_fuse_ins": w(ks[2], (C_CAT, C_OUT), C_CAT),
        "b_fuse_ins": w(ks[3], (1, C_OUT), C_CAT),
        "w_sem": w(ks[4], (C_OUT, N_CLS), C_OUT),
        "b_sem": w(ks[5], (1, N_CLS), C_OUT),
        "w_off": w(ks[6], (C_OUT, 3), C_OUT),
        "b_off": w(ks[7], (1, 3), C_OUT),
        "w_hmap": w(ks[8], (C_OUT, 1), C_OUT),
        "b_hmap": w(ks[9], (1, 1), C_OUT),
    }


if __name__ == "__main__":
    key = jax.random.PRNGKey(0)
    k = jax.random.split(key, 8)
    point_feat_tmp = jax.random.normal(k[0], (B, C_PT, N, 1), jnp.float32)
    bev_feat_sem = jax.random.normal(k[1], (B, C_BEV, HB, WB), jnp.float32)
    bev_feat_ins = jax.random.normal(k[2], (B, C_BEV, HB, WB), jnp.float32)
    rv_feat_sem = jax.random.normal(k[3], (B, C_RV, HR, WR), jnp.float32)
    rv_feat_ins = jax.random.normal(k[4], (B, C_RV, HR, WR), jnp.float32)
    pc_coord_bev = (jax.random.uniform(k[5], (B, N, 1, 2), jnp.float32)
                    * jnp.array([WB - 1, HB - 1], jnp.float32))
    pc_coord_rv = (jax.random.uniform(k[6], (B, N, 1, 2), jnp.float32)
                   * jnp.array([WR - 1, HR - 1], jnp.float32))
    params = init_params(k[7])

    args = (point_feat_tmp, bev_feat_sem, bev_feat_ins, pc_coord_bev,
            rv_feat_sem, rv_feat_ins, pc_coord_rv, params)

    outs = jax.jit(mvfuse_forward)(*args)
    outs = jax.block_until_ready(outs)

    refs = mvfuse_ref(*args)
    names = ["point_feat_sem", "pred_sem", "pred_offset", "pred_hmap"]
    for name, o, r in zip(names, outs, refs):
        assert o.shape == r.shape, (name, o.shape, r.shape)
        err = float(jnp.max(jnp.abs(o - r)))
        assert err < 5e-3, (name, err)

    print("KERNEL_OK")
</pallas_src>

<mosaic_0001>
module attributes {stable_mosaic.version = 11 : i64} {
  func.func @mvfuse_kernel(%arg0: i32, %arg1: memref<1x256x32xf32, #tpu.memory_space<vmem>>, %arg2: memref<1x256x4xf32, #tpu.memory_space<vmem>>, %arg3: memref<1x512x128xf32, #tpu.memory_space<vmem>>, %arg4: memref<176x128xf32, #tpu.memory_space<vmem>>, %arg5: memref<1x256x128xf32, #tpu.memory_space<vmem>>) attributes {dimension_semantics = [#tpu.dimension_semantics<parallel>], iteration_bounds = array<i64: 2>, scalar_prefetch = 0 : i64, scratch_operands = 0 : i64, tpu.core_type = #tpu.core_type<tc>, window_params = [{transform_indices = @transform_0, window_bounds = array<i64: 1, 256, 32>}, {transform_indices = @transform_1, window_bounds = array<i64: 1, 256, 4>}, {transform_indices = @transform_2, window_bounds = array<i64: 1, 512, 128>}, {pipeline_mode = #tpu.pipeline_mode<synchronous>, transform_indices = @transform_3, window_bounds = array<i64: 176, 128>}, {transform_indices = @transform_4, window_bounds = array<i64: 1, 256, 128>}]} {
    %c0 = arith.constant 0 : index
    %c0_0 = arith.constant 0 : index
    %c0_1 = arith.constant 0 : index
    %0 = vector.load %arg1[%c0, %c0_0, %c0_1] : memref<1x256x32xf32, #tpu.memory_space<vmem>>, vector<1x256x32xf32>
    %1 = vector.shape_cast %0 : vector<1x256x32xf32> to vector<256x32xf32>
    %c0_2 = arith.constant 0 : index
    %c0_3 = arith.constant 0 : index
    %c0_4 = arith.constant 0 : index
    %2 = vector.load %arg2[%c0_2, %c0_3, %c0_4] : memref<1x256x4xf32, #tpu.memory_space<vmem>>, vector<1x256x4xf32>
    %3 = vector.shape_cast %2 : vector<1x256x4xf32> to vector<256x4xf32>
    %4 = tpu.iota {dimensions = array<i32: 1>} : vector<256x256xi32>
    %5 = vector.extract_strided_slice %3 {offsets = [0, 0], sizes = [256, 1], strides = [1, 1]} : vector<256x4xf32> to vector<256x1xf32>
    %6 = vector.extract_strided_slice %3 {offsets = [0, 1], sizes = [256, 1], strides = [1, 1]} : vector<256x4xf32> to vector<256x1xf32>
    %7 = math.floor %5 : vector<256x1xf32>
    %8 = math.floor %6 : vector<256x1xf32>
    %9 = arith.subf %5, %7 : vector<256x1xf32>
    %10 = arith.subf %6, %8 : vector<256x1xf32>
    %cst = arith.constant 1.000000e+00 : f32
    %11 = vector.broadcast %cst : f32 to vector<256x1xf32>
    %12 = arith.subf %11, %9 : vector<256x1xf32>
    %cst_5 = arith.constant 1.000000e+00 : f32
    %13 = vector.broadcast %cst_5 : f32 to vector<256x1xf32>
    %14 = arith.subf %13, %10 : vector<256x1xf32>
    %15 = arith.fptosi %7 : vector<256x1xf32> to vector<256x1xi32>
    %16 = arith.fptosi %8 : vector<256x1xf32> to vector<256x1xi32>
    %c1_i32 = arith.constant 1 : i32
    %17 = vector.broadcast %c1_i32 : i32 to vector<256x1xi32>
    %18 = arith.addi %15, %17 : vector<256x1xi32>
    %c1_i32_6 = arith.constant 1 : i32
    %19 = vector.broadcast %c1_i32_6 : i32 to vector<256x1xi32>
    %20 = arith.addi %16, %19 : vector<256x1xi32>
    %21 = arith.mulf %12, %14 : vector<256x1xf32>
    %c0_i32 = arith.constant 0 : i32
    %22 = vector.broadcast %c0_i32 : i32 to vector<256x1xi32>
    %23 = arith.cmpi sge, %15, %22 : vector<256x1xi32>
    %c16_i32 = arith.constant 16 : i32
    %24 = vector.broadcast %c16_i32 : i32 to vector<256x1xi32>
    %25 = arith.cmpi slt, %15, %24 : vector<256x1xi32>
    %26 = arith.andi %23, %25 : vector<256x1xi1>
    %c0_i32_7 = arith.constant 0 : i32
    %27 = vector.broadcast %c0_i32_7 : i32 to vector<256x1xi32>
    %28 = arith.cmpi sge, %16, %27 : vector<256x1xi32>
    %29 = arith.andi %26, %28 : vector<256x1xi1>
    %c16_i32_8 = arith.constant 16 : i32
    %30 = vector.broadcast %c16_i32_8 : i32 to vector<256x1xi32>
    %31 = arith.cmpi slt, %16, %30 : vector<256x1xi32>
    %32 = arith.andi %29, %31 : vector<256x1xi1>
    %c16_i32_9 = arith.constant 16 : i32
    %33 = vector.broadcast %c16_i32_9 : i32 to vector<256x1xi32>
    %34 = arith.muli %16, %33 : vector<256x1xi32>
    %35 = arith.addi %34, %15 : vector<256x1xi32>
    %c-1_i32 = arith.constant -1 : i32
    %36 = vector.broadcast %c-1_i32 : i32 to vector<256x1xi32>
    %37 = arith.select %32, %35, %36 : vector<256x1xi1>, vector<256x1xi32>
    %38 = vector.broadcast %37 : vector<256x1xi32> to vector<256x256xi32>
    %39 = arith.cmpi eq, %4, %38 : vector<256x256xi32>
    %40 = arith.extui %39 : vector<256x256xi1> to vector<256x256xi32>
    %41 = arith.sitofp %40 : vector<256x256xi32> to vector<256x256xf32>
    %42 = vector.broadcast %21 : vector<256x1xf32> to vector<256x256xf32>
    %43 = arith.mulf %41, %42 : vector<256x256xf32>
    %44 = arith.mulf %9, %14 : vector<256x1xf32>
    %c0_i32_10 = arith.constant 0 : i32
    %45 = vector.broadcast %c0_i32_10 : i32 to vector<256x1xi32>
    %46 = arith.cmpi sge, %18, %45 : vector<256x1xi32>
    %c16_i32_11 = arith.constant 16 : i32
    %47 = vector.broadcast %c16_i32_11 : i32 to vector<256x1xi32>
    %48 = arith.cmpi slt, %18, %47 : vector<256x1xi32>
    %49 = arith.andi %46, %48 : vector<256x1xi1>
    %c0_i32_12 = arith.constant 0 : i32
    %50 = vector.broadcast %c0_i32_12 : i32 to vector<256x1xi32>
    %51 = arith.cmpi sge, %16, %50 : vector<256x1xi32>
    %52 = arith.andi %49, %51 : vector<256x1xi1>
    %c16_i32_13 = arith.constant 16 : i32
    %53 = vector.broadcast %c16_i32_13 : i32 to vector<256x1xi32>
    %54 = arith.cmpi slt, %16, %53 : vector<256x1xi32>
    %55 = arith.andi %52, %54 : vector<256x1xi1>
    %c16_i32_14 = arith.constant 16 : i32
    %56 = vector.broadcast %c16_i32_14 : i32 to vector<256x1xi32>
    %57 = arith.muli %16, %56 : vector<256x1xi32>
    %58 = arith.addi %57, %18 : vector<256x1xi32>
    %c-1_i32_15 = arith.constant -1 : i32
    %59 = vector.broadcast %c-1_i32_15 : i32 to vector<256x1xi32>
    %60 = arith.select %55, %58, %59 : vector<256x1xi1>, vector<256x1xi32>
    %61 = vector.broadcast %60 : vector<256x1xi32> to vector<256x256xi32>
    %62 = arith.cmpi eq, %4, %61 : vector<256x256xi32>
    %63 = arith.extui %62 : vector<256x256xi1> to vector<256x256xi32>
    %64 = arith.sitofp %63 : vector<256x256xi32> to vector<256x256xf32>
    %65 = vector.broadcast %44 : vector<256x1xf32> to vector<256x256xf32>
    %66 = arith.mulf %64, %65 : vector<256x256xf32>
    %67 = arith.addf %43, %66 : vector<256x256xf32>
    %68 = arith.mulf %12, %10 : vector<256x1xf32>
    %c0_i32_16 = arith.constant 0 : i32
    %69 = vector.broadcast %c0_i32_16 : i32 to vector<256x1xi32>
    %70 = arith.cmpi sge, %15, %69 : vector<256x1xi32>
    %c16_i32_17 = arith.constant 16 : i32
    %71 = vector.broadcast %c16_i32_17 : i32 to vector<256x1xi32>
    %72 = arith.cmpi slt, %15, %71 : vector<256x1xi32>
    %73 = arith.andi %70, %72 : vector<256x1xi1>
    %c0_i32_18 = arith.constant 0 : i32
    %74 = vector.broadcast %c0_i32_18 : i32 to vector<256x1xi32>
    %75 = arith.cmpi sge, %20, %74 : vector<256x1xi32>
    %76 = arith.andi %73, %75 : vector<256x1xi1>
    %c16_i32_19 = arith.constant 16 : i32
    %77 = vector.broadcast %c16_i32_19 : i32 to vector<256x1xi32>
    %78 = arith.cmpi slt, %20, %77 : vector<256x1xi32>
    %79 = arith.andi %76, %78 : vector<256x1xi1>
    %c16_i32_20 = arith.constant 16 : i32
    %80 = vector.broadcast %c16_i32_20 : i32 to vector<256x1xi32>
    %81 = arith.muli %20, %80 : vector<256x1xi32>
    %82 = arith.addi %81, %15 : vector<256x1xi32>
    %c-1_i32_21 = arith.constant -1 : i32
    %83 = vector.broadcast %c-1_i32_21 : i32 to vector<256x1xi32>
    %84 = arith.select %79, %82, %83 : vector<256x1xi1>, vector<256x1xi32>
    %85 = vector.broadcast %84 : vector<256x1xi32> to vector<256x256xi32>
    %86 = arith.cmpi eq, %4, %85 : vector<256x256xi32>
    %87 = arith.extui %86 : vector<256x256xi1> to vector<256x256xi32>
    %88 = arith.sitofp %87 : vector<256x256xi32> to vector<256x256xf32>
    %89 = vector.broadcast %68 : vector<256x1xf32> to vector<256x256xf32>
    %90 = arith.mulf %88, %89 : vector<256x256xf32>
    %91 = arith.addf %67, %90 : vector<256x256xf32>
    %92 = arith.mulf %9, %10 : vector<256x1xf32>
    %c0_i32_22 = arith.constant 0 : i32
    %93 = vector.broadcast %c0_i32_22 : i32 to vector<256x1xi32>
    %94 = arith.cmpi sge, %18, %93 : vector<256x1xi32>
    %c16_i32_23 = arith.constant 16 : i32
    %95 = vector.broadcast %c16_i32_23 : i32 to vector<256x1xi32>
    %96 = arith.cmpi slt, %18, %95 : vector<256x1xi32>
    %97 = arith.andi %94, %96 : vector<256x1xi1>
    %c0_i32_24 = arith.constant 0 : i32
    %98 = vector.broadcast %c0_i32_24 : i32 to vector<256x1xi32>
    %99 = arith.cmpi sge, %20, %98 : vector<256x1xi32>
    %100 = arith.andi %97, %99 : vector<256x1xi1>
    %c16_i32_25 = arith.constant 16 : i32
    %101 = vector.broadcast %c16_i32_25 : i32 to vector<256x1xi32>
    %102 = arith.cmpi slt, %20, %101 : vector<256x1xi32>
    %103 = arith.andi %100, %102 : vector<256x1xi1>
    %c16_i32_26 = arith.constant 16 : i32
    %104 = vector.broadcast %c16_i32_26 : i32 to vector<256x1xi32>
    %105 = arith.muli %20, %104 : vector<256x1xi32>
    %106 = arith.addi %105, %18 : vector<256x1xi32>
    %c-1_i32_27 = arith.constant -1 : i32
    %107 = vector.broadcast %c-1_i32_27 : i32 to vector<256x1xi32>
    %108 = arith.select %103, %106, %107 : vector<256x1xi1>, vector<256x1xi32>
    %109 = vector.broadcast %108 : vector<256x1xi32> to vector<256x256xi32>
    %110 = arith.cmpi eq, %4, %109 : vector<256x256xi32>
    %111 = arith.extui %110 : vector<256x256xi1> to vector<256x256xi32>
    %112 = arith.sitofp %111 : vector<256x256xi32> to vector<256x256xf32>
    %113 = vector.broadcast %92 : vector<256x1xf32> to vector<256x256xf32>
    %114 = arith.mulf %112, %113 : vector<256x256xf32>
    %115 = arith.addf %91, %114 : vector<256x256xf32>
    %116 = vector.extract_strided_slice %3 {offsets = [0, 2], sizes = [256, 1], strides = [1, 1]} : vector<256x4xf32> to vector<256x1xf32>
    %117 = vector.extract_strided_slice %3 {offsets = [0, 3], sizes = [256, 1], strides = [1, 1]} : vector<256x4xf32> to vector<256x1xf32>
    %118 = math.floor %116 : vector<256x1xf32>
    %119 = math.floor %117 : vector<256x1xf32>
    %120 = arith.subf %116, %118 : vector<256x1xf32>
    %121 = arith.subf %117, %119 : vector<256x1xf32>
    %cst_28 = arith.constant 1.000000e+00 : f32
    %122 = vector.broadcast %cst_28 : f32 to vector<256x1xf32>
    %123 = arith.subf %122, %120 : vector<256x1xf32>
    %cst_29 = arith.constant 1.000000e+00 : f32
    %124 = vector.broadcast %cst_29 : f32 to vector<256x1xf32>
    %125 = arith.subf %124, %121 : vector<256x1xf32>
    %126 = arith.fptosi %118 : vector<256x1xf32> to vector<256x1xi32>
    %127 = arith.fptosi %119 : vector<256x1xf32> to vector<256x1xi32>
    %c1_i32_30 = arith.constant 1 : i32
    %128 = vector.broadcast %c1_i32_30 : i32 to vector<256x1xi32>
    %129 = arith.addi %126, %128 : vector<256x1xi32>
    %c1_i32_31 = arith.constant 1 : i32
    %130 = vector.broadcast %c1_i32_31 : i32 to vector<256x1xi32>
    %131 = arith.addi %127, %130 : vector<256x1xi32>
    %132 = arith.mulf %123, %125 : vector<256x1xf32>
    %c0_i32_32 = arith.constant 0 : i32
    %133 = vector.broadcast %c0_i32_32 : i32 to vector<256x1xi32>
    %134 = arith.cmpi sge, %126, %133 : vector<256x1xi32>
    %c32_i32 = arith.constant 32 : i32
    %135 = vector.broadcast %c32_i32 : i32 to vector<256x1xi32>
    %136 = arith.cmpi slt, %126, %135 : vector<256x1xi32>
    %137 = arith.andi %134, %136 : vector<256x1xi1>
    %c0_i32_33 = arith.constant 0 : i32
    %138 = vector.broadcast %c0_i32_33 : i32 to vector<256x1xi32>
    %139 = arith.cmpi sge, %127, %138 : vector<256x1xi32>
    %140 = arith.andi %137, %139 : vector<256x1xi1>
    %c8_i32 = arith.constant 8 : i32
    %141 = vector.broadcast %c8_i32 : i32 to vector<256x1xi32>
    %142 = arith.cmpi slt, %127, %141 : vector<256x1xi32>
    %143 = arith.andi %140, %142 : vector<256x1xi1>
    %c32_i32_34 = arith.constant 32 : i32
    %144 = vector.broadcast %c32_i32_34 : i32 to vector<256x1xi32>
    %145 = arith.muli %127, %144 : vector<256x1xi32>
    %146 = arith.addi %145, %126 : vector<256x1xi32>
    %c-1_i32_35 = arith.constant -1 : i32
    %147 = vector.broadcast %c-1_i32_35 : i32 to vector<256x1xi32>
    %148 = arith.select %143, %146, %147 : vector<256x1xi1>, vector<256x1xi32>
    %149 = vector.broadcast %148 : vector<256x1xi32> to vector<256x256xi32>
    %150 = arith.cmpi eq, %4, %149 : vector<256x256xi32>
    %151 = arith.extui %150 : vector<256x256xi1> to vector<256x256xi32>
    %152 = arith.sitofp %151 : vector<256x256xi32> to vector<256x256xf32>
    %153 = vector.broadcast %132 : vector<256x1xf32> to vector<256x256xf32>
    %154 = arith.mulf %152, %153 : vector<256x256xf32>
    %155 = arith.mulf %120, %125 : vector<256x1xf32>
    %c0_i32_36 = arith.constant 0 : i32
    %156 = vector.broadcast %c0_i32_36 : i32 to vector<256x1xi32>
    %157 = arith.cmpi sge, %129, %156 : vector<256x1xi32>
    %c32_i32_37 = arith.constant 32 : i32
    %158 = vector.broadcast %c32_i32_37 : i32 to vector<256x1xi32>
    %159 = arith.cmpi slt, %129, %158 : vector<256x1xi32>
    %160 = arith.andi %157, %159 : vector<256x1xi1>
    %c0_i32_38 = arith.constant 0 : i32
    %161 = vector.broadcast %c0_i32_38 : i32 to vector<256x1xi32>
    %162 = arith.cmpi sge, %127, %161 : vector<256x1xi32>
    %163 = arith.andi %160, %162 : vector<256x1xi1>
    %c8_i32_39 = arith.constant 8 : i32
    %164 = vector.broadcast %c8_i32_39 : i32 to vector<256x1xi32>
    %165 = arith.cmpi slt, %127, %164 : vector<256x1xi32>
    %166 = arith.andi %163, %165 : vector<256x1xi1>
    %c32_i32_40 = arith.constant 32 : i32
    %167 = vector.broadcast %c32_i32_40 : i32 to vector<256x1xi32>
    %168 = arith.muli %127, %167 : vector<256x1xi32>
    %169 = arith.addi %168, %129 : vector<256x1xi32>
    %c-1_i32_41 = arith.constant -1 : i32
    %170 = vector.broadcast %c-1_i32_41 : i32 to vector<256x1xi32>
    %171 = arith.select %166, %169, %170 : vector<256x1xi1>, vector<256x1xi32>
    %172 = vector.broadcast %171 : vector<256x1xi32> to vector<256x256xi32>
    %173 = arith.cmpi eq, %4, %172 : vector<256x256xi32>
    %174 = arith.extui %173 : vector<256x256xi1> to vector<256x256xi32>
    %175 = arith.sitofp %174 : vector<256x256xi32> to vector<256x256xf32>
    %176 = vector.broadcast %155 : vector<256x1xf32> to vector<256x256xf32>
    %177 = arith.mulf %175, %176 : vector<256x256xf32>
    %178 = arith.addf %154, %177 : vector<256x256xf32>
    %179 = arith.mulf %123, %121 : vector<256x1xf32>
    %c0_i32_42 = arith.constant 0 : i32
    %180 = vector.broadcast %c0_i32_42 : i32 to vector<256x1xi32>
    %181 = arith.cmpi sge, %126, %180 : vector<256x1xi32>
    %c32_i32_43 = arith.constant 32 : i32
    %182 = vector.broadcast %c32_i32_43 : i32 to vector<256x1xi32>
    %183 = arith.cmpi slt, %126, %182 : vector<256x1xi32>
    %184 = arith.andi %181, %183 : vector<256x1xi1>
    %c0_i32_44 = arith.constant 0 : i32
    %185 = vector.broadcast %c0_i32_44 : i32 to vector<256x1xi32>
    %186 = arith.cmpi sge, %131, %185 : vector<256x1xi32>
    %187 = arith.andi %184, %186 : vector<256x1xi1>
    %c8_i32_45 = arith.constant 8 : i32
    %188 = vector.broadcast %c8_i32_45 : i32 to vector<256x1xi32>
    %189 = arith.cmpi slt, %131, %188 : vector<256x1xi32>
    %190 = arith.andi %187, %189 : vector<256x1xi1>
    %c32_i32_46 = arith.constant 32 : i32
    %191 = vector.broadcast %c32_i32_46 : i32 to vector<256x1xi32>
    %192 = arith.muli %131, %191 : vector<256x1xi32>
    %193 = arith.addi %192, %126 : vector<256x1xi32>
    %c-1_i32_47 = arith.constant -1 : i32
    %194 = vector.broadcast %c-1_i32_47 : i32 to vector<256x1xi32>
    %195 = arith.select %190, %193, %194 : vector<256x1xi1>, vector<256x1xi32>
    %196 = vector.broadcast %195 : vector<256x1xi32> to vector<256x256xi32>
    %197 = arith.cmpi eq, %4, %196 : vector<256x256xi32>
    %198 = arith.extui %197 : vector<256x256xi1> to vector<256x256xi32>
    %199 = arith.sitofp %198 : vector<256x256xi32> to vector<256x256xf32>
    %200 = vector.broadcast %179 : vector<256x1xf32> to vector<256x256xf32>
    %201 = arith.mulf %199, %200 : vector<256x256xf32>
    %202 = arith.addf %178, %201 : vector<256x256xf32>
    %203 = arith.mulf %120, %121 : vector<256x1xf32>
    %c0_i32_48 = arith.constant 0 : i32
    %204 = vector.broadcast %c0_i32_48 : i32 to vector<256x1xi32>
    %205 = arith.cmpi sge, %129, %204 : vector<256x1xi32>
    %c32_i32_49 = arith.constant 32 : i32
    %206 = vector.broadcast %c32_i32_49 : i32 to vector<256x1xi32>
    %207 = arith.cmpi slt, %129, %206 : vector<256x1xi32>
    %208 = arith.andi %205, %207 : vector<256x1xi1>
    %c0_i32_50 = arith.constant 0 : i32
    %209 = vector.broadcast %c0_i32_50 : i32 to vector<256x1xi32>
    %210 = arith.cmpi sge, %131, %209 : vector<256x1xi32>
    %211 = arith.andi %208, %210 : vector<256x1xi1>
    %c8_i32_51 = arith.constant 8 : i32
    %212 = vector.broadcast %c8_i32_51 : i32 to vector<256x1xi32>
    %213 = arith.cmpi slt, %131, %212 : vector<256x1xi32>
    %214 = arith.andi %211, %213 : vector<256x1xi1>
    %c32_i32_52 = arith.constant 32 : i32
    %215 = vector.broadcast %c32_i32_52 : i32 to vector<256x1xi32>
    %216 = arith.muli %131, %215 : vector<256x1xi32>
    %217 = arith.addi %216, %129 : vector<256x1xi32>
    %c-1_i32_53 = arith.constant -1 : i32
    %218 = vector.broadcast %c-1_i32_53 : i32 to vector<256x1xi32>
    %219 = arith.select %214, %217, %218 : vector<256x1xi1>, vector<256x1xi32>
    %220 = vector.broadcast %219 : vector<256x1xi32> to vector<256x256xi32>
    %221 = arith.cmpi eq, %4, %220 : vector<256x256xi32>
    %222 = arith.extui %221 : vector<256x256xi1> to vector<256x256xi32>
    %223 = arith.sitofp %222 : vector<256x256xi32> to vector<256x256xf32>
    %224 = vector.broadcast %203 : vector<256x1xf32> to vector<256x256xf32>
    %225 = arith.mulf %223, %224 : vector<256x256xf32>
    %226 = arith.addf %202, %225 : vector<256x256xf32>
    %c0_54 = arith.constant 0 : index
    %c0_55 = arith.constant 0 : index
    %227 = vector.load %arg4[%c0_54, %c0_55] : memref<176x128xf32, #tpu.memory_space<vmem>>, vector<32x128xf32>
    %c32 = arith.constant 32 : index
    %c0_56 = arith.constant 0 : index
    %228 = vector.load %arg4[%c32, %c0_56] : memref<176x128xf32, #tpu.memory_space<vmem>>, vector<1x128xf32>
    %c40 = arith.constant 40 : index
    %c0_57 = arith.constant 0 : index
    %229 = vector.load %arg4[%c40, %c0_57] : memref<176x128xf32, #tpu.memory_space<vmem>>, vector<128x128xf32>
    %c168 = arith.constant 168 : index
    %c0_58 = arith.constant 0 : index
    %230 = vector.load %arg4[%c168, %c0_58] : memref<176x128xf32, #tpu.memory_space<vmem>>, vector<1x128xf32>
    %cst_59 = arith.constant dense<0.000000e+00> : vector<256x128xf32>
    %231 = tpu.matmul %1, %227, %cst_59 {dimension_numbers = #tpu.dot_dimension_numbers<[1], [0], [0], [1], [0, 0, 1, 1], [], []>} : vector<256x32xf32>, vector<32x128xf32>, vector<256x128xf32> -> vector<256x128xf32>
    %c0_60 = arith.constant 0 : index
    %c0_61 = arith.constant 0 : index
    %c0_62 = arith.constant 0 : index
    %232 = vector.load %arg3[%c0_60, %c0_61, %c0_62] : memref<1x512x128xf32, #tpu.memory_space<vmem>>, vector<1x256x128xf32>
    %233 = vector.shape_cast %232 : vector<1x256x128xf32> to vector<256x128xf32>
    %cst_63 = arith.constant dense<0.000000e+00> : vector<256x128xf32>
    %234 = tpu.matmul %115, %233, %cst_63 {dimension_numbers = #tpu.dot_dimension_numbers<[1], [0], [0], [1], [0, 0, 1, 1], [], []>} : vector<256x256xf32>, vector<256x128xf32>, vector<256x128xf32> -> vector<256x128xf32>
    %235 = arith.addf %231, %234 : vector<256x128xf32>
    %c0_64 = arith.constant 0 : index
    %c256 = arith.constant 256 : index
    %c0_65 = arith.constant 0 : index
    %236 = vector.load %arg3[%c0_64, %c256, %c0_65] : memref<1x512x128xf32, #tpu.memory_space<vmem>>, vector<1x256x128xf32>
    %237 = vector.shape_cast %236 : vector<1x256x128xf32> to vector<256x128xf32>
    %cst_66 = arith.constant dense<0.000000e+00> : vector<256x128xf32>
    %238 = tpu.matmul %226, %237, %cst_66 {dimension_numbers = #tpu.dot_dimension_numbers<[1], [0], [0], [1], [0, 0, 1, 1], [], []>} : vector<256x256xf32>, vector<256x128xf32>, vector<256x128xf32> -> vector<256x128xf32>
    %239 = arith.addf %235, %238 : vector<256x128xf32>
    %240 = vector.broadcast %228 : vector<1x128xf32> to vector<256x128xf32>
    %241 = arith.addf %239, %240 : vector<256x128xf32>
    %cst_67 = arith.constant 0.000000e+00 : f32
    %242 = vector.broadcast %cst_67 : f32 to vector<256x128xf32>
    %243 = arith.maximumf %241, %242 : vector<256x128xf32>
    %cst_68 = arith.constant dense<0.000000e+00> : vector<256x128xf32>
    %244 = tpu.matmul %243, %229, %cst_68 {dimension_numbers = #tpu.dot_dimension_numbers<[1], [0], [0], [1], [0, 0, 1, 1], [], []>} : vector<256x128xf32>, vector<128x128xf32>, vector<256x128xf32> -> vector<256x128xf32>
    %245 = vector.broadcast %230 : vector<1x128xf32> to vector<256x128xf32>
    %246 = arith.addf %244, %245 : vector<256x128xf32>
    %247 = tpu.iota {dimensions = array<i32: 1>} : vector<256x128xi32>
    %cst_69 = arith.constant 5.000000e-01 : f32
    %248 = vector.broadcast %cst_69 : f32 to vector<256x128xf32>
    %249 = arith.mulf %248, %246 : vector<256x128xf32>
    %250 = math.tanh %249 : vector<256x128xf32>
    %cst_70 = arith.constant 1.000000e+00 : f32
    %251 = vector.broadcast %cst_70 : f32 to vector<256x128xf32>
    %252 = arith.addf %250, %251 : vector<256x128xf32>
    %cst_71 = arith.constant 5.000000e-01 : f32
    %253 = vector.broadcast %cst_71 : f32 to vector<256x128xf32>
    %254 = arith.mulf %253, %252 : vector<256x128xf32>
    %c75_i32 = arith.constant 75 : i32
    %255 = vector.broadcast %c75_i32 : i32 to vector<256x128xi32>
    %256 = arith.cmpi eq, %247, %255 : vector<256x128xi32>
    %257 = arith.select %256, %254, %246 : vector<256x128xi1>, vector<256x128xf32>
    %c0_72 = arith.constant 0 : index
    %c0_73 = arith.constant 0 : index
    %c0_74 = arith.constant 0 : index
    %258 = vector.load %arg5[%c0_72, %c0_73, %c0_74] : memref<1x256x128xf32, #tpu.memory_space<vmem>>, vector<1x256x128xf32>
    %259 = vector.shape_cast %258 : vector<1x256x128xf32> to vector<256x128xf32>
    %260 = vector.shape_cast %257 : vector<256x128xf32> to vector<1x256x128xf32>
    tpu.vector_store %arg5[%c0_72, %c0_73, %c0_74], %260 {strides = array<i32>} : memref<1x256x128xf32, #tpu.memory_space<vmem>>, vector<1x256x128xf32>,
    return
  }
  func.func @transform_0(%arg0: i32) -> (i32, i32, i32) {
    %c0_i32 = arith.constant 0 : i32
    %c0_i32_0 = arith.constant 0 : i32
    %c0_i32_1 = arith.constant 0 : i32
    return %arg0, %c0_i32, %c0_i32_0 : i32, i32, i32
  }
  func.func @transform_1(%arg0: i32) -> (i32, i32, i32) {
    %c0_i32 = arith.constant 0 : i32
    %c0_i32_0 = arith.constant 0 : i32
    %c0_i32_1 = arith.constant 0 : i32
    return %arg0, %c0_i32, %c0_i32_0 : i32, i32, i32
  }
  func.func @transform_2(%arg0: i32) -> (i32, i32, i32) {
    %c0_i32 = arith.constant 0 : i32
    %c0_i32_0 = arith.constant 0 : i32
    %c0_i32_1 = arith.constant 0 : i32
    return %arg0, %c0_i32, %c0_i32_0 : i32, i32, i32
  }
  func.func @transform_3(%arg0: i32) -> (i32, i32) {
    %c0_i32 = arith.constant 0 : i32
    %c0_i32_0 = arith.constant 0 : i32
    %c0_i32_1 = arith.constant 0 : i32
    return %c0_i32, %c0_i32_0 : i32, i32
  }
  func.func @transform_4(%arg0: i32) -> (i32, i32, i32) {
    %c0_i32 = arith.constant 0 : i32
    %c0_i32_0 = arith.constant 0 : i32
    %c0_i32_1 = arith.constant 0 : i32
    return %arg0, %c0_i32, %c0_i32_0 : i32, i32, i32
  }
}

</mosaic_0001>

<llo_original>
// kernel: mvfuse_forward.1
$region0: #{mvfuse_forward.1}
  #allocation0 [shape = 'u32[]', space=smem, size = 0x4, offset = 0x4, fixed_abs, tag = 'smem constant byte address 0x4 - core index']
  #allocation1 [shape = 'u32[72,128]{1,0:T(1,128)}', space=vmem, size = 0x9000, scoped, tag = 'internal scratch']
  %s0 = inlined_call_operand.vmem [shape: f32[2,256,32], index: 0, kind: input, shape index: {}]
  %s1 = inlined_call_operand.vmem [shape: f32[2,256,4], index: 1, kind: input, shape index: {}]
  %s2 = inlined_call_operand.vmem [shape: f32[2,512,128], index: 2, kind: input, shape index: {}]
  %s3 = inlined_call_operand.vmem [shape: f32[176,128], index: 3, kind: input, shape index: {}]
  %s4 = inlined_call_operand.vmem [shape: f32[2,256,128], index: 4, kind: output, shape index: {}]
  %s5 = sld [smem:[#allocation0]]
  $region49: #{mvfuse_forward.1} parent=0
    _
  %s7 = ssub.s32 1, %s5
  %s8 = scalar_select 0, %s7, %s5
  loop: start=0, step=1, limit=4
  $region2: #{mvfuse_forward.1} parent=0 // loop_pre_header
    _
  $region3: #{mvfuse_forward.1} parent=0 // loop_header
    %s10 = sphi 0, %s14
    %p11 = scmp.ge.s32.totalorder %s10, 4
    %s20 = sphi 0, %s22
    %s23 = sphi 0, %s20
    %s24 = sphi 0, %s23
    %s40 = sphi 0, %s24
    %s46 = sphi 0, %s48
    %s49 = sphi 0, %s46
    %s50 = sphi 0, %s49
    %s66 = sphi 0, %s50
    %s72 = sphi 0, %s74
    %s75 = sphi 0, %s72
    %s76 = sphi 0, %s75
    %s92 = sphi 0, %s76
    %s96 = sphi 0, %s96
    %s98 = sphi 0, %s96
    %s99 = sphi 0, %s98
    %s113 = sphi 0, %s99
    %s119 = sphi 0, %s121
    %s122 = sphi 0, %s119
    %s123 = sphi 0, %s122
    %s139 = sphi 0, %s123
  $region4: #{mvfuse_forward.1} parent=0 // loop_header_branch
    %13 = sbr.rel (%p11) target = $region8
  $region5: #{mvfuse_forward.1} parent=0 // loop_body
    %s15 = ssub.s32 %s10, 1
    %s16 = ssub.s32 %s10, 2
    %s17 = sadd.s32 %s10, 1
    %s18 = ssub.s32 %s10, %s17
    %p19 = scmp.eq.s32.totalorder %s18, 0
    %s21 = sadd.s32 %s20, 1
    %s22 = scalar_select %p19, %s20, %s21
    %p25 = pneg %p19
    %p26 = scmp.eq.s32.totalorder %s10, 1
    %p27 = por %p25, %p26
    %p28 = scmp.ne.s32.totalorder %s20, %s23
    %p29 = scmp.eq.s32.totalorder %s10, 0
    %p30 = por %p28, %p29
    %p31 = scmp.ne.s32.totalorder %s20, %s23
    %p32 = scmp.eq.s32.totalorder %s15, 1
    %p33 = por %p31, %p32
    %p34 = scmp.ne.s32.totalorder %s23, %s24
    %p35 = scmp.eq.s32.totalorder %s15, 0
    %p36 = por %p34, %p35
    %p37 = scmp.ne.s32.totalorder %s23, %s24
    %p38 = scmp.eq.s32.totalorder %s16, 1
    %p39 = por %p37, %p38
    %p41 = scmp.ne.s32.totalorder %s24, %s40
    %p42 = scmp.eq.s32.totalorder %s16, 0
    %p43 = por %p41, %p42
    %s44 = ssub.s32 %s10, %s17
    %p45 = scmp.eq.s32.totalorder %s44, 0
    %s47 = sadd.s32 %s46, 1
    %s48 = scalar_select %p45, %s46, %s47
    %p51 = pneg %p45
    %p52 = scmp.eq.s32.totalorder %s10, 1
    %p53 = por %p51, %p52
    %p54 = scmp.ne.s32.totalorder %s46, %s49
    %p55 = scmp.eq.s32.totalorder %s10, 0
    %p56 = por %p54, %p55
    %p57 = scmp.ne.s32.totalorder %s46, %s49
    %p58 = scmp.eq.s32.totalorder %s15, 1
    %p59 = por %p57, %p58
    %p60 = scmp.ne.s32.totalorder %s49, %s50
    %p61 = scmp.eq.s32.totalorder %s15, 0
    %p62 = por %p60, %p61
    %p63 = scmp.ne.s32.totalorder %s49, %s50
    %p64 = scmp.eq.s32.totalorder %s16, 1
    %p65 = por %p63, %p64
    %p67 = scmp.ne.s32.totalorder %s50, %s66
    %p68 = scmp.eq.s32.totalorder %s16, 0
    %p69 = por %p67, %p68
    %s70 = ssub.s32 %s10, %s17
    %p71 = scmp.eq.s32.totalorder %s70, 0
    %s73 = sadd.s32 %s72, 1
    %s74 = scalar_select %p71, %s72, %s73
    %p77 = pneg %p71
    %p78 = scmp.eq.s32.totalorder %s10, 1
    %p79 = por %p77, %p78
    %p80 = scmp.ne.s32.totalorder %s72, %s75
    %p81 = scmp.eq.s32.totalorder %s10, 0
    %p82 = por %p80, %p81
    %p83 = scmp.ne.s32.totalorder %s72, %s75
    %p84 = scmp.eq.s32.totalorder %s15, 1
    %p85 = por %p83, %p84
    %p86 = scmp.ne.s32.totalorder %s75, %s76
    %p87 = scmp.eq.s32.totalorder %s15, 0
    %p88 = por %p86, %p87
    %p89 = scmp.ne.s32.totalorder %s75, %s76
    %p90 = scmp.eq.s32.totalorder %s16, 1
    %p91 = por %p89, %p90
    %p93 = scmp.ne.s32.totalorder %s76, %s92
    %p94 = scmp.eq.s32.totalorder %s16, 0
    %p95 = por %p93, %p94
    %s97 = sadd.s32 %s96, 1
    %p100 = scmp.eq.s32.totalorder %s10, 1
    %p101 = scmp.ne.s32.totalorder %s96, %s98
    %p102 = scmp.eq.s32.totalorder %s10, 0
    %p103 = por %p101, %p102
    %p104 = scmp.ne.s32.totalorder %s96, %s98
    %p105 = scmp.eq.s32.totalorder %s15, 1
    %p106 = por %p104, %p105
    %p107 = scmp.ne.s32.totalorder %s98, %s99
    %p108 = scmp.eq.s32.totalorder %s15, 0
    %p109 = por %p107, %p108
    %p110 = scmp.ne.s32.totalorder %s98, %s99
    %p111 = scmp.eq.s32.totalorder %s16, 1
    %p112 = por %p110, %p111
    %p114 = scmp.ne.s32.totalorder %s99, %s113
    %p115 = scmp.eq.s32.totalorder %s16, 0
    %p116 = por %p114, %p115
    %s117 = ssub.s32 %s10, %s17
    %p118 = scmp.eq.s32.totalorder %s117, 0
    %s120 = sadd.s32 %s119, 1
    %s121 = scalar_select %p118, %s119, %s120
    %p124 = pneg %p118
    %p125 = scmp.eq.s32.totalorder %s10, 1
    %p126 = por %p124, %p125
    %p127 = scmp.ne.s32.totalorder %s119, %s122
    %p128 = scmp.eq.s32.totalorder %s10, 0
    %p129 = por %p127, %p128
    %p130 = scmp.ne.s32.totalorder %s119, %s122
    %p131 = scmp.eq.s32.totalorder %s15, 1
    %p132 = por %p130, %p131
    %p133 = scmp.ne.s32.totalorder %s122, %s123
    %p134 = scmp.eq.s32.totalorder %s15, 0
    %p135 = por %p133, %p134
    %p136 = scmp.ne.s32.totalorder %s122, %s123
    %p137 = scmp.eq.s32.totalorder %s16, 1
    %p138 = por %p136, %p137
    %p140 = scmp.ne.s32.totalorder %s123, %s139
    %p141 = scmp.eq.s32.totalorder %s16, 0
    %p142 = por %p140, %p141
    %p143 = scmp.le.s32.totalorder 1, %s10
    %p144 = scmp.lt.s32.totalorder %s10, 3
    %p145 = pnand %p143, %p144
    %p146 = pneg %p145
    // Predicated region
    $region9: #{mvfuse_forward.1} parent=5 // pred_check
      _
    $region10: #{mvfuse_forward.1} parent=5 // pred_check_branch
      %148 = sbr.rel (%p145) target = $region12
    $region11: #{mvfuse_forward.1} parent=5 // pred_region
      %s149 = ssub.s32 %s10, 1
      // Predicated region
      $region13: #{mvfuse_forward.1} parent=11 // pred_check
        %p150 = pneg %p109
      $region14: #{mvfuse_forward.1} parent=11 // pred_check_branch
        %152 = sbr.rel (%p150) target = $region16
      $region15: #{mvfuse_forward.1} parent=11 // pred_region
        _
      $region16: #{mvfuse_forward.1} parent=11 // pred_fallthru
        _
    $region12: #{mvfuse_forward.1} parent=5 // pred_fallthru
      _
    %p153 = scmp.lt.s32.totalorder %s10, 2
    // Predicated region
    $region17: #{mvfuse_forward.1} parent=5 // pred_check
      %p154 = pneg %p153
    $region18: #{mvfuse_forward.1} parent=5 // pred_check_branch
      %156 = sbr.rel (%p154) target = $region20
    $region19: #{mvfuse_forward.1} parent=5 // pred_region
      // Predicated region
      $region21: #{mvfuse_forward.1} parent=19 // pred_check
        %p157 = pneg %p30
      $region22: #{mvfuse_forward.1} parent=19 // pred_check_branch
        %159 = sbr.rel (%p157) target = $region24
      $region23: #{mvfuse_forward.1} parent=19 // pred_region
        %p160 = scmp.lt.s32.totalorder %s10, 1
        %s161 = scalar_select %p160, %s10, 1
        %s162 = smul.addr %s161, 32
        %s163 = smul.addr %s162, 8
        %s164 = scalar_lea.vmem %s0, %s163
      $region24: #{mvfuse_forward.1} parent=19 // pred_fallthru
        _
      // Predicated region
      $region25: #{mvfuse_forward.1} parent=19 // pred_check
        %p165 = pneg %p56
      $region26: #{mvfuse_forward.1} parent=19 // pred_check_branch
        %167 = sbr.rel (%p165) target = $region28
      $region27: #{mvfuse_forward.1} parent=19 // pred_region
        %p168 = scmp.lt.s32.totalorder %s10, 1
        %s169 = scalar_select %p168, %s10, 1
        %s170 = smul.addr %s169, 32
        %s171 = smul.addr %s170, 8
        %s172 = scalar_lea.vmem %s1, %s171
      $region28: #{mvfuse_forward.1} parent=19 // pred_fallthru
        _
      // Predicated region
      $region29: #{mvfuse_forward.1} parent=19 // pred_check
        %p173 = pneg %p82
      $region30: #{mvfuse_forward.1} parent=19 // pred_check_branch
        %175 = sbr.rel (%p173) target = $region32
      $region31: #{mvfuse_forward.1} parent=19 // pred_region
        %p176 = scmp.lt.s32.totalorder %s10, 1
        %s177 = scalar_select %p176, %s10, 1
        %s178 = smul.addr %s177, 64
        %s179 = smul.addr %s178, 8
        %s180 = scalar_lea.vmem %s2, %s179
      $region32: #{mvfuse_forward.1} parent=19 // pred_fallthru
        _
    $region20: #{mvfuse_forward.1} parent=5 // pred_fallthru
      _
    %p181 = scmp.le.s32.totalorder 1, %s10
    %p182 = scmp.lt.s32.totalorder %s10, 3
    %p183 = pnand %p181, %p182
    %p184 = pneg %p183
    // Predicated region
    $region33: #{mvfuse_forward.1} parent=5 // pred_check
      _
    $region34: #{mvfuse_forward.1} parent=5 // pred_check_branch
      %186 = sbr.rel (%p183) target = $region36
    $region35: #{mvfuse_forward.1} parent=5 // pred_region
      %s187 = ssub.s32 %s10, 1
      %p188 = scmp.lt.s32.totalorder %s15, 1
      %s189 = scalar_select %p188, %s15, 1
      %s190 = smul.addr %s189, 32
      %s191 = smul.addr %s190, 8
      %s192 = scalar_lea.vmem %s0, %s191
      %p193 = pneg %p36
      %p194 = pneg %p33
      %p195 = scmp.lt.s32.totalorder %s15, 1
      %s196 = scalar_select %p195, %s15, 1
      %s197 = smul.addr %s196, 32
      %s198 = smul.addr %s197, 8
      %s199 = scalar_lea.vmem %s1, %s198
      %p200 = pneg %p62
      %p201 = pneg %p59
      %p202 = scmp.lt.s32.totalorder %s15, 1
      %s203 = scalar_select %p202, %s15, 1
      %s204 = smul.addr %s203, 64
      %s205 = smul.addr %s204, 8
      %s206 = scalar_lea.vmem %s2, %s205
      %p207 = pneg %p88
      %p208 = pneg %p85
      %p209 = pneg %p109
      %p210 = pneg %p106
      %p211 = pneg %p135
      %p212 = pneg %p132
      %p213 = scmp.lt.s32.totalorder %s15, 1
      %s214 = scalar_select %p213, %s15, 1
      %s215 = smul.addr %s214, 32
      %s216 = smul.addr %s215, 8
      %s217 = scalar_lea.vmem %s4, %s216
      %p218 = scmp.lt.s32.totalorder %s15, 1
      %s219 = scalar_select %p218, %s15, 1
      %s220 = smul.addr %s219, 32
      %s221 = smul.addr %s220, 8
      %s222 = scalar_lea.vmem %s0, %s221
      %p223 = scmp.lt.s32.totalorder %s15, 1
      %s224 = scalar_select %p223, %s15, 1
      %s225 = smul.addr %s224, 32
      %s226 = smul.addr %s225, 8
      %s227 = scalar_lea.vmem %s1, %s226
      %p228 = scmp.lt.s32.totalorder %s15, 1
      %s229 = scalar_select %p228, %s15, 1
      %s230 = smul.addr %s229, 64
      %s231 = smul.addr %s230, 8
      %s232 = scalar_lea.vmem %s2, %s231
      %p233 = scmp.lt.s32.totalorder %s15, 1
      %s234 = scalar_select %p233, %s15, 1
      %s235 = smul.addr %s234, 32
      %s236 = smul.addr %s235, 8
      %s237 = scalar_lea.vmem %s4, %s236
      %v238 = vld [vmem:[%s222] sm:$0xff]
      %v239 = vld [vmem:[%s222 + $0x8] sm:$0xff]
      %v240 = vld [vmem:[%s222 + $0x10] sm:$0xff]
      %v241 = vld [vmem:[%s222 + $0x18] sm:$0xff]
      %v242 = vld [vmem:[%s222 + $0x20] sm:$0xff]
      %v243 = vld [vmem:[%s222 + $0x28] sm:$0xff]
      %v244 = vld [vmem:[%s222 + $0x30] sm:$0xff]
      %v245 = vld [vmem:[%s222 + $0x38] sm:$0xff]
      %v246 = vld [vmem:[%s222 + $0x40] sm:$0xff]
      %v247 = vld [vmem:[%s222 + $0x48] sm:$0xff]
      %v248 = vld [vmem:[%s222 + $0x50] sm:$0xff]
      %v249 = vld [vmem:[%s222 + $0x58] sm:$0xff]
      %v250 = vld [vmem:[%s222 + $0x60] sm:$0xff]
      %v251 = vld [vmem:[%s222 + $0x68] sm:$0xff]
      %v252 = vld [vmem:[%s222 + $0x70] sm:$0xff]
      %v253 = vld [vmem:[%s222 + $0x78] sm:$0xff]
      %v254 = vld [vmem:[%s222 + $0x80] sm:$0xff]
      %v255 = vld [vmem:[%s222 + $0x88] sm:$0xff]
      %v256 = vld [vmem:[%s222 + $0x90] sm:$0xff]
      %v257 = vld [vmem:[%s222 + $0x98] sm:$0xff]
      %v258 = vld [vmem:[%s222 + $0xa0] sm:$0xff]
      %v259 = vld [vmem:[%s222 + $0xa8] sm:$0xff]
      %v260 = vld [vmem:[%s222 + $0xb0] sm:$0xff]
      %v261 = vld [vmem:[%s222 + $0xb8] sm:$0xff]
      %v262 = vld [vmem:[%s222 + $0xc0] sm:$0xff]
      %v263 = vld [vmem:[%s222 + $0xc8] sm:$0xff]
      %v264 = vld [vmem:[%s222 + $0xd0] sm:$0xff]
      %v265 = vld [vmem:[%s222 + $0xd8] sm:$0xff]
      %v266 = vld [vmem:[%s222 + $0xe0] sm:$0xff]
      %v267 = vld [vmem:[%s222 + $0xe8] sm:$0xff]
      %v268 = vld [vmem:[%s222 + $0xf0] sm:$0xff]
      %v269 = vld [vmem:[%s222 + $0xf8] sm:$0xff]
      %v270 = vld [vmem:[%s227] sm:$0xff]
      %v271 = vld [vmem:[%s227 + $0x8] sm:$0xff]
      %v272 = vld [vmem:[%s227 + $0x10] sm:$0xff]
      %v273 = vld [vmem:[%s227 + $0x18] sm:$0xff]
      %v274 = vld [vmem:[%s227 + $0x20] sm:$0xff]
      %v275 = vld [vmem:[%s227 + $0x28] sm:$0xff]
      %v276 = vld [vmem:[%s227 + $0x30] sm:$0xff]
      %v277 = vld [vmem:[%s227 + $0x38] sm:$0xff]
      %v278 = vld [vmem:[%s227 + $0x40] sm:$0xff]
      %v279 = vld [vmem:[%s227 + $0x48] sm:$0xff]
      %v280 = vld [vmem:[%s227 + $0x50] sm:$0xff]
      %v281 = vld [vmem:[%s227 + $0x58] sm:$0xff]
      %v282 = vld [vmem:[%s227 + $0x60] sm:$0xff]
      %v283 = vld [vmem:[%s227 + $0x68] sm:$0xff]
      %v284 = vld [vmem:[%s227 + $0x70] sm:$0xff]
      %v285 = vld [vmem:[%s227 + $0x78] sm:$0xff]
      %v286 = vld [vmem:[%s227 + $0x80] sm:$0xff]
      %v287 = vld [vmem:[%s227 + $0x88] sm:$0xff]
      %v288 = vld [vmem:[%s227 + $0x90] sm:$0xff]
      %v289 = vld [vmem:[%s227 + $0x98] sm:$0xff]
      %v290 = vld [vmem:[%s227 + $0xa0] sm:$0xff]
      %v291 = vld [vmem:[%s227 + $0xa8] sm:$0xff]
      %v292 = vld [vmem:[%s227 + $0xb0] sm:$0xff]
      %v293 = vld [vmem:[%s227 + $0xb8] sm:$0xff]
      %v294 = vld [vmem:[%s227 + $0xc0] sm:$0xff]
      %v295 = vld [vmem:[%s227 + $0xc8] sm:$0xff]
      %v296 = vld [vmem:[%s227 + $0xd0] sm:$0xff]
      %v297 = vld [vmem:[%s227 + $0xd8] sm:$0xff]
      %v298 = vld [vmem:[%s227 + $0xe0] sm:$0xff]
      %v299 = vld [vmem:[%s227 + $0xe8] sm:$0xff]
      %v300 = vld [vmem:[%s227 + $0xf0] sm:$0xff]
      %v301 = vld [vmem:[%s227 + $0xf8] sm:$0xff]
      %v302 = vlaneseq
      %v303 = vand.u32 %v302, 127
      %v304 = vadd.s32 %v303, 128
      %v305 = vfloor.f32 %v270
      %v306 = vfloor.f32 %v271
      %v307 = vfloor.f32 %v272
      %v308 = vfloor.f32 %v273
      %v309 = vfloor.f32 %v274
      %v310 = vfloor.f32 %v275
      %v311 = vfloor.f32 %v276
      %v312 = vfloor.f32 %v277
      %v313 = vfloor.f32 %v278
      %v314 = vfloor.f32 %v279
      %v315 = vfloor.f32 %v280
      %v316 = vfloor.f32 %v281
      %v317 = vfloor.f32 %v282
      %v318 = vfloor.f32 %v283
      %v319 = vfloor.f32 %v284
      %v320 = vfloor.f32 %v285
      %v321 = vfloor.f32 %v286
      %v322 = vfloor.f32 %v287
      %v323 = vfloor.f32 %v288
      %v324 = vfloor.f32 %v289
      %v325 = vfloor.f32 %v290
      %v326 = vfloor.f32 %v291
      %v327 = vfloor.f32 %v292
      %v328 = vfloor.f32 %v293
      %v329 = vfloor.f32 %v294
      %v330 = vfloor.f32 %v295
      %v331 = vfloor.f32 %v296
      %v332 = vfloor.f32 %v297
      %v333 = vfloor.f32 %v298
      %v334 = vfloor.f32 %v299
      %v335 = vfloor.f32 %v300
      %v336 = vfloor.f32 %v301
      %v337 = vsub.f32 %v270, %v305
      %v338 = vsub.f32 %v271, %v306
      %v339 = vsub.f32 %v272, %v307
      %v340 = vsub.f32 %v273, %v308
      %v341 = vsub.f32 %v274, %v309
      %v342 = vsub.f32 %v275, %v310
      %v343 = vsub.f32 %v276, %v311
      %v344 = vsub.f32 %v277, %v312
      %v345 = vsub.f32 %v278, %v313
      %v346 = vsub.f32 %v279, %v314
      %v347 = vsub.f32 %v280, %v315
      %v348 = vsub.f32 %v281, %v316
      %v349 = vsub.f32 %v282, %v317
      %v350 = vsub.f32 %v283, %v318
      %v351 = vsub.f32 %v284, %v319
      %v352 = vsub.f32 %v285, %v320
      %v353 = vsub.f32 %v286, %v321
      %v354 = vsub.f32 %v287, %v322
      %v355 = vsub.f32 %v288, %v323
      %v356 = vsub.f32 %v289, %v324
      %v357 = vsub.f32 %v290, %v325
      %v358 = vsub.f32 %v291, %v326
      %v359 = vsub.f32 %v292, %v327
      %v360 = vsub.f32 %v293, %v328
      %v361 = vsub.f32 %v294, %v329
      %v362 = vsub.f32 %v295, %v330
      %v363 = vsub.f32 %v296, %v331
      %v364 = vsub.f32 %v297, %v332
      %v365 = vsub.f32 %v298, %v333
      %v366 = vsub.f32 %v299, %v334
      %v367 = vsub.f32 %v300, %v335
      %v368 = vsub.f32 %v301, %v336
      %v369 = vsub.f32 1.0, %v337
      %v370 = vsub.f32 1.0, %v338
      %v371 = vsub.f32 1.0, %v339
      %v372 = vsub.f32 1.0, %v340
      %v373 = vsub.f32 1.0, %v341
      %v374 = vsub.f32 1.0, %v342
      %v375 = vsub.f32 1.0, %v343
      %v376 = vsub.f32 1.0, %v344
      %v377 = vsub.f32 1.0, %v345
      %v378 = vsub.f32 1.0, %v346
      %v379 = vsub.f32 1.0, %v347
      %v380 = vsub.f32 1.0, %v348
      %v381 = vsub.f32 1.0, %v349
      %v382 = vsub.f32 1.0, %v350
      %v383 = vsub.f32 1.0, %v351
      %v384 = vsub.f32 1.0, %v352
      %v385 = vsub.f32 1.0, %v353
      %v386 = vsub.f32 1.0, %v354
      %v387 = vsub.f32 1.0, %v355
      %v388 = vsub.f32 1.0, %v356
      %v389 = vsub.f32 1.0, %v357
      %v390 = vsub.f32 1.0, %v358
      %v391 = vsub.f32 1.0, %v359
      %v392 = vsub.f32 1.0, %v360
      %v393 = vsub.f32 1.0, %v361
      %v394 = vsub.f32 1.0, %v362
      %v395 = vsub.f32 1.0, %v363
      %v396 = vsub.f32 1.0, %v364
      %v397 = vsub.f32 1.0, %v365
      %v398 = vsub.f32 1.0, %v366
      %v399 = vsub.f32 1.0, %v367
      %v400 = vsub.f32 1.0, %v368
      %v401 = vcvt.f32.s32.to.zero.pseudo %v305
      %v402 = vcvt.f32.s32.to.zero.pseudo %v306
      %v403 = vcvt.f32.s32.to.zero.pseudo %v307
      %v404 = vcvt.f32.s32.to.zero.pseudo %v308
      %v405 = vcvt.f32.s32.to.zero.pseudo %v309
      %v406 = vcvt.f32.s32.to.zero.pseudo %v310
      %v407 = vcvt.f32.s32.to.zero.pseudo %v311
      %v408 = vcvt.f32.s32.to.zero.pseudo %v312
      %v409 = vcvt.f32.s32.to.zero.pseudo %v313
      %v410 = vcvt.f32.s32.to.zero.pseudo %v314
      %v411 = vcvt.f32.s32.to.zero.pseudo %v315
      %v412 = vcvt.f32.s32.to.zero.pseudo %v316
      %v413 = vcvt.f32.s32.to.zero.pseudo %v317
      %v414 = vcvt.f32.s32.to.zero.pseudo %v318
      %v415 = vcvt.f32.s32.to.zero.pseudo %v319
      %v416 = vcvt.f32.s32.to.zero.pseudo %v320
      %v417 = vcvt.f32.s32.to.zero.pseudo %v321
      %v418 = vcvt.f32.s32.to.zero.pseudo %v322
      %v419 = vcvt.f32.s32.to.zero.pseudo %v323
      %v420 = vcvt.f32.s32.to.zero.pseudo %v324
      %v421 = vcvt.f32.s32.to.zero.pseudo %v325
      %v422 = vcvt.f32.s32.to.zero.pseudo %v326
      %v423 = vcvt.f32.s32.to.zero.pseudo %v327
      %v424 = vcvt.f32.s32.to.zero.pseudo %v328
      %v425 = vcvt.f32.s32.to.zero.pseudo %v329
      %v426 = vcvt.f32.s32.to.zero.pseudo %v330
      %v427 = vcvt.f32.s32.to.zero.pseudo %v331
      %v428 = vcvt.f32.s32.to.zero.pseudo %v332
      %v429 = vcvt.f32.s32.to.zero.pseudo %v333
      %v430 = vcvt.f32.s32.to.zero.pseudo %v334
      %v431 = vcvt.f32.s32.to.zero.pseudo %v335
      %v432 = vcvt.f32.s32.to.zero.pseudo %v336
      %v433 = vadd.s32 %v401, 1
      %v434 = vadd.s32 %v402, 1
      %v435 = vadd.s32 %v403, 1
      %v436 = vadd.s32 %v404, 1
      %v437 = vadd.s32 %v405, 1
      %v438 = vadd.s32 %v406, 1
      %v439 = vadd.s32 %v407, 1
      %v440 = vadd.s32 %v408, 1
      %v441 = vadd.s32 %v409, 1
      %v442 = vadd.s32 %v410, 1
      %v443 = vadd.s32 %v411, 1
      %v444 = vadd.s32 %v412, 1
      %v445 = vadd.s32 %v413, 1
      %v446 = vadd.s32 %v414, 1
      %v447 = vadd.s32 %v415, 1
      %v448 = vadd.s32 %v416, 1
      %v449 = vadd.s32 %v417, 1
      %v450 = vadd.s32 %v418, 1
      %v451 = vadd.s32 %v419, 1
      %v452 = vadd.s32 %v420, 1
      %v453 = vadd.s32 %v421, 1
      %v454 = vadd.s32 %v422, 1
      %v455 = vadd.s32 %v423, 1
      %v456 = vadd.s32 %v424, 1
      %v457 = vadd.s32 %v425, 1
      %v458 = vadd.s32 %v426, 1
      %v459 = vadd.s32 %v427, 1
      %v460 = vadd.s32 %v428, 1
      %v461 = vadd.s32 %v429, 1
      %v462 = vadd.s32 %v430, 1
      %v463 = vadd.s32 %v431, 1
      %v464 = vadd.s32 %v432, 1
      %497 = vrot.lane.b32.xlu0 %v369, 127
      %v498 = vpop.permute.xlu0 %497
      %499 = vrot.lane.b32.xlu0 %v370, 127
      %v500 = vpop.permute.xlu0 %499
      %501 = vrot.lane.b32.xlu0 %v371, 127
      %v502 = vpop.permute.xlu0 %501
      %503 = vrot.lane.b32.xlu0 %v372, 127
      %v504 = vpop.permute.xlu0 %503
      %505 = vrot.lane.b32.xlu0 %v373, 127
      %v506 = vpop.permute.xlu0 %505
      %507 = vrot.lane.b32.xlu0 %v374, 127
      %v508 = vpop.permute.xlu0 %507
      %509 = vrot.lane.b32.xlu0 %v375, 127
      %v510 = vpop.permute.xlu0 %509
      %511 = vrot.lane.b32.xlu0 %v376, 127
      %v512 = vpop.permute.xlu0 %511
      %513 = vrot.lane.b32.xlu0 %v377, 127
      %v514 = vpop.permute.xlu0 %513
      %515 = vrot.lane.b32.xlu0 %v378, 127
      %v516 = vpop.permute.xlu0 %515
      %517 = vrot.lane.b32.xlu0 %v379, 127
      %v518 = vpop.permute.xlu0 %517
      %519 = vrot.lane.b32.xlu0 %v380, 127
      %v520 = vpop.permute.xlu0 %519
      %521 = vrot.lane.b32.xlu0 %v381, 127
      %v522 = vpop.permute.xlu0 %521
      %523 = vrot.lane.b32.xlu0 %v382, 127
      %v524 = vpop.permute.xlu0 %523
      %525 = vrot.lane.b32.xlu0 %v383, 127
      %v526 = vpop.permute.xlu0 %525
      %527 = vrot.lane.b32.xlu0 %v384, 127
      %v528 = vpop.permute.xlu0 %527
      %529 = vrot.lane.b32.xlu0 %v385, 127
      %v530 = vpop.permute.xlu0 %529
      %531 = vrot.lane.b32.xlu0 %v386, 127
      %v532 = vpop.permute.xlu0 %531
      %533 = vrot.lane.b32.xlu0 %v387, 127
      %v534 = vpop.permute.xlu0 %533
      %535 = vrot.lane.b32.xlu0 %v388, 127
      %v536 = vpop.permute.xlu0 %535
      %537 = vrot.lane.b32.xlu0 %v389, 127
      %v538 = vpop.permute.xlu0 %537
      %539 = vrot.lane.b32.xlu0 %v390, 127
      %v540 = vpop.permute.xlu0 %539
      %541 = vrot.lane.b32.xlu0 %v391, 127
      %v542 = vpop.permute.xlu0 %541
      %543 = vrot.lane.b32.xlu0 %v392, 127
      %v544 = vpop.permute.xlu0 %543
      %545 = vrot.lane.b32.xlu0 %v393, 127
      %v546 = vpop.permute.xlu0 %545
      %547 = vrot.lane.b32.xlu0 %v394, 127
      %v548 = vpop.permute.xlu0 %547
      %549 = vrot.lane.b32.xlu0 %v395, 127
      %v550 = vpop.permute.xlu0 %549
      %551 = vrot.lane.b32.xlu0 %v396, 127
      %v552 = vpop.permute.xlu0 %551
      %553 = vrot.lane.b32.xlu0 %v397, 127
      %v554 = vpop.permute.xlu0 %553
      %555 = vrot.lane.b32.xlu0 %v398, 127
      %v556 = vpop.permute.xlu0 %555
      %557 = vrot.lane.b32.xlu0 %v399, 127
      %v558 = vpop.permute.xlu0 %557
      %559 = vrot.lane.b32.xlu0 %v400, 127
      %v560 = vpop.permute.xlu0 %559
      %v593 = vmul.f32 %v369, %v498
      %v594 = vmul.f32 %v370, %v500
      %v595 = vmul.f32 %v371, %v502
      %v596 = vmul.f32 %v372, %v504
      %v597 = vmul.f32 %v373, %v506
      %v598 = vmul.f32 %v374, %v508
      %v599 = vmul.f32 %v375, %v510
      %v600 = vmul.f32 %v376, %v512
      %v601 = vmul.f32 %v377, %v514
      %v602 = vmul.f32 %v378, %v516
      %v603 = vmul.f32 %v379, %v518
      %v604 = vmul.f32 %v380, %v520
      %v605 = vmul.f32 %v381, %v522
      %v606 = vmul.f32 %v382, %v524
      %v607 = vmul.f32 %v383, %v526
      %v608 = vmul.f32 %v384, %v528
      %v609 = vmul.f32 %v385, %v530
      %v610 = vmul.f32 %v386, %v532
      %v611 = vmul.f32 %v387, %v534
      %v612 = vmul.f32 %v388, %v536
      %v613 = vmul.f32 %v389, %v538
      %v614 = vmul.f32 %v390, %v540
      %v615 = vmul.f32 %v391, %v542
      %v616 = vmul.f32 %v392, %v544
      %v617 = vmul.f32 %v393, %v546
      %v618 = vmul.f32 %v394, %v548
      %v619 = vmul.f32 %v395, %v550
      %v620 = vmul.f32 %v396, %v552
      %v621 = vmul.f32 %v397, %v554
      %v622 = vmul.f32 %v398, %v556
      %v623 = vmul.f32 %v399, %v558
      %v624 = vmul.f32 %v400, %v560
      %vm625 = vcmp.ge.s32.totalorder %v401, 0
      %vm626 = vcmp.ge.s32.totalorder %v402, 0
      %vm627 = vcmp.ge.s32.totalorder %v403, 0
      %vm628 = vcmp.ge.s32.totalorder %v404, 0
      %vm629 = vcmp.ge.s32.totalorder %v405, 0
      %vm630 = vcmp.ge.s32.totalorder %v406, 0
      %vm631 = vcmp.ge.s32.totalorder %v407, 0
      %vm632 = vcmp.ge.s32.totalorder %v408, 0
      %vm633 = vcmp.ge.s32.totalorder %v409, 0
      %vm634 = vcmp.ge.s32.totalorder %v410, 0
      %vm635 = vcmp.ge.s32.totalorder %v411, 0
      %vm636 = vcmp.ge.s32.totalorder %v412, 0
      %vm637 = vcmp.ge.s32.totalorder %v413, 0
      %vm638 = vcmp.ge.s32.totalorder %v414, 0
      %vm639 = vcmp.ge.s32.totalorder %v415, 0
      %vm640 = vcmp.ge.s32.totalorder %v416, 0
      %vm641 = vcmp.ge.s32.totalorder %v417, 0
      %vm642 = vcmp.ge.s32.totalorder %v418, 0
      %vm643 = vcmp.ge.s32.totalorder %v419, 0
      %vm644 = vcmp.ge.s32.totalorder %v420, 0
      %vm645 = vcmp.ge.s32.totalorder %v421, 0
      %vm646 = vcmp.ge.s32.totalorder %v422, 0
      %vm647 = vcmp.ge.s32.totalorder %v423, 0
      %vm648 = vcmp.ge.s32.totalorder %v424, 0
      %vm649 = vcmp.ge.s32.totalorder %v425, 0
      %vm650 = vcmp.ge.s32.totalorder %v426, 0
      %vm651 = vcmp.ge.s32.totalorder %v427, 0
      %vm652 = vcmp.ge.s32.totalorder %v428, 0
      %vm653 = vcmp.ge.s32.totalorder %v429, 0
      %vm654 = vcmp.ge.s32.totalorder %v430, 0
      %vm655 = vcmp.ge.s32.totalorder %v431, 0
      %vm656 = vcmp.ge.s32.totalorder %v432, 0
      %vm657 = vcmp.lt.s32.totalorder %v401, 16
      %vm658 = vcmp.lt.s32.totalorder %v402, 16
      %vm659 = vcmp.lt.s32.totalorder %v403, 16
      %vm660 = vcmp.lt.s32.totalorder %v404, 16
      %vm661 = vcmp.lt.s32.totalorder %v405, 16
      %vm662 = vcmp.lt.s32.totalorder %v406, 16
      %vm663 = vcmp.lt.s32.totalorder %v407, 16
      %vm664 = vcmp.lt.s32.totalorder %v408, 16
      %vm665 = vcmp.lt.s32.totalorder %v409, 16
      %vm666 = vcmp.lt.s32.totalorder %v410, 16
      %vm667 = vcmp.lt.s32.totalorder %v411, 16
      %vm668 = vcmp.lt.s32.totalorder %v412, 16
      %vm669 = vcmp.lt.s32.totalorder %v413, 16
      %vm670 = vcmp.lt.s32.totalorder %v414, 16
      %vm671 = vcmp.lt.s32.totalorder %v415, 16
      %vm672 = vcmp.lt.s32.totalorder %v416, 16
      %vm673 = vcmp.lt.s32.totalorder %v417, 16
      %vm674 = vcmp.lt.s32.totalorder %v418, 16
      %vm675 = vcmp.lt.s32.totalorder %v419, 16
      %vm676 = vcmp.lt.s32.totalorder %v420, 16
      %vm677 = vcmp.lt.s32.totalorder %v421, 16
      %vm678 = vcmp.lt.s32.totalorder %v422, 16
      %vm679 = vcmp.lt.s32.totalorder %v423, 16
      %vm680 = vcmp.lt.s32.totalorder %v424, 16
      %vm681 = vcmp.lt.s32.totalorder %v425, 16
      %vm682 = vcmp.lt.s32.totalorder %v426, 16
      %vm683 = vcmp.lt.s32.totalorder %v427, 16
      %vm684 = vcmp.lt.s32.totalorder %v428, 16
      %vm685 = vcmp.lt.s32.totalorder %v429, 16
      %vm686 = vcmp.lt.s32.totalorder %v430, 16
      %vm687 = vcmp.lt.s32.totalorder %v431, 16
      %vm688 = vcmp.lt.s32.totalorder %v432, 16
      %vm689 = vmand %vm625, %vm657
      %vm690 = vmand %vm626, %vm658
      %vm691 = vmand %vm627, %vm659
      %vm692 = vmand %vm628, %vm660
      %vm693 = vmand %vm629, %vm661
      %vm694 = vmand %vm630, %vm662
      %vm695 = vmand %vm631, %vm663
      %vm696 = vmand %vm632, %vm664
      %vm697 = vmand %vm633, %vm665
      %vm698 = vmand %vm634, %vm666
      %vm699 = vmand %vm635, %vm667
      %vm700 = vmand %vm636, %vm668
      %vm701 = vmand %vm637, %vm669
      %vm702 = vmand %vm638, %vm670
      %vm703 = vmand %vm639, %vm671
      %vm704 = vmand %vm640, %vm672
      %vm705 = vmand %vm641, %vm673
      %vm706 = vmand %vm642, %vm674
      %vm707 = vmand %vm643, %vm675
      %vm708 = vmand %vm644, %vm676
      %vm709 = vmand %vm645, %vm677
      %vm710 = vmand %vm646, %vm678
      %vm711 = vmand %vm647, %vm679
      %vm712 = vmand %vm648, %vm680
      %vm713 = vmand %vm649, %vm681
      %vm714 = vmand %vm650, %vm682
      %vm715 = vmand %vm651, %vm683
      %vm716 = vmand %vm652, %vm684
      %vm717 = vmand %vm653, %vm685
      %vm718 = vmand %vm654, %vm686
      %vm719 = vmand %vm655, %vm687
      %vm720 = vmand %vm656, %vm688
      %v721 = vsel %vm625, 1, 0
      %v722 = vsel %vm626, 1, 0
      %v723 = vsel %vm627, 1, 0
      %v724 = vsel %vm628, 1, 0
      %v725 = vsel %vm629, 1, 0
      %v726 = vsel %vm630, 1, 0
      %v727 = vsel %vm631, 1, 0
      %v728 = vsel %vm632, 1, 0
      %v729 = vsel %vm633, 1, 0
      %v730 = vsel %vm634, 1, 0
      %v731 = vsel %vm635, 1, 0
      %v732 = vsel %vm636, 1, 0
      %v733 = vsel %vm637, 1, 0
      %v734 = vsel %vm638, 1, 0
      %v735 = vsel %vm639, 1, 0
      %v736 = vsel %vm640, 1, 0
      %v737 = vsel %vm641, 1, 0
      %v738 = vsel %vm642, 1, 0
      %v739 = vsel %vm643, 1, 0
      %v740 = vsel %vm644, 1, 0
      %v741 = vsel %vm645, 1, 0
      %v742 = vsel %vm646, 1, 0
      %v743 = vsel %vm647, 1, 0
      %v744 = vsel %vm648, 1, 0
      %v745 = vsel %vm649, 1, 0
      %v746 = vsel %vm650, 1, 0
      %v747 = vsel %vm651, 1, 0
      %v748 = vsel %vm652, 1, 0
      %v749 = vsel %vm653, 1, 0
      %v750 = vsel %vm654, 1, 0
      %v751 = vsel %vm655, 1, 0
      %v752 = vsel %vm656, 1, 0
      %753 = vrot.lane.b32.xlu0 %v721, 127
      %v754 = vpop.permute.xlu0 %753
      %755 = vrot.lane.b32.xlu0 %v722, 127
      %v756 = vpop.permute.xlu0 %755
      %757 = vrot.lane.b32.xlu0 %v723, 127
      %v758 = vpop.permute.xlu0 %757
      %759 = vrot.lane.b32.xlu0 %v724, 127
      %v760 = vpop.permute.xlu0 %759
      %761 = vrot.lane.b32.xlu0 %v725, 127
      %v762 = vpop.permute.xlu0 %761
      %763 = vrot.lane.b32.xlu0 %v726, 127
      %v764 = vpop.permute.xlu0 %763
      %765 = vrot.lane.b32.xlu0 %v727, 127
      %v766 = vpop.permute.xlu0 %765
      %767 = vrot.lane.b32.xlu0 %v728, 127
      %v768 = vpop.permute.xlu0 %767
      %769 = vrot.lane.b32.xlu0 %v729, 127
      %v770 = vpop.permute.xlu0 %769
      %771 = vrot.lane.b32.xlu0 %v730, 127
      %v772 = vpop.permute.xlu0 %771
      %773 = vrot.lane.b32.xlu0 %v731, 127
      %v774 = vpop.permute.xlu0 %773
      %775 = vrot.lane.b32.xlu0 %v732, 127
      %v776 = vpop.permute.xlu0 %775
      %777 = vrot.lane.b32.xlu0 %v733, 127
      %v778 = vpop.permute.xlu0 %777
      %779 = vrot.lane.b32.xlu0 %v734, 127
      %v780 = vpop.permute.xlu0 %779
      %781 = vrot.lane.b32.xlu0 %v735, 127
      %v782 = vpop.permute.xlu0 %781
      %783 = vrot.lane.b32.xlu0 %v736, 127
      %v784 = vpop.permute.xlu0 %783
      %785 = vrot.lane.b32.xlu0 %v737, 127
      %v786 = vpop.permute.xlu0 %785
      %787 = vrot.lane.b32.xlu0 %v738, 127
      %v788 = vpop.permute.xlu0 %787
      %789 = vrot.lane.b32.xlu0 %v739, 127
      %v790 = vpop.permute.xlu0 %789
      %791 = vrot.lane.b32.xlu0 %v740, 127
      %v792 = vpop.permute.xlu0 %791
      %793 = vrot.lane.b32.xlu0 %v741, 127
      %v794 = vpop.permute.xlu0 %793
      %795 = vrot.lane.b32.xlu0 %v742, 127
      %v796 = vpop.permute.xlu0 %795
      %797 = vrot.lane.b32.xlu0 %v743, 127
      %v798 = vpop.permute.xlu0 %797
      %799 = vrot.lane.b32.xlu0 %v744, 127
      %v800 = vpop.permute.xlu0 %799
      %801 = vrot.lane.b32.xlu0 %v745, 127
      %v802 = vpop.permute.xlu0 %801
      %803 = vrot.lane.b32.xlu0 %v746, 127
      %v804 = vpop.permute.xlu0 %803
      %805 = vrot.lane.b32.xlu0 %v747, 127
      %v806 = vpop.permute.xlu0 %805
      %807 = vrot.lane.b32.xlu0 %v748, 127
      %v808 = vpop.permute.xlu0 %807
      %809 = vrot.lane.b32.xlu0 %v749, 127
      %v810 = vpop.permute.xlu0 %809
      %811 = vrot.lane.b32.xlu0 %v750, 127
      %v812 = vpop.permute.xlu0 %811
      %813 = vrot.lane.b32.xlu0 %v751, 127
      %v814 = vpop.permute.xlu0 %813
      %815 = vrot.lane.b32.xlu0 %v752, 127
      %v816 = vpop.permute.xlu0 %815
      %vm817 = vcmp.ne.s32.totalorder %v754, 0
      %vm818 = vcmp.ne.s32.totalorder %v756, 0
      %vm819 = vcmp.ne.s32.totalorder %v758, 0
      %vm820 = vcmp.ne.s32.totalorder %v760, 0
      %vm821 = vcmp.ne.s32.totalorder %v762, 0
      %vm822 = vcmp.ne.s32.totalorder %v764, 0
      %vm823 = vcmp.ne.s32.totalorder %v766, 0
      %vm824 = vcmp.ne.s32.totalorder %v768, 0
      %vm825 = vcmp.ne.s32.totalorder %v770, 0
      %vm826 = vcmp.ne.s32.totalorder %v772, 0
      %vm827 = vcmp.ne.s32.totalorder %v774, 0
      %vm828 = vcmp.ne.s32.totalorder %v776, 0
      %vm829 = vcmp.ne.s32.totalorder %v778, 0
      %vm830 = vcmp.ne.s32.totalorder %v780, 0
      %vm831 = vcmp.ne.s32.totalorder %v782, 0
      %vm832 = vcmp.ne.s32.totalorder %v784, 0
      %vm833 = vcmp.ne.s32.totalorder %v786, 0
      %vm834 = vcmp.ne.s32.totalorder %v788, 0
      %vm835 = vcmp.ne.s32.totalorder %v790, 0
      %vm836 = vcmp.ne.s32.totalorder %v792, 0
      %vm837 = vcmp.ne.s32.totalorder %v794, 0
      %vm838 = vcmp.ne.s32.totalorder %v796, 0
      %vm839 = vcmp.ne.s32.totalorder %v798, 0
      %vm840 = vcmp.ne.s32.totalorder %v800, 0
      %vm841 = vcmp.ne.s32.totalorder %v802, 0
      %vm842 = vcmp.ne.s32.totalorder %v804, 0
      %vm843 = vcmp.ne.s32.totalorder %v806, 0
      %vm844 = vcmp.ne.s32.totalorder %v808, 0
      %vm845 = vcmp.ne.s32.totalorder %v810, 0
      %vm846 = vcmp.ne.s32.totalorder %v812, 0
      %vm847 = vcmp.ne.s32.totalorder %v814, 0
      %vm848 = vcmp.ne.s32.totalorder %v816, 0
      %vm849 = vmand %vm689, %vm817
      %vm850 = vmand %vm690, %vm818
      %vm851 = vmand %vm691, %vm819
      %vm852 = vmand %vm692, %vm820
      %vm853 = vmand %vm693, %vm821
      %vm854 = vmand %vm694, %vm822
      %vm855 = vmand %vm695, %vm823
      %vm856 = vmand %vm696, %vm824
      %vm857 = vmand %vm697, %vm825
      %vm858 = vmand %vm698, %vm826
      %vm859 = vmand %vm699, %vm827
      %vm860 = vmand %vm700, %vm828
      %vm861 = vmand %vm701, %vm829
      %vm862 = vmand %vm702, %vm830
      %vm863 = vmand %vm703, %vm831
      %vm864 = vmand %vm704, %vm832
      %vm865 = vmand %vm705, %vm833
      %vm866 = vmand %vm706, %vm834
      %vm867 = vmand %vm707, %vm835
      %vm868 = vmand %vm708, %vm836
      %vm869 = vmand %vm709, %vm837
      %vm870 = vmand %vm710, %vm838
      %vm871 = vmand %vm711, %vm839
      %vm872 = vmand %vm712, %vm840
      %vm873 = vmand %vm713, %vm841
      %vm874 = vmand %vm714, %vm842
      %vm875 = vmand %vm715, %vm843
      %vm876 = vmand %vm716, %vm844
      %vm877 = vmand %vm717, %vm845
      %vm878 = vmand %vm718, %vm846
      %vm879 = vmand %vm719, %vm847
      %vm880 = vmand %vm720, %vm848
      %v881 = vsel %vm657, 1, 0
      %v882 = vsel %vm658, 1, 0
      %v883 = vsel %vm659, 1, 0
      %v884 = vsel %vm660, 1, 0
      %v885 = vsel %vm661, 1, 0
      %v886 = vsel %vm662, 1, 0
      %v887 = vsel %vm663, 1, 0
      %v888 = vsel %vm664, 1, 0
      %v889 = vsel %vm665, 1, 0
      %v890 = vsel %vm666, 1, 0
      %v891 = vsel %vm667, 1, 0
      %v892 = vsel %vm668, 1, 0
      %v893 = vsel %vm669, 1, 0
      %v894 = vsel %vm670, 1, 0
      %v895 = vsel %vm671, 1, 0
      %v896 = vsel %vm672, 1, 0
      %v897 = vsel %vm673, 1, 0
      %v898 = vsel %vm674, 1, 0
      %v899 = vsel %vm675, 1, 0
      %v900 = vsel %vm676, 1, 0
      %v901 = vsel %vm677, 1, 0
      %v902 = vsel %vm678, 1, 0
      %v903 = vsel %vm679, 1, 0
      %v904 = vsel %vm680, 1, 0
      %v905 = vsel %vm681, 1, 0
      %v906 = vsel %vm682, 1, 0
      %v907 = vsel %vm683, 1, 0
      %v908 = vsel %vm684, 1, 0
      %v909 = vsel %vm685, 1, 0
      %v910 = vsel %vm686, 1, 0
      %v911 = vsel %vm687, 1, 0
      %v912 = vsel %vm688, 1, 0
      %913 = vrot.lane.b32.xlu0 %v881, 127
      %v914 = vpop.permute.xlu0 %913
      %915 = vrot.lane.b32.xlu0 %v882, 127
      %v916 = vpop.permute.xlu0 %915
      %917 = vrot.lane.b32.xlu0 %v883, 127
      %v918 = vpop.permute.xlu0 %917
      %919 = vrot.lane.b32.xlu0 %v884, 127
      %v920 = vpop.permute.xlu0 %919
      %921 = vrot.lane.b32.xlu0 %v885, 127
      %v922 = vpop.permute.xlu0 %921
      %923 = vrot.lane.b32.xlu0 %v886, 127
      %v924 = vpop.permute.xlu0 %923
      %925 = vrot.lane.b32.xlu0 %v887, 127
      %v926 = vpop.permute.xlu0 %925
      %927 = vrot.lane.b32.xlu0 %v888, 127
      %v928 = vpop.permute.xlu0 %927
      %929 = vrot.lane.b32.xlu0 %v889, 127
      %v930 = vpop.permute.xlu0 %929
      %931 = vrot.lane.b32.xlu0 %v890, 127
      %v932 = vpop.permute.xlu0 %931
      %933 = vrot.lane.b32.xlu0 %v891, 127
      %v934 = vpop.permute.xlu0 %933
      %935 = vrot.lane.b32.xlu0 %v892, 127
      %v936 = vpop.permute.xlu0 %935
      %937 = vrot.lane.b32.xlu0 %v893, 127
      %v938 = vpop.permute.xlu0 %937
      %939 = vrot.lane.b32.xlu0 %v894, 127
      %v940 = vpop.permute.xlu0 %939
      %941 = vrot.lane.b32.xlu0 %v895, 127
      %v942 = vpop.permute.xlu0 %941
      %943 = vrot.lane.b32.xlu0 %v896, 127
      %v944 = vpop.permute.xlu0 %943
      %945 = vrot.lane.b32.xlu0 %v897, 127
      %v946 = vpop.permute.xlu0 %945
      %947 = vrot.lane.b32.xlu0 %v898, 127
      %v948 = vpop.permute.xlu0 %947
      %949 = vrot.lane.b32.xlu0 %v899, 127
      %v950 = vpop.permute.xlu0 %949
      %951 = vrot.lane.b32.xlu0 %v900, 127
      %v952 = vpop.permute.xlu0 %951
      %953 = vrot.lane.b32.xlu0 %v901, 127
      %v954 = vpop.permute.xlu0 %953
      %955 = vrot.lane.b32.xlu0 %v902, 127
      %v956 = vpop.permute.xlu0 %955
      %957 = vrot.lane.b32.xlu0 %v903, 127
      %v958 = vpop.permute.xlu0 %957
      %959 = vrot.lane.b32.xlu0 %v904, 127
      %v960 = vpop.permute.xlu0 %959
      %961 = vrot.lane.b32.xlu0 %v905, 127
      %v962 = vpop.permute.xlu0 %961
      %963 = vrot.lane.b32.xlu0 %v906, 127
      %v964 = vpop.permute.xlu0 %963
      %965 = vrot.lane.b32.xlu0 %v907, 127
      %v966 = vpop.permute.xlu0 %965
      %967 = vrot.lane.b32.xlu0 %v908, 127
      %v968 = vpop.permute.xlu0 %967
      %969 = vrot.lane.b32.xlu0 %v909, 127
      %v970 = vpop.permute.xlu0 %969
      %971 = vrot.lane.b32.xlu0 %v910, 127
      %v972 = vpop.permute.xlu0 %971
      %973 = vrot.lane.b32.xlu0 %v911, 127
      %v974 = vpop.permute.xlu0 %973
      %975 = vrot.lane.b32.xlu0 %v912, 127
      %v976 = vpop.permute.xlu0 %975
      %vm977 = vcmp.ne.s32.totalorder %v914, 0
      %vm978 = vcmp.ne.s32.totalorder %v916, 0
      %vm979 = vcmp.ne.s32.totalorder %v918, 0
      %vm980 = vcmp.ne.s32.totalorder %v920, 0
      %vm981 = vcmp.ne.s32.totalorder %v922, 0
      %vm982 = vcmp.ne.s32.totalorder %v924, 0
      %vm983 = vcmp.ne.s32.totalorder %v926, 0
      %vm984 = vcmp.ne.s32.totalorder %v928, 0
      %vm985 = vcmp.ne.s32.totalorder %v930, 0
      %vm986 = vcmp.ne.s32.totalorder %v932, 0
      %vm987 = vcmp.ne.s32.totalorder %v934, 0
      %vm988 = vcmp.ne.s32.totalorder %v936, 0
      %vm989 = vcmp.ne.s32.totalorder %v938, 0
      %vm990 = vcmp.ne.s32.totalorder %v940, 0
      %vm991 = vcmp.ne.s32.totalorder %v942, 0
      %vm992 = vcmp.ne.s32.totalorder %v944, 0
      %vm993 = vcmp.ne.s32.totalorder %v946, 0
      %vm994 = vcmp.ne.s32.totalorder %v948, 0
      %vm995 = vcmp.ne.s32.totalorder %v950, 0
      %vm996 = vcmp.ne.s32.totalorder %v952, 0
      %vm997 = vcmp.ne.s32.totalorder %v954, 0
      %vm998 = vcmp.ne.s32.totalorder %v956, 0
      %vm999 = vcmp.ne.s32.totalorder %v958, 0
      %vm1000 = vcmp.ne.s32.totalorder %v960, 0
      %vm1001 = vcmp.ne.s32.totalorder %v962, 0
      %vm1002 = vcmp.ne.s32.totalorder %v964, 0
      %vm1003 = vcmp.ne.s32.totalorder %v966, 0
      %vm1004 = vcmp.ne.s32.totalorder %v968, 0
      %vm1005 = vcmp.ne.s32.totalorder %v970, 0
      %vm1006 = vcmp.ne.s32.totalorder %v972, 0
      %vm1007 = vcmp.ne.s32.totalorder %v974, 0
      %vm1008 = vcmp.ne.s32.totalorder %v976, 0
      %vm1009 = vmand %vm849, %vm977
      %vm1010 = vmand %vm850, %vm978
      %vm1011 = vmand %vm851, %vm979
      %vm1012 = vmand %vm852, %vm980
      %vm1013 = vmand %vm853, %vm981
      %vm1014 = vmand %vm854, %vm982
      %vm1015 = vmand %vm855, %vm983
      %vm1016 = vmand %vm856, %vm984
      %vm1017 = vmand %vm857, %vm985
      %vm1018 = vmand %vm858, %vm986
      %vm1019 = vmand %vm859, %vm987
      %vm1020 = vmand %vm860, %vm988
      %vm1021 = vmand %vm861, %vm989
      %vm1022 = vmand %vm862, %vm990
      %vm1023 = vmand %vm863, %vm991
      %vm1024 = vmand %vm864, %vm992
      %vm1025 = vmand %vm865, %vm993
      %vm1026 = vmand %vm866, %vm994
      %vm1027 = vmand %vm867, %vm995
      %vm1028 = vmand %vm868, %vm996
      %vm1029 = vmand %vm869, %vm997
      %vm1030 = vmand %vm870, %vm998
      %vm1031 = vmand %vm871, %vm999
      %vm1032 = vmand %vm872, %vm1000
      %vm1033 = vmand %vm873, %vm1001
      %vm1034 = vmand %vm874, %vm1002
      %vm1035 = vmand %vm875, %vm1003
      %vm1036 = vmand %vm876, %vm1004
      %vm1037 = vmand %vm877, %vm1005
      %vm1038 = vmand %vm878, %vm1006
      %vm1039 = vmand %vm879, %vm1007
      %vm1040 = vmand %vm880, %vm1008
      %v1041 = vmul.u32 %v401, 16
      %v1042 = vmul.u32 %v402, 16
      %v1043 = vmul.u32 %v403, 16
      %v1044 = vmul.u32 %v404, 16
      %v1045 = vmul.u32 %v405, 16
      %v1046 = vmul.u32 %v406, 16
      %v1047 = vmul.u32 %v407, 16
      %v1048 = vmul.u32 %v408, 16
      %v1049 = vmul.u32 %v409, 16
      %v1050 = vmul.u32 %v410, 16
      %v1051 = vmul.u32 %v411, 16
      %v1052 = vmul.u32 %v412, 16
      %v1053 = vmul.u32 %v413, 16
      %v1054 = vmul.u32 %v414, 16
      %v1055 = vmul.u32 %v415, 16
      %v1056 = vmul.u32 %v416, 16
      %v1057 = vmul.u32 %v417, 16
      %v1058 = vmul.u32 %v418, 16
      %v1059 = vmul.u32 %v419, 16
      %v1060 = vmul.u32 %v420, 16
      %v1061 = vmul.u32 %v421, 16
      %v1062 = vmul.u32 %v422, 16
      %v1063 = vmul.u32 %v423, 16
      %v1064 = vmul.u32 %v424, 16
      %v1065 = vmul.u32 %v425, 16
      %v1066 = vmul.u32 %v426, 16
      %v1067 = vmul.u32 %v427, 16
      %v1068 = vmul.u32 %v428, 16
      %v1069 = vmul.u32 %v429, 16
      %v1070 = vmul.u32 %v430, 16
      %v1071 = vmul.u32 %v431, 16
      %v1072 = vmul.u32 %v432, 16
      %1073 = vrot.lane.b32.xlu0 %v401, 1
      %v1074 = vpop.permute.xlu0 %1073
      %1075 = vrot.lane.b32.xlu0 %v402, 1
      %v1076 = vpop.permute.xlu0 %1075
      %1077 = vrot.lane.b32.xlu0 %v403, 1
      %v1078 = vpop.permute.xlu0 %1077
      %1079 = vrot.lane.b32.xlu0 %v404, 1
      %v1080 = vpop.permute.xlu0 %1079
      %1081 = vrot.lane.b32.xlu0 %v405, 1
      %v1082 = vpop.permute.xlu0 %1081
      %1083 = vrot.lane.b32.xlu0 %v406, 1
      %v1084 = vpop.permute.xlu0 %1083
      %1085 = vrot.lane.b32.xlu0 %v407, 1
      %v1086 = vpop.permute.xlu0 %1085
      %1087 = vrot.lane.b32.xlu0 %v408, 1
      %v1088 = vpop.permute.xlu0 %1087
      %1089 = vrot.lane.b32.xlu0 %v409, 1
      %v1090 = vpop.permute.xlu0 %1089
      %1091 = vrot.lane.b32.xlu0 %v410, 1
      %v1092 = vpop.permute.xlu0 %1091
      %1093 = vrot.lane.b32.xlu0 %v411, 1
      %v1094 = vpop.permute.xlu0 %1093
      %1095 = vrot.lane.b32.xlu0 %v412, 1
      %v1096 = vpop.permute.xlu0 %1095
      %1097 = vrot.lane.b32.xlu0 %v413, 1
      %v1098 = vpop.permute.xlu0 %1097
      %1099 = vrot.lane.b32.xlu0 %v414, 1
      %v1100 = vpop.permute.xlu0 %1099
      %1101 = vrot.lane.b32.xlu0 %v415, 1
      %v1102 = vpop.permute.xlu0 %1101
      %1103 = vrot.lane.b32.xlu0 %v416, 1
      %v1104 = vpop.permute.xlu0 %1103
      %1105 = vrot.lane.b32.xlu0 %v417, 1
      %v1106 = vpop.permute.xlu0 %1105
      %1107 = vrot.lane.b32.xlu0 %v418, 1
      %v1108 = vpop.permute.xlu0 %1107
      %1109 = vrot.lane.b32.xlu0 %v419, 1
      %v1110 = vpop.permute.xlu0 %1109
      %1111 = vrot.lane.b32.xlu0 %v420, 1
      %v1112 = vpop.permute.xlu0 %1111
      %1113 = vrot.lane.b32.xlu0 %v421, 1
      %v1114 = vpop.permute.xlu0 %1113
      %1115 = vrot.lane.b32.xlu0 %v422, 1
      %v1116 = vpop.permute.xlu0 %1115
      %1117 = vrot.lane.b32.xlu0 %v423, 1
      %v1118 = vpop.permute.xlu0 %1117
      %1119 = vrot.lane.b32.xlu0 %v424, 1
      %v1120 = vpop.permute.xlu0 %1119
      %1121 = vrot.lane.b32.xlu0 %v425, 1
      %v1122 = vpop.permute.xlu0 %1121
      %1123 = vrot.lane.b32.xlu0 %v426, 1
      %v1124 = vpop.permute.xlu0 %1123
      %1125 = vrot.lane.b32.xlu0 %v427, 1
      %v1126 = vpop.permute.xlu0 %1125
      %1127 = vrot.lane.b32.xlu0 %v428, 1
      %v1128 = vpop.permute.xlu0 %1127
      %1129 = vrot.lane.b32.xlu0 %v429, 1
      %v1130 = vpop.permute.xlu0 %1129
      %1131 = vrot.lane.b32.xlu0 %v430, 1
      %v1132 = vpop.permute.xlu0 %1131
      %1133 = vrot.lane.b32.xlu0 %v431, 1
      %v1134 = vpop.permute.xlu0 %1133
      %1135 = vrot.lane.b32.xlu0 %v432, 1
      %v1136 = vpop.permute.xlu0 %1135
      %v1137 = vadd.s32 %v1041, %v1074
      %v1138 = vadd.s32 %v1042, %v1076
      %v1139 = vadd.s32 %v1043, %v1078
      %v1140 = vadd.s32 %v1044, %v1080
      %v1141 = vadd.s32 %v1045, %v1082
      %v1142 = vadd.s32 %v1046, %v1084
      %v1143 = vadd.s32 %v1047, %v1086
      %v1144 = vadd.s32 %v1048, %v1088
      %v1145 = vadd.s32 %v1049, %v1090
      %v1146 = vadd.s32 %v1050, %v1092
      %v1147 = vadd.s32 %v1051, %v1094
      %v1148 = vadd.s32 %v1052, %v1096
      %v1149 = vadd.s32 %v1053, %v1098
      %v1150 = vadd.s32 %v1054, %v1100
      %v1151 = vadd.s32 %v1055, %v1102
      %v1152 = vadd.s32 %v1056, %v1104
      %v1153 = vadd.s32 %v1057, %v1106
      %v1154 = vadd.s32 %v1058, %v1108
      %v1155 = vadd.s32 %v1059, %v1110
      %v1156 = vadd.s32 %v1060, %v1112
      %v1157 = vadd.s32 %v1061, %v1114
      %v1158 = vadd.s32 %v1062, %v1116
      %v1159 = vadd.s32 %v1063, %v1118
      %v1160 = vadd.s32 %v1064, %v1120
      %v1161 = vadd.s32 %v1065, %v1122
      %v1162 = vadd.s32 %v1066, %v1124
      %v1163 = vadd.s32 %v1067, %v1126
      %v1164 = vadd.s32 %v1068, %v1128
      %v1165 = vadd.s32 %v1069, %v1130
      %v1166 = vadd.s32 %v1070, %v1132
      %v1167 = vadd.s32 %v1071, %v1134
      %v1168 = vadd.s32 %v1072, %v1136
      %1169 = vrot.lane.b32.xlu0 %v1137, 127
      %v1170 = vpop.permute.xlu0 %1169
      %1171 = vrot.lane.b32.xlu0 %v1138, 127
      %v1172 = vpop.permute.xlu0 %1171
      %1173 = vrot.lane.b32.xlu0 %v1139, 127
      %v1174 = vpop.permute.xlu0 %1173
      %1175 = vrot.lane.b32.xlu0 %v1140, 127
      %v1176 = vpop.permute.xlu0 %1175
      %1177 = vrot.lane.b32.xlu0 %v1141, 127
      %v1178 = vpop.permute.xlu0 %1177
      %1179 = vrot.lane.b32.xlu0 %v1142, 127
      %v1180 = vpop.permute.xlu0 %1179
      %1181 = vrot.lane.b32.xlu0 %v1143, 127
      %v1182 = vpop.permute.xlu0 %1181
      %1183 = vrot.lane.b32.xlu0 %v1144, 127
      %v1184 = vpop.permute.xlu0 %1183
      %1185 = vrot.lane.b32.xlu0 %v1145, 127
      %v1186 = vpop.permute.xlu0 %1185
      %1187 = vrot.lane.b32.xlu0 %v1146, 127
      %v1188 = vpop.permute.xlu0 %1187
      %1189 = vrot.lane.b32.xlu0 %v1147, 127
      %v1190 = vpop.permute.xlu0 %1189
      %1191 = vrot.lane.b32.xlu0 %v1148, 127
      %v1192 = vpop.permute.xlu0 %1191
      %1193 = vrot.lane.b32.xlu0 %v1149, 127
      %v1194 = vpop.permute.xlu0 %1193
      %1195 = vrot.lane.b32.xlu0 %v1150, 127
      %v1196 = vpop.permute.xlu0 %1195
      %1197 = vrot.lane.b32.xlu0 %v1151, 127
      %v1198 = vpop.permute.xlu0 %1197
      %1199 = vrot.lane.b32.xlu0 %v1152, 127
      %v1200 = vpop.permute.xlu0 %1199
      %1201 = vrot.lane.b32.xlu0 %v1153, 127
      %v1202 = vpop.permute.xlu0 %1201
      %1203 = vrot.lane.b32.xlu0 %v1154, 127
      %v1204 = vpop.permute.xlu0 %1203
      %1205 = vrot.lane.b32.xlu0 %v1155, 127
      %v1206 = vpop.permute.xlu0 %1205
      %1207 = vrot.lane.b32.xlu0 %v1156, 127
      %v1208 = vpop.permute.xlu0 %1207
      %1209 = vrot.lane.b32.xlu0 %v1157, 127
      %v1210 = vpop.permute.xlu0 %1209
      %1211 = vrot.lane.b32.xlu0 %v1158, 127
      %v1212 = vpop.permute.xlu0 %1211
      %1213 = vrot.lane.b32.xlu0 %v1159, 127
      %v1214 = vpop.permute.xlu0 %1213
      %1215 = vrot.lane.b32.xlu0 %v1160, 127
      %v1216 = vpop.permute.xlu0 %1215
      %1217 = vrot.lane.b32.xlu0 %v1161, 127
      %v1218 = vpop.permute.xlu0 %1217
      %1219 = vrot.lane.b32.xlu0 %v1162, 127
      %v1220 = vpop.permute.xlu0 %1219
      %1221 = vrot.lane.b32.xlu0 %v1163, 127
      %v1222 = vpop.permute.xlu0 %1221
      %1223 = vrot.lane.b32.xlu0 %v1164, 127
      %v1224 = vpop.permute.xlu0 %1223
      %1225 = vrot.lane.b32.xlu0 %v1165, 127
      %v1226 = vpop.permute.xlu0 %1225
      %1227 = vrot.lane.b32.xlu0 %v1166, 127
      %v1228 = vpop.permute.xlu0 %1227
      %1229 = vrot.lane.b32.xlu0 %v1167, 127
      %v1230 = vpop.permute.xlu0 %1229
      %1231 = vrot.lane.b32.xlu0 %v1168, 127
      %v1232 = vpop.permute.xlu0 %1231
      %v1233 = vsel %vm1009, %v1170, 4294967295
      %v1234 = vsel %vm1010, %v1172, 4294967295
      %v1235 = vsel %vm1011, %v1174, 4294967295
      %v1236 = vsel %vm1012, %v1176, 4294967295
      %v1237 = vsel %vm1013, %v1178, 4294967295
      %v1238 = vsel %vm1014, %v1180, 4294967295
      %v1239 = vsel %vm1015, %v1182, 4294967295
      %v1240 = vsel %vm1016, %v1184, 4294967295
      %v1241 = vsel %vm1017, %v1186, 4294967295
      %v1242 = vsel %vm1018, %v1188, 4294967295
      %v1243 = vsel %vm1019, %v1190, 4294967295
      %v1244 = vsel %vm1020, %v1192, 4294967295
      %v1245 = vsel %vm1021, %v1194, 4294967295
      %v1246 = vsel %vm1022, %v1196, 4294967295
      %v1247 = vsel %vm1023, %v1198, 4294967295
      %v1248 = vsel %vm1024, %v1200, 4294967295
      %v1249 = vsel %vm1025, %v1202, 4294967295
      %v1250 = vsel %vm1026, %v1204, 4294967295
      %v1251 = vsel %vm1027, %v1206, 4294967295
      %v1252 = vsel %vm1028, %v1208, 4294967295
      %v1253 = vsel %vm1029, %v1210, 4294967295
      %v1254 = vsel %vm1030, %v1212, 4294967295
      %v1255 = vsel %vm1031, %v1214, 4294967295
      %v1256 = vsel %vm1032, %v1216, 4294967295
      %v1257 = vsel %vm1033, %v1218, 4294967295
      %v1258 = vsel %vm1034, %v1220, 4294967295
      %v1259 = vsel %vm1035, %v1222, 4294967295
      %v1260 = vsel %vm1036, %v1224, 4294967295
      %v1261 = vsel %vm1037, %v1226, 4294967295
      %v1262 = vsel %vm1038, %v1228, 4294967295
      %v1263 = vsel %vm1039, %v1230, 4294967295
      %v1264 = vsel %vm1040, %v1232, 4294967295
      %1265 = vset.pattern.permute.xlu0 0
      %1266 = vperm.xlu0 %1265, %v1233
      %v1267 = vpop.permute.xlu0 %1266
      %1268 = vset.pattern.permute.xlu0 0
      %1269 = vperm.xlu0 %1268, %v1234
      %v1270 = vpop.permute.xlu0 %1269
      %1271 = vset.pattern.permute.xlu0 0
      %1272 = vperm.xlu0 %1271, %v1235
      %v1273 = vpop.permute.xlu0 %1272
      %1274 = vset.pattern.permute.xlu0 0
      %1275 = vperm.xlu0 %1274, %v1236
      %v1276 = vpop.permute.xlu0 %1275
      %1277 = vset.pattern.permute.xlu0 0
      %1278 = vperm.xlu0 %1277, %v1237
      %v1279 = vpop.permute.xlu0 %1278
      %1280 = vset.pattern.permute.xlu0 0
      %1281 = vperm.xlu0 %1280, %v1238
      %v1282 = vpop.permute.xlu0 %1281
      %1283 = vset.pattern.permute.xlu0 0
      %1284 = vperm.xlu0 %1283, %v1239
      %v1285 = vpop.permute.xlu0 %1284
      %1286 = vset.pattern.permute.xlu0 0
      %1287 = vperm.xlu0 %1286, %v1240
      %v1288 = vpop.permute.xlu0 %1287
      %1289 = vset.pattern.permute.xlu0 0
      %1290 = vperm.xlu0 %1289, %v1241
      %v1291 = vpop.permute.xlu0 %1290
      %1292 = vset.pattern.permute.xlu0 0
      %1293 = vperm.xlu0 %1292, %v1242
      %v1294 = vpop.permute.xlu0 %1293
      %1295 = vset.pattern.permute.xlu0 0
      %1296 = vperm.xlu0 %1295, %v1243
      %v1297 = vpop.permute.xlu0 %1296
      %1298 = vset.pattern.permute.xlu0 0
      %1299 = vperm.xlu0 %1298, %v1244
      %v1300 = vpop.permute.xlu0 %1299
      %1301 = vset.pattern.permute.xlu0 0
      %1302 = vperm.xlu0 %1301, %v1245
      %v1303 = vpop.permute.xlu0 %1302
      %1304 = vset.pattern.permute.xlu0 0
      %1305 = vperm.xlu0 %1304, %v1246
      %v1306 = vpop.permute.xlu0 %1305
      %1307 = vset.pattern.permute.xlu0 0
      %1308 = vperm.xlu0 %1307, %v1247
      %v1309 = vpop.permute.xlu0 %1308
      %1310 = vset.pattern.permute.xlu0 0
      %1311 = vperm.xlu0 %1310, %v1248
      %v1312 = vpop.permute.xlu0 %1311
      %1313 = vset.pattern.permute.xlu0 0
      %1314 = vperm.xlu0 %1313, %v1249
      %v1315 = vpop.permute.xlu0 %1314
      %1316 = vset.pattern.permute.xlu0 0
      %1317 = vperm.xlu0 %1316, %v1250
      %v1318 = vpop.permute.xlu0 %1317
      %1319 = vset.pattern.permute.xlu0 0
      %1320 = vperm.xlu0 %1319, %v1251
      %v1321 = vpop.permute.xlu0 %1320
      %1322 = vset.pattern.permute.xlu0 0
      %1323 = vperm.xlu0 %1322, %v1252
      %v1324 = vpop.permute.xlu0 %1323
      %1325 = vset.pattern.permute.xlu0 0
      %1326 = vperm.xlu0 %1325, %v1253
      %v1327 = vpop.permute.xlu0 %1326
      %1328 = vset.pattern.permute.xlu0 0
      %1329 = vperm.xlu0 %1328, %v1254
      %v1330 = vpop.permute.xlu0 %1329
      %1331 = vset.pattern.permute.xlu0 0
      %1332 = vperm.xlu0 %1331, %v1255
      %v1333 = vpop.permute.xlu0 %1332
      %1334 = vset.pattern.permute.xlu0 0
      %1335 = vperm.xlu0 %1334, %v1256
      %v1336 = vpop.permute.xlu0 %1335
      %1337 = vset.pattern.permute.xlu0 0
      %1338 = vperm.xlu0 %1337, %v1257
      %v1339 = vpop.permute.xlu0 %1338
      %1340 = vset.pattern.permute.xlu0 0
      %1341 = vperm.xlu0 %1340, %v1258
      %v1342 = vpop.permute.xlu0 %1341
      %1343 = vset.pattern.permute.xlu0 0
      %1344 = vperm.xlu0 %1343, %v1259
      %v1345 = vpop.permute.xlu0 %1344
      %1346 = vset.pattern.permute.xlu0 0
      %1347 = vperm.xlu0 %1346, %v1260
      %v1348 = vpop.permute.xlu0 %1347
      %1349 = vset.pattern.permute.xlu0 0
      %1350 = vperm.xlu0 %1349, %v1261
      %v1351 = vpop.permute.xlu0 %1350
      %1352 = vset.pattern.permute.xlu0 0
      %1353 = vperm.xlu0 %1352, %v1262
      %v1354 = vpop.permute.xlu0 %1353
      %1355 = vset.pattern.permute.xlu0 0
      %1356 = vperm.xlu0 %1355, %v1263
      %v1357 = vpop.permute.xlu0 %1356
      %1358 = vset.pattern.permute.xlu0 0
      %1359 = vperm.xlu0 %1358, %v1264
      %v1360 = vpop.permute.xlu0 %1359
      %vm1361 = vcmp.eq.s32.totalorder %v303, %v1267
      %vm1362 = vcmp.eq.s32.totalorder %v304, %v1267
      %vm1363 = vcmp.eq.s32.totalorder %v303, %v1270
      %vm1364 = vcmp.eq.s32.totalorder %v304, %v1270
      %vm1365 = vcmp.eq.s32.totalorder %v303, %v1273
      %vm1366 = vcmp.eq.s32.totalorder %v304, %v1273
      %vm1367 = vcmp.eq.s32.totalorder %v303, %v1276
      %vm1368 = vcmp.eq.s32.totalorder %v304, %v1276
      %vm1369 = vcmp.eq.s32.totalorder %v303, %v1279
      %vm1370 = vcmp.eq.s32.totalorder %v304, %v1279
      %vm1371 = vcmp.eq.s32.totalorder %v303, %v1282
      %vm1372 = vcmp.eq.s32.totalorder %v304, %v1282
      %vm1373 = vcmp.eq.s32.totalorder %v303, %v1285
      %vm1374 = vcmp.eq.s32.totalorder %v304, %v1285
      %vm1375 = vcmp.eq.s32.totalorder %v303, %v1288
      %vm1376 = vcmp.eq.s32.totalorder %v304, %v1288
      %vm1377 = vcmp.eq.s32.totalorder %v303, %v1291
      %vm1378 = vcmp.eq.s32.totalorder %v304, %v1291
      %vm1379 = vcmp.eq.s32.totalorder %v303, %v1294
      %vm1380 = vcmp.eq.s32.totalorder %v304, %v1294
      %vm1381 = vcmp.eq.s32.totalorder %v303, %v1297
      %vm1382 = vcmp.eq.s32.totalorder %v304, %v1297
      %vm1383 = vcmp.eq.s32.totalorder %v303, %v1300
      %vm1384 = vcmp.eq.s32.totalorder %v304, %v1300
      %vm1385 = vcmp.eq.s32.totalorder %v303, %v1303
      %vm1386 = vcmp.eq.s32.totalorder %v304, %v1303
      %vm1387 = vcmp.eq.s32.totalorder %v303, %v1306
      %vm1388 = vcmp.eq.s32.totalorder %v304, %v1306
      %vm1389 = vcmp.eq.s32.totalorder %v303, %v1309
      %vm1390 = vcmp.eq.s32.totalorder %v304, %v1309
      %vm1391 = vcmp.eq.s32.totalorder %v303, %v1312
      %vm1392 = vcmp.eq.s32.totalorder %v304, %v1312
      %vm1393 = vcmp.eq.s32.totalorder %v303, %v1315
      %vm1394 = vcmp.eq.s32.totalorder %v304, %v1315
      %vm1395 = vcmp.eq.s32.totalorder %v303, %v1318
      %vm1396 = vcmp.eq.s32.totalorder %v304, %v1318
      %vm1397 = vcmp.eq.s32.totalorder %v303, %v1321
      %vm1398 = vcmp.eq.s32.totalorder %v304, %v1321
      %vm1399 = vcmp.eq.s32.totalorder %v303, %v1324
      %vm1400 = vcmp.eq.s32.totalorder %v304, %v1324
      %vm1401 = vcmp.eq.s32.totalorder %v303, %v1327
      %vm1402 = vcmp.eq.s32.totalorder %v304, %v1327
      %vm1403 = vcmp.eq.s32.totalorder %v303, %v1330
      %vm1404 = vcmp.eq.s32.totalorder %v304, %v1330
      %vm1405 = vcmp.eq.s32.totalorder %v303, %v1333
      %vm1406 = vcmp.eq.s32.totalorder %v304, %v1333
      %vm1407 = vcmp.eq.s32.totalorder %v303, %v1336
      %vm1408 = vcmp.eq.s32.totalorder %v304, %v1336
      %vm1409 = vcmp.eq.s32.totalorder %v303, %v1339
      %vm1410 = vcmp.eq.s32.totalorder %v304, %v1339
      %vm1411 = vcmp.eq.s32.totalorder %v303, %v1342
      %vm1412 = vcmp.eq.s32.totalorder %v304, %v1342
      %vm1413 = vcmp.eq.s32.totalorder %v303, %v1345
      %vm1414 = vcmp.eq.s32.totalorder %v304, %v1345
      %vm1415 = vcmp.eq.s32.totalorder %v303, %v1348
      %vm1416 = vcmp.eq.s32.totalorder %v304, %v1348
      %vm1417 = vcmp.eq.s32.totalorder %v303, %v1351
      %vm1418 = vcmp.eq.s32.totalorder %v304, %v1351
      %vm1419 = vcmp.eq.s32.totalorder %v303, %v1354
      %vm1420 = vcmp.eq.s32.totalorder %v304, %v1354
      %vm1421 = vcmp.eq.s32.totalorder %v303, %v1357
      %vm1422 = vcmp.eq.s32.totalorder %v304, %v1357
      %vm1423 = vcmp.eq.s32.totalorder %v303, %v1360
      %vm1424 = vcmp.eq.s32.totalorder %v304, %v1360
      %v1425 = vsel %vm1361, 1, 0
      %v1426 = vsel %vm1362, 1, 0
      %v1427 = vsel %vm1363, 1, 0
      %v1428 = vsel %vm1364, 1, 0
      %v1429 = vsel %vm1365, 1, 0
      %v1430 = vsel %vm1366, 1, 0
      %v1431 = vsel %vm1367, 1, 0
      %v1432 = vsel %vm1368, 1, 0
      %v1433 = vsel %vm1369, 1, 0
      %v1434 = vsel %vm1370, 1, 0
      %v1435 = vsel %vm1371, 1, 0
      %v1436 = vsel %vm1372, 1, 0
      %v1437 = vsel %vm1373, 1, 0
      %v1438 = vsel %vm1374, 1, 0
      %v1439 = vsel %vm1375, 1, 0
      %v1440 = vsel %vm1376, 1, 0
      %v1441 = vsel %vm1377, 1, 0
      %v1442 = vsel %vm1378, 1, 0
      %v1443 = vsel %vm1379, 1, 0
      %v1444 = vsel %vm1380, 1, 0
      %v1445 = vsel %vm1381, 1, 0
      %v1446 = vsel %vm1382, 1, 0
      %v1447 = vsel %vm1383, 1, 0
      %v1448 = vsel %vm1384, 1, 0
      %v1449 = vsel %vm1385, 1, 0
      %v1450 = vsel %vm1386, 1, 0
      %v1451 = vsel %vm1387, 1, 0
      %v1452 = vsel %vm1388, 1, 0
      %v1453 = vsel %vm1389, 1, 0
      %v1454 = vsel %vm1390, 1, 0
      %v1455 = vsel %vm1391, 1, 0
      %v1456 = vsel %vm1392, 1, 0
      %v1457 = vsel %vm1393, 1, 0
      %v1458 = vsel %vm1394, 1, 0
      %v1459 = vsel %vm1395, 1, 0
      %v1460 = vsel %vm1396, 1, 0
      %v1461 = vsel %vm1397, 1, 0
      %v1462 = vsel %vm1398, 1, 0
      %v1463 = vsel %vm1399, 1, 0
      %v1464 = vsel %vm1400, 1, 0
      %v1465 = vsel %vm1401, 1, 0
      %v1466 = vsel %vm1402, 1, 0
      %v1467 = vsel %vm1403, 1, 0
      %v1468 = vsel %vm1404, 1, 0
      %v1469 = vsel %vm1405, 1, 0
      %v1470 = vsel %vm1406, 1, 0
      %v1471 = vsel %vm1407, 1, 0
      %v1472 = vsel %vm1408, 1, 0
      %v1473 = vsel %vm1409, 1, 0
      %v1474 = vsel %vm1410, 1, 0
      %v1475 = vsel %vm1411, 1, 0
      %v1476 = vsel %vm1412, 1, 0
      %v1477 = vsel %vm1413, 1, 0
      %v1478 = vsel %vm1414, 1, 0
      %v1479 = vsel %vm1415, 1, 0
      %v1480 = vsel %vm1416, 1, 0
      %v1481 = vsel %vm1417, 1, 0
      %v1482 = vsel %vm1418, 1, 0
      %v1483 = vsel %vm1419, 1, 0
      %v1484 = vsel %vm1420, 1, 0
      %v1485 = vsel %vm1421, 1, 0
      %v1486 = vsel %vm1422, 1, 0
      %v1487 = vsel %vm1423, 1, 0
      %v1488 = vsel %vm1424, 1, 0
      %v1489 = vcvt.s32.f32 %v1425
      %v1490 = vcvt.s32.f32 %v1426
      %v1491 = vcvt.s32.f32 %v1427
      %v1492 = vcvt.s32.f32 %v1428
      %v1493 = vcvt.s32.f32 %v1429
      %v1494 = vcvt.s32.f32 %v1430
      %v1495 = vcvt.s32.f32 %v1431
      %v1496 = vcvt.s32.f32 %v1432
      %v1497 = vcvt.s32.f32 %v1433
      %v1498 = vcvt.s32.f32 %v1434
      %v1499 = vcvt.s32.f32 %v1435
      %v1500 = vcvt.s32.f32 %v1436
      %v1501 = vcvt.s32.f32 %v1437
      %v1502 = vcvt.s32.f32 %v1438
      %v1503 = vcvt.s32.f32 %v1439
      %v1504 = vcvt.s32.f32 %v1440
      %v1505 = vcvt.s32.f32 %v1441
      %v1506 = vcvt.s32.f32 %v1442
      %v1507 = vcvt.s32.f32 %v1443
      %v1508 = vcvt.s32.f32 %v1444
      %v1509 = vcvt.s32.f32 %v1445
      %v1510 = vcvt.s32.f32 %v1446
      %v1511 = vcvt.s32.f32 %v1447
      %v1512 = vcvt.s32.f32 %v1448
      %v1513 = vcvt.s32.f32 %v1449
      %v1514 = vcvt.s32.f32 %v1450
      %v1515 = vcvt.s32.f32 %v1451
      %v1516 = vcvt.s32.f32 %v1452
      %v1517 = vcvt.s32.f32 %v1453
      %v1518 = vcvt.s32.f32 %v1454
      %v1519 = vcvt.s32.f32 %v1455
      %v1520 = vcvt.s32.f32 %v1456
      %v1521 = vcvt.s32.f32 %v1457
      %v1522 = vcvt.s32.f32 %v1458
      %v1523 = vcvt.s32.f32 %v1459
      %v1524 = vcvt.s32.f32 %v1460
      %v1525 = vcvt.s32.f32 %v1461
      %v1526 = vcvt.s32.f32 %v1462
      %v1527 = vcvt.s32.f32 %v1463
      %v1528 = vcvt.s32.f32 %v1464
      %v1529 = vcvt.s32.f32 %v1465
      %v1530 = vcvt.s32.f32 %v1466
      %v1531 = vcvt.s32.f32 %v1467
      %v1532 = vcvt.s32.f32 %v1468
      %v1533 = vcvt.s32.f32 %v1469
      %v1534 = vcvt.s32.f32 %v1470
      %v1535 = vcvt.s32.f32 %v1471
      %v1536 = vcvt.s32.f32 %v1472
      %v1537 = vcvt.s32.f32 %v1473
      %v1538 = vcvt.s32.f32 %v1474
      %v1539 = vcvt.s32.f32 %v1475
      %v1540 = vcvt.s32.f32 %v1476
      %v1541 = vcvt.s32.f32 %v1477
      %v1542 = vcvt.s32.f32 %v1478
      %v1543 = vcvt.s32.f32 %v1479
      %v1544 = vcvt.s32.f32 %v1480
      %v1545 = vcvt.s32.f32 %v1481
      %v1546 = vcvt.s32.f32 %v1482
      %v1547 = vcvt.s32.f32 %v1483
      %v1548 = vcvt.s32.f32 %v1484
      %v1549 = vcvt.s32.f32 %v1485
      %v1550 = vcvt.s32.f32 %v1486
      %v1551 = vcvt.s32.f32 %v1487
      %v1552 = vcvt.s32.f32 %v1488
      %1554 = vset.pattern.permute.xlu0 0
      %1555 = vperm.xlu0 %1554, %v593
      %v1556 = vpop.permute.xlu0 %1555
      %1559 = vset.pattern.permute.xlu0 0
      %1560 = vperm.xlu0 %1559, %v594
      %v1561 = vpop.permute.xlu0 %1560
      %1564 = vset.pattern.permute.xlu0 0
      %1565 = vperm.xlu0 %1564, %v595
      %v1566 = vpop.permute.xlu0 %1565
      %1569 = vset.pattern.permute.xlu0 0
      %1570 = vperm.xlu0 %1569, %v596
      %v1571 = vpop.permute.xlu0 %1570
      %1574 = vset.pattern.permute.xlu0 0
      %1575 = vperm.xlu0 %1574, %v597
      %v1576 = vpop.permute.xlu0 %1575
      %1579 = vset.pattern.permute.xlu0 0
      %1580 = vperm.xlu0 %1579, %v598
      %v1581 = vpop.permute.xlu0 %1580
      %1584 = vset.pattern.permute.xlu0 0
      %1585 = vperm.xlu0 %1584, %v599
      %v1586 = vpop.permute.xlu0 %1585
      %1589 = vset.pattern.permute.xlu0 0
      %1590 = vperm.xlu0 %1589, %v600
      %v1591 = vpop.permute.xlu0 %1590
      %1594 = vset.pattern.permute.xlu0 0
      %1595 = vperm.xlu0 %1594, %v601
      %v1596 = vpop.permute.xlu0 %1595
      %1599 = vset.pattern.permute.xlu0 0
      %1600 = vperm.xlu0 %1599, %v602
      %v1601 = vpop.permute.xlu0 %1600
      %1604 = vset.pattern.permute.xlu0 0
      %1605 = vperm.xlu0 %1604, %v603
      %v1606 = vpop.permute.xlu0 %1605
      %1609 = vset.pattern.permute.xlu0 0
      %1610 = vperm.xlu0 %1609, %v604
      %v1611 = vpop.permute.xlu0 %1610
      %1614 = vset.pattern.permute.xlu0 0
      %1615 = vperm.xlu0 %1614, %v605
      %v1616 = vpop.permute.xlu0 %1615
      %1619 = vset.pattern.permute.xlu0 0
      %1620 = vperm.xlu0 %1619, %v606
      %v1621 = vpop.permute.xlu0 %1620
      %1624 = vset.pattern.permute.xlu0 0
      %1625 = vperm.xlu0 %1624, %v607
      %v1626 = vpop.permute.xlu0 %1625
      %1629 = vset.pattern.permute.xlu0 0
      %1630 = vperm.xlu0 %1629, %v608
      %v1631 = vpop.permute.xlu0 %1630
      %1634 = vset.pattern.permute.xlu0 0
      %1635 = vperm.xlu0 %1634, %v609
      %v1636 = vpop.permute.xlu0 %1635
      %1639 = vset.pattern.permute.xlu0 0
      %1640 = vperm.xlu0 %1639, %v610
      %v1641 = vpop.permute.xlu0 %1640
      %1644 = vset.pattern.permute.xlu0 0
      %1645 = vperm.xlu0 %1644, %v611
      %v1646 = vpop.permute.xlu0 %1645
      %1649 = vset.pattern.permute.xlu0 0
      %1650 = vperm.xlu0 %1649, %v612
      %v1651 = vpop.permute.xlu0 %1650
      %1654 = vset.pattern.permute.xlu0 0
      %1655 = vperm.xlu0 %1654, %v613
      %v1656 = vpop.permute.xlu0 %1655
      %1659 = vset.pattern.permute.xlu0 0
      %1660 = vperm.xlu0 %1659, %v614
      %v1661 = vpop.permute.xlu0 %1660
      %1664 = vset.pattern.permute.xlu0 0
      %1665 = vperm.xlu0 %1664, %v615
      %v1666 = vpop.permute.xlu0 %1665
      %1669 = vset.pattern.permute.xlu0 0
      %1670 = vperm.xlu0 %1669, %v616
      %v1671 = vpop.permute.xlu0 %1670
      %1674 = vset.pattern.permute.xlu0 0
      %1675 = vperm.xlu0 %1674, %v617
      %v1676 = vpop.permute.xlu0 %1675
      %1679 = vset.pattern.permute.xlu0 0
      %1680 = vperm.xlu0 %1679, %v618
      %v1681 = vpop.permute.xlu0 %1680
      %1684 = vset.pattern.permute.xlu0 0
      %1685 = vperm.xlu0 %1684, %v619
      %v1686 = vpop.permute.xlu0 %1685
      %1689 = vset.pattern.permute.xlu0 0
      %1690 = vperm.xlu0 %1689, %v620
      %v1691 = vpop.permute.xlu0 %1690
      %1694 = vset.pattern.permute.xlu0 0
      %1695 = vperm.xlu0 %1694, %v621
      %v1696 = vpop.permute.xlu0 %1695
      %1699 = vset.pattern.permute.xlu0 0
      %1700 = vperm.xlu0 %1699, %v622
      %v1701 = vpop.permute.xlu0 %1700
      %1704 = vset.pattern.permute.xlu0 0
      %1705 = vperm.xlu0 %1704, %v623
      %v1706 = vpop.permute.xlu0 %1705
      %1709 = vset.pattern.permute.xlu0 0
      %1710 = vperm.xlu0 %1709, %v624
      %v1711 = vpop.permute.xlu0 %1710
      %v1713 = vmul.f32 %v1489, %v1556
      %v1714 = vmul.f32 %v1490, %v1556
      %v1715 = vmul.f32 %v1491, %v1561
      %v1716 = vmul.f32 %v1492, %v1561
      %v1717 = vmul.f32 %v1493, %v1566
      %v1718 = vmul.f32 %v1494, %v1566
      %v1719 = vmul.f32 %v1495, %v1571
      %v1720 = vmul.f32 %v1496, %v1571
      %v1721 = vmul.f32 %v1497, %v1576
      %v1722 = vmul.f32 %v1498, %v1576
      %v1723 = vmul.f32 %v1499, %v1581
      %v1724 = vmul.f32 %v1500, %v1581
      %v1725 = vmul.f32 %v1501, %v1586
      %v1726 = vmul.f32 %v1502, %v1586
      %v1727 = vmul.f32 %v1503, %v1591
      %v1728 = vmul.f32 %v1504, %v1591
      %v1729 = vmul.f32 %v1505, %v1596
      %v1730 = vmul.f32 %v1506, %v1596
      %v1731 = vmul.f32 %v1507, %v1601
      %v1732 = vmul.f32 %v1508, %v1601
      %v1733 = vmul.f32 %v1509, %v1606
      %v1734 = vmul.f32 %v1510, %v1606
      %v1735 = vmul.f32 %v1511, %v1611
      %v1736 = vmul.f32 %v1512, %v1611
      %v1737 = vmul.f32 %v1513, %v1616
      %v1738 = vmul.f32 %v1514, %v1616
      %v1739 = vmul.f32 %v1515, %v1621
      %v1740 = vmul.f32 %v1516, %v1621
      %v1741 = vmul.f32 %v1517, %v1626
      %v1742 = vmul.f32 %v1518, %v1626
      %v1743 = vmul.f32 %v1519, %v1631
      %v1744 = vmul.f32 %v1520, %v1631
      %v1745 = vmul.f32 %v1521, %v1636
      %v1746 = vmul.f32 %v1522, %v1636
      %v1747 = vmul.f32 %v1523, %v1641
      %v1748 = vmul.f32 %v1524, %v1641
      %v1749 = vmul.f32 %v1525, %v1646
      %v1750 = vmul.f32 %v1526, %v1646
      %v1751 = vmul.f32 %v1527, %v1651
      %v1752 = vmul.f32 %v1528, %v1651
      %v1753 = vmul.f32 %v1529, %v1656
      %v1754 = vmul.f32 %v1530, %v1656
      %v1755 = vmul.f32 %v1531, %v1661
      %v1756 = vmul.f32 %v1532, %v1661
      %v1757 = vmul.f32 %v1533, %v1666
      %v1758 = vmul.f32 %v1534, %v1666
      %v1759 = vmul.f32 %v1535, %v1671
      %v1760 = vmul.f32 %v1536, %v1671
      %v1761 = vmul.f32 %v1537, %v1676
      %v1762 = vmul.f32 %v1538, %v1676
      %v1763 = vmul.f32 %v1539, %v1681
      %v1764 = vmul.f32 %v1540, %v1681
      %v1765 = vmul.f32 %v1541, %v1686
      %v1766 = vmul.f32 %v1542, %v1686
      %v1767 = vmul.f32 %v1543, %v1691
      %v1768 = vmul.f32 %v1544, %v1691
      %v1769 = vmul.f32 %v1545, %v1696
      %v1770 = vmul.f32 %v1546, %v1696
      %v1771 = vmul.f32 %v1547, %v1701
      %v1772 = vmul.f32 %v1548, %v1701
      %v1773 = vmul.f32 %v1549, %v1706
      %v1774 = vmul.f32 %v1550, %v1706
      %v1775 = vmul.f32 %v1551, %v1711
      %v1776 = vmul.f32 %v1552, %v1711
      %v1777 = vmul.f32 %v337, %v498
      %v1778 = vmul.f32 %v338, %v500
      %v1779 = vmul.f32 %v339, %v502
      %v1780 = vmul.f32 %v340, %v504
      %v1781 = vmul.f32 %v341, %v506
      %v1782 = vmul.f32 %v342, %v508
      %v1783 = vmul.f32 %v343, %v510
      %v1784 = vmul.f32 %v344, %v512
      %v1785 = vmul.f32 %v345, %v514
      %v1786 = vmul.f32 %v346, %v516
      %v1787 = vmul.f32 %v347, %v518
      %v1788 = vmul.f32 %v348, %v520
      %v1789 = vmul.f32 %v349, %v522
      %v1790 = vmul.f32 %v350, %v524
      %v1791 = vmul.f32 %v351, %v526
      %v1792 = vmul.f32 %v352, %v528
      %v1793 = vmul.f32 %v353, %v530
      %v1794 = vmul.f32 %v354, %v532
      %v1795 = vmul.f32 %v355, %v534
      %v1796 = vmul.f32 %v356, %v536
      %v1797 = vmul.f32 %v357, %v538
      %v1798 = vmul.f32 %v358, %v540
      %v1799 = vmul.f32 %v359, %v542
      %v1800 = vmul.f32 %v360, %v544
      %v1801 = vmul.f32 %v361, %v546
      %v1802 = vmul.f32 %v362, %v548
      %v1803 = vmul.f32 %v363, %v550
      %v1804 = vmul.f32 %v364, %v552
      %v1805 = vmul.f32 %v365, %v554
      %v1806 = vmul.f32 %v366, %v556
      %v1807 = vmul.f32 %v367, %v558
      %v1808 = vmul.f32 %v368, %v560
      %vm1809 = vcmp.ge.s32.totalorder %v433, 0
      %vm1810 = vcmp.ge.s32.totalorder %v434, 0
      %vm1811 = vcmp.ge.s32.totalorder %v435, 0
      %vm1812 = vcmp.ge.s32.totalorder %v436, 0
      %vm1813 = vcmp.ge.s32.totalorder %v437, 0
      %vm1814 = vcmp.ge.s32.totalorder %v438, 0
      %vm1815 = vcmp.ge.s32.totalorder %v439, 0
      %vm1816 = vcmp.ge.s32.totalorder %v440, 0
      %vm1817 = vcmp.ge.s32.totalorder %v441, 0
      %vm1818 = vcmp.ge.s32.totalorder %v442, 0
      %vm1819 = vcmp.ge.s32.totalorder %v443, 0
      %vm1820 = vcmp.ge.s32.totalorder %v444, 0
      %vm1821 = vcmp.ge.s32.totalorder %v445, 0
      %vm1822 = vcmp.ge.s32.totalorder %v446, 0
      %vm1823 = vcmp.ge.s32.totalorder %v447, 0
      %vm1824 = vcmp.ge.s32.totalorder %v448, 0
      %vm1825 = vcmp.ge.s32.totalorder %v449, 0
      %vm1826 = vcmp.ge.s32.totalorder %v450, 0
      %vm1827 = vcmp.ge.s32.totalorder %v451, 0
      %vm1828 = vcmp.ge.s32.totalorder %v452, 0
      %vm1829 = vcmp.ge.s32.totalorder %v453, 0
      %vm1830 = vcmp.ge.s32.totalorder %v454, 0
      %vm1831 = vcmp.ge.s32.totalorder %v455, 0
      %vm1832 = vcmp.ge.s32.totalorder %v456, 0
      %vm1833 = vcmp.ge.s32.totalorder %v457, 0
      %vm1834 = vcmp.ge.s32.totalorder %v458, 0
      %vm1835 = vcmp.ge.s32.totalorder %v459, 0
      %vm1836 = vcmp.ge.s32.totalorder %v460, 0
      %vm1837 = vcmp.ge.s32.totalorder %v461, 0
      %vm1838 = vcmp.ge.s32.totalorder %v462, 0
      %vm1839 = vcmp.ge.s32.totalorder %v463, 0
      %vm1840 = vcmp.ge.s32.totalorder %v464, 0
      %vm1841 = vcmp.lt.s32.totalorder %v433, 16
      %vm1842 = vcmp.lt.s32.totalorder %v434, 16
      %vm1843 = vcmp.lt.s32.totalorder %v435, 16
      %vm1844 = vcmp.lt.s32.totalorder %v436, 16
      %vm1845 = vcmp.lt.s32.totalorder %v437, 16
      %vm1846 = vcmp.lt.s32.totalorder %v438, 16
      %vm1847 = vcmp.lt.s32.totalorder %v439, 16
      %vm1848 = vcmp.lt.s32.totalorder %v440, 16
      %vm1849 = vcmp.lt.s32.totalorder %v441, 16
      %vm1850 = vcmp.lt.s32.totalorder %v442, 16
      %vm1851 = vcmp.lt.s32.totalorder %v443, 16
      %vm1852 = vcmp.lt.s32.totalorder %v444, 16
      %vm1853 = vcmp.lt.s32.totalorder %v445, 16
      %vm1854 = vcmp.lt.s32.totalorder %v446, 16
      %vm1855 = vcmp.lt.s32.totalorder %v447, 16
      %vm1856 = vcmp.lt.s32.totalorder %v448, 16
      %vm1857 = vcmp.lt.s32.totalorder %v449, 16
      %vm1858 = vcmp.lt.s32.totalorder %v450, 16
      %vm1859 = vcmp.lt.s32.totalorder %v451, 16
      %vm1860 = vcmp.lt.s32.totalorder %v452, 16
      %vm1861 = vcmp.lt.s32.totalorder %v453, 16
      %vm1862 = vcmp.lt.s32.totalorder %v454, 16
      %vm1863 = vcmp.lt.s32.totalorder %v455, 16
      %vm1864 = vcmp.lt.s32.totalorder %v456, 16
      %vm1865 = vcmp.lt.s32.totalorder %v457, 16
      %vm1866 = vcmp.lt.s32.totalorder %v458, 16
      %vm1867 = vcmp.lt.s32.totalorder %v459, 16
      %vm1868 = vcmp.lt.s32.totalorder %v460, 16
      %vm1869 = vcmp.lt.s32.totalorder %v461, 16
      %vm1870 = vcmp.lt.s32.totalorder %v462, 16
      %vm1871 = vcmp.lt.s32.totalorder %v463, 16
      %vm1872 = vcmp.lt.s32.totalorder %v464, 16
      %vm1873 = vmand %vm1809, %vm1841
      %vm1874 = vmand %vm1810, %vm1842
      %vm1875 = vmand %vm1811, %vm1843
      %vm1876 = vmand %vm1812, %vm1844
      %vm1877 = vmand %vm1813, %vm1845
      %vm1878 = vmand %vm1814, %vm1846
      %vm1879 = vmand %vm1815, %vm1847
      %vm1880 = vmand %vm1816, %vm1848
      %vm1881 = vmand %vm1817, %vm1849
      %vm1882 = vmand %vm1818, %vm1850
      %vm1883 = vmand %vm1819, %vm1851
      %vm1884 = vmand %vm1820, %vm1852
      %vm1885 = vmand %vm1821, %vm1853
      %vm1886 = vmand %vm1822, %vm1854
      %vm1887 = vmand %vm1823, %vm1855
      %vm1888 = vmand %vm1824, %vm1856
      %vm1889 = vmand %vm1825, %vm1857
      %vm1890 = vmand %vm1826, %vm1858
      %vm1891 = vmand %vm1827, %vm1859
      %vm1892 = vmand %vm1828, %vm1860
      %vm1893 = vmand %vm1829, %vm1861
      %vm1894 = vmand %vm1830, %vm1862
      %vm1895 = vmand %vm1831, %vm1863
      %vm1896 = vmand %vm1832, %vm1864
      %vm1897 = vmand %vm1833, %vm1865
      %vm1898 = vmand %vm1834, %vm1866
      %vm1899 = vmand %vm1835, %vm1867
      %vm1900 = vmand %vm1836, %vm1868
      %vm1901 = vmand %vm1837, %vm1869
      %vm1902 = vmand %vm1838, %vm1870
      %vm1903 = vmand %vm1839, %vm1871
      %vm1904 = vmand %vm1840, %vm1872
      %vm1905 = vmand %vm1873, %vm817
      %vm1906 = vmand %vm1874, %vm818
      %vm1907 = vmand %vm1875, %vm819
      %vm1908 = vmand %vm1876, %vm820
      %vm1909 = vmand %vm1877, %vm821
      %vm1910 = vmand %vm1878, %vm822
      %vm1911 = vmand %vm1879, %vm823
      %vm1912 = vmand %vm1880, %vm824
      %vm1913 = vmand %vm1881, %vm825
      %vm1914 = vmand %vm1882, %vm826
      %vm1915 = vmand %vm1883, %vm827
      %vm1916 = vmand %vm1884, %vm828
      %vm1917 = vmand %vm1885, %vm829
      %vm1918 = vmand %vm1886, %vm830
      %vm1919 = vmand %vm1887, %vm831
      %vm1920 = vmand %vm1888, %vm832
      %vm1921 = vmand %vm1889, %vm833
      %vm1922 = vmand %vm1890, %vm834
      %vm1923 = vmand %vm1891, %vm835
      %vm1924 = vmand %vm1892, %vm836
      %vm1925 = vmand %vm1893, %vm837
      %vm1926 = vmand %vm1894, %vm838
      %vm1927 = vmand %vm1895, %vm839
      %vm1928 = vmand %vm1896, %vm840
      %vm1929 = vmand %vm1897, %vm841
      %vm1930 = vmand %vm1898, %vm842
      %vm1931 = vmand %vm1899, %vm843
      %vm1932 = vmand %vm1900, %vm844
      %vm1933 = vmand %vm1901, %vm845
      %vm1934 = vmand %vm1902, %vm846
      %vm1935 = vmand %vm1903, %vm847
      %vm1936 = vmand %vm1904, %vm848
      %vm1937 = vmand %vm1905, %vm977
      %vm1938 = vmand %vm1906, %vm978
      %vm1939 = vmand %vm1907, %vm979
      %vm1940 = vmand %vm1908, %vm980
      %vm1941 = vmand %vm1909, %vm981
      %vm1942 = vmand %vm1910, %vm982
      %vm1943 = vmand %vm1911, %vm983
      %vm1944 = vmand %vm1912, %vm984
      %vm1945 = vmand %vm1913, %vm985
      %vm1946 = vmand %vm1914, %vm986
      %vm1947 = vmand %vm1915, %vm987
      %vm1948 = vmand %vm1916, %vm988
      %vm1949 = vmand %vm1917, %vm989
      %vm1950 = vmand %vm1918, %vm990
      %vm1951 = vmand %vm1919, %vm991
      %vm1952 = vmand %vm1920, %vm992
      %vm1953 = vmand %vm1921, %vm993
      %vm1954 = vmand %vm1922, %vm994
      %vm1955 = vmand %vm1923, %vm995
      %vm1956 = vmand %vm1924, %vm996
      %vm1957 = vmand %vm1925, %vm997
      %vm1958 = vmand %vm1926, %vm998
      %vm1959 = vmand %vm1927, %vm999
      %vm1960 = vmand %vm1928, %vm1000
      %vm1961 = vmand %vm1929, %vm1001
      %vm1962 = vmand %vm1930, %vm1002
      %vm1963 = vmand %vm1931, %vm1003
      %vm1964 = vmand %vm1932, %vm1004
      %vm1965 = vmand %vm1933, %vm1005
      %vm1966 = vmand %vm1934, %vm1006
      %vm1967 = vmand %vm1935, %vm1007
      %vm1968 = vmand %vm1936, %vm1008
      %1969 = vrot.lane.b32.xlu0 %v433, 1
      %v1970 = vpop.permute.xlu0 %1969
      %1971 = vrot.lane.b32.xlu0 %v434, 1
      %v1972 = vpop.permute.xlu0 %1971
      %1973 = vrot.lane.b32.xlu0 %v435, 1
      %v1974 = vpop.permute.xlu0 %1973
      %1975 = vrot.lane.b32.xlu0 %v436, 1
      %v1976 = vpop.permute.xlu0 %1975
      %1977 = vrot.lane.b32.xlu0 %v437, 1
      %v1978 = vpop.permute.xlu0 %1977
      %1979 = vrot.lane.b32.xlu0 %v438, 1
      %v1980 = vpop.permute.xlu0 %1979
      %1981 = vrot.lane.b32.xlu0 %v439, 1
      %v1982 = vpop.permute.xlu0 %1981
      %1983 = vrot.lane.b32.xlu0 %v440, 1
      %v1984 = vpop.permute.xlu0 %1983
      %1985 = vrot.lane.b32.xlu0 %v441, 1
      %v1986 = vpop.permute.xlu0 %1985
      %1987 = vrot.lane.b32.xlu0 %v442, 1
      %v1988 = vpop.permute.xlu0 %1987
      %1989 = vrot.lane.b32.xlu0 %v443, 1
      %v1990 = vpop.permute.xlu0 %1989
      %1991 = vrot.lane.b32.xlu0 %v444, 1
      %v1992 = vpop.permute.xlu0 %1991
      %1993 = vrot.lane.b32.xlu0 %v445, 1
      %v1994 = vpop.permute.xlu0 %1993
      %1995 = vrot.lane.b32.xlu0 %v446, 1
      %v1996 = vpop.permute.xlu0 %1995
      %1997 = vrot.lane.b32.xlu0 %v447, 1
      %v1998 = vpop.permute.xlu0 %1997
      %1999 = vrot.lane.b32.xlu0 %v448, 1
      %v2000 = vpop.permute.xlu0 %1999
      %2001 = vrot.lane.b32.xlu0 %v449, 1
      %v2002 = vpop.permute.xlu0 %2001
      %2003 = vrot.lane.b32.xlu0 %v450, 1
      %v2004 = vpop.permute.xlu0 %2003
      %2005 = vrot.lane.b32.xlu0 %v451, 1
      %v2006 = vpop.permute.xlu0 %2005
      %2007 = vrot.lane.b32.xlu0 %v452, 1
      %v2008 = vpop.permute.xlu0 %2007
      %2009 = vrot.lane.b32.xlu0 %v453, 1
      %v2010 = vpop.permute.xlu0 %2009
      %2011 = vrot.lane.b32.xlu0 %v454, 1
      %v2012 = vpop.permute.xlu0 %2011
      %2013 = vrot.lane.b32.xlu0 %v455, 1
      %v2014 = vpop.permute.xlu0 %2013
      %2015 = vrot.lane.b32.xlu0 %v456, 1
      %v2016 = vpop.permute.xlu0 %2015
      %2017 = vrot.lane.b32.xlu0 %v457, 1
      %v2018 = vpop.permute.xlu0 %2017
      %2019 = vrot.lane.b32.xlu0 %v458, 1
      %v2020 = vpop.permute.xlu0 %2019
      %2021 = vrot.lane.b32.xlu0 %v459, 1
      %v2022 = vpop.permute.xlu0 %2021
      %2023 = vrot.lane.b32.xlu0 %v460, 1
      %v2024 = vpop.permute.xlu0 %2023
      %2025 = vrot.lane.b32.xlu0 %v461, 1
      %v2026 = vpop.permute.xlu0 %2025
      %2027 = vrot.lane.b32.xlu0 %v462, 1
      %v2028 = vpop.permute.xlu0 %2027
      %2029 = vrot.lane.b32.xlu0 %v463, 1
      %v2030 = vpop.permute.xlu0 %2029
      %2031 = vrot.lane.b32.xlu0 %v464, 1
      %v2032 = vpop.permute.xlu0 %2031
      %v2033 = vadd.s32 %v1041, %v1970
      %v2034 = vadd.s32 %v1042, %v1972
      %v2035 = vadd.s32 %v1043, %v1974
      %v2036 = vadd.s32 %v1044, %v1976
      %v2037 = vadd.s32 %v1045, %v1978
      %v2038 = vadd.s32 %v1046, %v1980
      %v2039 = vadd.s32 %v1047, %v1982
      %v2040 = vadd.s32 %v1048, %v1984
      %v2041 = vadd.s32 %v1049, %v1986
      %v2042 = vadd.s32 %v1050, %v1988
      %v2043 = vadd.s32 %v1051, %v1990
      %v2044 = vadd.s32 %v1052, %v1992
      %v2045 = vadd.s32 %v1053, %v1994
      %v2046 = vadd.s32 %v1054, %v1996
      %v2047 = vadd.s32 %v1055, %v1998
      %v2048 = vadd.s32 %v1056, %v2000
      %v2049 = vadd.s32 %v1057, %v2002
      %v2050 = vadd.s32 %v1058, %v2004
      %v2051 = vadd.s32 %v1059, %v2006
      %v2052 = vadd.s32 %v1060, %v2008
      %v2053 = vadd.s32 %v1061, %v2010
      %v2054 = vadd.s32 %v1062, %v2012
      %v2055 = vadd.s32 %v1063, %v2014
      %v2056 = vadd.s32 %v1064, %v2016
      %v2057 = vadd.s32 %v1065, %v2018
      %v2058 = vadd.s32 %v1066, %v2020
      %v2059 = vadd.s32 %v1067, %v2022
      %v2060 = vadd.s32 %v1068, %v2024
      %v2061 = vadd.s32 %v1069, %v2026
      %v2062 = vadd.s32 %v1070, %v2028
      %v2063 = vadd.s32 %v1071, %v2030
      %v2064 = vadd.s32 %v1072, %v2032
      %2065 = vrot.lane.b32.xlu0 %v2033, 127
      %v2066 = vpop.permute.xlu0 %2065
      %2067 = vrot.lane.b32.xlu0 %v2034, 127
      %v2068 = vpop.permute.xlu0 %2067
      %2069 = vrot.lane.b32.xlu0 %v2035, 127
      %v2070 = vpop.permute.xlu0 %2069
      %2071 = vrot.lane.b32.xlu0 %v2036, 127
      %v2072 = vpop.permute.xlu0 %2071
      %2073 = vrot.lane.b32.xlu0 %v2037, 127
      %v2074 = vpop.permute.xlu0 %2073
      %2075 = vrot.lane.b32.xlu0 %v2038, 127
      %v2076 = vpop.permute.xlu0 %2075
      %2077 = vrot.lane.b32.xlu0 %v2039, 127
      %v2078 = vpop.permute.xlu0 %2077
      %2079 = vrot.lane.b32.xlu0 %v2040, 127
      %v2080 = vpop.permute.xlu0 %2079
      %2081 = vrot.lane.b32.xlu0 %v2041, 127
      %v2082 = vpop.permute.xlu0 %2081
      %2083 = vrot.lane.b32.xlu0 %v2042, 127
      %v2084 = vpop.permute.xlu0 %2083
      %2085 = vrot.lane.b32.xlu0 %v2043, 127
      %v2086 = vpop.permute.xlu0 %2085
      %2087 = vrot.lane.b32.xlu0 %v2044, 127
      %v2088 = vpop.permute.xlu0 %2087
      %2089 = vrot.lane.b32.xlu0 %v2045, 127
      %v2090 = vpop.permute.xlu0 %2089
      %2091 = vrot.lane.b32.xlu0 %v2046, 127
      %v2092 = vpop.permute.xlu0 %2091
      %2093 = vrot.lane.b32.xlu0 %v2047, 127
      %v2094 = vpop.permute.xlu0 %2093
      %2095 = vrot.lane.b32.xlu0 %v2048, 127
      %v2096 = vpop.permute.xlu0 %2095
      %2097 = vrot.lane.b32.xlu0 %v2049, 127
      %v2098 = vpop.permute.xlu0 %2097
      %2099 = vrot.lane.b32.xlu0 %v2050, 127
      %v2100 = vpop.permute.xlu0 %2099
      %2101 = vrot.lane.b32.xlu0 %v2051, 127
      %v2102 = vpop.permute.xlu0 %2101
      %2103 = vrot.lane.b32.xlu0 %v2052, 127
      %v2104 = vpop.permute.xlu0 %2103
      %2105 = vrot.lane.b32.xlu0 %v2053, 127
      %v2106 = vpop.permute.xlu0 %2105
      %2107 = vrot.lane.b32.xlu0 %v2054, 127
      %v2108 = vpop.permute.xlu0 %2107
      %2109 = vrot.lane.b32.xlu0 %v2055, 127
      %v2110 = vpop.permute.xlu0 %2109
      %2111 = vrot.lane.b32.xlu0 %v2056, 127
      %v2112 = vpop.permute.xlu0 %2111
      %2113 = vrot.lane.b32.xlu0 %v2057, 127
      %v2114 = vpop.permute.xlu0 %2113
      %2115 = vrot.lane.b32.xlu0 %v2058, 127
      %v2116 = vpop.permute.xlu0 %2115
      %2117 = vrot.lane.b32.xlu0 %v2059, 127
      %v2118 = vpop.permute.xlu0 %2117
      %2119 = vrot.lane.b32.xlu0 %v2060, 127
      %v2120 = vpop.permute.xlu0 %2119
      %2121 = vrot.lane.b32.xlu0 %v2061, 127
      %v2122 = vpop.permute.xlu0 %2121
      %2123 = vrot.lane.b32.xlu0 %v2062, 127
      %v2124 = vpop.permute.xlu0 %2123
      %2125 = vrot.lane.b32.xlu0 %v2063, 127
      %v2126 = vpop.permute.xlu0 %2125
      %2127 = vrot.lane.b32.xlu0 %v2064, 127
      %v2128 = vpop.permute.xlu0 %2127
      %v2129 = vsel %vm1937, %v2066, 4294967295
      %v2130 = vsel %vm1938, %v2068, 4294967295
      %v2131 = vsel %vm1939, %v2070, 4294967295
      %v2132 = vsel %vm1940, %v2072, 4294967295
      %v2133 = vsel %vm1941, %v2074, 4294967295
      %v2134 = vsel %vm1942, %v2076, 4294967295
      %v2135 = vsel %vm1943, %v2078, 4294967295
      %v2136 = vsel %vm1944, %v2080, 4294967295
      %v2137 = vsel %vm1945, %v2082, 4294967295
      %v2138 = vsel %vm1946, %v2084, 4294967295
      %v2139 = vsel %vm1947, %v2086, 4294967295
      %v2140 = vsel %vm1948, %v2088, 4294967295
      %v2141 = vsel %vm1949, %v2090, 4294967295
      %v2142 = vsel %vm1950, %v2092, 4294967295
      %v2143 = vsel %vm1951, %v2094, 4294967295
      %v2144 = vsel %vm1952, %v2096, 4294967295
      %v2145 = vsel %vm1953, %v2098, 4294967295
      %v2146 = vsel %vm1954, %v2100, 4294967295
      %v2147 = vsel %vm1955, %v2102, 4294967295
      %v2148 = vsel %vm1956, %v2104, 4294967295
      %v2149 = vsel %vm1957, %v2106, 4294967295
      %v2150 = vsel %vm1958, %v2108, 4294967295
      %v2151 = vsel %vm1959, %v2110, 4294967295
      %v2152 = vsel %vm1960, %v2112, 4294967295
      %v2153 = vsel %vm1961, %v2114, 4294967295
      %v2154 = vsel %vm1962, %v2116, 4294967295
      %v2155 = vsel %vm1963, %v2118, 4294967295
      %v2156 = vsel %vm1964, %v2120, 4294967295
      %v2157 = vsel %vm1965, %v2122, 4294967295
      %v2158 = vsel %vm1966, %v2124, 4294967295
      %v2159 = vsel %vm1967, %v2126, 4294967295
      %v2160 = vsel %vm1968, %v2128, 4294967295
      %2161 = vset.pattern.permute.xlu0 0
      %2162 = vperm.xlu0 %2161, %v2129
      %v2163 = vpop.permute.xlu0 %2162
      %2164 = vset.pattern.permute.xlu0 0
      %2165 = vperm.xlu0 %2164, %v2130
      %v2166 = vpop.permute.xlu0 %2165
      %2167 = vset.pattern.permute.xlu0 0
      %2168 = vperm.xlu0 %2167, %v2131
      %v2169 = vpop.permute.xlu0 %2168
      %2170 = vset.pattern.permute.xlu0 0
      %2171 = vperm.xlu0 %2170, %v2132
      %v2172 = vpop.permute.xlu0 %2171
      %2173 = vset.pattern.permute.xlu0 0
      %2174 = vperm.xlu0 %2173, %v2133
      %v2175 = vpop.permute.xlu0 %2174
      %2176 = vset.pattern.permute.xlu0 0
      %2177 = vperm.xlu0 %2176, %v2134
      %v2178 = vpop.permute.xlu0 %2177
      %2179 = vset.pattern.permute.xlu0 0
      %2180 = vperm.xlu0 %2179, %v2135
      %v2181 = vpop.permute.xlu0 %2180
      %2182 = vset.pattern.permute.xlu0 0
      %2183 = vperm.xlu0 %2182, %v2136
      %v2184 = vpop.permute.xlu0 %2183
      %2185 = vset.pattern.permute.xlu0 0
      %2186 = vperm.xlu0 %2185, %v2137
      %v2187 = vpop.permute.xlu0 %2186
      %2188 = vset.pattern.permute.xlu0 0
      %2189 = vperm.xlu0 %2188, %v2138
      %v2190 = vpop.permute.xlu0 %2189
      %2191 = vset.pattern.permute.xlu0 0
      %2192 = vperm.xlu0 %2191, %v2139
      %v2193 = vpop.permute.xlu0 %2192
      %2194 = vset.pattern.permute.xlu0 0
      %2195 = vperm.xlu0 %2194, %v2140
      %v2196 = vpop.permute.xlu0 %2195
      %2197 = vset.pattern.permute.xlu0 0
      %2198 = vperm.xlu0 %2197, %v2141
      %v2199 = vpop.permute.xlu0 %2198
      %2200 = vset.pattern.permute.xlu0 0
      %2201 = vperm.xlu0 %2200, %v2142
      %v2202 = vpop.permute.xlu0 %2201
      %2203 = vset.pattern.permute.xlu0 0
      %2204 = vperm.xlu0 %2203, %v2143
      %v2205 = vpop.permute.xlu0 %2204
      %2206 = vset.pattern.permute.xlu0 0
      %2207 = vperm.xlu0 %2206, %v2144
      %v2208 = vpop.permute.xlu0 %2207
      %2209 = vset.pattern.permute.xlu0 0
      %2210 = vperm.xlu0 %2209, %v2145
      %v2211 = vpop.permute.xlu0 %2210
      %2212 = vset.pattern.permute.xlu0 0
      %2213 = vperm.xlu0 %2212, %v2146
      %v2214 = vpop.permute.xlu0 %2213
      %2215 = vset.pattern.permute.xlu0 0
      %2216 = vperm.xlu0 %2215, %v2147
      %v2217 = vpop.permute.xlu0 %2216
      %2218 = vset.pattern.permute.xlu0 0
      %2219 = vperm.xlu0 %2218, %v2148
      %v2220 = vpop.permute.xlu0 %2219
      %2221 = vset.pattern.permute.xlu0 0
      %2222 = vperm.xlu0 %2221, %v2149
      %v2223 = vpop.permute.xlu0 %2222
      %2224 = vset.pattern.permute.xlu0 0
      %2225 = vperm.xlu0 %2224, %v2150
      %v2226 = vpop.permute.xlu0 %2225
      %2227 = vset.pattern.permute.xlu0 0
      %2228 = vperm.xlu0 %2227, %v2151
      %v2229 = vpop.permute.xlu0 %2228
      %2230 = vset.pattern.permute.xlu0 0
      %2231 = vperm.xlu0 %2230, %v2152
      %v2232 = vpop.permute.xlu0 %2231
      %2233 = vset.pattern.permute.xlu0 0
      %2234 = vperm.xlu0 %2233, %v2153
      %v2235 = vpop.permute.xlu0 %2234
      %2236 = vset.pattern.permute.xlu0 0
      %2237 = vperm.xlu0 %2236, %v2154
      %v2238 = vpop.permute.xlu0 %2237
      %2239 = vset.pattern.permute.xlu0 0
      %2240 = vperm.xlu0 %2239, %v2155
      %v2241 = vpop.permute.xlu0 %2240
      %2242 = vset.pattern.permute.xlu0 0
      %2243 = vperm.xlu0 %2242, %v2156
      %v2244 = vpop.permute.xlu0 %2243
      %2245 = vset.pattern.permute.xlu0 0
      %2246 = vperm.xlu0 %2245, %v2157
      %v2247 = vpop.permute.xlu0 %2246
      %2248 = vset.pattern.permute.xlu0 0
      %2249 = vperm.xlu0 %2248, %v2158
      %v2250 = vpop.permute.xlu0 %2249
      %2251 = vset.pattern.permute.xlu0 0
      %2252 = vperm.xlu0 %2251, %v2159
      %v2253 = vpop.permute.xlu0 %2252
      %2254 = vset.pattern.permute.xlu0 0
      %2255 = vperm.xlu0 %2254, %v2160
      %v2256 = vpop.permute.xlu0 %2255
      %vm2257 = vcmp.eq.s32.totalorder %v303, %v2163
      %vm2258 = vcmp.eq.s32.totalorder %v304, %v2163
      %vm2259 = vcmp.eq.s32.totalorder %v303, %v2166
      %vm2260 = vcmp.eq.s32.totalorder %v304, %v2166
      %vm2261 = vcmp.eq.s32.totalorder %v303, %v2169
      %vm2262 = vcmp.eq.s32.totalorder %v304, %v2169
      %vm2263 = vcmp.eq.s32.totalorder %v303, %v2172
      %vm2264 = vcmp.eq.s32.totalorder %v304, %v2172
      %vm2265 = vcmp.eq.s32.totalorder %v303, %v2175
      %vm2266 = vcmp.eq.s32.totalorder %v304, %v2175
      %vm2267 = vcmp.eq.s32.totalorder %v303, %v2178
      %vm2268 = vcmp.eq.s32.totalorder %v304, %v2178
      %vm2269 = vcmp.eq.s32.totalorder %v303, %v2181
      %vm2270 = vcmp.eq.s32.totalorder %v304, %v2181
      %vm2271 = vcmp.eq.s32.totalorder %v303, %v2184
      %vm2272 = vcmp.eq.s32.totalorder %v304, %v2184
      %vm2273 = vcmp.eq.s32.totalorder %v303, %v2187
      %vm2274 = vcmp.eq.s32.totalorder %v304, %v2187
      %vm2275 = vcmp.eq.s32.totalorder %v303, %v2190
      %vm2276 = vcmp.eq.s32.totalorder %v304, %v2190
      %vm2277 = vcmp.eq.s32.totalorder %v303, %v2193
      %vm2278 = vcmp.eq.s32.totalorder %v304, %v2193
      %vm2279 = vcmp.eq.s32.totalorder %v303, %v2196
      %vm2280 = vcmp.eq.s32.totalorder %v304, %v2196
      %vm2281 = vcmp.eq.s32.totalorder %v303, %v2199
      %vm2282 = vcmp.eq.s32.totalorder %v304, %v2199
      %vm2283 = vcmp.eq.s32.totalorder %v303, %v2202
      %vm2284 = vcmp.eq.s32.totalorder %v304, %v2202
      %vm2285 = vcmp.eq.s32.totalorder %v303, %v2205
      %vm2286 = vcmp.eq.s32.totalorder %v304, %v2205
      %vm2287 = vcmp.eq.s32.totalorder %v303, %v2208
      %vm2288 = vcmp.eq.s32.totalorder %v304, %v2208
      %vm2289 = vcmp.eq.s32.totalorder %v303, %v2211
      %vm2290 = vcmp.eq.s32.totalorder %v304, %v2211
      %vm2291 = vcmp.eq.s32.totalorder %v303, %v2214
      %vm2292 = vcmp.eq.s32.totalorder %v304, %v2214
      %vm2293 = vcmp.eq.s32.totalorder %v303, %v2217
      %vm2294 = vcmp.eq.s32.totalorder %v304, %v2217
      %vm2295 = vcmp.eq.s32.totalorder %v303, %v2220
      %vm2296 = vcmp.eq.s32.totalorder %v304, %v2220
      %vm2297 = vcmp.eq.s32.totalorder %v303, %v2223
      %vm2298 = vcmp.eq.s32.totalorder %v304, %v2223
      %vm2299 = vcmp.eq.s32.totalorder %v303, %v2226
      %vm2300 = vcmp.eq.s32.totalorder %v304, %v2226
      %vm2301 = vcmp.eq.s32.totalorder %v303, %v2229
      %vm2302 = vcmp.eq.s32.totalorder %v304, %v2229
      %vm2303 = vcmp.eq.s32.totalorder %v303, %v2232
      %vm2304 = vcmp.eq.s32.totalorder %v304, %v2232
      %vm2305 = vcmp.eq.s32.totalorder %v303, %v2235
      %vm2306 = vcmp.eq.s32.totalorder %v304, %v2235
      %vm2307 = vcmp.eq.s32.totalorder %v303, %v2238
      %vm2308 = vcmp.eq.s32.totalorder %v304, %v2238
      %vm2309 = vcmp.eq.s32.totalorder %v303, %v2241
      %vm2310 = vcmp.eq.s32.totalorder %v304, %v2241
      %vm2311 = vcmp.eq.s32.totalorder %v303, %v2244
      %vm2312 = vcmp.eq.s32.totalorder %v304, %v2244
      %vm2313 = vcmp.eq.s32.totalorder %v303, %v2247
      %vm2314 = vcmp.eq.s32.totalorder %v304, %v2247
      %vm2315 = vcmp.eq.s32.totalorder %v303, %v2250
      %vm2316 = vcmp.eq.s32.totalorder %v304, %v2250
      %vm2317 = vcmp.eq.s32.totalorder %v303, %v2253
      %vm2318 = vcmp.eq.s32.totalorder %v304, %v2253
      %vm2319 = vcmp.eq.s32.totalorder %v303, %v2256
      %vm2320 = vcmp.eq.s32.totalorder %v304, %v2256
      %v2321 = vsel %vm2257, 1, 0
      %v2322 = vsel %vm2258, 1, 0
      %v2323 = vsel %vm2259, 1, 0
      %v2324 = vsel %vm2260, 1, 0
      %v2325 = vsel %vm2261, 1, 0
      %v2326 = vsel %vm2262, 1, 0
      %v2327 = vsel %vm2263, 1, 0
      %v2328 = vsel %vm2264, 1, 0
      %v2329 = vsel %vm2265, 1, 0
      %v2330 = vsel %vm2266, 1, 0
      %v2331 = vsel %vm2267, 1, 0
      %v2332 = vsel %vm2268, 1, 0
      %v2333 = vsel %vm2269, 1, 0
      %v2334 = vsel %vm2270, 1, 0
      %v2335 = vsel %vm2271, 1, 0
      %v2336 = vsel %vm2272, 1, 0
      %v2337 = vsel %vm2273, 1, 0
      %v2338 = vsel %vm2274, 1, 0
      %v2339 = vsel %vm2275, 1, 0
      %v2340 = vsel %vm2276, 1, 0
      %v2341 = vsel %vm2277, 1, 0
      %v2342 = vsel %vm2278, 1, 0
      %v2343 = vsel %vm2279, 1, 0
      %v2344 = vsel %vm2280, 1, 0
      %v2345 = vsel %vm2281, 1, 0
      %v2346 = vsel %vm2282, 1, 0
      %v2347 = vsel %vm2283, 1, 0
      %v2348 = vsel %vm2284, 1, 0
      %v2349 = vsel %vm2285, 1, 0
      %v2350 = vsel %vm2286, 1, 0
      %v2351 = vsel %vm2287, 1, 0
      %v2352 = vsel %vm2288, 1, 0
      %v2353 = vsel %vm2289, 1, 0
      %v2354 = vsel %vm2290, 1, 0
      %v2355 = vsel %vm2291, 1, 0
      %v2356 = vsel %vm2292, 1, 0
      %v2357 = vsel %vm2293, 1, 0
      %v2358 = vsel %vm2294, 1, 0
      %v2359 = vsel %vm2295, 1, 0
      %v2360 = vsel %vm2296, 1, 0
      %v2361 = vsel %vm2297, 1, 0
      %v2362 = vsel %vm2298, 1, 0
      %v2363 = vsel %vm2299, 1, 0
      %v2364 = vsel %vm2300, 1, 0
      %v2365 = vsel %vm2301, 1, 0
      %v2366 = vsel %vm2302, 1, 0
      %v2367 = vsel %vm2303, 1, 0
      %v2368 = vsel %vm2304, 1, 0
      %v2369 = vsel %vm2305, 1, 0
      %v2370 = vsel %vm2306, 1, 0
      %v2371 = vsel %vm2307, 1, 0
      %v2372 = vsel %vm2308, 1, 0
      %v2373 = vsel %vm2309, 1, 0
      %v2374 = vsel %vm2310, 1, 0
      %v2375 = vsel %vm2311, 1, 0
      %v2376 = vsel %vm2312, 1, 0
      %v2377 = vsel %vm2313, 1, 0
      %v2378 = vsel %vm2314, 1, 0
      %v2379 = vsel %vm2315, 1, 0
      %v2380 = vsel %vm2316, 1, 0
      %v2381 = vsel %vm2317, 1, 0
      %v2382 = vsel %vm2318, 1, 0
      %v2383 = vsel %vm2319, 1, 0
      %v2384 = vsel %vm2320, 1, 0
      %v2385 = vcvt.s32.f32 %v2321
      %v2386 = vcvt.s32.f32 %v2322
      %v2387 = vcvt.s32.f32 %v2323
      %v2388 = vcvt.s32.f32 %v2324
      %v2389 = vcvt.s32.f32 %v2325
      %v2390 = vcvt.s32.f32 %v2326
      %v2391 = vcvt.s32.f32 %v2327
      %v2392 = vcvt.s32.f32 %v2328
      %v2393 = vcvt.s32.f32 %v2329
      %v2394 = vcvt.s32.f32 %v2330
      %v2395 = vcvt.s32.f32 %v2331
      %v2396 = vcvt.s32.f32 %v2332
      %v2397 = vcvt.s32.f32 %v2333
      %v2398 = vcvt.s32.f32 %v2334
      %v2399 = vcvt.s32.f32 %v2335
      %v2400 = vcvt.s32.f32 %v2336
      %v2401 = vcvt.s32.f32 %v2337
      %v2402 = vcvt.s32.f32 %v2338
      %v2403 = vcvt.s32.f32 %v2339
      %v2404 = vcvt.s32.f32 %v2340
      %v2405 = vcvt.s32.f32 %v2341
      %v2406 = vcvt.s32.f32 %v2342
      %v2407 = vcvt.s32.f32 %v2343
      %v2408 = vcvt.s32.f32 %v2344
      %v2409 = vcvt.s32.f32 %v2345
      %v2410 = vcvt.s32.f32 %v2346
      %v2411 = vcvt.s32.f32 %v2347
      %v2412 = vcvt.s32.f32 %v2348
      %v2413 = vcvt.s32.f32 %v2349
      %v2414 = vcvt.s32.f32 %v2350
      %v2415 = vcvt.s32.f32 %v2351
      %v2416 = vcvt.s32.f32 %v2352
      %v2417 = vcvt.s32.f32 %v2353
      %v2418 = vcvt.s32.f32 %v2354
      %v2419 = vcvt.s32.f32 %v2355
      %v2420 = vcvt.s32.f32 %v2356
      %v2421 = vcvt.s32.f32 %v2357
      %v2422 = vcvt.s32.f32 %v2358
      %v2423 = vcvt.s32.f32 %v2359
      %v2424 = vcvt.s32.f32 %v2360
      %v2425 = vcvt.s32.f32 %v2361
      %v2426 = vcvt.s32.f32 %v2362
      %v2427 = vcvt.s32.f32 %v2363
      %v2428 = vcvt.s32.f32 %v2364
      %v2429 = vcvt.s32.f32 %v2365
      %v2430 = vcvt.s32.f32 %v2366
      %v2431 = vcvt.s32.f32 %v2367
      %v2432 = vcvt.s32.f32 %v2368
      %v2433 = vcvt.s32.f32 %v2369
      %v2434 = vcvt.s32.f32 %v2370
      %v2435 = vcvt.s32.f32 %v2371
      %v2436 = vcvt.s32.f32 %v2372
      %v2437 = vcvt.s32.f32 %v2373
      %v2438 = vcvt.s32.f32 %v2374
      %v2439 = vcvt.s32.f32 %v2375
      %v2440 = vcvt.s32.f32 %v2376
      %v2441 = vcvt.s32.f32 %v2377
      %v2442 = vcvt.s32.f32 %v2378
      %v2443 = vcvt.s32.f32 %v2379
      %v2444 = vcvt.s32.f32 %v2380
      %v2445 = vcvt.s32.f32 %v2381
      %v2446 = vcvt.s32.f32 %v2382
      %v2447 = vcvt.s32.f32 %v2383
      %v2448 = vcvt.s32.f32 %v2384
      %2450 = vset.pattern.permute.xlu0 0
      %2451 = vperm.xlu0 %2450, %v1777
      %v2452 = vpop.permute.xlu0 %2451
      %2455 = vset.pattern.permute.xlu0 0
      %2456 = vperm.xlu0 %2455, %v1778
      %v2457 = vpop.permute.xlu0 %2456
      %2460 = vset.pattern.permute.xlu0 0
      %2461 = vperm.xlu0 %2460, %v1779
      %v2462 = vpop.permute.xlu0 %2461
      %2465 = vset.pattern.permute.xlu0 0
      %2466 = vperm.xlu0 %2465, %v1780
      %v2467 = vpop.permute.xlu0 %2466
      %2470 = vset.pattern.permute.xlu0 0
      %2471 = vperm.xlu0 %2470, %v1781
      %v2472 = vpop.permute.xlu0 %2471
      %2475 = vset.pattern.permute.xlu0 0
      %2476 = vperm.xlu0 %2475, %v1782
      %v2477 = vpop.permute.xlu0 %2476
      %2480 = vset.pattern.permute.xlu0 0
      %2481 = vperm.xlu0 %2480, %v1783
      %v2482 = vpop.permute.xlu0 %2481
      %2485 = vset.pattern.permute.xlu0 0
      %2486 = vperm.xlu0 %2485, %v1784
      %v2487 = vpop.permute.xlu0 %2486
      %2490 = vset.pattern.permute.xlu0 0
      %2491 = vperm.xlu0 %2490, %v1785
      %v2492 = vpop.permute.xlu0 %2491
      %2495 = vset.pattern.permute.xlu0 0
      %2496 = vperm.xlu0 %2495, %v1786
      %v2497 = vpop.permute.xlu0 %2496
      %2500 = vset.pattern.permute.xlu0 0
      %2501 = vperm.xlu0 %2500, %v1787
      %v2502 = vpop.permute.xlu0 %2501
      %2505 = vset.pattern.permute.xlu0 0
      %2506 = vperm.xlu0 %2505, %v1788
      %v2507 = vpop.permute.xlu0 %2506
      %2510 = vset.pattern.permute.xlu0 0
      %2511 = vperm.xlu0 %2510, %v1789
      %v2512 = vpop.permute.xlu0 %2511
      %2515 = vset.pattern.permute.xlu0 0
      %2516 = vperm.xlu0 %2515, %v1790
      %v2517 = vpop.permute.xlu0 %2516
      %2520 = vset.pattern.permute.xlu0 0
      %2521 = vperm.xlu0 %2520, %v1791
      %v2522 = vpop.permute.xlu0 %2521
      %2525 = vset.pattern.permute.xlu0 0
      %2526 = vperm.xlu0 %2525, %v1792
      %v2527 = vpop.permute.xlu0 %2526
      %2530 = vset.pattern.permute.xlu0 0
      %2531 = vperm.xlu0 %2530, %v1793
      %v2532 = vpop.permute.xlu0 %2531
      %2535 = vset.pattern.permute.xlu0 0
      %2536 = vperm.xlu0 %2535, %v1794
      %v2537 = vpop.permute.xlu0 %2536
      %2540 = vset.pattern.permute.xlu0 0
      %2541 = vperm.xlu0 %2540, %v1795
      %v2542 = vpop.permute.xlu0 %2541
      %2545 = vset.pattern.permute.xlu0 0
      %2546 = vperm.xlu0 %2545, %v1796
      %v2547 = vpop.permute.xlu0 %2546
      %2550 = vset.pattern.permute.xlu0 0
      %2551 = vperm.xlu0 %2550, %v1797
      %v2552 = vpop.permute.xlu0 %2551
      %2555 = vset.pattern.permute.xlu0 0
      %2556 = vperm.xlu0 %2555, %v1798
      %v2557 = vpop.permute.xlu0 %2556
      %2560 = vset.pattern.permute.xlu0 0
      %2561 = vperm.xlu0 %2560, %v1799
      %v2562 = vpop.permute.xlu0 %2561
      %2565 = vset.pattern.permute.xlu0 0
      %2566 = vperm.xlu0 %2565, %v1800
      %v2567 = vpop.permute.xlu0 %2566
      %2570 = vset.pattern.permute.xlu0 0
      %2571 = vperm.xlu0 %2570, %v1801
      %v2572 = vpop.permute.xlu0 %2571
      %2575 = vset.pattern.permute.xlu0 0
      %2576 = vperm.xlu0 %2575, %v1802
      %v2577 = vpop.permute.xlu0 %2576
      %2580 = vset.pattern.permute.xlu0 0
      %2581 = vperm.xlu0 %2580, %v1803
      %v2582 = vpop.permute.xlu0 %2581
      %2585 = vset.pattern.permute.xlu0 0
      %2586 = vperm.xlu0 %2585, %v1804
      %v2587 = vpop.permute.xlu0 %2586
      %2590 = vset.pattern.permute.xlu0 0
      %2591 = vperm.xlu0 %2590, %v1805
      %v2592 = vpop.permute.xlu0 %2591
      %2595 = vset.pattern.permute.xlu0 0
      %2596 = vperm.xlu0 %2595, %v1806
      %v2597 = vpop.permute.xlu0 %2596
      %2600 = vset.pattern.permute.xlu0 0
      %2601 = vperm.xlu0 %2600, %v1807
      %v2602 = vpop.permute.xlu0 %2601
      %2605 = vset.pattern.permute.xlu0 0
      %2606 = vperm.xlu0 %2605, %v1808
      %v2607 = vpop.permute.xlu0 %2606
      %v2609 = vmul.f32 %v2385, %v2452
      %v2610 = vmul.f32 %v2386, %v2452
      %v2611 = vmul.f32 %v2387, %v2457
      %v2612 = vmul.f32 %v2388, %v2457
      %v2613 = vmul.f32 %v2389, %v2462
      %v2614 = vmul.f32 %v2390, %v2462
      %v2615 = vmul.f32 %v2391, %v2467
      %v2616 = vmul.f32 %v2392, %v2467
      %v2617 = vmul.f32 %v2393, %v2472
      %v2618 = vmul.f32 %v2394, %v2472
      %v2619 = vmul.f32 %v2395, %v2477
      %v2620 = vmul.f32 %v2396, %v2477
      %v2621 = vmul.f32 %v2397, %v2482
      %v2622 = vmul.f32 %v2398, %v2482
      %v2623 = vmul.f32 %v2399, %v2487
      %v2624 = vmul.f32 %v2400, %v2487
      %v2625 = vmul.f32 %v2401, %v2492
      %v2626 = vmul.f32 %v2402, %v2492
      %v2627 = vmul.f32 %v2403, %v2497
      %v2628 = vmul.f32 %v2404, %v2497
      %v2629 = vmul.f32 %v2405, %v2502
      %v2630 = vmul.f32 %v2406, %v2502
      %v2631 = vmul.f32 %v2407, %v2507
      %v2632 = vmul.f32 %v2408, %v2507
      %v2633 = vmul.f32 %v2409, %v2512
      %v2634 = vmul.f32 %v2410, %v2512
      %v2635 = vmul.f32 %v2411, %v2517
      %v2636 = vmul.f32 %v2412, %v2517
      %v2637 = vmul.f32 %v2413, %v2522
      %v2638 = vmul.f32 %v2414, %v2522
      %v2639 = vmul.f32 %v2415, %v2527
      %v2640 = vmul.f32 %v2416, %v2527
      %v2641 = vmul.f32 %v2417, %v2532
      %v2642 = vmul.f32 %v2418, %v2532
      %v2643 = vmul.f32 %v2419, %v2537
      %v2644 = vmul.f32 %v2420, %v2537
      %v2645 = vmul.f32 %v2421, %v2542
      %v2646 = vmul.f32 %v2422, %v2542
      %v2647 = vmul.f32 %v2423, %v2547
      %v2648 = vmul.f32 %v2424, %v2547
      %v2649 = vmul.f32 %v2425, %v2552
      %v2650 = vmul.f32 %v2426, %v2552
      %v2651 = vmul.f32 %v2427, %v2557
      %v2652 = vmul.f32 %v2428, %v2557
      %v2653 = vmul.f32 %v2429, %v2562
      %v2654 = vmul.f32 %v2430, %v2562
      %v2655 = vmul.f32 %v2431, %v2567
      %v2656 = vmul.f32 %v2432, %v2567
      %v2657 = vmul.f32 %v2433, %v2572
      %v2658 = vmul.f32 %v2434, %v2572
      %v2659 = vmul.f32 %v2435, %v2577
      %v2660 = vmul.f32 %v2436, %v2577
      %v2661 = vmul.f32 %v2437, %v2582
      %v2662 = vmul.f32 %v2438, %v2582
      %v2663 = vmul.f32 %v2439, %v2587
      %v2664 = vmul.f32 %v2440, %v2587
      %v2665 = vmul.f32 %v2441, %v2592
      %v2666 = vmul.f32 %v2442, %v2592
      %v2667 = vmul.f32 %v2443, %v2597
      %v2668 = vmul.f32 %v2444, %v2597
      %v2669 = vmul.f32 %v2445, %v2602
      %v2670 = vmul.f32 %v2446, %v2602
      %v2671 = vmul.f32 %v2447, %v2607
      %v2672 = vmul.f32 %v2448, %v2607
      %v2673 = vadd.f32 %v1713, %v2609
      %v2674 = vadd.f32 %v1714, %v2610
      %v2675 = vadd.f32 %v1715, %v2611
      %v2676 = vadd.f32 %v1716, %v2612
      %v2677 = vadd.f32 %v1717, %v2613
      %v2678 = vadd.f32 %v1718, %v2614
      %v2679 = vadd.f32 %v1719, %v2615
      %v2680 = vadd.f32 %v1720, %v2616
      %v2681 = vadd.f32 %v1721, %v2617
      %v2682 = vadd.f32 %v1722, %v2618
      %v2683 = vadd.f32 %v1723, %v2619
      %v2684 = vadd.f32 %v1724, %v2620
      %v2685 = vadd.f32 %v1725, %v2621
      %v2686 = vadd.f32 %v1726, %v2622
      %v2687 = vadd.f32 %v1727, %v2623
      %v2688 = vadd.f32 %v1728, %v2624
      %v2689 = vadd.f32 %v1729, %v2625
      %v2690 = vadd.f32 %v1730, %v2626
      %v2691 = vadd.f32 %v1731, %v2627
      %v2692 = vadd.f32 %v1732, %v2628
      %v2693 = vadd.f32 %v1733, %v2629
      %v2694 = vadd.f32 %v1734, %v2630
      %v2695 = vadd.f32 %v1735, %v2631
      %v2696 = vadd.f32 %v1736, %v2632
      %v2697 = vadd.f32 %v1737, %v2633
      %v2698 = vadd.f32 %v1738, %v2634
      %v2699 = vadd.f32 %v1739, %v2635
      %v2700 = vadd.f32 %v1740, %v2636
      %v2701 = vadd.f32 %v1741, %v2637
      %v2702 = vadd.f32 %v1742, %v2638
      %v2703 = vadd.f32 %v1743, %v2639
      %v2704 = vadd.f32 %v1744, %v2640
      %v2705 = vadd.f32 %v1745, %v2641
      %v2706 = vadd.f32 %v1746, %v2642
      %v2707 = vadd.f32 %v1747, %v2643
      %v2708 = vadd.f32 %v1748, %v2644
      %v2709 = vadd.f32 %v1749, %v2645
      %v2710 = vadd.f32 %v1750, %v2646
      %v2711 = vadd.f32 %v1751, %v2647
      %v2712 = vadd.f32 %v1752, %v2648
      %v2713 = vadd.f32 %v1753, %v2649
      %v2714 = vadd.f32 %v1754, %v2650
      %v2715 = vadd.f32 %v1755, %v2651
      %v2716 = vadd.f32 %v1756, %v2652
      %v2717 = vadd.f32 %v1757, %v2653
      %v2718 = vadd.f32 %v1758, %v2654
      %v2719 = vadd.f32 %v1759, %v2655
      %v2720 = vadd.f32 %v1760, %v2656
      %v2721 = vadd.f32 %v1761, %v2657
      %v2722 = vadd.f32 %v1762, %v2658
      %v2723 = vadd.f32 %v1763, %v2659
      %v2724 = vadd.f32 %v1764, %v2660
      %v2725 = vadd.f32 %v1765, %v2661
      %v2726 = vadd.f32 %v1766, %v2662
      %v2727 = vadd.f32 %v1767, %v2663
      %v2728 = vadd.f32 %v1768, %v2664
      %v2729 = vadd.f32 %v1769, %v2665
      %v2730 = vadd.f32 %v1770, %v2666
      %v2731 = vadd.f32 %v1771, %v2667
      %v2732 = vadd.f32 %v1772, %v2668
      %v2733 = vadd.f32 %v1773, %v2669
      %v2734 = vadd.f32 %v1774, %v2670
      %v2735 = vadd.f32 %v1775, %v2671
      %v2736 = vadd.f32 %v1776, %v2672
      %2769 = vrot.lane.b32.xlu0 %v337, 127
      %v2770 = vpop.permute.xlu0 %2769
      %2771 = vrot.lane.b32.xlu0 %v338, 127
      %v2772 = vpop.permute.xlu0 %2771
      %2773 = vrot.lane.b32.xlu0 %v339, 127
      %v2774 = vpop.permute.xlu0 %2773
      %2775 = vrot.lane.b32.xlu0 %v340, 127
      %v2776 = vpop.permute.xlu0 %2775
      %2777 = vrot.lane.b32.xlu0 %v341, 127
      %v2778 = vpop.permute.xlu0 %2777
      %2779 = vrot.lane.b32.xlu0 %v342, 127
      %v2780 = vpop.permute.xlu0 %2779
      %2781 = vrot.lane.b32.xlu0 %v343, 127
      %v2782 = vpop.permute.xlu0 %2781
      %2783 = vrot.lane.b32.xlu0 %v344, 127
      %v2784 = vpop.permute.xlu0 %2783
      %2785 = vrot.lane.b32.xlu0 %v345, 127
      %v2786 = vpop.permute.xlu0 %2785
      %2787 = vrot.lane.b32.xlu0 %v346, 127
      %v2788 = vpop.permute.xlu0 %2787
      %2789 = vrot.lane.b32.xlu0 %v347, 127
      %v2790 = vpop.permute.xlu0 %2789
      %2791 = vrot.lane.b32.xlu0 %v348, 127
      %v2792 = vpop.permute.xlu0 %2791
      %2793 = vrot.lane.b32.xlu0 %v349, 127
      %v2794 = vpop.permute.xlu0 %2793
      %2795 = vrot.lane.b32.xlu0 %v350, 127
      %v2796 = vpop.permute.xlu0 %2795
      %2797 = vrot.lane.b32.xlu0 %v351, 127
      %v2798 = vpop.permute.xlu0 %2797
      %2799 = vrot.lane.b32.xlu0 %v352, 127
      %v2800 = vpop.permute.xlu0 %2799
      %2801 = vrot.lane.b32.xlu0 %v353, 127
      %v2802 = vpop.permute.xlu0 %2801
      %2803 = vrot.lane.b32.xlu0 %v354, 127
      %v2804 = vpop.permute.xlu0 %2803
      %2805 = vrot.lane.b32.xlu0 %v355, 127
      %v2806 = vpop.permute.xlu0 %2805
      %2807 = vrot.lane.b32.xlu0 %v356, 127
      %v2808 = vpop.permute.xlu0 %2807
      %2809 = vrot.lane.b32.xlu0 %v357, 127
      %v2810 = vpop.permute.xlu0 %2809
      %2811 = vrot.lane.b32.xlu0 %v358, 127
      %v2812 = vpop.permute.xlu0 %2811
      %2813 = vrot.lane.b32.xlu0 %v359, 127
      %v2814 = vpop.permute.xlu0 %2813
      %2815 = vrot.lane.b32.xlu0 %v360, 127
      %v2816 = vpop.permute.xlu0 %2815
      %2817 = vrot.lane.b32.xlu0 %v361, 127
      %v2818 = vpop.permute.xlu0 %2817
      %2819 = vrot.lane.b32.xlu0 %v362, 127
      %v2820 = vpop.permute.xlu0 %2819
      %2821 = vrot.lane.b32.xlu0 %v363, 127
      %v2822 = vpop.permute.xlu0 %2821
      %2823 = vrot.lane.b32.xlu0 %v364, 127
      %v2824 = vpop.permute.xlu0 %2823
      %2825 = vrot.lane.b32.xlu0 %v365, 127
      %v2826 = vpop.permute.xlu0 %2825
      %2827 = vrot.lane.b32.xlu0 %v366, 127
      %v2828 = vpop.permute.xlu0 %2827
      %2829 = vrot.lane.b32.xlu0 %v367, 127
      %v2830 = vpop.permute.xlu0 %2829
      %2831 = vrot.lane.b32.xlu0 %v368, 127
      %v2832 = vpop.permute.xlu0 %2831
      %v2865 = vmul.f32 %v369, %v2770
      %v2866 = vmul.f32 %v370, %v2772
      %v2867 = vmul.f32 %v371, %v2774
      %v2868 = vmul.f32 %v372, %v2776
      %v2869 = vmul.f32 %v373, %v2778
      %v2870 = vmul.f32 %v374, %v2780
      %v2871 = vmul.f32 %v375, %v2782
      %v2872 = vmul.f32 %v376, %v2784
      %v2873 = vmul.f32 %v377, %v2786
      %v2874 = vmul.f32 %v378, %v2788
      %v2875 = vmul.f32 %v379, %v2790
      %v2876 = vmul.f32 %v380, %v2792
      %v2877 = vmul.f32 %v381, %v2794
      %v2878 = vmul.f32 %v382, %v2796
      %v2879 = vmul.f32 %v383, %v2798
      %v2880 = vmul.f32 %v384, %v2800
      %v2881 = vmul.f32 %v385, %v2802
      %v2882 = vmul.f32 %v386, %v2804
      %v2883 = vmul.f32 %v387, %v2806
      %v2884 = vmul.f32 %v388, %v2808
      %v2885 = vmul.f32 %v389, %v2810
      %v2886 = vmul.f32 %v390, %v2812
      %v2887 = vmul.f32 %v391, %v2814
      %v2888 = vmul.f32 %v392, %v2816
      %v2889 = vmul.f32 %v393, %v2818
      %v2890 = vmul.f32 %v394, %v2820
      %v2891 = vmul.f32 %v395, %v2822
      %v2892 = vmul.f32 %v396, %v2824
      %v2893 = vmul.f32 %v397, %v2826
      %v2894 = vmul.f32 %v398, %v2828
      %v2895 = vmul.f32 %v399, %v2830
      %v2896 = vmul.f32 %v400, %v2832
      %v2897 = vsel %vm1809, 1, 0
      %v2898 = vsel %vm1810, 1, 0
      %v2899 = vsel %vm1811, 1, 0
      %v2900 = vsel %vm1812, 1, 0
      %v2901 = vsel %vm1813, 1, 0
      %v2902 = vsel %vm1814, 1, 0
      %v2903 = vsel %vm1815, 1, 0
      %v2904 = vsel %vm1816, 1, 0
      %v2905 = vsel %vm1817, 1, 0
      %v2906 = vsel %vm1818, 1, 0
      %v2907 = vsel %vm1819, 1, 0
      %v2908 = vsel %vm1820, 1, 0
      %v2909 = vsel %vm1821, 1, 0
      %v2910 = vsel %vm1822, 1, 0
      %v2911 = vsel %vm1823, 1, 0
      %v2912 = vsel %vm1824, 1, 0
      %v2913 = vsel %vm1825, 1, 0
      %v2914 = vsel %vm1826, 1, 0
      %v2915 = vsel %vm1827, 1, 0
      %v2916 = vsel %vm1828, 1, 0
      %v2917 = vsel %vm1829, 1, 0
      %v2918 = vsel %vm1830, 1, 0
      %v2919 = vsel %vm1831, 1, 0
      %v2920 = vsel %vm1832, 1, 0
      %v2921 = vsel %vm1833, 1, 0
      %v2922 = vsel %vm1834, 1, 0
      %v2923 = vsel %vm1835, 1, 0
      %v2924 = vsel %vm1836, 1, 0
      %v2925 = vsel %vm1837, 1, 0
      %v2926 = vsel %vm1838, 1, 0
      %v2927 = vsel %vm1839, 1, 0
      %v2928 = vsel %vm1840, 1, 0
      %2929 = vrot.lane.b32.xlu0 %v2897, 127
      %v2930 = vpop.permute.xlu0 %2929
      %2931 = vrot.lane.b32.xlu0 %v2898, 127
      %v2932 = vpop.permute.xlu0 %2931
      %2933 = vrot.lane.b32.xlu0 %v2899, 127
      %v2934 = vpop.permute.xlu0 %2933
      %2935 = vrot.lane.b32.xlu0 %v2900, 127
      %v2936 = vpop.permute.xlu0 %2935
      %2937 = vrot.lane.b32.xlu0 %v2901, 127
      %v2938 = vpop.permute.xlu0 %2937
      %2939 = vrot.lane.b32.xlu0 %v2902, 127
      %v2940 = vpop.permute.xlu0 %2939
      %2941 = vrot.lane.b32.xlu0 %v2903, 127
      %v2942 = vpop.permute.xlu0 %2941
      %2943 = vrot.lane.b32.xlu0 %v2904, 127
      %v2944 = vpop.permute.xlu0 %2943
      %2945 = vrot.lane.b32.xlu0 %v2905, 127
      %v2946 = vpop.permute.xlu0 %2945
      %2947 = vrot.lane.b32.xlu0 %v2906, 127
      %v2948 = vpop.permute.xlu0 %2947
      %2949 = vrot.lane.b32.xlu0 %v2907, 127
      %v2950 = vpop.permute.xlu0 %2949
      %2951 = vrot.lane.b32.xlu0 %v2908, 127
      %v2952 = vpop.permute.xlu0 %2951
      %2953 = vrot.lane.b32.xlu0 %v2909, 127
      %v2954 = vpop.permute.xlu0 %2953
      %2955 = vrot.lane.b32.xlu0 %v2910, 127
      %v2956 = vpop.permute.xlu0 %2955
      %2957 = vrot.lane.b32.xlu0 %v2911, 127
      %v2958 = vpop.permute.xlu0 %2957
      %2959 = vrot.lane.b32.xlu0 %v2912, 127
      %v2960 = vpop.permute.xlu0 %2959
      %2961 = vrot.lane.b32.xlu0 %v2913, 127
      %v2962 = vpop.permute.xlu0 %2961
      %2963 = vrot.lane.b32.xlu0 %v2914, 127
      %v2964 = vpop.permute.xlu0 %2963
      %2965 = vrot.lane.b32.xlu0 %v2915, 127
      %v2966 = vpop.permute.xlu0 %2965
      %2967 = vrot.lane.b32.xlu0 %v2916, 127
      %v2968 = vpop.permute.xlu0 %2967
      %2969 = vrot.lane.b32.xlu0 %v2917, 127
      %v2970 = vpop.permute.xlu0 %2969
      %2971 = vrot.lane.b32.xlu0 %v2918, 127
      %v2972 = vpop.permute.xlu0 %2971
      %2973 = vrot.lane.b32.xlu0 %v2919, 127
      %v2974 = vpop.permute.xlu0 %2973
      %2975 = vrot.lane.b32.xlu0 %v2920, 127
      %v2976 = vpop.permute.xlu0 %2975
      %2977 = vrot.lane.b32.xlu0 %v2921, 127
      %v2978 = vpop.permute.xlu0 %2977
      %2979 = vrot.lane.b32.xlu0 %v2922, 127
      %v2980 = vpop.permute.xlu0 %2979
      %2981 = vrot.lane.b32.xlu0 %v2923, 127
      %v2982 = vpop.permute.xlu0 %2981
      %2983 = vrot.lane.b32.xlu0 %v2924, 127
      %v2984 = vpop.permute.xlu0 %2983
      %2985 = vrot.lane.b32.xlu0 %v2925, 127
      %v2986 = vpop.permute.xlu0 %2985
      %2987 = vrot.lane.b32.xlu0 %v2926, 127
      %v2988 = vpop.permute.xlu0 %2987
      %2989 = vrot.lane.b32.xlu0 %v2927, 127
      %v2990 = vpop.permute.xlu0 %2989
      %2991 = vrot.lane.b32.xlu0 %v2928, 127
      %v2992 = vpop.permute.xlu0 %2991
      %vm2993 = vcmp.ne.s32.totalorder %v2930, 0
      %vm2994 = vcmp.ne.s32.totalorder %v2932, 0
      %vm2995 = vcmp.ne.s32.totalorder %v2934, 0
      %vm2996 = vcmp.ne.s32.totalorder %v2936, 0
      %vm2997 = vcmp.ne.s32.totalorder %v2938, 0
      %vm2998 = vcmp.ne.s32.totalorder %v2940, 0
      %vm2999 = vcmp.ne.s32.totalorder %v2942, 0
      %vm3000 = vcmp.ne.s32.totalorder %v2944, 0
      %vm3001 = vcmp.ne.s32.totalorder %v2946, 0
      %vm3002 = vcmp.ne.s32.totalorder %v2948, 0
      %vm3003 = vcmp.ne.s32.totalorder %v2950, 0
      %vm3004 = vcmp.ne.s32.totalorder %v2952, 0
      %vm3005 = vcmp.ne.s32.totalorder %v2954, 0
      %vm3006 = vcmp.ne.s32.totalorder %v2956, 0
      %vm3007 = vcmp.ne.s32.totalorder %v2958, 0
      %vm3008 = vcmp.ne.s32.totalorder %v2960, 0
      %vm3009 = vcmp.ne.s32.totalorder %v2962, 0
      %vm3010 = vcmp.ne.s32.totalorder %v2964, 0
      %vm3011 = vcmp.ne.s32.totalorder %v2966, 0
      %vm3012 = vcmp.ne.s32.totalorder %v2968, 0
      %vm3013 = vcmp.ne.s32.totalorder %v2970, 0
      %vm3014 = vcmp.ne.s32.totalorder %v2972, 0
      %vm3015 = vcmp.ne.s32.totalorder %v2974, 0
      %vm3016 = vcmp.ne.s32.totalorder %v2976, 0
      %vm3017 = vcmp.ne.s32.totalorder %v2978, 0
      %vm3018 = vcmp.ne.s32.totalorder %v2980, 0
      %vm3019 = vcmp.ne.s32.totalorder %v2982, 0
      %vm3020 = vcmp.ne.s32.totalorder %v2984, 0
      %vm3021 = vcmp.ne.s32.totalorder %v2986, 0
      %vm3022 = vcmp.ne.s32.totalorder %v2988, 0
      %vm3023 = vcmp.ne.s32.totalorder %v2990, 0
      %vm3024 = vcmp.ne.s32.totalorder %v2992, 0
      %vm3025 = vmand %vm689, %vm2993
      %vm3026 = vmand %vm690, %vm2994
      %vm3027 = vmand %vm691, %vm2995
      %vm3028 = vmand %vm692, %vm2996
      %vm3029 = vmand %vm693, %vm2997
      %vm3030 = vmand %vm694, %vm2998
      %vm3031 = vmand %vm695, %vm2999
      %vm3032 = vmand %vm696, %vm3000
      %vm3033 = vmand %vm697, %vm3001
      %vm3034 = vmand %vm698, %vm3002
      %vm3035 = vmand %vm699, %vm3003
      %vm3036 = vmand %vm700, %vm3004
      %vm3037 = vmand %vm701, %vm3005
      %vm3038 = vmand %vm702, %vm3006
      %vm3039 = vmand %vm703, %vm3007
      %vm3040 = vmand %vm704, %vm3008
      %vm3041 = vmand %vm705, %vm3009
      %vm3042 = vmand %vm706, %vm3010
      %vm3043 = vmand %vm707, %vm3011
      %vm3044 = vmand %vm708, %vm3012
      %vm3045 = vmand %vm709, %vm3013
      %vm3046 = vmand %vm710, %vm3014
      %vm3047 = vmand %vm711, %vm3015
      %vm3048 = vmand %vm712, %vm3016
      %vm3049 = vmand %vm713, %vm3017
      %vm3050 = vmand %vm714, %vm3018
      %vm3051 = vmand %vm715, %vm3019
      %vm3052 = vmand %vm716, %vm3020
      %vm3053 = vmand %vm717, %vm3021
      %vm3054 = vmand %vm718, %vm3022
      %vm3055 = vmand %vm719, %vm3023
      %vm3056 = vmand %vm720, %vm3024
      %v3057 = vsel %vm1841, 1, 0
      %v3058 = vsel %vm1842, 1, 0
      %v3059 = vsel %vm1843, 1, 0
      %v3060 = vsel %vm1844, 1, 0
      %v3061 = vsel %vm1845, 1, 0
      %v3062 = vsel %vm1846, 1, 0
      %v3063 = vsel %vm1847, 1, 0
      %v3064 = vsel %vm1848, 1, 0
      %v3065 = vsel %vm1849, 1, 0
      %v3066 = vsel %vm1850, 1, 0
      %v3067 = vsel %vm1851, 1, 0
      %v3068 = vsel %vm1852, 1, 0
      %v3069 = vsel %vm1853, 1, 0
      %v3070 = vsel %vm1854, 1, 0
      %v3071 = vsel %vm1855, 1, 0
      %v3072 = vsel %vm1856, 1, 0
      %v3073 = vsel %vm1857, 1, 0
      %v3074 = vsel %vm1858, 1, 0
      %v3075 = vsel %vm1859, 1, 0
      %v3076 = vsel %vm1860, 1, 0
      %v3077 = vsel %vm1861, 1, 0
      %v3078 = vsel %vm1862, 1, 0
      %v3079 = vsel %vm1863, 1, 0
      %v3080 = vsel %vm1864, 1, 0
      %v3081 = vsel %vm1865, 1, 0
      %v3082 = vsel %vm1866, 1, 0
      %v3083 = vsel %vm1867, 1, 0
      %v3084 = vsel %vm1868, 1, 0
      %v3085 = vsel %vm1869, 1, 0
      %v3086 = vsel %vm1870, 1, 0
      %v3087 = vsel %vm1871, 1, 0
      %v3088 = vsel %vm1872, 1, 0
      %3089 = vrot.lane.b32.xlu0 %v3057, 127
      %v3090 = vpop.permute.xlu0 %3089
      %3091 = vrot.lane.b32.xlu0 %v3058, 127
      %v3092 = vpop.permute.xlu0 %3091
      %3093 = vrot.lane.b32.xlu0 %v3059, 127
      %v3094 = vpop.permute.xlu0 %3093
      %3095 = vrot.lane.b32.xlu0 %v3060, 127
      %v3096 = vpop.permute.xlu0 %3095
      %3097 = vrot.lane.b32.xlu0 %v3061, 127
      %v3098 = vpop.permute.xlu0 %3097
      %3099 = vrot.lane.b32.xlu0 %v3062, 127
      %v3100 = vpop.permute.xlu0 %3099
      %3101 = vrot.lane.b32.xlu0 %v3063, 127
      %v3102 = vpop.permute.xlu0 %3101
      %3103 = vrot.lane.b32.xlu0 %v3064, 127
      %v3104 = vpop.permute.xlu0 %3103
      %3105 = vrot.lane.b32.xlu0 %v3065, 127
      %v3106 = vpop.permute.xlu0 %3105
      %3107 = vrot.lane.b32.xlu0 %v3066, 127
      %v3108 = vpop.permute.xlu0 %3107
      %3109 = vrot.lane.b32.xlu0 %v3067, 127
      %v3110 = vpop.permute.xlu0 %3109
      %3111 = vrot.lane.b32.xlu0 %v3068, 127
      %v3112 = vpop.permute.xlu0 %3111
      %3113 = vrot.lane.b32.xlu0 %v3069, 127
      %v3114 = vpop.permute.xlu0 %3113
      %3115 = vrot.lane.b32.xlu0 %v3070, 127
      %v3116 = vpop.permute.xlu0 %3115
      %3117 = vrot.lane.b32.xlu0 %v3071, 127
      %v3118 = vpop.permute.xlu0 %3117
      %3119 = vrot.lane.b32.xlu0 %v3072, 127
      %v3120 = vpop.permute.xlu0 %3119
      %3121 = vrot.lane.b32.xlu0 %v3073, 127
      %v3122 = vpop.permute.xlu0 %3121
      %3123 = vrot.lane.b32.xlu0 %v3074, 127
      %v3124 = vpop.permute.xlu0 %3123
      %3125 = vrot.lane.b32.xlu0 %v3075, 127
      %v3126 = vpop.permute.xlu0 %3125
      %3127 = vrot.lane.b32.xlu0 %v3076, 127
      %v3128 = vpop.permute.xlu0 %3127
      %3129 = vrot.lane.b32.xlu0 %v3077, 127
      %v3130 = vpop.permute.xlu0 %3129
      %3131 = vrot.lane.b32.xlu0 %v3078, 127
      %v3132 = vpop.permute.xlu0 %3131
      %3133 = vrot.lane.b32.xlu0 %v3079, 127
      %v3134 = vpop.permute.xlu0 %3133
      %3135 = vrot.lane.b32.xlu0 %v3080, 127
      %v3136 = vpop.permute.xlu0 %3135
      %3137 = vrot.lane.b32.xlu0 %v3081, 127
      %v3138 = vpop.permute.xlu0 %3137
      %3139 = vrot.lane.b32.xlu0 %v3082, 127
      %v3140 = vpop.permute.xlu0 %3139
      %3141 = vrot.lane.b32.xlu0 %v3083, 127
      %v3142 = vpop.permute.xlu0 %3141
      %3143 = vrot.lane.b32.xlu0 %v3084, 127
      %v3144 = vpop.permute.xlu0 %3143
      %3145 = vrot.lane.b32.xlu0 %v3085, 127
      %v3146 = vpop.permute.xlu0 %3145
      %3147 = vrot.lane.b32.xlu0 %v3086, 127
      %v3148 = vpop.permute.xlu0 %3147
      %3149 = vrot.lane.b32.xlu0 %v3087, 127
      %v3150 = vpop.permute.xlu0 %3149
      %3151 = vrot.lane.b32.xlu0 %v3088, 127
      %v3152 = vpop.permute.xlu0 %3151
      %vm3153 = vcmp.ne.s32.totalorder %v3090, 0
      %vm3154 = vcmp.ne.s32.totalorder %v3092, 0
      %vm3155 = vcmp.ne.s32.totalorder %v3094, 0
      %vm3156 = vcmp.ne.s32.totalorder %v3096, 0
      %vm3157 = vcmp.ne.s32.totalorder %v3098, 0
      %vm3158 = vcmp.ne.s32.totalorder %v3100, 0
      %vm3159 = vcmp.ne.s32.totalorder %v3102, 0
      %vm3160 = vcmp.ne.s32.totalorder %v3104, 0
      %vm3161 = vcmp.ne.s32.totalorder %v3106, 0
      %vm3162 = vcmp.ne.s32.totalorder %v3108, 0
      %vm3163 = vcmp.ne.s32.totalorder %v3110, 0
      %vm3164 = vcmp.ne.s32.totalorder %v3112, 0
      %vm3165 = vcmp.ne.s32.totalorder %v3114, 0
      %vm3166 = vcmp.ne.s32.totalorder %v3116, 0
      %vm3167 = vcmp.ne.s32.totalorder %v3118, 0
      %vm3168 = vcmp.ne.s32.totalorder %v3120, 0
      %vm3169 = vcmp.ne.s32.totalorder %v3122, 0
      %vm3170 = vcmp.ne.s32.totalorder %v3124, 0
      %vm3171 = vcmp.ne.s32.totalorder %v3126, 0
      %vm3172 = vcmp.ne.s32.totalorder %v3128, 0
      %vm3173 = vcmp.ne.s32.totalorder %v3130, 0
      %vm3174 = vcmp.ne.s32.totalorder %v3132, 0
      %vm3175 = vcmp.ne.s32.totalorder %v3134, 0
      %vm3176 = vcmp.ne.s32.totalorder %v3136, 0
      %vm3177 = vcmp.ne.s32.totalorder %v3138, 0
      %vm3178 = vcmp.ne.s32.totalorder %v3140, 0
      %vm3179 = vcmp.ne.s32.totalorder %v3142, 0
      %vm3180 = vcmp.ne.s32.totalorder %v3144, 0
      %vm3181 = vcmp.ne.s32.totalorder %v3146, 0
      %vm3182 = vcmp.ne.s32.totalorder %v3148, 0
      %vm3183 = vcmp.ne.s32.totalorder %v3150, 0
      %vm3184 = vcmp.ne.s32.totalorder %v3152, 0
      %vm3185 = vmand %vm3025, %vm3153
      %vm3186 = vmand %vm3026, %vm3154
      %vm3187 = vmand %vm3027, %vm3155
      %vm3188 = vmand %vm3028, %vm3156
      %vm3189 = vmand %vm3029, %vm3157
      %vm3190 = vmand %vm3030, %vm3158
      %vm3191 = vmand %vm3031, %vm3159
      %vm3192 = vmand %vm3032, %vm3160
      %vm3193 = vmand %vm3033, %vm3161
      %vm3194 = vmand %vm3034, %vm3162
      %vm3195 = vmand %vm3035, %vm3163
      %vm3196 = vmand %vm3036, %vm3164
      %vm3197 = vmand %vm3037, %vm3165
      %vm3198 = vmand %vm3038, %vm3166
      %vm3199 = vmand %vm3039, %vm3167
      %vm3200 = vmand %vm3040, %vm3168
      %vm3201 = vmand %vm3041, %vm3169
      %vm3202 = vmand %vm3042, %vm3170
      %vm3203 = vmand %vm3043, %vm3171
      %vm3204 = vmand %vm3044, %vm3172
      %vm3205 = vmand %vm3045, %vm3173
      %vm3206 = vmand %vm3046, %vm3174
      %vm3207 = vmand %vm3047, %vm3175
      %vm3208 = vmand %vm3048, %vm3176
      %vm3209 = vmand %vm3049, %vm3177
      %vm3210 = vmand %vm3050, %vm3178
      %vm3211 = vmand %vm3051, %vm3179
      %vm3212 = vmand %vm3052, %vm3180
      %vm3213 = vmand %vm3053, %vm3181
      %vm3214 = vmand %vm3054, %vm3182
      %vm3215 = vmand %vm3055, %vm3183
      %vm3216 = vmand %vm3056, %vm3184
      %v3217 = vmul.u32 %v433, 16
      %v3218 = vmul.u32 %v434, 16
      %v3219 = vmul.u32 %v435, 16
      %v3220 = vmul.u32 %v436, 16
      %v3221 = vmul.u32 %v437, 16
      %v3222 = vmul.u32 %v438, 16
      %v3223 = vmul.u32 %v439, 16
      %v3224 = vmul.u32 %v440, 16
      %v3225 = vmul.u32 %v441, 16
      %v3226 = vmul.u32 %v442, 16
      %v3227 = vmul.u32 %v443, 16
      %v3228 = vmul.u32 %v444, 16
      %v3229 = vmul.u32 %v445, 16
      %v3230 = vmul.u32 %v446, 16
      %v3231 = vmul.u32 %v447, 16
      %v3232 = vmul.u32 %v448, 16
      %v3233 = vmul.u32 %v449, 16
      %v3234 = vmul.u32 %v450, 16
      %v3235 = vmul.u32 %v451, 16
      %v3236 = vmul.u32 %v452, 16
      %v3237 = vmul.u32 %v453, 16
      %v3238 = vmul.u32 %v454, 16
      %v3239 = vmul.u32 %v455, 16
      %v3240 = vmul.u32 %v456, 16
      %v3241 = vmul.u32 %v457, 16
      %v3242 = vmul.u32 %v458, 16
      %v3243 = vmul.u32 %v459, 16
      %v3244 = vmul.u32 %v460, 16
      %v3245 = vmul.u32 %v461, 16
      %v3246 = vmul.u32 %v462, 16
      %v3247 = vmul.u32 %v463, 16
      %v3248 = vmul.u32 %v464, 16
      %v3249 = vadd.s32 %v3217, %v1074
      %v3250 = vadd.s32 %v3218, %v1076
      %v3251 = vadd.s32 %v3219, %v1078
      %v3252 = vadd.s32 %v3220, %v1080
      %v3253 = vadd.s32 %v3221, %v1082
      %v3254 = vadd.s32 %v3222, %v1084
      %v3255 = vadd.s32 %v3223, %v1086
      %v3256 = vadd.s32 %v3224, %v1088
      %v3257 = vadd.s32 %v3225, %v1090
      %v3258 = vadd.s32 %v3226, %v1092
      %v3259 = vadd.s32 %v3227, %v1094
      %v3260 = vadd.s32 %v3228, %v1096
      %v3261 = vadd.s32 %v3229, %v1098
      %v3262 = vadd.s32 %v3230, %v1100
      %v3263 = vadd.s32 %v3231, %v1102
      %v3264 = vadd.s32 %v3232, %v1104
      %v3265 = vadd.s32 %v3233, %v1106
      %v3266 = vadd.s32 %v3234, %v1108
      %v3267 = vadd.s32 %v3235, %v1110
      %v3268 = vadd.s32 %v3236, %v1112
      %v3269 = vadd.s32 %v3237, %v1114
      %v3270 = vadd.s32 %v3238, %v1116
      %v3271 = vadd.s32 %v3239, %v1118
      %v3272 = vadd.s32 %v3240, %v1120
      %v3273 = vadd.s32 %v3241, %v1122
      %v3274 = vadd.s32 %v3242, %v1124
      %v3275 = vadd.s32 %v3243, %v1126
      %v3276 = vadd.s32 %v3244, %v1128
      %v3277 = vadd.s32 %v3245, %v1130
      %v3278 = vadd.s32 %v3246, %v1132
      %v3279 = vadd.s32 %v3247, %v1134
      %v3280 = vadd.s32 %v3248, %v1136
      %3281 = vrot.lane.b32.xlu0 %v3249, 127
      %v3282 = vpop.permute.xlu0 %3281
      %3283 = vrot.lane.b32.xlu0 %v3250, 127
      %v3284 = vpop.permute.xlu0 %3283
      %3285 = vrot.lane.b32.xlu0 %v3251, 127
      %v3286 = vpop.permute.xlu0 %3285
      %3287 = vrot.lane.b32.xlu0 %v3252, 127
      %v3288 = vpop.permute.xlu0 %3287
      %3289 = vrot.lane.b32.xlu0 %v3253, 127
      %v3290 = vpop.permute.xlu0 %3289
      %3291 = vrot.lane.b32.xlu0 %v3254, 127
      %v3292 = vpop.permute.xlu0 %3291
      %3293 = vrot.lane.b32.xlu0 %v3255, 127
      %v3294 = vpop.permute.xlu0 %3293
      %3295 = vrot.lane.b32.xlu0 %v3256, 127
      %v3296 = vpop.permute.xlu0 %3295
      %3297 = vrot.lane.b32.xlu0 %v3257, 127
      %v3298 = vpop.permute.xlu0 %3297
      %3299 = vrot.lane.b32.xlu0 %v3258, 127
      %v3300 = vpop.permute.xlu0 %3299
      %3301 = vrot.lane.b32.xlu0 %v3259, 127
      %v3302 = vpop.permute.xlu0 %3301
      %3303 = vrot.lane.b32.xlu0 %v3260, 127
      %v3304 = vpop.permute.xlu0 %3303
      %3305 = vrot.lane.b32.xlu0 %v3261, 127
      %v3306 = vpop.permute.xlu0 %3305
      %3307 = vrot.lane.b32.xlu0 %v3262, 127
      %v3308 = vpop.permute.xlu0 %3307
      %3309 = vrot.lane.b32.xlu0 %v3263, 127
      %v3310 = vpop.permute.xlu0 %3309
      %3311 = vrot.lane.b32.xlu0 %v3264, 127
      %v3312 = vpop.permute.xlu0 %3311
      %3313 = vrot.lane.b32.xlu0 %v3265, 127
      %v3314 = vpop.permute.xlu0 %3313
      %3315 = vrot.lane.b32.xlu0 %v3266, 127
      %v3316 = vpop.permute.xlu0 %3315
      %3317 = vrot.lane.b32.xlu0 %v3267, 127
      %v3318 = vpop.permute.xlu0 %3317
      %3319 = vrot.lane.b32.xlu0 %v3268, 127
      %v3320 = vpop.permute.xlu0 %3319
      %3321 = vrot.lane.b32.xlu0 %v3269, 127
      %v3322 = vpop.permute.xlu0 %3321
      %3323 = vrot.lane.b32.xlu0 %v3270, 127
      %v3324 = vpop.permute.xlu0 %3323
      %3325 = vrot.lane.b32.xlu0 %v3271, 127
      %v3326 = vpop.permute.xlu0 %3325
      %3327 = vrot.lane.b32.xlu0 %v3272, 127
      %v3328 = vpop.permute.xlu0 %3327
      %3329 = vrot.lane.b32.xlu0 %v3273, 127
      %v3330 = vpop.permute.xlu0 %3329
      %3331 = vrot.lane.b32.xlu0 %v3274, 127
      %v3332 = vpop.permute.xlu0 %3331
      %3333 = vrot.lane.b32.xlu0 %v3275, 127
      %v3334 = vpop.permute.xlu0 %3333
      %3335 = vrot.lane.b32.xlu0 %v3276, 127
      %v3336 = vpop.permute.xlu0 %3335
      %3337 = vrot.lane.b32.xlu0 %v3277, 127
      %v3338 = vpop.permute.xlu0 %3337
      %3339 = vrot.lane.b32.xlu0 %v3278, 127
      %v3340 = vpop.permute.xlu0 %3339
      %3341 = vrot.lane.b32.xlu0 %v3279, 127
      %v3342 = vpop.permute.xlu0 %3341
      %3343 = vrot.lane.b32.xlu0 %v3280, 127
      %v3344 = vpop.permute.xlu0 %3343
      %v3345 = vsel %vm3185, %v3282, 4294967295
      %v3346 = vsel %vm3186, %v3284, 4294967295
      %v3347 = vsel %vm3187, %v3286, 4294967295
      %v3348 = vsel %vm3188, %v3288, 4294967295
      %v3349 = vsel %vm3189, %v3290, 4294967295
      %v3350 = vsel %vm3190, %v3292, 4294967295
      %v3351 = vsel %vm3191, %v3294, 4294967295
      %v3352 = vsel %vm3192, %v3296, 4294967295
      %v3353 = vsel %vm3193, %v3298, 4294967295
      %v3354 = vsel %vm3194, %v3300, 4294967295
      %v3355 = vsel %vm3195, %v3302, 4294967295
      %v3356 = vsel %vm3196, %v3304, 4294967295
      %v3357 = vsel %vm3197, %v3306, 4294967295
      %v3358 = vsel %vm3198, %v3308, 4294967295
      %v3359 = vsel %vm3199, %v3310, 4294967295
      %v3360 = vsel %vm3200, %v3312, 4294967295
      %v3361 = vsel %vm3201, %v3314, 4294967295
      %v3362 = vsel %vm3202, %v3316, 4294967295
      %v3363 = vsel %vm3203, %v3318, 4294967295
      %v3364 = vsel %vm3204, %v3320, 4294967295
      %v3365 = vsel %vm3205, %v3322, 4294967295
      %v3366 = vsel %vm3206, %v3324, 4294967295
      %v3367 = vsel %vm3207, %v3326, 4294967295
      %v3368 = vsel %vm3208, %v3328, 4294967295
      %v3369 = vsel %vm3209, %v3330, 4294967295
      %v3370 = vsel %vm3210, %v3332, 4294967295
      %v3371 = vsel %vm3211, %v3334, 4294967295
      %v3372 = vsel %vm3212, %v3336, 4294967295
      %v3373 = vsel %vm3213, %v3338, 4294967295
      %v3374 = vsel %vm3214, %v3340, 4294967295
      %v3375 = vsel %vm3215, %v3342, 4294967295
      %v3376 = vsel %vm3216, %v3344, 4294967295
      %3377 = vset.pattern.permute.xlu0 0
      %3378 = vperm.xlu0 %3377, %v3345
      %v3379 = vpop.permute.xlu0 %3378
      %3380 = vset.pattern.permute.xlu0 0
      %3381 = vperm.xlu0 %3380, %v3346
      %v3382 = vpop.permute.xlu0 %3381
      %3383 = vset.pattern.permute.xlu0 0
      %3384 = vperm.xlu0 %3383, %v3347
      %v3385 = vpop.permute.xlu0 %3384
      %3386 = vset.pattern.permute.xlu0 0
      %3387 = vperm.xlu0 %3386, %v3348
      %v3388 = vpop.permute.xlu0 %3387
      %3389 = vset.pattern.permute.xlu0 0
      %3390 = vperm.xlu0 %3389, %v3349
      %v3391 = vpop.permute.xlu0 %3390
      %3392 = vset.pattern.permute.xlu0 0
      %3393 = vperm.xlu0 %3392, %v3350
      %v3394 = vpop.permute.xlu0 %3393
      %3395 = vset.pattern.permute.xlu0 0
      %3396 = vperm.xlu0 %3395, %v3351
      %v3397 = vpop.permute.xlu0 %3396
      %3398 = vset.pattern.permute.xlu0 0
      %3399 = vperm.xlu0 %3398, %v3352
      %v3400 = vpop.permute.xlu0 %3399
      %3401 = vset.pattern.permute.xlu0 0
      %3402 = vperm.xlu0 %3401, %v3353
      %v3403 = vpop.permute.xlu0 %3402
      %3404 = vset.pattern.permute.xlu0 0
      %3405 = vperm.xlu0 %3404, %v3354
      %v3406 = vpop.permute.xlu0 %3405
      %3407 = vset.pattern.permute.xlu0 0
      %3408 = vperm.xlu0 %3407, %v3355
      %v3409 = vpop.permute.xlu0 %3408
      %3410 = vset.pattern.permute.xlu0 0
      %3411 = vperm.xlu0 %3410, %v3356
      %v3412 = vpop.permute.xlu0 %3411
      %3413 = vset.pattern.permute.xlu0 0
      %3414 = vperm.xlu0 %3413, %v3357
      %v3415 = vpop.permute.xlu0 %3414
      %3416 = vset.pattern.permute.xlu0 0
      %3417 = vperm.xlu0 %3416, %v3358
      %v3418 = vpop.permute.xlu0 %3417
      %3419 = vset.pattern.permute.xlu0 0
      %3420 = vperm.xlu0 %3419, %v3359
      %v3421 = vpop.permute.xlu0 %3420
      %3422 = vset.pattern.permute.xlu0 0
      %3423 = vperm.xlu0 %3422, %v3360
      %v3424 = vpop.permute.xlu0 %3423
      %3425 = vset.pattern.permute.xlu0 0
      %3426 = vperm.xlu0 %3425, %v3361
      %v3427 = vpop.permute.xlu0 %3426
      %3428 = vset.pattern.permute.xlu0 0
      %3429 = vperm.xlu0 %3428, %v3362
      %v3430 = vpop.permute.xlu0 %3429
      %3431 = vset.pattern.permute.xlu0 0
      %3432 = vperm.xlu0 %3431, %v3363
      %v3433 = vpop.permute.xlu0 %3432
      %3434 = vset.pattern.permute.xlu0 0
      %3435 = vperm.xlu0 %3434, %v3364
      %v3436 = vpop.permute.xlu0 %3435
      %3437 = vset.pattern.permute.xlu0 0
      %3438 = vperm.xlu0 %3437, %v3365
      %v3439 = vpop.permute.xlu0 %3438
      %3440 = vset.pattern.permute.xlu0 0
      %3441 = vperm.xlu0 %3440, %v3366
      %v3442 = vpop.permute.xlu0 %3441
      %3443 = vset.pattern.permute.xlu0 0
      %3444 = vperm.xlu0 %3443, %v3367
      %v3445 = vpop.permute.xlu0 %3444
      %3446 = vset.pattern.permute.xlu0 0
      %3447 = vperm.xlu0 %3446, %v3368
      %v3448 = vpop.permute.xlu0 %3447
      %3449 = vset.pattern.permute.xlu0 0
      %3450 = vperm.xlu0 %3449, %v3369
      %v3451 = vpop.permute.xlu0 %3450
      %3452 = vset.pattern.permute.xlu0 0
      %3453 = vperm.xlu0 %3452, %v3370
      %v3454 = vpop.permute.xlu0 %3453
      %3455 = vset.pattern.permute.xlu0 0
      %3456 = vperm.xlu0 %3455, %v3371
      %v3457 = vpop.permute.xlu0 %3456
      %3458 = vset.pattern.permute.xlu0 0
      %3459 = vperm.xlu0 %3458, %v3372
      %v3460 = vpop.permute.xlu0 %3459
      %3461 = vset.pattern.permute.xlu0 0
      %3462 = vperm.xlu0 %3461, %v3373
      %v3463 = vpop.permute.xlu0 %3462
      %3464 = vset.pattern.permute.xlu0 0
      %3465 = vperm.xlu0 %3464, %v3374
      %v3466 = vpop.permute.xlu0 %3465
      %3467 = vset.pattern.permute.xlu0 0
      %3468 = vperm.xlu0 %3467, %v3375
      %v3469 = vpop.permute.xlu0 %3468
      %3470 = vset.pattern.permute.xlu0 0
      %3471 = vperm.xlu0 %3470, %v3376
      %v3472 = vpop.permute.xlu0 %3471
      %vm3473 = vcmp.eq.s32.totalorder %v303, %v3379
      %vm3474 = vcmp.eq.s32.totalorder %v304, %v3379
      %vm3475 = vcmp.eq.s32.totalorder %v303, %v3382
      %vm3476 = vcmp.eq.s32.totalorder %v304, %v3382
      %vm3477 = vcmp.eq.s32.totalorder %v303, %v3385
      %vm3478 = vcmp.eq.s32.totalorder %v304, %v3385
      %vm3479 = vcmp.eq.s32.totalorder %v303, %v3388
      %vm3480 = vcmp.eq.s32.totalorder %v304, %v3388
      %vm3481 = vcmp.eq.s32.totalorder %v303, %v3391
      %vm3482 = vcmp.eq.s32.totalorder %v304, %v3391
      %vm3483 = vcmp.eq.s32.totalorder %v303, %v3394
      %vm3484 = vcmp.eq.s32.totalorder %v304, %v3394
      %vm3485 = vcmp.eq.s32.totalorder %v303, %v3397
      %vm3486 = vcmp.eq.s32.totalorder %v304, %v3397
      %vm3487 = vcmp.eq.s32.totalorder %v303, %v3400
      %vm3488 = vcmp.eq.s32.totalorder %v304, %v3400
      %vm3489 = vcmp.eq.s32.totalorder %v303, %v3403
      %vm3490 = vcmp.eq.s32.totalorder %v304, %v3403
      %vm3491 = vcmp.eq.s32.totalorder %v303, %v3406
      %vm3492 = vcmp.eq.s32.totalorder %v304, %v3406
      %vm3493 = vcmp.eq.s32.totalorder %v303, %v3409
      %vm3494 = vcmp.eq.s32.totalorder %v304, %v3409
      %vm3495 = vcmp.eq.s32.totalorder %v303, %v3412
      %vm3496 = vcmp.eq.s32.totalorder %v304, %v3412
      %vm3497 = vcmp.eq.s32.totalorder %v303, %v3415
      %vm3498 = vcmp.eq.s32.totalorder %v304, %v3415
      %vm3499 = vcmp.eq.s32.totalorder %v303, %v3418
      %vm3500 = vcmp.eq.s32.totalorder %v304, %v3418
      %vm3501 = vcmp.eq.s32.totalorder %v303, %v3421
      %vm3502 = vcmp.eq.s32.totalorder %v304, %v3421
      %vm3503 = vcmp.eq.s32.totalorder %v303, %v3424
      %vm3504 = vcmp.eq.s32.totalorder %v304, %v3424
      %vm3505 = vcmp.eq.s32.totalorder %v303, %v3427
      %vm3506 = vcmp.eq.s32.totalorder %v304, %v3427
      %vm3507 = vcmp.eq.s32.totalorder %v303, %v3430
      %vm3508 = vcmp.eq.s32.totalorder %v304, %v3430
      %vm3509 = vcmp.eq.s32.totalorder %v303, %v3433
      %vm3510 = vcmp.eq.s32.totalorder %v304, %v3433
      %vm3511 = vcmp.eq.s32.totalorder %v303, %v3436
      %vm3512 = vcmp.eq.s32.totalorder %v304, %v3436
      %vm3513 = vcmp.eq.s32.totalorder %v303, %v3439
      %vm3514 = vcmp.eq.s32.totalorder %v304, %v3439
      %vm3515 = vcmp.eq.s32.totalorder %v303, %v3442
      %vm3516 = vcmp.eq.s32.totalorder %v304, %v3442
      %vm3517 = vcmp.eq.s32.totalorder %v303, %v3445
      %vm3518 = vcmp.eq.s32.totalorder %v304, %v3445
      %vm3519 = vcmp.eq.s32.totalorder %v303, %v3448
      %vm3520 = vcmp.eq.s32.totalorder %v304, %v3448
      %vm3521 = vcmp.eq.s32.totalorder %v303, %v3451
      %vm3522 = vcmp.eq.s32.totalorder %v304, %v3451
      %vm3523 = vcmp.eq.s32.totalorder %v303, %v3454
      %vm3524 = vcmp.eq.s32.totalorder %v304, %v3454
      %vm3525 = vcmp.eq.s32.totalorder %v303, %v3457
      %vm3526 = vcmp.eq.s32.totalorder %v304, %v3457
      %vm3527 = vcmp.eq.s32.totalorder %v303, %v3460
      %vm3528 = vcmp.eq.s32.totalorder %v304, %v3460
      %vm3529 = vcmp.eq.s32.totalorder %v303, %v3463
      %vm3530 = vcmp.eq.s32.totalorder %v304, %v3463
      %vm3531 = vcmp.eq.s32.totalorder %v303, %v3466
      %vm3532 = vcmp.eq.s32.totalorder %v304, %v3466
      %vm3533 = vcmp.eq.s32.totalorder %v303, %v3469
      %vm3534 = vcmp.eq.s32.totalorder %v304, %v3469
      %vm3535 = vcmp.eq.s32.totalorder %v303, %v3472
      %vm3536 = vcmp.eq.s32.totalorder %v304, %v3472
      %v3537 = vsel %vm3473, 1, 0
      %v3538 = vsel %vm3474, 1, 0
      %v3539 = vsel %vm3475, 1, 0
      %v3540 = vsel %vm3476, 1, 0
      %v3541 = vsel %vm3477, 1, 0
      %v3542 = vsel %vm3478, 1, 0
      %v3543 = vsel %vm3479, 1, 0
      %v3544 = vsel %vm3480, 1, 0
      %v3545 = vsel %vm3481, 1, 0
      %v3546 = vsel %vm3482, 1, 0
      %v3547 = vsel %vm3483, 1, 0
      %v3548 = vsel %vm3484, 1, 0
      %v3549 = vsel %vm3485, 1, 0
      %v3550 = vsel %vm3486, 1, 0
      %v3551 = vsel %vm3487, 1, 0
      %v3552 = vsel %vm3488, 1, 0
      %v3553 = vsel %vm3489, 1, 0
      %v3554 = vsel %vm3490, 1, 0
      %v3555 = vsel %vm3491, 1, 0
      %v3556 = vsel %vm3492, 1, 0
      %v3557 = vsel %vm3493, 1, 0
      %v3558 = vsel %vm3494, 1, 0
      %v3559 = vsel %vm3495, 1, 0
      %v3560 = vsel %vm3496, 1, 0
      %v3561 = vsel %vm3497, 1, 0
      %v3562 = vsel %vm3498, 1, 0
      %v3563 = vsel %vm3499, 1, 0
      %v3564 = vsel %vm3500, 1, 0
      %v3565 = vsel %vm3501, 1, 0
      %v3566 = vsel %vm3502, 1, 0
      %v3567 = vsel %vm3503, 1, 0
      %v3568 = vsel %vm3504, 1, 0
      %v3569 = vsel %vm3505, 1, 0
      %v3570 = vsel %vm3506, 1, 0
      %v3571 = vsel %vm3507, 1, 0
      %v3572 = vsel %vm3508, 1, 0
      %v3573 = vsel %vm3509, 1, 0
      %v3574 = vsel %vm3510, 1, 0
      %v3575 = vsel %vm3511, 1, 0
      %v3576 = vsel %vm3512, 1, 0
      %v3577 = vsel %vm3513, 1, 0
      %v3578 = vsel %vm3514, 1, 0
      %v3579 = vsel %vm3515, 1, 0
      %v3580 = vsel %vm3516, 1, 0
      %v3581 = vsel %vm3517, 1, 0
      %v3582 = vsel %vm3518, 1, 0
      %v3583 = vsel %vm3519, 1, 0
      %v3584 = vsel %vm3520, 1, 0
      %v3585 = vsel %vm3521, 1, 0
      %v3586 = vsel %vm3522, 1, 0
      %v3587 = vsel %vm3523, 1, 0
      %v3588 = vsel %vm3524, 1, 0
      %v3589 = vsel %vm3525, 1, 0
      %v3590 = vsel %vm3526, 1, 0
      %v3591 = vsel %vm3527, 1, 0
      %v3592 = vsel %vm3528, 1, 0
      %v3593 = vsel %vm3529, 1, 0
      %v3594 = vsel %vm3530, 1, 0
      %v3595 = vsel %vm3531, 1, 0
      %v3596 = vsel %vm3532, 1, 0
      %v3597 = vsel %vm3533, 1, 0
      %v3598 = vsel %vm3534, 1, 0
      %v3599 = vsel %vm3535, 1, 0
      %v3600 = vsel %vm3536, 1, 0
      %v3601 = vcvt.s32.f32 %v3537
      %v3602 = vcvt.s32.f32 %v3538
      %v3603 = vcvt.s32.f32 %v3539
      %v3604 = vcvt.s32.f32 %v3540
      %v3605 = vcvt.s32.f32 %v3541
      %v3606 = vcvt.s32.f32 %v3542
      %v3607 = vcvt.s32.f32 %v3543
      %v3608 = vcvt.s32.f32 %v3544
      %v3609 = vcvt.s32.f32 %v3545
      %v3610 = vcvt.s32.f32 %v3546
      %v3611 = vcvt.s32.f32 %v3547
      %v3612 = vcvt.s32.f32 %v3548
      %v3613 = vcvt.s32.f32 %v3549
      %v3614 = vcvt.s32.f32 %v3550
      %v3615 = vcvt.s32.f32 %v3551
      %v3616 = vcvt.s32.f32 %v3552
      %v3617 = vcvt.s32.f32 %v3553
      %v3618 = vcvt.s32.f32 %v3554
      %v3619 = vcvt.s32.f32 %v3555
      %v3620 = vcvt.s32.f32 %v3556
      %v3621 = vcvt.s32.f32 %v3557
      %v3622 = vcvt.s32.f32 %v3558
      %v3623 = vcvt.s32.f32 %v3559
      %v3624 = vcvt.s32.f32 %v3560
      %v3625 = vcvt.s32.f32 %v3561
      %v3626 = vcvt.s32.f32 %v3562
      %v3627 = vcvt.s32.f32 %v3563
      %v3628 = vcvt.s32.f32 %v3564
      %v3629 = vcvt.s32.f32 %v3565
      %v3630 = vcvt.s32.f32 %v3566
      %v3631 = vcvt.s32.f32 %v3567
      %v3632 = vcvt.s32.f32 %v3568
      %v3633 = vcvt.s32.f32 %v3569
      %v3634 = vcvt.s32.f32 %v3570
      %v3635 = vcvt.s32.f32 %v3571
      %v3636 = vcvt.s32.f32 %v3572
      %v3637 = vcvt.s32.f32 %v3573
      %v3638 = vcvt.s32.f32 %v3574
      %v3639 = vcvt.s32.f32 %v3575
      %v3640 = vcvt.s32.f32 %v3576
      %v3641 = vcvt.s32.f32 %v3577
      %v3642 = vcvt.s32.f32 %v3578
      %v3643 = vcvt.s32.f32 %v3579
      %v3644 = vcvt.s32.f32 %v3580
      %v3645 = vcvt.s32.f32 %v3581
      %v3646 = vcvt.s32.f32 %v3582
      %v3647 = vcvt.s32.f32 %v3583
      %v3648 = vcvt.s32.f32 %v3584
      %v3649 = vcvt.s32.f32 %v3585
      %v3650 = vcvt.s32.f32 %v3586
      %v3651 = vcvt.s32.f32 %v3587
      %v3652 = vcvt.s32.f32 %v3588
      %v3653 = vcvt.s32.f32 %v3589
      %v3654 = vcvt.s32.f32 %v3590
      %v3655 = vcvt.s32.f32 %v3591
      %v3656 = vcvt.s32.f32 %v3592
      %v3657 = vcvt.s32.f32 %v3593
      %v3658 = vcvt.s32.f32 %v3594
      %v3659 = vcvt.s32.f32 %v3595
      %v3660 = vcvt.s32.f32 %v3596
      %v3661 = vcvt.s32.f32 %v3597
      %v3662 = vcvt.s32.f32 %v3598
      %v3663 = vcvt.s32.f32 %v3599
      %v3664 = vcvt.s32.f32 %v3600
      %3666 = vset.pattern.permute.xlu0 0
      %3667 = vperm.xlu0 %3666, %v2865
      %v3668 = vpop.permute.xlu0 %3667
      %3671 = vset.pattern.permute.xlu0 0
      %3672 = vperm.xlu0 %3671, %v2866
      %v3673 = vpop.permute.xlu0 %3672
      %3676 = vset.pattern.permute.xlu0 0
      %3677 = vperm.xlu0 %3676, %v2867
      %v3678 = vpop.permute.xlu0 %3677
      %3681 = vset.pattern.permute.xlu0 0
      %3682 = vperm.xlu0 %3681, %v2868
      %v3683 = vpop.permute.xlu0 %3682
      %3686 = vset.pattern.permute.xlu0 0
      %3687 = vperm.xlu0 %3686, %v2869
      %v3688 = vpop.permute.xlu0 %3687
      %3691 = vset.pattern.permute.xlu0 0
      %3692 = vperm.xlu0 %3691, %v2870
      %v3693 = vpop.permute.xlu0 %3692
      %3696 = vset.pattern.permute.xlu0 0
      %3697 = vperm.xlu0 %3696, %v2871
      %v3698 = vpop.permute.xlu0 %3697
      %3701 = vset.pattern.permute.xlu0 0
      %3702 = vperm.xlu0 %3701, %v2872
      %v3703 = vpop.permute.xlu0 %3702
      %3706 = vset.pattern.permute.xlu0 0
      %3707 = vperm.xlu0 %3706, %v2873
      %v3708 = vpop.permute.xlu0 %3707
      %3711 = vset.pattern.permute.xlu0 0
      %3712 = vperm.xlu0 %3711, %v2874
      %v3713 = vpop.permute.xlu0 %3712
      %3716 = vset.pattern.permute.xlu0 0
      %3717 = vperm.xlu0 %3716, %v2875
      %v3718 = vpop.permute.xlu0 %3717
      %3721 = vset.pattern.permute.xlu0 0
      %3722 = vperm.xlu0 %3721, %v2876
      %v3723 = vpop.permute.xlu0 %3722
      %3726 = vset.pattern.permute.xlu0 0
      %3727 = vperm.xlu0 %3726, %v2877
      %v3728 = vpop.permute.xlu0 %3727
      %3731 = vset.pattern.permute.xlu0 0
      %3732 = vperm.xlu0 %3731, %v2878
      %v3733 = vpop.permute.xlu0 %3732
      %3736 = vset.pattern.permute.xlu0 0
      %3737 = vperm.xlu0 %3736, %v2879
      %v3738 = vpop.permute.xlu0 %3737
      %3741 = vset.pattern.permute.xlu0 0
      %3742 = vperm.xlu0 %3741, %v2880
      %v3743 = vpop.permute.xlu0 %3742
      %3746 = vset.pattern.permute.xlu0 0
      %3747 = vperm.xlu0 %3746, %v2881
      %v3748 = vpop.permute.xlu0 %3747
      %3751 = vset.pattern.permute.xlu0 0
      %3752 = vperm.xlu0 %3751, %v2882
      %v3753 = vpop.permute.xlu0 %3752
      %3756 = vset.pattern.permute.xlu0 0
      %3757 = vperm.xlu0 %3756, %v2883
      %v3758 = vpop.permute.xlu0 %3757
      %3761 = vset.pattern.permute.xlu0 0
      %3762 = vperm.xlu0 %3761, %v2884
      %v3763 = vpop.permute.xlu0 %3762
      %3766 = vset.pattern.permute.xlu0 0
      %3767 = vperm.xlu0 %3766, %v2885
      %v3768 = vpop.permute.xlu0 %3767
      %3771 = vset.pattern.permute.xlu0 0
      %3772 = vperm.xlu0 %3771, %v2886
      %v3773 = vpop.permute.xlu0 %3772
      %3776 = vset.pattern.permute.xlu0 0
      %3777 = vperm.xlu0 %3776, %v2887
      %v3778 = vpop.permute.xlu0 %3777
      %3781 = vset.pattern.permute.xlu0 0
      %3782 = vperm.xlu0 %3781, %v2888
      %v3783 = vpop.permute.xlu0 %3782
      %3786 = vset.pattern.permute.xlu0 0
      %3787 = vperm.xlu0 %3786, %v2889
      %v3788 = vpop.permute.xlu0 %3787
      %3791 = vset.pattern.permute.xlu0 0
      %3792 = vperm.xlu0 %3791, %v2890
      %v3793 = vpop.permute.xlu0 %3792
      %3796 = vset.pattern.permute.xlu0 0
      %3797 = vperm.xlu0 %3796, %v2891
      %v3798 = vpop.permute.xlu0 %3797
      %3801 = vset.pattern.permute.xlu0 0
      %3802 = vperm.xlu0 %3801, %v2892
      %v3803 = vpop.permute.xlu0 %3802
      %3806 = vset.pattern.permute.xlu0 0
      %3807 = vperm.xlu0 %3806, %v2893
      %v3808 = vpop.permute.xlu0 %3807
      %3811 = vset.pattern.permute.xlu0 0
      %3812 = vperm.xlu0 %3811, %v2894
      %v3813 = vpop.permute.xlu0 %3812
      %3816 = vset.pattern.permute.xlu0 0
      %3817 = vperm.xlu0 %3816, %v2895
      %v3818 = vpop.permute.xlu0 %3817
      %3821 = vset.pattern.permute.xlu0 0
      %3822 = vperm.xlu0 %3821, %v2896
      %v3823 = vpop.permute.xlu0 %3822
      %v3825 = vmul.f32 %v3601, %v3668
      %v3826 = vmul.f32 %v3602, %v3668
      %v3827 = vmul.f32 %v3603, %v3673
      %v3828 = vmul.f32 %v3604, %v3673
      %v3829 = vmul.f32 %v3605, %v3678
      %v3830 = vmul.f32 %v3606, %v3678
      %v3831 = vmul.f32 %v3607, %v3683
      %v3832 = vmul.f32 %v3608, %v3683
      %v3833 = vmul.f32 %v3609, %v3688
      %v3834 = vmul.f32 %v3610, %v3688
      %v3835 = vmul.f32 %v3611, %v3693
      %v3836 = vmul.f32 %v3612, %v3693
      %v3837 = vmul.f32 %v3613, %v3698
      %v3838 = vmul.f32 %v3614, %v3698
      %v3839 = vmul.f32 %v3615, %v3703
      %v3840 = vmul.f32 %v3616, %v3703
      %v3841 = vmul.f32 %v3617, %v3708
      %v3842 = vmul.f32 %v3618, %v3708
      %v3843 = vmul.f32 %v3619, %v3713
      %v3844 = vmul.f32 %v3620, %v3713
      %v3845 = vmul.f32 %v3621, %v3718
      %v3846 = vmul.f32 %v3622, %v3718
      %v3847 = vmul.f32 %v3623, %v3723
      %v3848 = vmul.f32 %v3624, %v3723
      %v3849 = vmul.f32 %v3625, %v3728
      %v3850 = vmul.f32 %v3626, %v3728
      %v3851 = vmul.f32 %v3627, %v3733
      %v3852 = vmul.f32 %v3628, %v3733
      %v3853 = vmul.f32 %v3629, %v3738
      %v3854 = vmul.f32 %v3630, %v3738
      %v3855 = vmul.f32 %v3631, %v3743
      %v3856 = vmul.f32 %v3632, %v3743
      %v3857 = vmul.f32 %v3633, %v3748
      %v3858 = vmul.f32 %v3634, %v3748
      %v3859 = vmul.f32 %v3635, %v3753
      %v3860 = vmul.f32 %v3636, %v3753
      %v3861 = vmul.f32 %v3637, %v3758
      %v3862 = vmul.f32 %v3638, %v3758
      %v3863 = vmul.f32 %v3639, %v3763
      %v3864 = vmul.f32 %v3640, %v3763
      %v3865 = vmul.f32 %v3641, %v3768
      %v3866 = vmul.f32 %v3642, %v3768
      %v3867 = vmul.f32 %v3643, %v3773
      %v3868 = vmul.f32 %v3644, %v3773
      %v3869 = vmul.f32 %v3645, %v3778
      %v3870 = vmul.f32 %v3646, %v3778
      %v3871 = vmul.f32 %v3647, %v3783
      %v3872 = vmul.f32 %v3648, %v3783
      %v3873 = vmul.f32 %v3649, %v3788
      %v3874 = vmul.f32 %v3650, %v3788
      %v3875 = vmul.f32 %v3651, %v3793
      %v3876 = vmul.f32 %v3652, %v3793
      %v3877 = vmul.f32 %v3653, %v3798
      %v3878 = vmul.f32 %v3654, %v3798
      %v3879 = vmul.f32 %v3655, %v3803
      %v3880 = vmul.f32 %v3656, %v3803
      %v3881 = vmul.f32 %v3657, %v3808
      %v3882 = vmul.f32 %v3658, %v3808
      %v3883 = vmul.f32 %v3659, %v3813
      %v3884 = vmul.f32 %v3660, %v3813
      %v3885 = vmul.f32 %v3661, %v3818
      %v3886 = vmul.f32 %v3662, %v3818
      %v3887 = vmul.f32 %v3663, %v3823
      %v3888 = vmul.f32 %v3664, %v3823
      %v3889 = vadd.f32 %v2673, %v3825
      %v3890 = vadd.f32 %v2674, %v3826
      %v3891 = vadd.f32 %v2675, %v3827
      %v3892 = vadd.f32 %v2676, %v3828
      %v3893 = vadd.f32 %v2677, %v3829
      %v3894 = vadd.f32 %v2678, %v3830
      %v3895 = vadd.f32 %v2679, %v3831
      %v3896 = vadd.f32 %v2680, %v3832
      %v3897 = vadd.f32 %v2681, %v3833
      %v3898 = vadd.f32 %v2682, %v3834
      %v3899 = vadd.f32 %v2683, %v3835
      %v3900 = vadd.f32 %v2684, %v3836
      %v3901 = vadd.f32 %v2685, %v3837
      %v3902 = vadd.f32 %v2686, %v3838
      %v3903 = vadd.f32 %v2687, %v3839
      %v3904 = vadd.f32 %v2688, %v3840
      %v3905 = vadd.f32 %v2689, %v3841
      %v3906 = vadd.f32 %v2690, %v3842
      %v3907 = vadd.f32 %v2691, %v3843
      %v3908 = vadd.f32 %v2692, %v3844
      %v3909 = vadd.f32 %v2693, %v3845
      %v3910 = vadd.f32 %v2694, %v3846
      %v3911 = vadd.f32 %v2695, %v3847
      %v3912 = vadd.f32 %v2696, %v3848
      %v3913 = vadd.f32 %v2697, %v3849
      %v3914 = vadd.f32 %v2698, %v3850
      %v3915 = vadd.f32 %v2699, %v3851
      %v3916 = vadd.f32 %v2700, %v3852
      %v3917 = vadd.f32 %v2701, %v3853
      %v3918 = vadd.f32 %v2702, %v3854
      %v3919 = vadd.f32 %v2703, %v3855
      %v3920 = vadd.f32 %v2704, %v3856
      %v3921 = vadd.f32 %v2705, %v3857
      %v3922 = vadd.f32 %v2706, %v3858
      %v3923 = vadd.f32 %v2707, %v3859
      %v3924 = vadd.f32 %v2708, %v3860
      %v3925 = vadd.f32 %v2709, %v3861
      %v3926 = vadd.f32 %v2710, %v3862
      %v3927 = vadd.f32 %v2711, %v3863
      %v3928 = vadd.f32 %v2712, %v3864
      %v3929 = vadd.f32 %v2713, %v3865
      %v3930 = vadd.f32 %v2714, %v3866
      %v3931 = vadd.f32 %v2715, %v3867
      %v3932 = vadd.f32 %v2716, %v3868
      %v3933 = vadd.f32 %v2717, %v3869
      %v3934 = vadd.f32 %v2718, %v3870
      %v3935 = vadd.f32 %v2719, %v3871
      %v3936 = vadd.f32 %v2720, %v3872
      %v3937 = vadd.f32 %v2721, %v3873
      %v3938 = vadd.f32 %v2722, %v3874
      %v3939 = vadd.f32 %v2723, %v3875
      %v3940 = vadd.f32 %v2724, %v3876
      %v3941 = vadd.f32 %v2725, %v3877
      %v3942 = vadd.f32 %v2726, %v3878
      %v3943 = vadd.f32 %v2727, %v3879
      %v3944 = vadd.f32 %v2728, %v3880
      %v3945 = vadd.f32 %v2729, %v3881
      %v3946 = vadd.f32 %v2730, %v3882
      %v3947 = vadd.f32 %v2731, %v3883
      %v3948 = vadd.f32 %v2732, %v3884
      %v3949 = vadd.f32 %v2733, %v3885
      %v3950 = vadd.f32 %v2734, %v3886
      %v3951 = vadd.f32 %v2735, %v3887
      %v3952 = vadd.f32 %v2736, %v3888
      %v3953 = vmul.f32 %v337, %v2770
      %v3954 = vmul.f32 %v338, %v2772
      %v3955 = vmul.f32 %v339, %v2774
      %v3956 = vmul.f32 %v340, %v2776
      %v3957 = vmul.f32 %v341, %v2778
      %v3958 = vmul.f32 %v342, %v2780
      %v3959 = vmul.f32 %v343, %v2782
      %v3960 = vmul.f32 %v344, %v2784
      %v3961 = vmul.f32 %v345, %v2786
      %v3962 = vmul.f32 %v346, %v2788
      %v3963 = vmul.f32 %v347, %v2790
      %v3964 = vmul.f32 %v348, %v2792
      %v3965 = vmul.f32 %v349, %v2794
      %v3966 = vmul.f32 %v350, %v2796
      %v3967 = vmul.f32 %v351, %v2798
      %v3968 = vmul.f32 %v352, %v2800
      %v3969 = vmul.f32 %v353, %v2802
      %v3970 = vmul.f32 %v354, %v2804
      %v3971 = vmul.f32 %v355, %v2806
      %v3972 = vmul.f32 %v356, %v2808
      %v3973 = vmul.f32 %v357, %v2810
      %v3974 = vmul.f32 %v358, %v2812
      %v3975 = vmul.f32 %v359, %v2814
      %v3976 = vmul.f32 %v360, %v2816
      %v3977 = vmul.f32 %v361, %v2818
      %v3978 = vmul.f32 %v362, %v2820
      %v3979 = vmul.f32 %v363, %v2822
      %v3980 = vmul.f32 %v364, %v2824
      %v3981 = vmul.f32 %v365, %v2826
      %v3982 = vmul.f32 %v366, %v2828
      %v3983 = vmul.f32 %v367, %v2830
      %v3984 = vmul.f32 %v368, %v2832
      %vm3985 = vmand %vm1873, %vm2993
      %vm3986 = vmand %vm1874, %vm2994
      %vm3987 = vmand %vm1875, %vm2995
      %vm3988 = vmand %vm1876, %vm2996
      %vm3989 = vmand %vm1877, %vm2997
      %vm3990 = vmand %vm1878, %vm2998
      %vm3991 = vmand %vm1879, %vm2999
      %vm3992 = vmand %vm1880, %vm3000
      %vm3993 = vmand %vm1881, %vm3001
      %vm3994 = vmand %vm1882, %vm3002
      %vm3995 = vmand %vm1883, %vm3003
      %vm3996 = vmand %vm1884, %vm3004
      %vm3997 = vmand %vm1885, %vm3005
      %vm3998 = vmand %vm1886, %vm3006
      %vm3999 = vmand %vm1887, %vm3007
      %vm4000 = vmand %vm1888, %vm3008
      %vm4001 = vmand %vm1889, %vm3009
      %vm4002 = vmand %vm1890, %vm3010
      %vm4003 = vmand %vm1891, %vm3011
      %vm4004 = vmand %vm1892, %vm3012
      %vm4005 = vmand %vm1893, %vm3013
      %vm4006 = vmand %vm1894, %vm3014
      %vm4007 = vmand %vm1895, %vm3015
      %vm4008 = vmand %vm1896, %vm3016
      %vm4009 = vmand %vm1897, %vm3017
      %vm4010 = vmand %vm1898, %vm3018
      %vm4011 = vmand %vm1899, %vm3019
      %vm4012 = vmand %vm1900, %vm3020
      %vm4013 = vmand %vm1901, %vm3021
      %vm4014 = vmand %vm1902, %vm3022
      %vm4015 = vmand %vm1903, %vm3023
      %vm4016 = vmand %vm1904, %vm3024
      %vm4017 = vmand %vm3985, %vm3153
      %vm4018 = vmand %vm3986, %vm3154
      %vm4019 = vmand %vm3987, %vm3155
      %vm4020 = vmand %vm3988, %vm3156
      %vm4021 = vmand %vm3989, %vm3157
      %vm4022 = vmand %vm3990, %vm3158
      %vm4023 = vmand %vm3991, %vm3159
      %vm4024 = vmand %vm3992, %vm3160
      %vm4025 = vmand %vm3993, %vm3161
      %vm4026 = vmand %vm3994, %vm3162
      %vm4027 = vmand %vm3995, %vm3163
      %vm4028 = vmand %vm3996, %vm3164
      %vm4029 = vmand %vm3997, %vm3165
      %vm4030 = vmand %vm3998, %vm3166
      %vm4031 = vmand %vm3999, %vm3167
      %vm4032 = vmand %vm4000, %vm3168
      %vm4033 = vmand %vm4001, %vm3169
      %vm4034 = vmand %vm4002, %vm3170
      %vm4035 = vmand %vm4003, %vm3171
      %vm4036 = vmand %vm4004, %vm3172
      %vm4037 = vmand %vm4005, %vm3173
      %vm4038 = vmand %vm4006, %vm3174
      %vm4039 = vmand %vm4007, %vm3175
      %vm4040 = vmand %vm4008, %vm3176
      %vm4041 = vmand %vm4009, %vm3177
      %vm4042 = vmand %vm4010, %vm3178
      %vm4043 = vmand %vm4011, %vm3179
      %vm4044 = vmand %vm4012, %vm3180
      %vm4045 = vmand %vm4013, %vm3181
      %vm4046 = vmand %vm4014, %vm3182
      %vm4047 = vmand %vm4015, %vm3183
      %vm4048 = vmand %vm4016, %vm3184
      %v4049 = vadd.s32 %v3217, %v1970
      %v4050 = vadd.s32 %v3218, %v1972
      %v4051 = vadd.s32 %v3219, %v1974
      %v4052 = vadd.s32 %v3220, %v1976
      %v4053 = vadd.s32 %v3221, %v1978
      %v4054 = vadd.s32 %v3222, %v1980
      %v4055 = vadd.s32 %v3223, %v1982
      %v4056 = vadd.s32 %v3224, %v1984
      %v4057 = vadd.s32 %v3225, %v1986
      %v4058 = vadd.s32 %v3226, %v1988
      %v4059 = vadd.s32 %v3227, %v1990
      %v4060 = vadd.s32 %v3228, %v1992
      %v4061 = vadd.s32 %v3229, %v1994
      %v4062 = vadd.s32 %v3230, %v1996
      %v4063 = vadd.s32 %v3231, %v1998
      %v4064 = vadd.s32 %v3232, %v2000
      %v4065 = vadd.s32 %v3233, %v2002
      %v4066 = vadd.s32 %v3234, %v2004
      %v4067 = vadd.s32 %v3235, %v2006
      %v4068 = vadd.s32 %v3236, %v2008
      %v4069 = vadd.s32 %v3237, %v2010
      %v4070 = vadd.s32 %v3238, %v2012
      %v4071 = vadd.s32 %v3239, %v2014
      %v4072 = vadd.s32 %v3240, %v2016
      %v4073 = vadd.s32 %v3241, %v2018
      %v4074 = vadd.s32 %v3242, %v2020
      %v4075 = vadd.s32 %v3243, %v2022
      %v4076 = vadd.s32 %v3244, %v2024
      %v4077 = vadd.s32 %v3245, %v2026
      %v4078 = vadd.s32 %v3246, %v2028
      %v4079 = vadd.s32 %v3247, %v2030
      %v4080 = vadd.s32 %v3248, %v2032
      %4081 = vrot.lane.b32.xlu0 %v4049, 127
      %v4082 = vpop.permute.xlu0 %4081
      %4083 = vrot.lane.b32.xlu0 %v4050, 127
      %v4084 = vpop.permute.xlu0 %4083
      %4085 = vrot.lane.b32.xlu0 %v4051, 127
      %v4086 = vpop.permute.xlu0 %4085
      %4087 = vrot.lane.b32.xlu0 %v4052, 127
      %v4088 = vpop.permute.xlu0 %4087
      %4089 = vrot.lane.b32.xlu0 %v4053, 127
      %v4090 = vpop.permute.xlu0 %4089
      %4091 = vrot.lane.b32.xlu0 %v4054, 127
      %v4092 = vpop.permute.xlu0 %4091
      %4093 = vrot.lane.b32.xlu0 %v4055, 127
      %v4094 = vpop.permute.xlu0 %4093
      %4095 = vrot.lane.b32.xlu0 %v4056, 127
      %v4096 = vpop.permute.xlu0 %4095
      %4097 = vrot.lane.b32.xlu0 %v4057, 127
      %v4098 = vpop.permute.xlu0 %4097
      %4099 = vrot.lane.b32.xlu0 %v4058, 127
      %v4100 = vpop.permute.xlu0 %4099
      %4101 = vrot.lane.b32.xlu0 %v4059, 127
      %v4102 = vpop.permute.xlu0 %4101
      %4103 = vrot.lane.b32.xlu0 %v4060, 127
      %v4104 = vpop.permute.xlu0 %4103
      %4105 = vrot.lane.b32.xlu0 %v4061, 127
      %v4106 = vpop.permute.xlu0 %4105
      %4107 = vrot.lane.b32.xlu0 %v4062, 127
      %v4108 = vpop.permute.xlu0 %4107
      %4109 = vrot.lane.b32.xlu0 %v4063, 127
      %v4110 = vpop.permute.xlu0 %4109
      %4111 = vrot.lane.b32.xlu0 %v4064, 127
      %v4112 = vpop.permute.xlu0 %4111
      %4113 = vrot.lane.b32.xlu0 %v4065, 127
      %v4114 = vpop.permute.xlu0 %4113
      %4115 = vrot.lane.b32.xlu0 %v4066, 127
      %v4116 = vpop.permute.xlu0 %4115
      %4117 = vrot.lane.b32.xlu0 %v4067, 127
      %v4118 = vpop.permute.xlu0 %4117
      %4119 = vrot.lane.b32.xlu0 %v4068, 127
      %v4120 = vpop.permute.xlu0 %4119
      %4121 = vrot.lane.b32.xlu0 %v4069, 127
      %v4122 = vpop.permute.xlu0 %4121
      %4123 = vrot.lane.b32.xlu0 %v4070, 127
      %v4124 = vpop.permute.xlu0 %4123
      %4125 = vrot.lane.b32.xlu0 %v4071, 127
      %v4126 = vpop.permute.xlu0 %4125
      %4127 = vrot.lane.b32.xlu0 %v4072, 127
      %v4128 = vpop.permute.xlu0 %4127
      %4129 = vrot.lane.b32.xlu0 %v4073, 127
      %v4130 = vpop.permute.xlu0 %4129
      %4131 = vrot.lane.b32.xlu0 %v4074, 127
      %v4132 = vpop.permute.xlu0 %4131
      %4133 = vrot.lane.b32.xlu0 %v4075, 127
      %v4134 = vpop.permute.xlu0 %4133
      %4135 = vrot.lane.b32.xlu0 %v4076, 127
      %v4136 = vpop.permute.xlu0 %4135
      %4137 = vrot.lane.b32.xlu0 %v4077, 127
      %v4138 = vpop.permute.xlu0 %4137
      %4139 = vrot.lane.b32.xlu0 %v4078, 127
      %v4140 = vpop.permute.xlu0 %4139
      %4141 = vrot.lane.b32.xlu0 %v4079, 127
      %v4142 = vpop.permute.xlu0 %4141
      %4143 = vrot.lane.b32.xlu0 %v4080, 127
      %v4144 = vpop.permute.xlu0 %4143
      %v4145 = vsel %vm4017, %v4082, 4294967295
      %v4146 = vsel %vm4018, %v4084, 4294967295
      %v4147 = vsel %vm4019, %v4086, 4294967295
      %v4148 = vsel %vm4020, %v4088, 4294967295
      %v4149 = vsel %vm4021, %v4090, 4294967295
      %v4150 = vsel %vm4022, %v4092, 4294967295
      %v4151 = vsel %vm4023, %v4094, 4294967295
      %v4152 = vsel %vm4024, %v4096, 4294967295
      %v4153 = vsel %vm4025, %v4098, 4294967295
      %v4154 = vsel %vm4026, %v4100, 4294967295
      %v4155 = vsel %vm4027, %v4102, 4294967295
      %v4156 = vsel %vm4028, %v4104, 4294967295
      %v4157 = vsel %vm4029, %v4106, 4294967295
      %v4158 = vsel %vm4030, %v4108, 4294967295
      %v4159 = vsel %vm4031, %v4110, 4294967295
      %v4160 = vsel %vm4032, %v4112, 4294967295
      %v4161 = vsel %vm4033, %v4114, 4294967295
      %v4162 = vsel %vm4034, %v4116, 4294967295
      %v4163 = vsel %vm4035, %v4118, 4294967295
      %v4164 = vsel %vm4036, %v4120, 4294967295
      %v4165 = vsel %vm4037, %v4122, 4294967295
      %v4166 = vsel %vm4038, %v4124, 4294967295
      %v4167 = vsel %vm4039, %v4126, 4294967295
      %v4168 = vsel %vm4040, %v4128, 4294967295
      %v4169 = vsel %vm4041, %v4130, 4294967295
      %v4170 = vsel %vm4042, %v4132, 4294967295
      %v4171 = vsel %vm4043, %v4134, 4294967295
      %v4172 = vsel %vm4044, %v4136, 4294967295
      %v4173 = vsel %vm4045, %v4138, 4294967295
      %v4174 = vsel %vm4046, %v4140, 4294967295
      %v4175 = vsel %vm4047, %v4142, 4294967295
      %v4176 = vsel %vm4048, %v4144, 4294967295
      %4177 = vset.pattern.permute.xlu0 0
      %4178 = vperm.xlu0 %4177, %v4145
      %v4179 = vpop.permute.xlu0 %4178
      %4180 = vset.pattern.permute.xlu0 0
      %4181 = vperm.xlu0 %4180, %v4146
      %v4182 = vpop.permute.xlu0 %4181
      %4183 = vset.pattern.permute.xlu0 0
      %4184 = vperm.xlu0 %4183, %v4147
      %v4185 = vpop.permute.xlu0 %4184
      %4186 = vset.pattern.permute.xlu0 0
      %4187 = vperm.xlu0 %4186, %v4148
      %v4188 = vpop.permute.xlu0 %4187
      %4189 = vset.pattern.permute.xlu0 0
      %4190 = vperm.xlu0 %4189, %v4149
      %v4191 = vpop.permute.xlu0 %4190
      %4192 = vset.pattern.permute.xlu0 0
      %4193 = vperm.xlu0 %4192, %v4150
      %v4194 = vpop.permute.xlu0 %4193
      %4195 = vset.pattern.permute.xlu0 0
      %4196 = vperm.xlu0 %4195, %v4151
      %v4197 = vpop.permute.xlu0 %4196
      %4198 = vset.pattern.permute.xlu0 0
      %4199 = vperm.xlu0 %4198, %v4152
      %v4200 = vpop.permute.xlu0 %4199
      %4201 = vset.pattern.permute.xlu0 0
      %4202 = vperm.xlu0 %4201, %v4153
      %v4203 = vpop.permute.xlu0 %4202
      %4204 = vset.pattern.permute.xlu0 0
      %4205 = vperm.xlu0 %4204, %v4154
      %v4206 = vpop.permute.xlu0 %4205
      %4207 = vset.pattern.permute.xlu0 0
      %4208 = vperm.xlu0 %4207, %v4155
      %v4209 = vpop.permute.xlu0 %4208
      %4210 = vset.pattern.permute.xlu0 0
      %4211 = vperm.xlu0 %4210, %v4156
      %v4212 = vpop.permute.xlu0 %4211
      %4213 = vset.pattern.permute.xlu0 0
      %4214 = vperm.xlu0 %4213, %v4157
      %v4215 = vpop.permute.xlu0 %4214
      %4216 = vset.pattern.permute.xlu0 0
      %4217 = vperm.xlu0 %4216, %v4158
      %v4218 = vpop.permute.xlu0 %4217
      %4219 = vset.pattern.permute.xlu0 0
      %4220 = vperm.xlu0 %4219, %v4159
      %v4221 = vpop.permute.xlu0 %4220
      %4222 = vset.pattern.permute.xlu0 0
      %4223 = vperm.xlu0 %4222, %v4160
      %v4224 = vpop.permute.xlu0 %4223
      %4225 = vset.pattern.permute.xlu0 0
      %4226 = vperm.xlu0 %4225, %v4161
      %v4227 = vpop.permute.xlu0 %4226
      %4228 = vset.pattern.permute.xlu0 0
      %4229 = vperm.xlu0 %4228, %v4162
      %v4230 = vpop.permute.xlu0 %4229
      %4231 = vset.pattern.permute.xlu0 0
      %4232 = vperm.xlu0 %4231, %v4163
      %v4233 = vpop.permute.xlu0 %4232
      %4234 = vset.pattern.permute.xlu0 0
      %4235 = vperm.xlu0 %4234, %v4164
      %v4236 = vpop.permute.xlu0 %4235
      %4237 = vset.pattern.permute.xlu0 0
      %4238 = vperm.xlu0 %4237, %v4165
      %v4239 = vpop.permute.xlu0 %4238
      %4240 = vset.pattern.permute.xlu0 0
      %4241 = vperm.xlu0 %4240, %v4166
      %v4242 = vpop.permute.xlu0 %4241
      %4243 = vset.pattern.permute.xlu0 0
      %4244 = vperm.xlu0 %4243, %v4167
      %v4245 = vpop.permute.xlu0 %4244
      %4246 = vset.pattern.permute.xlu0 0
      %4247 = vperm.xlu0 %4246, %v4168
      %v4248 = vpop.permute.xlu0 %4247
      %4249 = vset.pattern.permute.xlu0 0
      %4250 = vperm.xlu0 %4249, %v4169
      %v4251 = vpop.permute.xlu0 %4250
      %4252 = vset.pattern.permute.xlu0 0
      %4253 = vperm.xlu0 %4252, %v4170
      %v4254 = vpop.permute.xlu0 %4253
      %4255 = vset.pattern.permute.xlu0 0
      %4256 = vperm.xlu0 %4255, %v4171
      %v4257 = vpop.permute.xlu0 %4256
      %4258 = vset.pattern.permute.xlu0 0
      %4259 = vperm.xlu0 %4258, %v4172
      %v4260 = vpop.permute.xlu0 %4259
      %4261 = vset.pattern.permute.xlu0 0
      %4262 = vperm.xlu0 %4261, %v4173
      %v4263 = vpop.permute.xlu0 %4262
      %4264 = vset.pattern.permute.xlu0 0
      %4265 = vperm.xlu0 %4264, %v4174
      %v4266 = vpop.permute.xlu0 %4265
      %4267 = vset.pattern.permute.xlu0 0
      %4268 = vperm.xlu0 %4267, %v4175
      %v4269 = vpop.permute.xlu0 %4268
      %4270 = vset.pattern.permute.xlu0 0
      %4271 = vperm.xlu0 %4270, %v4176
      %v4272 = vpop.permute.xlu0 %4271
      %vm4273 = vcmp.eq.s32.totalorder %v303, %v4179
      %vm4274 = vcmp.eq.s32.totalorder %v304, %v4179
      %vm4275 = vcmp.eq.s32.totalorder %v303, %v4182
      %vm4276 = vcmp.eq.s32.totalorder %v304, %v4182
      %vm4277 = vcmp.eq.s32.totalorder %v303, %v4185
      %vm4278 = vcmp.eq.s32.totalorder %v304, %v4185
      %vm4279 = vcmp.eq.s32.totalorder %v303, %v4188
      %vm4280 = vcmp.eq.s32.totalorder %v304, %v4188
      %vm4281 = vcmp.eq.s32.totalorder %v303, %v4191
      %vm4282 = vcmp.eq.s32.totalorder %v304, %v4191
      %vm4283 = vcmp.eq.s32.totalorder %v303, %v4194
      %vm4284 = vcmp.eq.s32.totalorder %v304, %v4194
      %vm4285 = vcmp.eq.s32.totalorder %v303, %v4197
      %vm4286 = vcmp.eq.s32.totalorder %v304, %v4197
      %vm4287 = vcmp.eq.s32.totalorder %v303, %v4200
      %vm4288 = vcmp.eq.s32.totalorder %v304, %v4200
      %vm4289 = vcmp.eq.s32.totalorder %v303, %v4203
      %vm4290 = vcmp.eq.s32.totalorder %v304, %v4203
      %vm4291 = vcmp.eq.s32.totalorder %v303, %v4206
      %vm4292 = vcmp.eq.s32.totalorder %v304, %v4206
      %vm4293 = vcmp.eq.s32.totalorder %v303, %v4209
      %vm4294 = vcmp.eq.s32.totalorder %v304, %v4209
      %vm4295 = vcmp.eq.s32.totalorder %v303, %v4212
      %vm4296 = vcmp.eq.s32.totalorder %v304, %v4212
      %vm4297 = vcmp.eq.s32.totalorder %v303, %v4215
      %vm4298 = vcmp.eq.s32.totalorder %v304, %v4215
      %vm4299 = vcmp.eq.s32.totalorder %v303, %v4218
      %vm4300 = vcmp.eq.s32.totalorder %v304, %v4218
      %vm4301 = vcmp.eq.s32.totalorder %v303, %v4221
      %vm4302 = vcmp.eq.s32.totalorder %v304, %v4221
      %vm4303 = vcmp.eq.s32.totalorder %v303, %v4224
      %vm4304 = vcmp.eq.s32.totalorder %v304, %v4224
      %vm4305 = vcmp.eq.s32.totalorder %v303, %v4227
      %vm4306 = vcmp.eq.s32.totalorder %v304, %v4227
      %vm4307 = vcmp.eq.s32.totalorder %v303, %v4230
      %vm4308 = vcmp.eq.s32.totalorder %v304, %v4230
      %vm4309 = vcmp.eq.s32.totalorder %v303, %v4233
      %vm4310 = vcmp.eq.s32.totalorder %v304, %v4233
      %vm4311 = vcmp.eq.s32.totalorder %v303, %v4236
      %vm4312 = vcmp.eq.s32.totalorder %v304, %v4236
      %vm4313 = vcmp.eq.s32.totalorder %v303, %v4239
      %vm4314 = vcmp.eq.s32.totalorder %v304, %v4239
      %vm4315 = vcmp.eq.s32.totalorder %v303, %v4242
      %vm4316 = vcmp.eq.s32.totalorder %v304, %v4242
      %vm4317 = vcmp.eq.s32.totalorder %v303, %v4245
      %vm4318 = vcmp.eq.s32.totalorder %v304, %v4245
      %vm4319 = vcmp.eq.s32.totalorder %v303, %v4248
      %vm4320 = vcmp.eq.s32.totalorder %v304, %v4248
      %vm4321 = vcmp.eq.s32.totalorder %v303, %v4251
      %vm4322 = vcmp.eq.s32.totalorder %v304, %v4251
      %vm4323 = vcmp.eq.s32.totalorder %v303, %v4254
      %vm4324 = vcmp.eq.s32.totalorder %v304, %v4254
      %vm4325 = vcmp.eq.s32.totalorder %v303, %v4257
      %vm4326 = vcmp.eq.s32.totalorder %v304, %v4257
      %vm4327 = vcmp.eq.s32.totalorder %v303, %v4260
      %vm4328 = vcmp.eq.s32.totalorder %v304, %v4260
      %vm4329 = vcmp.eq.s32.totalorder %v303, %v4263
      %vm4330 = vcmp.eq.s32.totalorder %v304, %v4263
      %vm4331 = vcmp.eq.s32.totalorder %v303, %v4266
      %vm4332 = vcmp.eq.s32.totalorder %v304, %v4266
      %vm4333 = vcmp.eq.s32.totalorder %v303, %v4269
      %vm4334 = vcmp.eq.s32.totalorder %v304, %v4269
      %vm4335 = vcmp.eq.s32.totalorder %v303, %v4272
      %vm4336 = vcmp.eq.s32.totalorder %v304, %v4272
      %v4337 = vsel %vm4273, 1, 0
      %v4338 = vsel %vm4274, 1, 0
      %v4339 = vsel %vm4275, 1, 0
      %v4340 = vsel %vm4276, 1, 0
      %v4341 = vsel %vm4277, 1, 0
      %v4342 = vsel %vm4278, 1, 0
      %v4343 = vsel %vm4279, 1, 0
      %v4344 = vsel %vm4280, 1, 0
      %v4345 = vsel %vm4281, 1, 0
      %v4346 = vsel %vm4282, 1, 0
      %v4347 = vsel %vm4283, 1, 0
      %v4348 = vsel %vm4284, 1, 0
      %v4349 = vsel %vm4285, 1, 0
      %v4350 = vsel %vm4286, 1, 0
      %v4351 = vsel %vm4287, 1, 0
      %v4352 = vsel %vm4288, 1, 0
      %v4353 = vsel %vm4289, 1, 0
      %v4354 = vsel %vm4290, 1, 0
      %v4355 = vsel %vm4291, 1, 0
      %v4356 = vsel %vm4292, 1, 0
      %v4357 = vsel %vm4293, 1, 0
      %v4358 = vsel %vm4294, 1, 0
      %v4359 = vsel %vm4295, 1, 0
      %v4360 = vsel %vm4296, 1, 0
      %v4361 = vsel %vm4297, 1, 0
      %v4362 = vsel %vm4298, 1, 0
      %v4363 = vsel %vm4299, 1, 0
      %v4364 = vsel %vm4300, 1, 0
      %v4365 = vsel %vm4301, 1, 0
      %v4366 = vsel %vm4302, 1, 0
      %v4367 = vsel %vm4303, 1, 0
      %v4368 = vsel %vm4304, 1, 0
      %v4369 = vsel %vm4305, 1, 0
      %v4370 = vsel %vm4306, 1, 0
      %v4371 = vsel %vm4307, 1, 0
      %v4372 = vsel %vm4308, 1, 0
      %v4373 = vsel %vm4309, 1, 0
      %v4374 = vsel %vm4310, 1, 0
      %v4375 = vsel %vm4311, 1, 0
      %v4376 = vsel %vm4312, 1, 0
      %v4377 = vsel %vm4313, 1, 0
      %v4378 = vsel %vm4314, 1, 0
      %v4379 = vsel %vm4315, 1, 0
      %v4380 = vsel %vm4316, 1, 0
      %v4381 = vsel %vm4317, 1, 0
      %v4382 = vsel %vm4318, 1, 0
      %v4383 = vsel %vm4319, 1, 0
      %v4384 = vsel %vm4320, 1, 0
      %v4385 = vsel %vm4321, 1, 0
      %v4386 = vsel %vm4322, 1, 0
      %v4387 = vsel %vm4323, 1, 0
      %v4388 = vsel %vm4324, 1, 0
      %v4389 = vsel %vm4325, 1, 0
      %v4390 = vsel %vm4326, 1, 0
      %v4391 = vsel %vm4327, 1, 0
      %v4392 = vsel %vm4328, 1, 0
      %v4393 = vsel %vm4329, 1, 0
      %v4394 = vsel %vm4330, 1, 0
      %v4395 = vsel %vm4331, 1, 0
      %v4396 = vsel %vm4332, 1, 0
      %v4397 = vsel %vm4333, 1, 0
      %v4398 = vsel %vm4334, 1, 0
      %v4399 = vsel %vm4335, 1, 0
      %v4400 = vsel %vm4336, 1, 0
      %v4401 = vcvt.s32.f32 %v4337
      %v4402 = vcvt.s32.f32 %v4338
      %v4403 = vcvt.s32.f32 %v4339
      %v4404 = vcvt.s32.f32 %v4340
      %v4405 = vcvt.s32.f32 %v4341
      %v4406 = vcvt.s32.f32 %v4342
      %v4407 = vcvt.s32.f32 %v4343
      %v4408 = vcvt.s32.f32 %v4344
      %v4409 = vcvt.s32.f32 %v4345
      %v4410 = vcvt.s32.f32 %v4346
      %v4411 = vcvt.s32.f32 %v4347
      %v4412 = vcvt.s32.f32 %v4348
      %v4413 = vcvt.s32.f32 %v4349
      %v4414 = vcvt.s32.f32 %v4350
      %v4415 = vcvt.s32.f32 %v4351
      %v4416 = vcvt.s32.f32 %v4352
      %v4417 = vcvt.s32.f32 %v4353
      %v4418 = vcvt.s32.f32 %v4354
      %v4419 = vcvt.s32.f32 %v4355
      %v4420 = vcvt.s32.f32 %v4356
      %v4421 = vcvt.s32.f32 %v4357
      %v4422 = vcvt.s32.f32 %v4358
      %v4423 = vcvt.s32.f32 %v4359
      %v4424 = vcvt.s32.f32 %v4360
      %v4425 = vcvt.s32.f32 %v4361
      %v4426 = vcvt.s32.f32 %v4362
      %v4427 = vcvt.s32.f32 %v4363
      %v4428 = vcvt.s32.f32 %v4364
      %v4429 = vcvt.s32.f32 %v4365
      %v4430 = vcvt.s32.f32 %v4366
      %v4431 = vcvt.s32.f32 %v4367
      %v4432 = vcvt.s32.f32 %v4368
      %v4433 = vcvt.s32.f32 %v4369
      %v4434 = vcvt.s32.f32 %v4370
      %v4435 = vcvt.s32.f32 %v4371
      %v4436 = vcvt.s32.f32 %v4372
      %v4437 = vcvt.s32.f32 %v4373
      %v4438 = vcvt.s32.f32 %v4374
      %v4439 = vcvt.s32.f32 %v4375
      %v4440 = vcvt.s32.f32 %v4376
      %v4441 = vcvt.s32.f32 %v4377
      %v4442 = vcvt.s32.f32 %v4378
      %v4443 = vcvt.s32.f32 %v4379
      %v4444 = vcvt.s32.f32 %v4380
      %v4445 = vcvt.s32.f32 %v4381
      %v4446 = vcvt.s32.f32 %v4382
      %v4447 = vcvt.s32.f32 %v4383
      %v4448 = vcvt.s32.f32 %v4384
      %v4449 = vcvt.s32.f32 %v4385
      %v4450 = vcvt.s32.f32 %v4386
      %v4451 = vcvt.s32.f32 %v4387
      %v4452 = vcvt.s32.f32 %v4388
      %v4453 = vcvt.s32.f32 %v4389
      %v4454 = vcvt.s32.f32 %v4390
      %v4455 = vcvt.s32.f32 %v4391
      %v4456 = vcvt.s32.f32 %v4392
      %v4457 = vcvt.s32.f32 %v4393
      %v4458 = vcvt.s32.f32 %v4394
      %v4459 = vcvt.s32.f32 %v4395
      %v4460 = vcvt.s32.f32 %v4396
      %v4461 = vcvt.s32.f32 %v4397
      %v4462 = vcvt.s32.f32 %v4398
      %v4463 = vcvt.s32.f32 %v4399
      %v4464 = vcvt.s32.f32 %v4400
      %4466 = vset.pattern.permute.xlu0 0
      %4467 = vperm.xlu0 %4466, %v3953
      %v4468 = vpop.permute.xlu0 %4467
      %4471 = vset.pattern.permute.xlu0 0
      %4472 = vperm.xlu0 %4471, %v3954
      %v4473 = vpop.permute.xlu0 %4472
      %4476 = vset.pattern.permute.xlu0 0
      %4477 = vperm.xlu0 %4476, %v3955
      %v4478 = vpop.permute.xlu0 %4477
      %4481 = vset.pattern.permute.xlu0 0
      %4482 = vperm.xlu0 %4481, %v3956
      %v4483 = vpop.permute.xlu0 %4482
      %4486 = vset.pattern.permute.xlu0 0
      %4487 = vperm.xlu0 %4486, %v3957
      %v4488 = vpop.permute.xlu0 %4487
      %4491 = vset.pattern.permute.xlu0 0
      %4492 = vperm.xlu0 %4491, %v3958
      %v4493 = vpop.permute.xlu0 %4492
      %4496 = vset.pattern.permute.xlu0 0
      %4497 = vperm.xlu0 %4496, %v3959
      %v4498 = vpop.permute.xlu0 %4497
      %4501 = vset.pattern.permute.xlu0 0
      %4502 = vperm.xlu0 %4501, %v3960
      %v4503 = vpop.permute.xlu0 %4502
      %4506 = vset.pattern.permute.xlu0 0
      %4507 = vperm.xlu0 %4506, %v3961
      %v4508 = vpop.permute.xlu0 %4507
      %4511 = vset.pattern.permute.xlu0 0
      %4512 = vperm.xlu0 %4511, %v3962
      %v4513 = vpop.permute.xlu0 %4512
      %4516 = vset.pattern.permute.xlu0 0
      %4517 = vperm.xlu0 %4516, %v3963
      %v4518 = vpop.permute.xlu0 %4517
      %4521 = vset.pattern.permute.xlu0 0
      %4522 = vperm.xlu0 %4521, %v3964
      %v4523 = vpop.permute.xlu0 %4522
      %4526 = vset.pattern.permute.xlu0 0
      %4527 = vperm.xlu0 %4526, %v3965
      %v4528 = vpop.permute.xlu0 %4527
      %4531 = vset.pattern.permute.xlu0 0
      %4532 = vperm.xlu0 %4531, %v3966
      %v4533 = vpop.permute.xlu0 %4532
      %4536 = vset.pattern.permute.xlu0 0
      %4537 = vperm.xlu0 %4536, %v3967
      %v4538 = vpop.permute.xlu0 %4537
      %4541 = vset.pattern.permute.xlu0 0
      %4542 = vperm.xlu0 %4541, %v3968
      %v4543 = vpop.permute.xlu0 %4542
      %4546 = vset.pattern.permute.xlu0 0
      %4547 = vperm.xlu0 %4546, %v3969
      %v4548 = vpop.permute.xlu0 %4547
      %4551 = vset.pattern.permute.xlu0 0
      %4552 = vperm.xlu0 %4551, %v3970
      %v4553 = vpop.permute.xlu0 %4552
      %4556 = vset.pattern.permute.xlu0 0
      %4557 = vperm.xlu0 %4556, %v3971
      %v4558 = vpop.permute.xlu0 %4557
      %4561 = vset.pattern.permute.xlu0 0
      %4562 = vperm.xlu0 %4561, %v3972
      %v4563 = vpop.permute.xlu0 %4562
      %4566 = vset.pattern.permute.xlu0 0
      %4567 = vperm.xlu0 %4566, %v3973
      %v4568 = vpop.permute.xlu0 %4567
      %4571 = vset.pattern.permute.xlu0 0
      %4572 = vperm.xlu0 %4571, %v3974
      %v4573 = vpop.permute.xlu0 %4572
      %4576 = vset.pattern.permute.xlu0 0
      %4577 = vperm.xlu0 %4576, %v3975
      %v4578 = vpop.permute.xlu0 %4577
      %4581 = vset.pattern.permute.xlu0 0
      %4582 = vperm.xlu0 %4581, %v3976
      %v4583 = vpop.permute.xlu0 %4582
      %4586 = vset.pattern.permute.xlu0 0
      %4587 = vperm.xlu0 %4586, %v3977
      %v4588 = vpop.permute.xlu0 %4587
      %4591 = vset.pattern.permute.xlu0 0
      %4592 = vperm.xlu0 %4591, %v3978
      %v4593 = vpop.permute.xlu0 %4592
      %4596 = vset.pattern.permute.xlu0 0
      %4597 = vperm.xlu0 %4596, %v3979
      %v4598 = vpop.permute.xlu0 %4597
      %4601 = vset.pattern.permute.xlu0 0
      %4602 = vperm.xlu0 %4601, %v3980
      %v4603 = vpop.permute.xlu0 %4602
      %4606 = vset.pattern.permute.xlu0 0
      %4607 = vperm.xlu0 %4606, %v3981
      %v4608 = vpop.permute.xlu0 %4607
      %4611 = vset.pattern.permute.xlu0 0
      %4612 = vperm.xlu0 %4611, %v3982
      %v4613 = vpop.permute.xlu0 %4612
      %4616 = vset.pattern.permute.xlu0 0
      %4617 = vperm.xlu0 %4616, %v3983
      %v4618 = vpop.permute.xlu0 %4617
      %4621 = vset.pattern.permute.xlu0 0
      %4622 = vperm.xlu0 %4621, %v3984
      %v4623 = vpop.permute.xlu0 %4622
      %v4625 = vmul.f32 %v4401, %v4468
      %v4626 = vmul.f32 %v4402, %v4468
      %v4627 = vmul.f32 %v4403, %v4473
      %v4628 = vmul.f32 %v4404, %v4473
      %v4629 = vmul.f32 %v4405, %v4478
      %v4630 = vmul.f32 %v4406, %v4478
      %v4631 = vmul.f32 %v4407, %v4483
      %v4632 = vmul.f32 %v4408, %v4483
      %v4633 = vmul.f32 %v4409, %v4488
      %v4634 = vmul.f32 %v4410, %v4488
      %v4635 = vmul.f32 %v4411, %v4493
      %v4636 = vmul.f32 %v4412, %v4493
      %v4637 = vmul.f32 %v4413, %v4498
      %v4638 = vmul.f32 %v4414, %v4498
      %v4639 = vmul.f32 %v4415, %v4503
      %v4640 = vmul.f32 %v4416, %v4503
      %v4641 = vmul.f32 %v4417, %v4508
      %v4642 = vmul.f32 %v4418, %v4508
      %v4643 = vmul.f32 %v4419, %v4513
      %v4644 = vmul.f32 %v4420, %v4513
      %v4645 = vmul.f32 %v4421, %v4518
      %v4646 = vmul.f32 %v4422, %v4518
      %v4647 = vmul.f32 %v4423, %v4523
      %v4648 = vmul.f32 %v4424, %v4523
      %v4649 = vmul.f32 %v4425, %v4528
      %v4650 = vmul.f32 %v4426, %v4528
      %v4651 = vmul.f32 %v4427, %v4533
      %v4652 = vmul.f32 %v4428, %v4533
      %v4653 = vmul.f32 %v4429, %v4538
      %v4654 = vmul.f32 %v4430, %v4538
      %v4655 = vmul.f32 %v4431, %v4543
      %v4656 = vmul.f32 %v4432, %v4543
      %v4657 = vmul.f32 %v4433, %v4548
      %v4658 = vmul.f32 %v4434, %v4548
      %v4659 = vmul.f32 %v4435, %v4553
      %v4660 = vmul.f32 %v4436, %v4553
      %v4661 = vmul.f32 %v4437, %v4558
      %v4662 = vmul.f32 %v4438, %v4558
      %v4663 = vmul.f32 %v4439, %v4563
      %v4664 = vmul.f32 %v4440, %v4563
      %v4665 = vmul.f32 %v4441, %v4568
      %v4666 = vmul.f32 %v4442, %v4568
      %v4667 = vmul.f32 %v4443, %v4573
      %v4668 = vmul.f32 %v4444, %v4573
      %v4669 = vmul.f32 %v4445, %v4578
      %v4670 = vmul.f32 %v4446, %v4578
      %v4671 = vmul.f32 %v4447, %v4583
      %v4672 = vmul.f32 %v4448, %v4583
      %v4673 = vmul.f32 %v4449, %v4588
      %v4674 = vmul.f32 %v4450, %v4588
      %v4675 = vmul.f32 %v4451, %v4593
      %v4676 = vmul.f32 %v4452, %v4593
      %v4677 = vmul.f32 %v4453, %v4598
      %v4678 = vmul.f32 %v4454, %v4598
      %v4679 = vmul.f32 %v4455, %v4603
      %v4680 = vmul.f32 %v4456, %v4603
      %v4681 = vmul.f32 %v4457, %v4608
      %v4682 = vmul.f32 %v4458, %v4608
      %v4683 = vmul.f32 %v4459, %v4613
      %v4684 = vmul.f32 %v4460, %v4613
      %v4685 = vmul.f32 %v4461, %v4618
      %v4686 = vmul.f32 %v4462, %v4618
      %v4687 = vmul.f32 %v4463, %v4623
      %v4688 = vmul.f32 %v4464, %v4623
      %v4689 = vadd.f32 %v3889, %v4625
      %v4690 = vadd.f32 %v3890, %v4626
      %v4691 = vadd.f32 %v3891, %v4627
      %v4692 = vadd.f32 %v3892, %v4628
      %v4693 = vadd.f32 %v3893, %v4629
      %v4694 = vadd.f32 %v3894, %v4630
      %v4695 = vadd.f32 %v3895, %v4631
      %v4696 = vadd.f32 %v3896, %v4632
      %v4697 = vadd.f32 %v3897, %v4633
      %v4698 = vadd.f32 %v3898, %v4634
      %v4699 = vadd.f32 %v3899, %v4635
      %v4700 = vadd.f32 %v3900, %v4636
      %v4701 = vadd.f32 %v3901, %v4637
      %v4702 = vadd.f32 %v3902, %v4638
      %v4703 = vadd.f32 %v3903, %v4639
      %v4704 = vadd.f32 %v3904, %v4640
      %v4705 = vadd.f32 %v3905, %v4641
      %v4706 = vadd.f32 %v3906, %v4642
      %v4707 = vadd.f32 %v3907, %v4643
      %v4708 = vadd.f32 %v3908, %v4644
      %v4709 = vadd.f32 %v3909, %v4645
      %v4710 = vadd.f32 %v3910, %v4646
      %v4711 = vadd.f32 %v3911, %v4647
      %v4712 = vadd.f32 %v3912, %v4648
      %v4713 = vadd.f32 %v3913, %v4649
      %v4714 = vadd.f32 %v3914, %v4650
      %v4715 = vadd.f32 %v3915, %v4651
      %v4716 = vadd.f32 %v3916, %v4652
      %v4717 = vadd.f32 %v3917, %v4653
      %v4718 = vadd.f32 %v3918, %v4654
      %v4719 = vadd.f32 %v3919, %v4655
      %v4720 = vadd.f32 %v3920, %v4656
      %v4721 = vadd.f32 %v3921, %v4657
      %v4722 = vadd.f32 %v3922, %v4658
      %v4723 = vadd.f32 %v3923, %v4659
      %v4724 = vadd.f32 %v3924, %v4660
      %v4725 = vadd.f32 %v3925, %v4661
      %v4726 = vadd.f32 %v3926, %v4662
      %v4727 = vadd.f32 %v3927, %v4663
      %v4728 = vadd.f32 %v3928, %v4664
      %v4729 = vadd.f32 %v3929, %v4665
      %v4730 = vadd.f32 %v3930, %v4666
      %v4731 = vadd.f32 %v3931, %v4667
      %v4732 = vadd.f32 %v3932, %v4668
      %v4733 = vadd.f32 %v3933, %v4669
      %v4734 = vadd.f32 %v3934, %v4670
      %v4735 = vadd.f32 %v3935, %v4671
      %v4736 = vadd.f32 %v3936, %v4672
      %v4737 = vadd.f32 %v3937, %v4673
      %v4738 = vadd.f32 %v3938, %v4674
      %v4739 = vadd.f32 %v3939, %v4675
      %v4740 = vadd.f32 %v3940, %v4676
      %v4741 = vadd.f32 %v3941, %v4677
      %v4742 = vadd.f32 %v3942, %v4678
      %v4743 = vadd.f32 %v3943, %v4679
      %v4744 = vadd.f32 %v3944, %v4680
      %v4745 = vadd.f32 %v3945, %v4681
      %v4746 = vadd.f32 %v3946, %v4682
      %v4747 = vadd.f32 %v3947, %v4683
      %v4748 = vadd.f32 %v3948, %v4684
      %v4749 = vadd.f32 %v3949, %v4685
      %v4750 = vadd.f32 %v3950, %v4686
      %v4751 = vadd.f32 %v3951, %v4687
      %v4752 = vadd.f32 %v3952, %v4688
      %vm4753 = vcmp.lt.s32.totalorder %v401, 32
      %vm4754 = vcmp.lt.s32.totalorder %v402, 32
      %vm4755 = vcmp.lt.s32.totalorder %v403, 32
      %vm4756 = vcmp.lt.s32.totalorder %v404, 32
      %vm4757 = vcmp.lt.s32.totalorder %v405, 32
      %vm4758 = vcmp.lt.s32.totalorder %v406, 32
      %vm4759 = vcmp.lt.s32.totalorder %v407, 32
      %vm4760 = vcmp.lt.s32.totalorder %v408, 32
      %vm4761 = vcmp.lt.s32.totalorder %v409, 32
      %vm4762 = vcmp.lt.s32.totalorder %v410, 32
      %vm4763 = vcmp.lt.s32.totalorder %v411, 32
      %vm4764 = vcmp.lt.s32.totalorder %v412, 32
      %vm4765 = vcmp.lt.s32.totalorder %v413, 32
      %vm4766 = vcmp.lt.s32.totalorder %v414, 32
      %vm4767 = vcmp.lt.s32.totalorder %v415, 32
      %vm4768 = vcmp.lt.s32.totalorder %v416, 32
      %vm4769 = vcmp.lt.s32.totalorder %v417, 32
      %vm4770 = vcmp.lt.s32.totalorder %v418, 32
      %vm4771 = vcmp.lt.s32.totalorder %v419, 32
      %vm4772 = vcmp.lt.s32.totalorder %v420, 32
      %vm4773 = vcmp.lt.s32.totalorder %v421, 32
      %vm4774 = vcmp.lt.s32.totalorder %v422, 32
      %vm4775 = vcmp.lt.s32.totalorder %v423, 32
      %vm4776 = vcmp.lt.s32.totalorder %v424, 32
      %vm4777 = vcmp.lt.s32.totalorder %v425, 32
      %vm4778 = vcmp.lt.s32.totalorder %v426, 32
      %vm4779 = vcmp.lt.s32.totalorder %v427, 32
      %vm4780 = vcmp.lt.s32.totalorder %v428, 32
      %vm4781 = vcmp.lt.s32.totalorder %v429, 32
      %vm4782 = vcmp.lt.s32.totalorder %v430, 32
      %vm4783 = vcmp.lt.s32.totalorder %v431, 32
      %vm4784 = vcmp.lt.s32.totalorder %v432, 32
      %vm4785 = vmand %vm625, %vm4753
      %vm4786 = vmand %vm626, %vm4754
      %vm4787 = vmand %vm627, %vm4755
      %vm4788 = vmand %vm628, %vm4756
      %vm4789 = vmand %vm629, %vm4757
      %vm4790 = vmand %vm630, %vm4758
      %vm4791 = vmand %vm631, %vm4759
      %vm4792 = vmand %vm632, %vm4760
      %vm4793 = vmand %vm633, %vm4761
      %vm4794 = vmand %vm634, %vm4762
      %vm4795 = vmand %vm635, %vm4763
      %vm4796 = vmand %vm636, %vm4764
      %vm4797 = vmand %vm637, %vm4765
      %vm4798 = vmand %vm638, %vm4766
      %vm4799 = vmand %vm639, %vm4767
      %vm4800 = vmand %vm640, %vm4768
      %vm4801 = vmand %vm641, %vm4769
      %vm4802 = vmand %vm642, %vm4770
      %vm4803 = vmand %vm643, %vm4771
      %vm4804 = vmand %vm644, %vm4772
      %vm4805 = vmand %vm645, %vm4773
      %vm4806 = vmand %vm646, %vm4774
      %vm4807 = vmand %vm647, %vm4775
      %vm4808 = vmand %vm648, %vm4776
      %vm4809 = vmand %vm649, %vm4777
      %vm4810 = vmand %vm650, %vm4778
      %vm4811 = vmand %vm651, %vm4779
      %vm4812 = vmand %vm652, %vm4780
      %vm4813 = vmand %vm653, %vm4781
      %vm4814 = vmand %vm654, %vm4782
      %vm4815 = vmand %vm655, %vm4783
      %vm4816 = vmand %vm656, %vm4784
      %vm4817 = vmand %vm4785, %vm817
      %vm4818 = vmand %vm4786, %vm818
      %vm4819 = vmand %vm4787, %vm819
      %vm4820 = vmand %vm4788, %vm820
      %vm4821 = vmand %vm4789, %vm821
      %vm4822 = vmand %vm4790, %vm822
      %vm4823 = vmand %vm4791, %vm823
      %vm4824 = vmand %vm4792, %vm824
      %vm4825 = vmand %vm4793, %vm825
      %vm4826 = vmand %vm4794, %vm826
      %vm4827 = vmand %vm4795, %vm827
      %vm4828 = vmand %vm4796, %vm828
      %vm4829 = vmand %vm4797, %vm829
      %vm4830 = vmand %vm4798, %vm830
      %vm4831 = vmand %vm4799, %vm831
      %vm4832 = vmand %vm4800, %vm832
      %vm4833 = vmand %vm4801, %vm833
      %vm4834 = vmand %vm4802, %vm834
      %vm4835 = vmand %vm4803, %vm835
      %vm4836 = vmand %vm4804, %vm836
      %vm4837 = vmand %vm4805, %vm837
      %vm4838 = vmand %vm4806, %vm838
      %vm4839 = vmand %vm4807, %vm839
      %vm4840 = vmand %vm4808, %vm840
      %vm4841 = vmand %vm4809, %vm841
      %vm4842 = vmand %vm4810, %vm842
      %vm4843 = vmand %vm4811, %vm843
      %vm4844 = vmand %vm4812, %vm844
      %vm4845 = vmand %vm4813, %vm845
      %vm4846 = vmand %vm4814, %vm846
      %vm4847 = vmand %vm4815, %vm847
      %vm4848 = vmand %vm4816, %vm848
      %vm4849 = vcmp.lt.s32.totalorder %v401, 8
      %vm4850 = vcmp.lt.s32.totalorder %v402, 8
      %vm4851 = vcmp.lt.s32.totalorder %v403, 8
      %vm4852 = vcmp.lt.s32.totalorder %v404, 8
      %vm4853 = vcmp.lt.s32.totalorder %v405, 8
      %vm4854 = vcmp.lt.s32.totalorder %v406, 8
      %vm4855 = vcmp.lt.s32.totalorder %v407, 8
      %vm4856 = vcmp.lt.s32.totalorder %v408, 8
      %vm4857 = vcmp.lt.s32.totalorder %v409, 8
      %vm4858 = vcmp.lt.s32.totalorder %v410, 8
      %vm4859 = vcmp.lt.s32.totalorder %v411, 8
      %vm4860 = vcmp.lt.s32.totalorder %v412, 8
      %vm4861 = vcmp.lt.s32.totalorder %v413, 8
      %vm4862 = vcmp.lt.s32.totalorder %v414, 8
      %vm4863 = vcmp.lt.s32.totalorder %v415, 8
      %vm4864 = vcmp.lt.s32.totalorder %v416, 8
      %vm4865 = vcmp.lt.s32.totalorder %v417, 8
      %vm4866 = vcmp.lt.s32.totalorder %v418, 8
      %vm4867 = vcmp.lt.s32.totalorder %v419, 8
      %vm4868 = vcmp.lt.s32.totalorder %v420, 8
      %vm4869 = vcmp.lt.s32.totalorder %v421, 8
      %vm4870 = vcmp.lt.s32.totalorder %v422, 8
      %vm4871 = vcmp.lt.s32.totalorder %v423, 8
      %vm4872 = vcmp.lt.s32.totalorder %v424, 8
      %vm4873 = vcmp.lt.s32.totalorder %v425, 8
      %vm4874 = vcmp.lt.s32.totalorder %v426, 8
      %vm4875 = vcmp.lt.s32.totalorder %v427, 8
      %vm4876 = vcmp.lt.s32.totalorder %v428, 8
      %vm4877 = vcmp.lt.s32.totalorder %v429, 8
      %vm4878 = vcmp.lt.s32.totalorder %v430, 8
      %vm4879 = vcmp.lt.s32.totalorder %v431, 8
      %vm4880 = vcmp.lt.s32.totalorder %v432, 8
      %v4881 = vsel %vm4849, 1, 0
      %v4882 = vsel %vm4850, 1, 0
      %v4883 = vsel %vm4851, 1, 0
      %v4884 = vsel %vm4852, 1, 0
      %v4885 = vsel %vm4853, 1, 0
      %v4886 = vsel %vm4854, 1, 0
      %v4887 = vsel %vm4855, 1, 0
      %v4888 = vsel %vm4856, 1, 0
      %v4889 = vsel %vm4857, 1, 0
      %v4890 = vsel %vm4858, 1, 0
      %v4891 = vsel %vm4859, 1, 0
      %v4892 = vsel %vm4860, 1, 0
      %v4893 = vsel %vm4861, 1, 0
      %v4894 = vsel %vm4862, 1, 0
      %v4895 = vsel %vm4863, 1, 0
      %v4896 = vsel %vm4864, 1, 0
      %v4897 = vsel %vm4865, 1, 0
      %v4898 = vsel %vm4866, 1, 0
      %v4899 = vsel %vm4867, 1, 0
      %v4900 = vsel %vm4868, 1, 0
      %v4901 = vsel %vm4869, 1, 0
      %v4902 = vsel %vm4870, 1, 0
      %v4903 = vsel %vm4871, 1, 0
      %v4904 = vsel %vm4872, 1, 0
      %v4905 = vsel %vm4873, 1, 0
      %v4906 = vsel %vm4874, 1, 0
      %v4907 = vsel %vm4875, 1, 0
      %v4908 = vsel %vm4876, 1, 0
      %v4909 = vsel %vm4877, 1, 0
      %v4910 = vsel %vm4878, 1, 0
      %v4911 = vsel %vm4879, 1, 0
      %v4912 = vsel %vm4880, 1, 0
      %4913 = vrot.lane.b32.xlu0 %v4881, 127
      %v4914 = vpop.permute.xlu0 %4913
      %4915 = vrot.lane.b32.xlu0 %v4882, 127
      %v4916 = vpop.permute.xlu0 %4915
      %4917 = vrot.lane.b32.xlu0 %v4883, 127
      %v4918 = vpop.permute.xlu0 %4917
      %4919 = vrot.lane.b32.xlu0 %v4884, 127
      %v4920 = vpop.permute.xlu0 %4919
      %4921 = vrot.lane.b32.xlu0 %v4885, 127
      %v4922 = vpop.permute.xlu0 %4921
      %4923 = vrot.lane.b32.xlu0 %v4886, 127
      %v4924 = vpop.permute.xlu0 %4923
      %4925 = vrot.lane.b32.xlu0 %v4887, 127
      %v4926 = vpop.permute.xlu0 %4925
      %4927 = vrot.lane.b32.xlu0 %v4888, 127
      %v4928 = vpop.permute.xlu0 %4927
      %4929 = vrot.lane.b32.xlu0 %v4889, 127
      %v4930 = vpop.permute.xlu0 %4929
      %4931 = vrot.lane.b32.xlu0 %v4890, 127
      %v4932 = vpop.permute.xlu0 %4931
      %4933 = vrot.lane.b32.xlu0 %v4891, 127
      %v4934 = vpop.permute.xlu0 %4933
      %4935 = vrot.lane.b32.xlu0 %v4892, 127
      %v4936 = vpop.permute.xlu0 %4935
      %4937 = vrot.lane.b32.xlu0 %v4893, 127
      %v4938 = vpop.permute.xlu0 %4937
      %4939 = vrot.lane.b32.xlu0 %v4894, 127
      %v4940 = vpop.permute.xlu0 %4939
      %4941 = vrot.lane.b32.xlu0 %v4895, 127
      %v4942 = vpop.permute.xlu0 %4941
      %4943 = vrot.lane.b32.xlu0 %v4896, 127
      %v4944 = vpop.permute.xlu0 %4943
      %4945 = vrot.lane.b32.xlu0 %v4897, 127
      %v4946 = vpop.permute.xlu0 %4945
      %4947 = vrot.lane.b32.xlu0 %v4898, 127
      %v4948 = vpop.permute.xlu0 %4947
      %4949 = vrot.lane.b32.xlu0 %v4899, 127
      %v4950 = vpop.permute.xlu0 %4949
      %4951 = vrot.lane.b32.xlu0 %v4900, 127
      %v4952 = vpop.permute.xlu0 %4951
      %4953 = vrot.lane.b32.xlu0 %v4901, 127
      %v4954 = vpop.permute.xlu0 %4953
      %4955 = vrot.lane.b32.xlu0 %v4902, 127
      %v4956 = vpop.permute.xlu0 %4955
      %4957 = vrot.lane.b32.xlu0 %v4903, 127
      %v4958 = vpop.permute.xlu0 %4957
      %4959 = vrot.lane.b32.xlu0 %v4904, 127
      %v4960 = vpop.permute.xlu0 %4959
      %4961 = vrot.lane.b32.xlu0 %v4905, 127
      %v4962 = vpop.permute.xlu0 %4961
      %4963 = vrot.lane.b32.xlu0 %v4906, 127
      %v4964 = vpop.permute.xlu0 %4963
      %4965 = vrot.lane.b32.xlu0 %v4907, 127
      %v4966 = vpop.permute.xlu0 %4965
      %4967 = vrot.lane.b32.xlu0 %v4908, 127
      %v4968 = vpop.permute.xlu0 %4967
      %4969 = vrot.lane.b32.xlu0 %v4909, 127
      %v4970 = vpop.permute.xlu0 %4969
      %4971 = vrot.lane.b32.xlu0 %v4910, 127
      %v4972 = vpop.permute.xlu0 %4971
      %4973 = vrot.lane.b32.xlu0 %v4911, 127
      %v4974 = vpop.permute.xlu0 %4973
      %4975 = vrot.lane.b32.xlu0 %v4912, 127
      %v4976 = vpop.permute.xlu0 %4975
      %vm4977 = vcmp.ne.s32.totalorder %v4914, 0
      %vm4978 = vcmp.ne.s32.totalorder %v4916, 0
      %vm4979 = vcmp.ne.s32.totalorder %v4918, 0
      %vm4980 = vcmp.ne.s32.totalorder %v4920, 0
      %vm4981 = vcmp.ne.s32.totalorder %v4922, 0
      %vm4982 = vcmp.ne.s32.totalorder %v4924, 0
      %vm4983 = vcmp.ne.s32.totalorder %v4926, 0
      %vm4984 = vcmp.ne.s32.totalorder %v4928, 0
      %vm4985 = vcmp.ne.s32.totalorder %v4930, 0
      %vm4986 = vcmp.ne.s32.totalorder %v4932, 0
      %vm4987 = vcmp.ne.s32.totalorder %v4934, 0
      %vm4988 = vcmp.ne.s32.totalorder %v4936, 0
      %vm4989 = vcmp.ne.s32.totalorder %v4938, 0
      %vm4990 = vcmp.ne.s32.totalorder %v4940, 0
      %vm4991 = vcmp.ne.s32.totalorder %v4942, 0
      %vm4992 = vcmp.ne.s32.totalorder %v4944, 0
      %vm4993 = vcmp.ne.s32.totalorder %v4946, 0
      %vm4994 = vcmp.ne.s32.totalorder %v4948, 0
      %vm4995 = vcmp.ne.s32.totalorder %v4950, 0
      %vm4996 = vcmp.ne.s32.totalorder %v4952, 0
      %vm4997 = vcmp.ne.s32.totalorder %v4954, 0
      %vm4998 = vcmp.ne.s32.totalorder %v4956, 0
      %vm4999 = vcmp.ne.s32.totalorder %v4958, 0
      %vm5000 = vcmp.ne.s32.totalorder %v4960, 0
      %vm5001 = vcmp.ne.s32.totalorder %v4962, 0
      %vm5002 = vcmp.ne.s32.totalorder %v4964, 0
      %vm5003 = vcmp.ne.s32.totalorder %v4966, 0
      %vm5004 = vcmp.ne.s32.totalorder %v4968, 0
      %vm5005 = vcmp.ne.s32.totalorder %v4970, 0
      %vm5006 = vcmp.ne.s32.totalorder %v4972, 0
      %vm5007 = vcmp.ne.s32.totalorder %v4974, 0
      %vm5008 = vcmp.ne.s32.totalorder %v4976, 0
      %vm5009 = vmand %vm4817, %vm4977
      %vm5010 = vmand %vm4818, %vm4978
      %vm5011 = vmand %vm4819, %vm4979
      %vm5012 = vmand %vm4820, %vm4980
      %vm5013 = vmand %vm4821, %vm4981
      %vm5014 = vmand %vm4822, %vm4982
      %vm5015 = vmand %vm4823, %vm4983
      %vm5016 = vmand %vm4824, %vm4984
      %vm5017 = vmand %vm4825, %vm4985
      %vm5018 = vmand %vm4826, %vm4986
      %vm5019 = vmand %vm4827, %vm4987
      %vm5020 = vmand %vm4828, %vm4988
      %vm5021 = vmand %vm4829, %vm4989
      %vm5022 = vmand %vm4830, %vm4990
      %vm5023 = vmand %vm4831, %vm4991
      %vm5024 = vmand %vm4832, %vm4992
      %vm5025 = vmand %vm4833, %vm4993
      %vm5026 = vmand %vm4834, %vm4994
      %vm5027 = vmand %vm4835, %vm4995
      %vm5028 = vmand %vm4836, %vm4996
      %vm5029 = vmand %vm4837, %vm4997
      %vm5030 = vmand %vm4838, %vm4998
      %vm5031 = vmand %vm4839, %vm4999
      %vm5032 = vmand %vm4840, %vm5000
      %vm5033 = vmand %vm4841, %vm5001
      %vm5034 = vmand %vm4842, %vm5002
      %vm5035 = vmand %vm4843, %vm5003
      %vm5036 = vmand %vm4844, %vm5004
      %vm5037 = vmand %vm4845, %vm5005
      %vm5038 = vmand %vm4846, %vm5006
      %vm5039 = vmand %vm4847, %vm5007
      %vm5040 = vmand %vm4848, %vm5008
      %v5041 = vmul.u32 %v401, 32
      %v5042 = vmul.u32 %v402, 32
      %v5043 = vmul.u32 %v403, 32
      %v5044 = vmul.u32 %v404, 32
      %v5045 = vmul.u32 %v405, 32
      %v5046 = vmul.u32 %v406, 32
      %v5047 = vmul.u32 %v407, 32
      %v5048 = vmul.u32 %v408, 32
      %v5049 = vmul.u32 %v409, 32
      %v5050 = vmul.u32 %v410, 32
      %v5051 = vmul.u32 %v411, 32
      %v5052 = vmul.u32 %v412, 32
      %v5053 = vmul.u32 %v413, 32
      %v5054 = vmul.u32 %v414, 32
      %v5055 = vmul.u32 %v415, 32
      %v5056 = vmul.u32 %v416, 32
      %v5057 = vmul.u32 %v417, 32
      %v5058 = vmul.u32 %v418, 32
      %v5059 = vmul.u32 %v419, 32
      %v5060 = vmul.u32 %v420, 32
      %v5061 = vmul.u32 %v421, 32
      %v5062 = vmul.u32 %v422, 32
      %v5063 = vmul.u32 %v423, 32
      %v5064 = vmul.u32 %v424, 32
      %v5065 = vmul.u32 %v425, 32
      %v5066 = vmul.u32 %v426, 32
      %v5067 = vmul.u32 %v427, 32
      %v5068 = vmul.u32 %v428, 32
      %v5069 = vmul.u32 %v429, 32
      %v5070 = vmul.u32 %v430, 32
      %v5071 = vmul.u32 %v431, 32
      %v5072 = vmul.u32 %v432, 32
      %v5073 = vadd.s32 %v5041, %v1074
      %v5074 = vadd.s32 %v5042, %v1076
      %v5075 = vadd.s32 %v5043, %v1078
      %v5076 = vadd.s32 %v5044, %v1080
      %v5077 = vadd.s32 %v5045, %v1082
      %v5078 = vadd.s32 %v5046, %v1084
      %v5079 = vadd.s32 %v5047, %v1086
      %v5080 = vadd.s32 %v5048, %v1088
      %v5081 = vadd.s32 %v5049, %v1090
      %v5082 = vadd.s32 %v5050, %v1092
      %v5083 = vadd.s32 %v5051, %v1094
      %v5084 = vadd.s32 %v5052, %v1096
      %v5085 = vadd.s32 %v5053, %v1098
      %v5086 = vadd.s32 %v5054, %v1100
      %v5087 = vadd.s32 %v5055, %v1102
      %v5088 = vadd.s32 %v5056, %v1104
      %v5089 = vadd.s32 %v5057, %v1106
      %v5090 = vadd.s32 %v5058, %v1108
      %v5091 = vadd.s32 %v5059, %v1110
      %v5092 = vadd.s32 %v5060, %v1112
      %v5093 = vadd.s32 %v5061, %v1114
      %v5094 = vadd.s32 %v5062, %v1116
      %v5095 = vadd.s32 %v5063, %v1118
      %v5096 = vadd.s32 %v5064, %v1120
      %v5097 = vadd.s32 %v5065, %v1122
      %v5098 = vadd.s32 %v5066, %v1124
      %v5099 = vadd.s32 %v5067, %v1126
      %v5100 = vadd.s32 %v5068, %v1128
      %v5101 = vadd.s32 %v5069, %v1130
      %v5102 = vadd.s32 %v5070, %v1132
      %v5103 = vadd.s32 %v5071, %v1134
      %v5104 = vadd.s32 %v5072, %v1136
      %5105 = vrot.lane.b32.xlu0 %v5073, 127
      %v5106 = vpop.permute.xlu0 %5105
      %5107 = vrot.lane.b32.xlu0 %v5074, 127
      %v5108 = vpop.permute.xlu0 %5107
      %5109 = vrot.lane.b32.xlu0 %v5075, 127
      %v5110 = vpop.permute.xlu0 %5109
      %5111 = vrot.lane.b32.xlu0 %v5076, 127
      %v5112 = vpop.permute.xlu0 %5111
      %5113 = vrot.lane.b32.xlu0 %v5077, 127
      %v5114 = vpop.permute.xlu0 %5113
      %5115 = vrot.lane.b32.xlu0 %v5078, 127
      %v5116 = vpop.permute.xlu0 %5115
      %5117 = vrot.lane.b32.xlu0 %v5079, 127
      %v5118 = vpop.permute.xlu0 %5117
      %5119 = vrot.lane.b32.xlu0 %v5080, 127
      %v5120 = vpop.permute.xlu0 %5119
      %5121 = vrot.lane.b32.xlu0 %v5081, 127
      %v5122 = vpop.permute.xlu0 %5121
      %5123 = vrot.lane.b32.xlu0 %v5082, 127
      %v5124 = vpop.permute.xlu0 %5123
      %5125 = vrot.lane.b32.xlu0 %v5083, 127
      %v5126 = vpop.permute.xlu0 %5125
      %5127 = vrot.lane.b32.xlu0 %v5084, 127
      %v5128 = vpop.permute.xlu0 %5127
      %5129 = vrot.lane.b32.xlu0 %v5085, 127
      %v5130 = vpop.permute.xlu0 %5129
      %5131 = vrot.lane.b32.xlu0 %v5086, 127
      %v5132 = vpop.permute.xlu0 %5131
      %5133 = vrot.lane.b32.xlu0 %v5087, 127
      %v5134 = vpop.permute.xlu0 %5133
      %5135 = vrot.lane.b32.xlu0 %v5088, 127
      %v5136 = vpop.permute.xlu0 %5135
      %5137 = vrot.lane.b32.xlu0 %v5089, 127
      %v5138 = vpop.permute.xlu0 %5137
      %5139 = vrot.lane.b32.xlu0 %v5090, 127
      %v5140 = vpop.permute.xlu0 %5139
      %5141 = vrot.lane.b32.xlu0 %v5091, 127
      %v5142 = vpop.permute.xlu0 %5141
      %5143 = vrot.lane.b32.xlu0 %v5092, 127
      %v5144 = vpop.permute.xlu0 %5143
      %5145 = vrot.lane.b32.xlu0 %v5093, 127
      %v5146 = vpop.permute.xlu0 %5145
      %5147 = vrot.lane.b32.xlu0 %v5094, 127
      %v5148 = vpop.permute.xlu0 %5147
      %5149 = vrot.lane.b32.xlu0 %v5095, 127
      %v5150 = vpop.permute.xlu0 %5149
      %5151 = vrot.lane.b32.xlu0 %v5096, 127
      %v5152 = vpop.permute.xlu0 %5151
      %5153 = vrot.lane.b32.xlu0 %v5097, 127
      %v5154 = vpop.permute.xlu0 %5153
      %5155 = vrot.lane.b32.xlu0 %v5098, 127
      %v5156 = vpop.permute.xlu0 %5155
      %5157 = vrot.lane.b32.xlu0 %v5099, 127
      %v5158 = vpop.permute.xlu0 %5157
      %5159 = vrot.lane.b32.xlu0 %v5100, 127
      %v5160 = vpop.permute.xlu0 %5159
      %5161 = vrot.lane.b32.xlu0 %v5101, 127
      %v5162 = vpop.permute.xlu0 %5161
      %5163 = vrot.lane.b32.xlu0 %v5102, 127
      %v5164 = vpop.permute.xlu0 %5163
      %5165 = vrot.lane.b32.xlu0 %v5103, 127
      %v5166 = vpop.permute.xlu0 %5165
      %5167 = vrot.lane.b32.xlu0 %v5104, 127
      %v5168 = vpop.permute.xlu0 %5167
      %v5169 = vsel %vm5009, %v5106, 4294967295
      %v5170 = vsel %vm5010, %v5108, 4294967295
      %v5171 = vsel %vm5011, %v5110, 4294967295
      %v5172 = vsel %vm5012, %v5112, 4294967295
      %v5173 = vsel %vm5013, %v5114, 4294967295
      %v5174 = vsel %vm5014, %v5116, 4294967295
      %v5175 = vsel %vm5015, %v5118, 4294967295
      %v5176 = vsel %vm5016, %v5120, 4294967295
      %v5177 = vsel %vm5017, %v5122, 4294967295
      %v5178 = vsel %vm5018, %v5124, 4294967295
      %v5179 = vsel %vm5019, %v5126, 4294967295
      %v5180 = vsel %vm5020, %v5128, 4294967295
      %v5181 = vsel %vm5021, %v5130, 4294967295
      %v5182 = vsel %vm5022, %v5132, 4294967295
      %v5183 = vsel %vm5023, %v5134, 4294967295
      %v5184 = vsel %vm5024, %v5136, 4294967295
      %v5185 = vsel %vm5025, %v5138, 4294967295
      %v5186 = vsel %vm5026, %v5140, 4294967295
      %v5187 = vsel %vm5027, %v5142, 4294967295
      %v5188 = vsel %vm5028, %v5144, 4294967295
      %v5189 = vsel %vm5029, %v5146, 4294967295
      %v5190 = vsel %vm5030, %v5148, 4294967295
      %v5191 = vsel %vm5031, %v5150, 4294967295
      %v5192 = vsel %vm5032, %v5152, 4294967295
      %v5193 = vsel %vm5033, %v5154, 4294967295
      %v5194 = vsel %vm5034, %v5156, 4294967295
      %v5195 = vsel %vm5035, %v5158, 4294967295
      %v5196 = vsel %vm5036, %v5160, 4294967295
      %v5197 = vsel %vm5037, %v5162, 4294967295
      %v5198 = vsel %vm5038, %v5164, 4294967295
      %v5199 = vsel %vm5039, %v5166, 4294967295
      %v5200 = vsel %vm5040, %v5168, 4294967295
      %5201 = vset.pattern.permute.xlu0 2
      %5202 = vperm.xlu0 %5201, %v5169
      %v5203 = vpop.permute.xlu0 %5202
      %5204 = vset.pattern.permute.xlu0 2
      %5205 = vperm.xlu0 %5204, %v5170
      %v5206 = vpop.permute.xlu0 %5205
      %5207 = vset.pattern.permute.xlu0 2
      %5208 = vperm.xlu0 %5207, %v5171
      %v5209 = vpop.permute.xlu0 %5208
      %5210 = vset.pattern.permute.xlu0 2
      %5211 = vperm.xlu0 %5210, %v5172
      %v5212 = vpop.permute.xlu0 %5211
      %5213 = vset.pattern.permute.xlu0 2
      %5214 = vperm.xlu0 %5213, %v5173
      %v5215 = vpop.permute.xlu0 %5214
      %5216 = vset.pattern.permute.xlu0 2
      %5217 = vperm.xlu0 %5216, %v5174
      %v5218 = vpop.permute.xlu0 %5217
      %5219 = vset.pattern.permute.xlu0 2
      %5220 = vperm.xlu0 %5219, %v5175
      %v5221 = vpop.permute.xlu0 %5220
      %5222 = vset.pattern.permute.xlu0 2
      %5223 = vperm.xlu0 %5222, %v5176
      %v5224 = vpop.permute.xlu0 %5223
      %5225 = vset.pattern.permute.xlu0 2
      %5226 = vperm.xlu0 %5225, %v5177
      %v5227 = vpop.permute.xlu0 %5226
      %5228 = vset.pattern.permute.xlu0 2
      %5229 = vperm.xlu0 %5228, %v5178
      %v5230 = vpop.permute.xlu0 %5229
      %5231 = vset.pattern.permute.xlu0 2
      %5232 = vperm.xlu0 %5231, %v5179
      %v5233 = vpop.permute.xlu0 %5232
      %5234 = vset.pattern.permute.xlu0 2
      %5235 = vperm.xlu0 %5234, %v5180
      %v5236 = vpop.permute.xlu0 %5235
      %5237 = vset.pattern.permute.xlu0 2
      %5238 = vperm.xlu0 %5237, %v5181
      %v5239 = vpop.permute.xlu0 %5238
      %5240 = vset.pattern.permute.xlu0 2
      %5241 = vperm.xlu0 %5240, %v5182
      %v5242 = vpop.permute.xlu0 %5241
      %5243 = vset.pattern.permute.xlu0 2
      %5244 = vperm.xlu0 %5243, %v5183
      %v5245 = vpop.permute.xlu0 %5244
      %5246 = vset.pattern.permute.xlu0 2
      %5247 = vperm.xlu0 %5246, %v5184
      %v5248 = vpop.permute.xlu0 %5247
      %5249 = vset.pattern.permute.xlu0 2
      %5250 = vperm.xlu0 %5249, %v5185
      %v5251 = vpop.permute.xlu0 %5250
      %5252 = vset.pattern.permute.xlu0 2
      %5253 = vperm.xlu0 %5252, %v5186
      %v5254 = vpop.permute.xlu0 %5253
      %5255 = vset.pattern.permute.xlu0 2
      %5256 = vperm.xlu0 %5255, %v5187
      %v5257 = vpop.permute.xlu0 %5256
      %5258 = vset.pattern.permute.xlu0 2
      %5259 = vperm.xlu0 %5258, %v5188
      %v5260 = vpop.permute.xlu0 %5259
      %5261 = vset.pattern.permute.xlu0 2
      %5262 = vperm.xlu0 %5261, %v5189
      %v5263 = vpop.permute.xlu0 %5262
      %5264 = vset.pattern.permute.xlu0 2
      %5265 = vperm.xlu0 %5264, %v5190
      %v5266 = vpop.permute.xlu0 %5265
      %5267 = vset.pattern.permute.xlu0 2
      %5268 = vperm.xlu0 %5267, %v5191
      %v5269 = vpop.permute.xlu0 %5268
      %5270 = vset.pattern.permute.xlu0 2
      %5271 = vperm.xlu0 %5270, %v5192
      %v5272 = vpop.permute.xlu0 %5271
      %5273 = vset.pattern.permute.xlu0 2
      %5274 = vperm.xlu0 %5273, %v5193
      %v5275 = vpop.permute.xlu0 %5274
      %5276 = vset.pattern.permute.xlu0 2
      %5277 = vperm.xlu0 %5276, %v5194
      %v5278 = vpop.permute.xlu0 %5277
      %5279 = vset.pattern.permute.xlu0 2
      %5280 = vperm.xlu0 %5279, %v5195
      %v5281 = vpop.permute.xlu0 %5280
      %5282 = vset.pattern.permute.xlu0 2
      %5283 = vperm.xlu0 %5282, %v5196
      %v5284 = vpop.permute.xlu0 %5283
      %5285 = vset.pattern.permute.xlu0 2
      %5286 = vperm.xlu0 %5285, %v5197
      %v5287 = vpop.permute.xlu0 %5286
      %5288 = vset.pattern.permute.xlu0 2
      %5289 = vperm.xlu0 %5288, %v5198
      %v5290 = vpop.permute.xlu0 %5289
      %5291 = vset.pattern.permute.xlu0 2
      %5292 = vperm.xlu0 %5291, %v5199
      %v5293 = vpop.permute.xlu0 %5292
      %5294 = vset.pattern.permute.xlu0 2
      %5295 = vperm.xlu0 %5294, %v5200
      %v5296 = vpop.permute.xlu0 %5295
      %vm5297 = vcmp.eq.s32.totalorder %v303, %v5203
      %vm5298 = vcmp.eq.s32.totalorder %v304, %v5203
      %vm5299 = vcmp.eq.s32.totalorder %v303, %v5206
      %vm5300 = vcmp.eq.s32.totalorder %v304, %v5206
      %vm5301 = vcmp.eq.s32.totalorder %v303, %v5209
      %vm5302 = vcmp.eq.s32.totalorder %v304, %v5209
      %vm5303 = vcmp.eq.s32.totalorder %v303, %v5212
      %vm5304 = vcmp.eq.s32.totalorder %v304, %v5212
      %vm5305 = vcmp.eq.s32.totalorder %v303, %v5215
      %vm5306 = vcmp.eq.s32.totalorder %v304, %v5215
      %vm5307 = vcmp.eq.s32.totalorder %v303, %v5218
      %vm5308 = vcmp.eq.s32.totalorder %v304, %v5218
      %vm5309 = vcmp.eq.s32.totalorder %v303, %v5221
      %vm5310 = vcmp.eq.s32.totalorder %v304, %v5221
      %vm5311 = vcmp.eq.s32.totalorder %v303, %v5224
      %vm5312 = vcmp.eq.s32.totalorder %v304, %v5224
      %vm5313 = vcmp.eq.s32.totalorder %v303, %v5227
      %vm5314 = vcmp.eq.s32.totalorder %v304, %v5227
      %vm5315 = vcmp.eq.s32.totalorder %v303, %v5230
      %vm5316 = vcmp.eq.s32.totalorder %v304, %v5230
      %vm5317 = vcmp.eq.s32.totalorder %v303, %v5233
      %vm5318 = vcmp.eq.s32.totalorder %v304, %v5233
      %vm5319 = vcmp.eq.s32.totalorder %v303, %v5236
      %vm5320 = vcmp.eq.s32.totalorder %v304, %v5236
      %vm5321 = vcmp.eq.s32.totalorder %v303, %v5239
      %vm5322 = vcmp.eq.s32.totalorder %v304, %v5239
      %vm5323 = vcmp.eq.s32.totalorder %v303, %v5242
      %vm5324 = vcmp.eq.s32.totalorder %v304, %v5242
      %vm5325 = vcmp.eq.s32.totalorder %v303, %v5245
      %vm5326 = vcmp.eq.s32.totalorder %v304, %v5245
      %vm5327 = vcmp.eq.s32.totalorder %v303, %v5248
      %vm5328 = vcmp.eq.s32.totalorder %v304, %v5248
      %vm5329 = vcmp.eq.s32.totalorder %v303, %v5251
      %vm5330 = vcmp.eq.s32.totalorder %v304, %v5251
      %vm5331 = vcmp.eq.s32.totalorder %v303, %v5254
      %vm5332 = vcmp.eq.s32.totalorder %v304, %v5254
      %vm5333 = vcmp.eq.s32.totalorder %v303, %v5257
      %vm5334 = vcmp.eq.s32.totalorder %v304, %v5257
      %vm5335 = vcmp.eq.s32.totalorder %v303, %v5260
      %vm5336 = vcmp.eq.s32.totalorder %v304, %v5260
      %vm5337 = vcmp.eq.s32.totalorder %v303, %v5263
      %vm5338 = vcmp.eq.s32.totalorder %v304, %v5263
      %vm5339 = vcmp.eq.s32.totalorder %v303, %v5266
      %vm5340 = vcmp.eq.s32.totalorder %v304, %v5266
      %vm5341 = vcmp.eq.s32.totalorder %v303, %v5269
      %vm5342 = vcmp.eq.s32.totalorder %v304, %v5269
      %vm5343 = vcmp.eq.s32.totalorder %v303, %v5272
      %vm5344 = vcmp.eq.s32.totalorder %v304, %v5272
      %vm5345 = vcmp.eq.s32.totalorder %v303, %v5275
      %vm5346 = vcmp.eq.s32.totalorder %v304, %v5275
      %vm5347 = vcmp.eq.s32.totalorder %v303, %v5278
      %vm5348 = vcmp.eq.s32.totalorder %v304, %v5278
      %vm5349 = vcmp.eq.s32.totalorder %v303, %v5281
      %vm5350 = vcmp.eq.s32.totalorder %v304, %v5281
      %vm5351 = vcmp.eq.s32.totalorder %v303, %v5284
      %vm5352 = vcmp.eq.s32.totalorder %v304, %v5284
      %vm5353 = vcmp.eq.s32.totalorder %v303, %v5287
      %vm5354 = vcmp.eq.s32.totalorder %v304, %v5287
      %vm5355 = vcmp.eq.s32.totalorder %v303, %v5290
      %vm5356 = vcmp.eq.s32.totalorder %v304, %v5290
      %vm5357 = vcmp.eq.s32.totalorder %v303, %v5293
      %vm5358 = vcmp.eq.s32.totalorder %v304, %v5293
      %vm5359 = vcmp.eq.s32.totalorder %v303, %v5296
      %vm5360 = vcmp.eq.s32.totalorder %v304, %v5296
      %v5361 = vsel %vm5297, 1, 0
      %v5362 = vsel %vm5298, 1, 0
      %v5363 = vsel %vm5299, 1, 0
      %v5364 = vsel %vm5300, 1, 0
      %v5365 = vsel %vm5301, 1, 0
      %v5366 = vsel %vm5302, 1, 0
      %v5367 = vsel %vm5303, 1, 0
      %v5368 = vsel %vm5304, 1, 0
      %v5369 = vsel %vm5305, 1, 0
      %v5370 = vsel %vm5306, 1, 0
      %v5371 = vsel %vm5307, 1, 0
      %v5372 = vsel %vm5308, 1, 0
      %v5373 = vsel %vm5309, 1, 0
      %v5374 = vsel %vm5310, 1, 0
      %v5375 = vsel %vm5311, 1, 0
      %v5376 = vsel %vm5312, 1, 0
      %v5377 = vsel %vm5313, 1, 0
      %v5378 = vsel %vm5314, 1, 0
      %v5379 = vsel %vm5315, 1, 0
      %v5380 = vsel %vm5316, 1, 0
      %v5381 = vsel %vm5317, 1, 0
      %v5382 = vsel %vm5318, 1, 0
      %v5383 = vsel %vm5319, 1, 0
      %v5384 = vsel %vm5320, 1, 0
      %v5385 = vsel %vm5321, 1, 0
      %v5386 = vsel %vm5322, 1, 0
      %v5387 = vsel %vm5323, 1, 0
      %v5388 = vsel %vm5324, 1, 0
      %v5389 = vsel %vm5325, 1, 0
      %v5390 = vsel %vm5326, 1, 0
      %v5391 = vsel %vm5327, 1, 0
      %v5392 = vsel %vm5328, 1, 0
      %v5393 = vsel %vm5329, 1, 0
      %v5394 = vsel %vm5330, 1, 0
      %v5395 = vsel %vm5331, 1, 0
      %v5396 = vsel %vm5332, 1, 0
      %v5397 = vsel %vm5333, 1, 0
      %v5398 = vsel %vm5334, 1, 0
      %v5399 = vsel %vm5335, 1, 0
      %v5400 = vsel %vm5336, 1, 0
      %v5401 = vsel %vm5337, 1, 0
      %v5402 = vsel %vm5338, 1, 0
      %v5403 = vsel %vm5339, 1, 0
      %v5404 = vsel %vm5340, 1, 0
      %v5405 = vsel %vm5341, 1, 0
      %v5406 = vsel %vm5342, 1, 0
      %v5407 = vsel %vm5343, 1, 0
      %v5408 = vsel %vm5344, 1, 0
      %v5409 = vsel %vm5345, 1, 0
      %v5410 = vsel %vm5346, 1, 0
      %v5411 = vsel %vm5347, 1, 0
      %v5412 = vsel %vm5348, 1, 0
      %v5413 = vsel %vm5349, 1, 0
      %v5414 = vsel %vm5350, 1, 0
      %v5415 = vsel %vm5351, 1, 0
      %v5416 = vsel %vm5352, 1, 0
      %v5417 = vsel %vm5353, 1, 0
      %v5418 = vsel %vm5354, 1, 0
      %v5419 = vsel %vm5355, 1, 0
      %v5420 = vsel %vm5356, 1, 0
      %v5421 = vsel %vm5357, 1, 0
      %v5422 = vsel %vm5358, 1, 0
      %v5423 = vsel %vm5359, 1, 0
      %v5424 = vsel %vm5360, 1, 0
      %v5425 = vcvt.s32.f32 %v5361
      %v5426 = vcvt.s32.f32 %v5362
      %v5427 = vcvt.s32.f32 %v5363
      %v5428 = vcvt.s32.f32 %v5364
      %v5429 = vcvt.s32.f32 %v5365
      %v5430 = vcvt.s32.f32 %v5366
      %v5431 = vcvt.s32.f32 %v5367
      %v5432 = vcvt.s32.f32 %v5368
      %v5433 = vcvt.s32.f32 %v5369
      %v5434 = vcvt.s32.f32 %v5370
      %v5435 = vcvt.s32.f32 %v5371
      %v5436 = vcvt.s32.f32 %v5372
      %v5437 = vcvt.s32.f32 %v5373
      %v5438 = vcvt.s32.f32 %v5374
      %v5439 = vcvt.s32.f32 %v5375
      %v5440 = vcvt.s32.f32 %v5376
      %v5441 = vcvt.s32.f32 %v5377
      %v5442 = vcvt.s32.f32 %v5378
      %v5443 = vcvt.s32.f32 %v5379
      %v5444 = vcvt.s32.f32 %v5380
      %v5445 = vcvt.s32.f32 %v5381
      %v5446 = vcvt.s32.f32 %v5382
      %v5447 = vcvt.s32.f32 %v5383
      %v5448 = vcvt.s32.f32 %v5384
      %v5449 = vcvt.s32.f32 %v5385
      %v5450 = vcvt.s32.f32 %v5386
      %v5451 = vcvt.s32.f32 %v5387
      %v5452 = vcvt.s32.f32 %v5388
      %v5453 = vcvt.s32.f32 %v5389
      %v5454 = vcvt.s32.f32 %v5390
      %v5455 = vcvt.s32.f32 %v5391
      %v5456 = vcvt.s32.f32 %v5392
      %v5457 = vcvt.s32.f32 %v5393
      %v5458 = vcvt.s32.f32 %v5394
      %v5459 = vcvt.s32.f32 %v5395
      %v5460 = vcvt.s32.f32 %v5396
      %v5461 = vcvt.s32.f32 %v5397
      %v5462 = vcvt.s32.f32 %v5398
      %v5463 = vcvt.s32.f32 %v5399
      %v5464 = vcvt.s32.f32 %v5400
      %v5465 = vcvt.s32.f32 %v5401
      %v5466 = vcvt.s32.f32 %v5402
      %v5467 = vcvt.s32.f32 %v5403
      %v5468 = vcvt.s32.f32 %v5404
      %v5469 = vcvt.s32.f32 %v5405
      %v5470 = vcvt.s32.f32 %v5406
      %v5471 = vcvt.s32.f32 %v5407
      %v5472 = vcvt.s32.f32 %v5408
      %v5473 = vcvt.s32.f32 %v5409
      %v5474 = vcvt.s32.f32 %v5410
      %v5475 = vcvt.s32.f32 %v5411
      %v5476 = vcvt.s32.f32 %v5412
      %v5477 = vcvt.s32.f32 %v5413
      %v5478 = vcvt.s32.f32 %v5414
      %v5479 = vcvt.s32.f32 %v5415
      %v5480 = vcvt.s32.f32 %v5416
      %v5481 = vcvt.s32.f32 %v5417
      %v5482 = vcvt.s32.f32 %v5418
      %v5483 = vcvt.s32.f32 %v5419
      %v5484 = vcvt.s32.f32 %v5420
      %v5485 = vcvt.s32.f32 %v5421
      %v5486 = vcvt.s32.f32 %v5422
      %v5487 = vcvt.s32.f32 %v5423
      %v5488 = vcvt.s32.f32 %v5424
      %5489 = vset.pattern.permute.xlu0 2
      %5490 = vperm.xlu0 %5489, %v593
      %v5491 = vpop.permute.xlu0 %5490
      %5493 = vset.pattern.permute.xlu0 2
      %5494 = vperm.xlu0 %5493, %v594
      %v5495 = vpop.permute.xlu0 %5494
      %5497 = vset.pattern.permute.xlu0 2
      %5498 = vperm.xlu0 %5497, %v595
      %v5499 = vpop.permute.xlu0 %5498
      %5501 = vset.pattern.permute.xlu0 2
      %5502 = vperm.xlu0 %5501, %v596
      %v5503 = vpop.permute.xlu0 %5502
      %5505 = vset.pattern.permute.xlu0 2
      %5506 = vperm.xlu0 %5505, %v597
      %v5507 = vpop.permute.xlu0 %5506
      %5509 = vset.pattern.permute.xlu0 2
      %5510 = vperm.xlu0 %5509, %v598
      %v5511 = vpop.permute.xlu0 %5510
      %5513 = vset.pattern.permute.xlu0 2
      %5514 = vperm.xlu0 %5513, %v599
      %v5515 = vpop.permute.xlu0 %5514
      %5517 = vset.pattern.permute.xlu0 2
      %5518 = vperm.xlu0 %5517, %v600
      %v5519 = vpop.permute.xlu0 %5518
      %5521 = vset.pattern.permute.xlu0 2
      %5522 = vperm.xlu0 %5521, %v601
      %v5523 = vpop.permute.xlu0 %5522
      %5525 = vset.pattern.permute.xlu0 2
      %5526 = vperm.xlu0 %5525, %v602
      %v5527 = vpop.permute.xlu0 %5526
      %5529 = vset.pattern.permute.xlu0 2
      %5530 = vperm.xlu0 %5529, %v603
      %v5531 = vpop.permute.xlu0 %5530
      %5533 = vset.pattern.permute.xlu0 2
      %5534 = vperm.xlu0 %5533, %v604
      %v5535 = vpop.permute.xlu0 %5534
      %5537 = vset.pattern.permute.xlu0 2
      %5538 = vperm.xlu0 %5537, %v605
      %v5539 = vpop.permute.xlu0 %5538
      %5541 = vset.pattern.permute.xlu0 2
      %5542 = vperm.xlu0 %5541, %v606
      %v5543 = vpop.permute.xlu0 %5542
      %5545 = vset.pattern.permute.xlu0 2
      %5546 = vperm.xlu0 %5545, %v607
      %v5547 = vpop.permute.xlu0 %5546
      %5549 = vset.pattern.permute.xlu0 2
      %5550 = vperm.xlu0 %5549, %v608
      %v5551 = vpop.permute.xlu0 %5550
      %5553 = vset.pattern.permute.xlu0 2
      %5554 = vperm.xlu0 %5553, %v609
      %v5555 = vpop.permute.xlu0 %5554
      %5557 = vset.pattern.permute.xlu0 2
      %5558 = vperm.xlu0 %5557, %v610
      %v5559 = vpop.permute.xlu0 %5558
      %5561 = vset.pattern.permute.xlu0 2
      %5562 = vperm.xlu0 %5561, %v611
      %v5563 = vpop.permute.xlu0 %5562
      %5565 = vset.pattern.permute.xlu0 2
      %5566 = vperm.xlu0 %5565, %v612
      %v5567 = vpop.permute.xlu0 %5566
      %5569 = vset.pattern.permute.xlu0 2
      %5570 = vperm.xlu0 %5569, %v613
      %v5571 = vpop.permute.xlu0 %5570
      %5573 = vset.pattern.permute.xlu0 2
      %5574 = vperm.xlu0 %5573, %v614
      %v5575 = vpop.permute.xlu0 %5574
      %5577 = vset.pattern.permute.xlu0 2
      %5578 = vperm.xlu0 %5577, %v615
      %v5579 = vpop.permute.xlu0 %5578
      %5581 = vset.pattern.permute.xlu0 2
      %5582 = vperm.xlu0 %5581, %v616
      %v5583 = vpop.permute.xlu0 %5582
      %5585 = vset.pattern.permute.xlu0 2
      %5586 = vperm.xlu0 %5585, %v617
      %v5587 = vpop.permute.xlu0 %5586
      %5589 = vset.pattern.permute.xlu0 2
      %5590 = vperm.xlu0 %5589, %v618
      %v5591 = vpop.permute.xlu0 %5590
      %5593 = vset.pattern.permute.xlu0 2
      %5594 = vperm.xlu0 %5593, %v619
      %v5595 = vpop.permute.xlu0 %5594
      %5597 = vset.pattern.permute.xlu0 2
      %5598 = vperm.xlu0 %5597, %v620
      %v5599 = vpop.permute.xlu0 %5598
      %5601 = vset.pattern.permute.xlu0 2
      %5602 = vperm.xlu0 %5601, %v621
      %v5603 = vpop.permute.xlu0 %5602
      %5605 = vset.pattern.permute.xlu0 2
      %5606 = vperm.xlu0 %5605, %v622
      %v5607 = vpop.permute.xlu0 %5606
      %5609 = vset.pattern.permute.xlu0 2
      %5610 = vperm.xlu0 %5609, %v623
      %v5611 = vpop.permute.xlu0 %5610
      %5613 = vset.pattern.permute.xlu0 2
      %5614 = vperm.xlu0 %5613, %v624
      %v5615 = vpop.permute.xlu0 %5614
      %v5617 = vmul.f32 %v5425, %v5491
      %v5618 = vmul.f32 %v5426, %v5491
      %v5619 = vmul.f32 %v5427, %v5495
      %v5620 = vmul.f32 %v5428, %v5495
      %v5621 = vmul.f32 %v5429, %v5499
      %v5622 = vmul.f32 %v5430, %v5499
      %v5623 = vmul.f32 %v5431, %v5503
      %v5624 = vmul.f32 %v5432, %v5503
      %v5625 = vmul.f32 %v5433, %v5507
      %v5626 = vmul.f32 %v5434, %v5507
      %v5627 = vmul.f32 %v5435, %v5511
      %v5628 = vmul.f32 %v5436, %v5511
      %v5629 = vmul.f32 %v5437, %v5515
      %v5630 = vmul.f32 %v5438, %v5515
      %v5631 = vmul.f32 %v5439, %v5519
      %v5632 = vmul.f32 %v5440, %v5519
      %v5633 = vmul.f32 %v5441, %v5523
      %v5634 = vmul.f32 %v5442, %v5523
      %v5635 = vmul.f32 %v5443, %v5527
      %v5636 = vmul.f32 %v5444, %v5527
      %v5637 = vmul.f32 %v5445, %v5531
      %v5638 = vmul.f32 %v5446, %v5531
      %v5639 = vmul.f32 %v5447, %v5535
      %v5640 = vmul.f32 %v5448, %v5535
      %v5641 = vmul.f32 %v5449, %v5539
      %v5642 = vmul.f32 %v5450, %v5539
      %v5643 = vmul.f32 %v5451, %v5543
      %v5644 = vmul.f32 %v5452, %v5543
      %v5645 = vmul.f32 %v5453, %v5547
      %v5646 = vmul.f32 %v5454, %v5547
      %v5647 = vmul.f32 %v5455, %v5551
      %v5648 = vmul.f32 %v5456, %v5551
      %v5649 = vmul.f32 %v5457, %v5555
      %v5650 = vmul.f32 %v5458, %v5555
      %v5651 = vmul.f32 %v5459, %v5559
      %v5652 = vmul.f32 %v5460, %v5559
      %v5653 = vmul.f32 %v5461, %v5563
      %v5654 = vmul.f32 %v5462, %v5563
      %v5655 = vmul.f32 %v5463, %v5567
      %v5656 = vmul.f32 %v5464, %v5567
      %v5657 = vmul.f32 %v5465, %v5571
      %v5658 = vmul.f32 %v5466, %v5571
      %v5659 = vmul.f32 %v5467, %v5575
      %v5660 = vmul.f32 %v5468, %v5575
      %v5661 = vmul.f32 %v5469, %v5579
      %v5662 = vmul.f32 %v5470, %v5579
      %v5663 = vmul.f32 %v5471, %v5583
      %v5664 = vmul.f32 %v5472, %v5583
      %v5665 = vmul.f32 %v5473, %v5587
      %v5666 = vmul.f32 %v5474, %v5587
      %v5667 = vmul.f32 %v5475, %v5591
      %v5668 = vmul.f32 %v5476, %v5591
      %v5669 = vmul.f32 %v5477, %v5595
      %v5670 = vmul.f32 %v5478, %v5595
      %v5671 = vmul.f32 %v5479, %v5599
      %v5672 = vmul.f32 %v5480, %v5599
      %v5673 = vmul.f32 %v5481, %v5603
      %v5674 = vmul.f32 %v5482, %v5603
      %v5675 = vmul.f32 %v5483, %v5607
      %v5676 = vmul.f32 %v5484, %v5607
      %v5677 = vmul.f32 %v5485, %v5611
      %v5678 = vmul.f32 %v5486, %v5611
      %v5679 = vmul.f32 %v5487, %v5615
      %v5680 = vmul.f32 %v5488, %v5615
      %vm5681 = vcmp.lt.s32.totalorder %v433, 32
      %vm5682 = vcmp.lt.s32.totalorder %v434, 32
      %vm5683 = vcmp.lt.s32.totalorder %v435, 32
      %vm5684 = vcmp.lt.s32.totalorder %v436, 32
      %vm5685 = vcmp.lt.s32.totalorder %v437, 32
      %vm5686 = vcmp.lt.s32.totalorder %v438, 32
      %vm5687 = vcmp.lt.s32.totalorder %v439, 32
      %vm5688 = vcmp.lt.s32.totalorder %v440, 32
      %vm5689 = vcmp.lt.s32.totalorder %v441, 32
      %vm5690 = vcmp.lt.s32.totalorder %v442, 32
      %vm5691 = vcmp.lt.s32.totalorder %v443, 32
      %vm5692 = vcmp.lt.s32.totalorder %v444, 32
      %vm5693 = vcmp.lt.s32.totalorder %v445, 32
      %vm5694 = vcmp.lt.s32.totalorder %v446, 32
      %vm5695 = vcmp.lt.s32.totalorder %v447, 32
      %vm5696 = vcmp.lt.s32.totalorder %v448, 32
      %vm5697 = vcmp.lt.s32.totalorder %v449, 32
      %vm5698 = vcmp.lt.s32.totalorder %v450, 32
      %vm5699 = vcmp.lt.s32.totalorder %v451, 32
      %vm5700 = vcmp.lt.s32.totalorder %v452, 32
      %vm5701 = vcmp.lt.s32.totalorder %v453, 32
      %vm5702 = vcmp.lt.s32.totalorder %v454, 32
      %vm5703 = vcmp.lt.s32.totalorder %v455, 32
      %vm5704 = vcmp.lt.s32.totalorder %v456, 32
      %vm5705 = vcmp.lt.s32.totalorder %v457, 32
      %vm5706 = vcmp.lt.s32.totalorder %v458, 32
      %vm5707 = vcmp.lt.s32.totalorder %v459, 32
      %vm5708 = vcmp.lt.s32.totalorder %v460, 32
      %vm5709 = vcmp.lt.s32.totalorder %v461, 32
      %vm5710 = vcmp.lt.s32.totalorder %v462, 32
      %vm5711 = vcmp.lt.s32.totalorder %v463, 32
      %vm5712 = vcmp.lt.s32.totalorder %v464, 32
      %vm5713 = vmand %vm1809, %vm5681
      %vm5714 = vmand %vm1810, %vm5682
      %vm5715 = vmand %vm1811, %vm5683
      %vm5716 = vmand %vm1812, %vm5684
      %vm5717 = vmand %vm1813, %vm5685
      %vm5718 = vmand %vm1814, %vm5686
      %vm5719 = vmand %vm1815, %vm5687
      %vm5720 = vmand %vm1816, %vm5688
      %vm5721 = vmand %vm1817, %vm5689
      %vm5722 = vmand %vm1818, %vm5690
      %vm5723 = vmand %vm1819, %vm5691
      %vm5724 = vmand %vm1820, %vm5692
      %vm5725 = vmand %vm1821, %vm5693
      %vm5726 = vmand %vm1822, %vm5694
      %vm5727 = vmand %vm1823, %vm5695
      %vm5728 = vmand %vm1824, %vm5696
      %vm5729 = vmand %vm1825, %vm5697
      %vm5730 = vmand %vm1826, %vm5698
      %vm5731 = vmand %vm1827, %vm5699
      %vm5732 = vmand %vm1828, %vm5700
      %vm5733 = vmand %vm1829, %vm5701
      %vm5734 = vmand %vm1830, %vm5702
      %vm5735 = vmand %vm1831, %vm5703
      %vm5736 = vmand %vm1832, %vm5704
      %vm5737 = vmand %vm1833, %vm5705
      %vm5738 = vmand %vm1834, %vm5706
      %vm5739 = vmand %vm1835, %vm5707
      %vm5740 = vmand %vm1836, %vm5708
      %vm5741 = vmand %vm1837, %vm5709
      %vm5742 = vmand %vm1838, %vm5710
      %vm5743 = vmand %vm1839, %vm5711
      %vm5744 = vmand %vm1840, %vm5712
      %vm5745 = vmand %vm5713, %vm817
      %vm5746 = vmand %vm5714, %vm818
      %vm5747 = vmand %vm5715, %vm819
      %vm5748 = vmand %vm5716, %vm820
      %vm5749 = vmand %vm5717, %vm821
      %vm5750 = vmand %vm5718, %vm822
      %vm5751 = vmand %vm5719, %vm823
      %vm5752 = vmand %vm5720, %vm824
      %vm5753 = vmand %vm5721, %vm825
      %vm5754 = vmand %vm5722, %vm826
      %vm5755 = vmand %vm5723, %vm827
      %vm5756 = vmand %vm5724, %vm828
      %vm5757 = vmand %vm5725, %vm829
      %vm5758 = vmand %vm5726, %vm830
      %vm5759 = vmand %vm5727, %vm831
      %vm5760 = vmand %vm5728, %vm832
      %vm5761 = vmand %vm5729, %vm833
      %vm5762 = vmand %vm5730, %vm834
      %vm5763 = vmand %vm5731, %vm835
      %vm5764 = vmand %vm5732, %vm836
      %vm5765 = vmand %vm5733, %vm837
      %vm5766 = vmand %vm5734, %vm838
      %vm5767 = vmand %vm5735, %vm839
      %vm5768 = vmand %vm5736, %vm840
      %vm5769 = vmand %vm5737, %vm841
      %vm5770 = vmand %vm5738, %vm842
      %vm5771 = vmand %vm5739, %vm843
      %vm5772 = vmand %vm5740, %vm844
      %vm5773 = vmand %vm5741, %vm845
      %vm5774 = vmand %vm5742, %vm846
      %vm5775 = vmand %vm5743, %vm847
      %vm5776 = vmand %vm5744, %vm848
      %vm5777 = vmand %vm5745, %vm4977
      %vm5778 = vmand %vm5746, %vm4978
      %vm5779 = vmand %vm5747, %vm4979
      %vm5780 = vmand %vm5748, %vm4980
      %vm5781 = vmand %vm5749, %vm4981
      %vm5782 = vmand %vm5750, %vm4982
      %vm5783 = vmand %vm5751, %vm4983
      %vm5784 = vmand %vm5752, %vm4984
      %vm5785 = vmand %vm5753, %vm4985
      %vm5786 = vmand %vm5754, %vm4986
      %vm5787 = vmand %vm5755, %vm4987
      %vm5788 = vmand %vm5756, %vm4988
      %vm5789 = vmand %vm5757, %vm4989
      %vm5790 = vmand %vm5758, %vm4990
      %vm5791 = vmand %vm5759, %vm4991
      %vm5792 = vmand %vm5760, %vm4992
      %vm5793 = vmand %vm5761, %vm4993
      %vm5794 = vmand %vm5762, %vm4994
      %vm5795 = vmand %vm5763, %vm4995
      %vm5796 = vmand %vm5764, %vm4996
      %vm5797 = vmand %vm5765, %vm4997
      %vm5798 = vmand %vm5766, %vm4998
      %vm5799 = vmand %vm5767, %vm4999
      %vm5800 = vmand %vm5768, %vm5000
      %vm5801 = vmand %vm5769, %vm5001
      %vm5802 = vmand %vm5770, %vm5002
      %vm5803 = vmand %vm5771, %vm5003
      %vm5804 = vmand %vm5772, %vm5004
      %vm5805 = vmand %vm5773, %vm5005
      %vm5806 = vmand %vm5774, %vm5006
      %vm5807 = vmand %vm5775, %vm5007
      %vm5808 = vmand %vm5776, %vm5008
      %v5809 = vadd.s32 %v5041, %v1970
      %v5810 = vadd.s32 %v5042, %v1972
      %v5811 = vadd.s32 %v5043, %v1974
      %v5812 = vadd.s32 %v5044, %v1976
      %v5813 = vadd.s32 %v5045, %v1978
      %v5814 = vadd.s32 %v5046, %v1980
      %v5815 = vadd.s32 %v5047, %v1982
      %v5816 = vadd.s32 %v5048, %v1984
      %v5817 = vadd.s32 %v5049, %v1986
      %v5818 = vadd.s32 %v5050, %v1988
      %v5819 = vadd.s32 %v5051, %v1990
      %v5820 = vadd.s32 %v5052, %v1992
      %v5821 = vadd.s32 %v5053, %v1994
      %v5822 = vadd.s32 %v5054, %v1996
      %v5823 = vadd.s32 %v5055, %v1998
      %v5824 = vadd.s32 %v5056, %v2000
      %v5825 = vadd.s32 %v5057, %v2002
      %v5826 = vadd.s32 %v5058, %v2004
      %v5827 = vadd.s32 %v5059, %v2006
      %v5828 = vadd.s32 %v5060, %v2008
      %v5829 = vadd.s32 %v5061, %v2010
      %v5830 = vadd.s32 %v5062, %v2012
      %v5831 = vadd.s32 %v5063, %v2014
      %v5832 = vadd.s32 %v5064, %v2016
      %v5833 = vadd.s32 %v5065, %v2018
      %v5834 = vadd.s32 %v5066, %v2020
      %v5835 = vadd.s32 %v5067, %v2022
      %v5836 = vadd.s32 %v5068, %v2024
      %v5837 = vadd.s32 %v5069, %v2026
      %v5838 = vadd.s32 %v5070, %v2028
      %v5839 = vadd.s32 %v5071, %v2030
      %v5840 = vadd.s32 %v5072, %v2032
      %5841 = vrot.lane.b32.xlu0 %v5809, 127
      %v5842 = vpop.permute.xlu0 %5841
      %5843 = vrot.lane.b32.xlu0 %v5810, 127
      %v5844 = vpop.permute.xlu0 %5843
      %5845 = vrot.lane.b32.xlu0 %v5811, 127
      %v5846 = vpop.permute.xlu0 %5845
      %5847 = vrot.lane.b32.xlu0 %v5812, 127
      %v5848 = vpop.permute.xlu0 %5847
      %5849 = vrot.lane.b32.xlu0 %v5813, 127
      %v5850 = vpop.permute.xlu0 %5849
      %5851 = vrot.lane.b32.xlu0 %v5814, 127
      %v5852 = vpop.permute.xlu0 %5851
      %5853 = vrot.lane.b32.xlu0 %v5815, 127
      %v5854 = vpop.permute.xlu0 %5853
      %5855 = vrot.lane.b32.xlu0 %v5816, 127
      %v5856 = vpop.permute.xlu0 %5855
      %5857 = vrot.lane.b32.xlu0 %v5817, 127
      %v5858 = vpop.permute.xlu0 %5857
      %5859 = vrot.lane.b32.xlu0 %v5818, 127
      %v5860 = vpop.permute.xlu0 %5859
      %5861 = vrot.lane.b32.xlu0 %v5819, 127
      %v5862 = vpop.permute.xlu0 %5861
      %5863 = vrot.lane.b32.xlu0 %v5820, 127
      %v5864 = vpop.permute.xlu0 %5863
      %5865 = vrot.lane.b32.xlu0 %v5821, 127
      %v5866 = vpop.permute.xlu0 %5865
      %5867 = vrot.lane.b32.xlu0 %v5822, 127
      %v5868 = vpop.permute.xlu0 %5867
      %5869 = vrot.lane.b32.xlu0 %v5823, 127
      %v5870 = vpop.permute.xlu0 %5869
      %5871 = vrot.lane.b32.xlu0 %v5824, 127
      %v5872 = vpop.permute.xlu0 %5871
      %5873 = vrot.lane.b32.xlu0 %v5825, 127
      %v5874 = vpop.permute.xlu0 %5873
      %5875 = vrot.lane.b32.xlu0 %v5826, 127
      %v5876 = vpop.permute.xlu0 %5875
      %5877 = vrot.lane.b32.xlu0 %v5827, 127
      %v5878 = vpop.permute.xlu0 %5877
      %5879 = vrot.lane.b32.xlu0 %v5828, 127
      %v5880 = vpop.permute.xlu0 %5879
      %5881 = vrot.lane.b32.xlu0 %v5829, 127
      %v5882 = vpop.permute.xlu0 %5881
      %5883 = vrot.lane.b32.xlu0 %v5830, 127
      %v5884 = vpop.permute.xlu0 %5883
      %5885 = vrot.lane.b32.xlu0 %v5831, 127
      %v5886 = vpop.permute.xlu0 %5885
      %5887 = vrot.lane.b32.xlu0 %v5832, 127
      %v5888 = vpop.permute.xlu0 %5887
      %5889 = vrot.lane.b32.xlu0 %v5833, 127
      %v5890 = vpop.permute.xlu0 %5889
      %5891 = vrot.lane.b32.xlu0 %v5834, 127
      %v5892 = vpop.permute.xlu0 %5891
      %5893 = vrot.lane.b32.xlu0 %v5835, 127
      %v5894 = vpop.permute.xlu0 %5893
      %5895 = vrot.lane.b32.xlu0 %v5836, 127
      %v5896 = vpop.permute.xlu0 %5895
      %5897 = vrot.lane.b32.xlu0 %v5837, 127
      %v5898 = vpop.permute.xlu0 %5897
      %5899 = vrot.lane.b32.xlu0 %v5838, 127
      %v5900 = vpop.permute.xlu0 %5899
      %5901 = vrot.lane.b32.xlu0 %v5839, 127
      %v5902 = vpop.permute.xlu0 %5901
      %5903 = vrot.lane.b32.xlu0 %v5840, 127
      %v5904 = vpop.permute.xlu0 %5903
      %v5905 = vsel %vm5777, %v5842, 4294967295
      %v5906 = vsel %vm5778, %v5844, 4294967295
      %v5907 = vsel %vm5779, %v5846, 4294967295
      %v5908 = vsel %vm5780, %v5848, 4294967295
      %v5909 = vsel %vm5781, %v5850, 4294967295
      %v5910 = vsel %vm5782, %v5852, 4294967295
      %v5911 = vsel %vm5783, %v5854, 4294967295
      %v5912 = vsel %vm5784, %v5856, 4294967295
      %v5913 = vsel %vm5785, %v5858, 4294967295
      %v5914 = vsel %vm5786, %v5860, 4294967295
      %v5915 = vsel %vm5787, %v5862, 4294967295
      %v5916 = vsel %vm5788, %v5864, 4294967295
      %v5917 = vsel %vm5789, %v5866, 4294967295
      %v5918 = vsel %vm5790, %v5868, 4294967295
      %v5919 = vsel %vm5791, %v5870, 4294967295
      %v5920 = vsel %vm5792, %v5872, 4294967295
      %v5921 = vsel %vm5793, %v5874, 4294967295
      %v5922 = vsel %vm5794, %v5876, 4294967295
      %v5923 = vsel %vm5795, %v5878, 4294967295
      %v5924 = vsel %vm5796, %v5880, 4294967295
      %v5925 = vsel %vm5797, %v5882, 4294967295
      %v5926 = vsel %vm5798, %v5884, 4294967295
      %v5927 = vsel %vm5799, %v5886, 4294967295
      %v5928 = vsel %vm5800, %v5888, 4294967295
      %v5929 = vsel %vm5801, %v5890, 4294967295
      %v5930 = vsel %vm5802, %v5892, 4294967295
      %v5931 = vsel %vm5803, %v5894, 4294967295
      %v5932 = vsel %vm5804, %v5896, 4294967295
      %v5933 = vsel %vm5805, %v5898, 4294967295
      %v5934 = vsel %vm5806, %v5900, 4294967295
      %v5935 = vsel %vm5807, %v5902, 4294967295
      %v5936 = vsel %vm5808, %v5904, 4294967295
      %5937 = vset.pattern.permute.xlu0 2
      %5938 = vperm.xlu0 %5937, %v5905
      %v5939 = vpop.permute.xlu0 %5938
      %5940 = vset.pattern.permute.xlu0 2
      %5941 = vperm.xlu0 %5940, %v5906
      %v5942 = vpop.permute.xlu0 %5941
      %5943 = vset.pattern.permute.xlu0 2
      %5944 = vperm.xlu0 %5943, %v5907
      %v5945 = vpop.permute.xlu0 %5944
      %5946 = vset.pattern.permute.xlu0 2
      %5947 = vperm.xlu0 %5946, %v5908
      %v5948 = vpop.permute.xlu0 %5947
      %5949 = vset.pattern.permute.xlu0 2
      %5950 = vperm.xlu0 %5949, %v5909
      %v5951 = vpop.permute.xlu0 %5950
      %5952 = vset.pattern.permute.xlu0 2
      %5953 = vperm.xlu0 %5952, %v5910
      %v5954 = vpop.permute.xlu0 %5953
      %5955 = vset.pattern.permute.xlu0 2
      %5956 = vperm.xlu0 %5955, %v5911
      %v5957 = vpop.permute.xlu0 %5956
      %5958 = vset.pattern.permute.xlu0 2
      %5959 = vperm.xlu0 %5958, %v5912
      %v5960 = vpop.permute.xlu0 %5959
      %5961 = vset.pattern.permute.xlu0 2
      %5962 = vperm.xlu0 %5961, %v5913
      %v5963 = vpop.permute.xlu0 %5962
      %5964 = vset.pattern.permute.xlu0 2
      %5965 = vperm.xlu0 %5964, %v5914
      %v5966 = vpop.permute.xlu0 %5965
      %5967 = vset.pattern.permute.xlu0 2
      %5968 = vperm.xlu0 %5967, %v5915
      %v5969 = vpop.permute.xlu0 %5968
      %5970 = vset.pattern.permute.xlu0 2
      %5971 = vperm.xlu0 %5970, %v5916
      %v5972 = vpop.permute.xlu0 %5971
      %5973 = vset.pattern.permute.xlu0 2
      %5974 = vperm.xlu0 %5973, %v5917
      %v5975 = vpop.permute.xlu0 %5974
      %5976 = vset.pattern.permute.xlu0 2
      %5977 = vperm.xlu0 %5976, %v5918
      %v5978 = vpop.permute.xlu0 %5977
      %5979 = vset.pattern.permute.xlu0 2
      %5980 = vperm.xlu0 %5979, %v5919
      %v5981 = vpop.permute.xlu0 %5980
      %5982 = vset.pattern.permute.xlu0 2
      %5983 = vperm.xlu0 %5982, %v5920
      %v5984 = vpop.permute.xlu0 %5983
      %5985 = vset.pattern.permute.xlu0 2
      %5986 = vperm.xlu0 %5985, %v5921
      %v5987 = vpop.permute.xlu0 %5986
      %5988 = vset.pattern.permute.xlu0 2
      %5989 = vperm.xlu0 %5988, %v5922
      %v5990 = vpop.permute.xlu0 %5989
      %5991 = vset.pattern.permute.xlu0 2
      %5992 = vperm.xlu0 %5991, %v5923
      %v5993 = vpop.permute.xlu0 %5992
      %5994 = vset.pattern.permute.xlu0 2
      %5995 = vperm.xlu0 %5994, %v5924
      %v5996 = vpop.permute.xlu0 %5995
      %5997 = vset.pattern.permute.xlu0 2
      %5998 = vperm.xlu0 %5997, %v5925
      %v5999 = vpop.permute.xlu0 %5998
      %6000 = vset.pattern.permute.xlu0 2
      %6001 = vperm.xlu0 %6000, %v5926
      %v6002 = vpop.permute.xlu0 %6001
      %6003 = vset.pattern.permute.xlu0 2
      %6004 = vperm.xlu0 %6003, %v5927
      %v6005 = vpop.permute.xlu0 %6004
      %6006 = vset.pattern.permute.xlu0 2
      %6007 = vperm.xlu0 %6006, %v5928
      %v6008 = vpop.permute.xlu0 %6007
      %6009 = vset.pattern.permute.xlu0 2
      %6010 = vperm.xlu0 %6009, %v5929
      %v6011 = vpop.permute.xlu0 %6010
      %6012 = vset.pattern.permute.xlu0 2
      %6013 = vperm.xlu0 %6012, %v5930
      %v6014 = vpop.permute.xlu0 %6013
      %6015 = vset.pattern.permute.xlu0 2
      %6016 = vperm.xlu0 %6015, %v5931
      %v6017 = vpop.permute.xlu0 %6016
      %6018 = vset.pattern.permute.xlu0 2
      %6019 = vperm.xlu0 %6018, %v5932
      %v6020 = vpop.permute.xlu0 %6019
      %6021 = vset.pattern.permute.xlu0 2
      %6022 = vperm.xlu0 %6021, %v5933
      %v6023 = vpop.permute.xlu0 %6022
      %6024 = vset.pattern.permute.xlu0 2
      %6025 = vperm.xlu0 %6024, %v5934
      %v6026 = vpop.permute.xlu0 %6025
      %6027 = vset.pattern.permute.xlu0 2
      %6028 = vperm.xlu0 %6027, %v5935
      %v6029 = vpop.permute.xlu0 %6028
      %6030 = vset.pattern.permute.xlu0 2
      %6031 = vperm.xlu0 %6030, %v5936
      %v6032 = vpop.permute.xlu0 %6031
      %vm6033 = vcmp.eq.s32.totalorder %v303, %v5939
      %vm6034 = vcmp.eq.s32.totalorder %v304, %v5939
      %vm6035 = vcmp.eq.s32.totalorder %v303, %v5942
      %vm6036 = vcmp.eq.s32.totalorder %v304, %v5942
      %vm6037 = vcmp.eq.s32.totalorder %v303, %v5945
      %vm6038 = vcmp.eq.s32.totalorder %v304, %v5945
      %vm6039 = vcmp.eq.s32.totalorder %v303, %v5948
      %vm6040 = vcmp.eq.s32.totalorder %v304, %v5948
      %vm6041 = vcmp.eq.s32.totalorder %v303, %v5951
      %vm6042 = vcmp.eq.s32.totalorder %v304, %v5951
      %vm6043 = vcmp.eq.s32.totalorder %v303, %v5954
      %vm6044 = vcmp.eq.s32.totalorder %v304, %v5954
      %vm6045 = vcmp.eq.s32.totalorder %v303, %v5957
      %vm6046 = vcmp.eq.s32.totalorder %v304, %v5957
      %vm6047 = vcmp.eq.s32.totalorder %v303, %v5960
      %vm6048 = vcmp.eq.s32.totalorder %v304, %v5960
      %vm6049 = vcmp.eq.s32.totalorder %v303, %v5963
      %vm6050 = vcmp.eq.s32.totalorder %v304, %v5963
      %vm6051 = vcmp.eq.s32.totalorder %v303, %v5966
      %vm6052 = vcmp.eq.s32.totalorder %v304, %v5966
      %vm6053 = vcmp.eq.s32.totalorder %v303, %v5969
      %vm6054 = vcmp.eq.s32.totalorder %v304, %v5969
      %vm6055 = vcmp.eq.s32.totalorder %v303, %v5972
      %vm6056 = vcmp.eq.s32.totalorder %v304, %v5972
      %vm6057 = vcmp.eq.s32.totalorder %v303, %v5975
      %vm6058 = vcmp.eq.s32.totalorder %v304, %v5975
      %vm6059 = vcmp.eq.s32.totalorder %v303, %v5978
      %vm6060 = vcmp.eq.s32.totalorder %v304, %v5978
      %vm6061 = vcmp.eq.s32.totalorder %v303, %v5981
      %vm6062 = vcmp.eq.s32.totalorder %v304, %v5981
      %vm6063 = vcmp.eq.s32.totalorder %v303, %v5984
      %vm6064 = vcmp.eq.s32.totalorder %v304, %v5984
      %vm6065 = vcmp.eq.s32.totalorder %v303, %v5987
      %vm6066 = vcmp.eq.s32.totalorder %v304, %v5987
      %vm6067 = vcmp.eq.s32.totalorder %v303, %v5990
      %vm6068 = vcmp.eq.s32.totalorder %v304, %v5990
      %vm6069 = vcmp.eq.s32.totalorder %v303, %v5993
      %vm6070 = vcmp.eq.s32.totalorder %v304, %v5993
      %vm6071 = vcmp.eq.s32.totalorder %v303, %v5996
      %vm6072 = vcmp.eq.s32.totalorder %v304, %v5996
      %vm6073 = vcmp.eq.s32.totalorder %v303, %v5999
      %vm6074 = vcmp.eq.s32.totalorder %v304, %v5999
      %vm6075 = vcmp.eq.s32.totalorder %v303, %v6002
      %vm6076 = vcmp.eq.s32.totalorder %v304, %v6002
      %vm6077 = vcmp.eq.s32.totalorder %v303, %v6005
      %vm6078 = vcmp.eq.s32.totalorder %v304, %v6005
      %vm6079 = vcmp.eq.s32.totalorder %v303, %v6008
      %vm6080 = vcmp.eq.s32.totalorder %v304, %v6008
      %vm6081 = vcmp.eq.s32.totalorder %v303, %v6011
      %vm6082 = vcmp.eq.s32.totalorder %v304, %v6011
      %vm6083 = vcmp.eq.s32.totalorder %v303, %v6014
      %vm6084 = vcmp.eq.s32.totalorder %v304, %v6014
      %vm6085 = vcmp.eq.s32.totalorder %v303, %v6017
      %vm6086 = vcmp.eq.s32.totalorder %v304, %v6017
      %vm6087 = vcmp.eq.s32.totalorder %v303, %v6020
      %vm6088 = vcmp.eq.s32.totalorder %v304, %v6020
      %vm6089 = vcmp.eq.s32.totalorder %v303, %v6023
      %vm6090 = vcmp.eq.s32.totalorder %v304, %v6023
      %vm6091 = vcmp.eq.s32.totalorder %v303, %v6026
      %vm6092 = vcmp.eq.s32.totalorder %v304, %v6026
      %vm6093 = vcmp.eq.s32.totalorder %v303, %v6029
      %vm6094 = vcmp.eq.s32.totalorder %v304, %v6029
      %vm6095 = vcmp.eq.s32.totalorder %v303, %v6032
      %vm6096 = vcmp.eq.s32.totalorder %v304, %v6032
      %v6097 = vsel %vm6033, 1, 0
      %v6098 = vsel %vm6034, 1, 0
      %v6099 = vsel %vm6035, 1, 0
      %v6100 = vsel %vm6036, 1, 0
      %v6101 = vsel %vm6037, 1, 0
      %v6102 = vsel %vm6038, 1, 0
      %v6103 = vsel %vm6039, 1, 0
      %v6104 = vsel %vm6040, 1, 0
      %v6105 = vsel %vm6041, 1, 0
      %v6106 = vsel %vm6042, 1, 0
      %v6107 = vsel %vm6043, 1, 0
      %v6108 = vsel %vm6044, 1, 0
      %v6109 = vsel %vm6045, 1, 0
      %v6110 = vsel %vm6046, 1, 0
      %v6111 = vsel %vm6047, 1, 0
      %v6112 = vsel %vm6048, 1, 0
      %v6113 = vsel %vm6049, 1, 0
      %v6114 = vsel %vm6050, 1, 0
      %v6115 = vsel %vm6051, 1, 0
      %v6116 = vsel %vm6052, 1, 0
      %v6117 = vsel %vm6053, 1, 0
      %v6118 = vsel %vm6054, 1, 0
      %v6119 = vsel %vm6055, 1, 0
      %v6120 = vsel %vm6056, 1, 0
      %v6121 = vsel %vm6057, 1, 0
      %v6122 = vsel %vm6058, 1, 0
      %v6123 = vsel %vm6059, 1, 0
      %v6124 = vsel %vm6060, 1, 0
      %v6125 = vsel %vm6061, 1, 0
      %v6126 = vsel %vm6062, 1, 0
      %v6127 = vsel %vm6063, 1, 0
      %v6128 = vsel %vm6064, 1, 0
      %v6129 = vsel %vm6065, 1, 0
      %v6130 = vsel %vm6066, 1, 0
      %v6131 = vsel %vm6067, 1, 0
      %v6132 = vsel %vm6068, 1, 0
      %v6133 = vsel %vm6069, 1, 0
      %v6134 = vsel %vm6070, 1, 0
      %v6135 = vsel %vm6071, 1, 0
      %v6136 = vsel %vm6072, 1, 0
      %v6137 = vsel %vm6073, 1, 0
      %v6138 = vsel %vm6074, 1, 0
      %v6139 = vsel %vm6075, 1, 0
      %v6140 = vsel %vm6076, 1, 0
      %v6141 = vsel %vm6077, 1, 0
      %v6142 = vsel %vm6078, 1, 0
      %v6143 = vsel %vm6079, 1, 0
      %v6144 = vsel %vm6080, 1, 0
      %v6145 = vsel %vm6081, 1, 0
      %v6146 = vsel %vm6082, 1, 0
      %v6147 = vsel %vm6083, 1, 0
      %v6148 = vsel %vm6084, 1, 0
      %v6149 = vsel %vm6085, 1, 0
      %v6150 = vsel %vm6086, 1, 0
      %v6151 = vsel %vm6087, 1, 0
      %v6152 = vsel %vm6088, 1, 0
      %v6153 = vsel %vm6089, 1, 0
      %v6154 = vsel %vm6090, 1, 0
      %v6155 = vsel %vm6091, 1, 0
      %v6156 = vsel %vm6092, 1, 0
      %v6157 = vsel %vm6093, 1, 0
      %v6158 = vsel %vm6094, 1, 0
      %v6159 = vsel %vm6095, 1, 0
      %v6160 = vsel %vm6096, 1, 0
      %v6161 = vcvt.s32.f32 %v6097
      %v6162 = vcvt.s32.f32 %v6098
      %v6163 = vcvt.s32.f32 %v6099
      %v6164 = vcvt.s32.f32 %v6100
      %v6165 = vcvt.s32.f32 %v6101
      %v6166 = vcvt.s32.f32 %v6102
      %v6167 = vcvt.s32.f32 %v6103
      %v6168 = vcvt.s32.f32 %v6104
      %v6169 = vcvt.s32.f32 %v6105
      %v6170 = vcvt.s32.f32 %v6106
      %v6171 = vcvt.s32.f32 %v6107
      %v6172 = vcvt.s32.f32 %v6108
      %v6173 = vcvt.s32.f32 %v6109
      %v6174 = vcvt.s32.f32 %v6110
      %v6175 = vcvt.s32.f32 %v6111
      %v6176 = vcvt.s32.f32 %v6112
      %v6177 = vcvt.s32.f32 %v6113
      %v6178 = vcvt.s32.f32 %v6114
      %v6179 = vcvt.s32.f32 %v6115
      %v6180 = vcvt.s32.f32 %v6116
      %v6181 = vcvt.s32.f32 %v6117
      %v6182 = vcvt.s32.f32 %v6118
      %v6183 = vcvt.s32.f32 %v6119
      %v6184 = vcvt.s32.f32 %v6120
      %v6185 = vcvt.s32.f32 %v6121
      %v6186 = vcvt.s32.f32 %v6122
      %v6187 = vcvt.s32.f32 %v6123
      %v6188 = vcvt.s32.f32 %v6124
      %v6189 = vcvt.s32.f32 %v6125
      %v6190 = vcvt.s32.f32 %v6126
      %v6191 = vcvt.s32.f32 %v6127
      %v6192 = vcvt.s32.f32 %v6128
      %v6193 = vcvt.s32.f32 %v6129
      %v6194 = vcvt.s32.f32 %v6130
      %v6195 = vcvt.s32.f32 %v6131
      %v6196 = vcvt.s32.f32 %v6132
      %v6197 = vcvt.s32.f32 %v6133
      %v6198 = vcvt.s32.f32 %v6134
      %v6199 = vcvt.s32.f32 %v6135
      %v6200 = vcvt.s32.f32 %v6136
      %v6201 = vcvt.s32.f32 %v6137
      %v6202 = vcvt.s32.f32 %v6138
      %v6203 = vcvt.s32.f32 %v6139
      %v6204 = vcvt.s32.f32 %v6140
      %v6205 = vcvt.s32.f32 %v6141
      %v6206 = vcvt.s32.f32 %v6142
      %v6207 = vcvt.s32.f32 %v6143
      %v6208 = vcvt.s32.f32 %v6144
      %v6209 = vcvt.s32.f32 %v6145
      %v6210 = vcvt.s32.f32 %v6146
      %v6211 = vcvt.s32.f32 %v6147
      %v6212 = vcvt.s32.f32 %v6148
      %v6213 = vcvt.s32.f32 %v6149
      %v6214 = vcvt.s32.f32 %v6150
      %v6215 = vcvt.s32.f32 %v6151
      %v6216 = vcvt.s32.f32 %v6152
      %v6217 = vcvt.s32.f32 %v6153
      %v6218 = vcvt.s32.f32 %v6154
      %v6219 = vcvt.s32.f32 %v6155
      %v6220 = vcvt.s32.f32 %v6156
      %v6221 = vcvt.s32.f32 %v6157
      %v6222 = vcvt.s32.f32 %v6158
      %v6223 = vcvt.s32.f32 %v6159
      %v6224 = vcvt.s32.f32 %v6160
      %6225 = vset.pattern.permute.xlu0 2
      %6226 = vperm.xlu0 %6225, %v1777
      %v6227 = vpop.permute.xlu0 %6226
      %6229 = vset.pattern.permute.xlu0 2
      %6230 = vperm.xlu0 %6229, %v1778
      %v6231 = vpop.permute.xlu0 %6230
      %6233 = vset.pattern.permute.xlu0 2
      %6234 = vperm.xlu0 %6233, %v1779
      %v6235 = vpop.permute.xlu0 %6234
      %6237 = vset.pattern.permute.xlu0 2
      %6238 = vperm.xlu0 %6237, %v1780
      %v6239 = vpop.permute.xlu0 %6238
      %6241 = vset.pattern.permute.xlu0 2
      %6242 = vperm.xlu0 %6241, %v1781
      %v6243 = vpop.permute.xlu0 %6242
      %6245 = vset.pattern.permute.xlu0 2
      %6246 = vperm.xlu0 %6245, %v1782
      %v6247 = vpop.permute.xlu0 %6246
      %6249 = vset.pattern.permute.xlu0 2
      %6250 = vperm.xlu0 %6249, %v1783
      %v6251 = vpop.permute.xlu0 %6250
      %6253 = vset.pattern.permute.xlu0 2
      %6254 = vperm.xlu0 %6253, %v1784
      %v6255 = vpop.permute.xlu0 %6254
      %6257 = vset.pattern.permute.xlu0 2
      %6258 = vperm.xlu0 %6257, %v1785
      %v6259 = vpop.permute.xlu0 %6258
      %6261 = vset.pattern.permute.xlu0 2
      %6262 = vperm.xlu0 %6261, %v1786
      %v6263 = vpop.permute.xlu0 %6262
      %6265 = vset.pattern.permute.xlu0 2
      %6266 = vperm.xlu0 %6265, %v1787
      %v6267 = vpop.permute.xlu0 %6266
      %6269 = vset.pattern.permute.xlu0 2
      %6270 = vperm.xlu0 %6269, %v1788
      %v6271 = vpop.permute.xlu0 %6270
      %6273 = vset.pattern.permute.xlu0 2
      %6274 = vperm.xlu0 %6273, %v1789
      %v6275 = vpop.permute.xlu0 %6274
      %6277 = vset.pattern.permute.xlu0 2
      %6278 = vperm.xlu0 %6277, %v1790
      %v6279 = vpop.permute.xlu0 %6278
      %6281 = vset.pattern.permute.xlu0 2
      %6282 = vperm.xlu0 %6281, %v1791
      %v6283 = vpop.permute.xlu0 %6282
      %6285 = vset.pattern.permute.xlu0 2
      %6286 = vperm.xlu0 %6285, %v1792
      %v6287 = vpop.permute.xlu0 %6286
      %6289 = vset.pattern.permute.xlu0 2
      %6290 = vperm.xlu0 %6289, %v1793
      %v6291 = vpop.permute.xlu0 %6290
      %6293 = vset.pattern.permute.xlu0 2
      %6294 = vperm.xlu0 %6293, %v1794
      %v6295 = vpop.permute.xlu0 %6294
      %6297 = vset.pattern.permute.xlu0 2
      %6298 = vperm.xlu0 %6297, %v1795
      %v6299 = vpop.permute.xlu0 %6298
      %6301 = vset.pattern.permute.xlu0 2
      %6302 = vperm.xlu0 %6301, %v1796
      %v6303 = vpop.permute.xlu0 %6302
      %6305 = vset.pattern.permute.xlu0 2
      %6306 = vperm.xlu0 %6305, %v1797
      %v6307 = vpop.permute.xlu0 %6306
      %6309 = vset.pattern.permute.xlu0 2
      %6310 = vperm.xlu0 %6309, %v1798
      %v6311 = vpop.permute.xlu0 %6310
      %6313 = vset.pattern.permute.xlu0 2
      %6314 = vperm.xlu0 %6313, %v1799
      %v6315 = vpop.permute.xlu0 %6314
      %6317 = vset.pattern.permute.xlu0 2
      %6318 = vperm.xlu0 %6317, %v1800
      %v6319 = vpop.permute.xlu0 %6318
      %6321 = vset.pattern.permute.xlu0 2
      %6322 = vperm.xlu0 %6321, %v1801
      %v6323 = vpop.permute.xlu0 %6322
      %6325 = vset.pattern.permute.xlu0 2
      %6326 = vperm.xlu0 %6325, %v1802
      %v6327 = vpop.permute.xlu0 %6326
      %6329 = vset.pattern.permute.xlu0 2
      %6330 = vperm.xlu0 %6329, %v1803
      %v6331 = vpop.permute.xlu0 %6330
      %6333 = vset.pattern.permute.xlu0 2
      %6334 = vperm.xlu0 %6333, %v1804
      %v6335 = vpop.permute.xlu0 %6334
      %6337 = vset.pattern.permute.xlu0 2
      %6338 = vperm.xlu0 %6337, %v1805
      %v6339 = vpop.permute.xlu0 %6338
      %6341 = vset.pattern.permute.xlu0 2
      %6342 = vperm.xlu0 %6341, %v1806
      %v6343 = vpop.permute.xlu0 %6342
      %6345 = vset.pattern.permute.xlu0 2
      %6346 = vperm.xlu0 %6345, %v1807
      %v6347 = vpop.permute.xlu0 %6346
      %6349 = vset.pattern.permute.xlu0 2
      %6350 = vperm.xlu0 %6349, %v1808
      %v6351 = vpop.permute.xlu0 %6350
      %v6353 = vmul.f32 %v6161, %v6227
      %v6354 = vmul.f32 %v6162, %v6227
      %v6355 = vmul.f32 %v6163, %v6231
      %v6356 = vmul.f32 %v6164, %v6231
      %v6357 = vmul.f32 %v6165, %v6235
      %v6358 = vmul.f32 %v6166, %v6235
      %v6359 = vmul.f32 %v6167, %v6239
      %v6360 = vmul.f32 %v6168, %v6239
      %v6361 = vmul.f32 %v6169, %v6243
      %v6362 = vmul.f32 %v6170, %v6243
      %v6363 = vmul.f32 %v6171, %v6247
      %v6364 = vmul.f32 %v6172, %v6247
      %v6365 = vmul.f32 %v6173, %v6251
      %v6366 = vmul.f32 %v6174, %v6251
      %v6367 = vmul.f32 %v6175, %v6255
      %v6368 = vmul.f32 %v6176, %v6255
      %v6369 = vmul.f32 %v6177, %v6259
      %v6370 = vmul.f32 %v6178, %v6259
      %v6371 = vmul.f32 %v6179, %v6263
      %v6372 = vmul.f32 %v6180, %v6263
      %v6373 = vmul.f32 %v6181, %v6267
      %v6374 = vmul.f32 %v6182, %v6267
      %v6375 = vmul.f32 %v6183, %v6271
      %v6376 = vmul.f32 %v6184, %v6271
      %v6377 = vmul.f32 %v6185, %v6275
      %v6378 = vmul.f32 %v6186, %v6275
      %v6379 = vmul.f32 %v6187, %v6279
      %v6380 = vmul.f32 %v6188, %v6279
      %v6381 = vmul.f32 %v6189, %v6283
      %v6382 = vmul.f32 %v6190, %v6283
      %v6383 = vmul.f32 %v6191, %v6287
      %v6384 = vmul.f32 %v6192, %v6287
      %v6385 = vmul.f32 %v6193, %v6291
      %v6386 = vmul.f32 %v6194, %v6291
      %v6387 = vmul.f32 %v6195, %v6295
      %v6388 = vmul.f32 %v6196, %v6295
      %v6389 = vmul.f32 %v6197, %v6299
      %v6390 = vmul.f32 %v6198, %v6299
      %v6391 = vmul.f32 %v6199, %v6303
      %v6392 = vmul.f32 %v6200, %v6303
      %v6393 = vmul.f32 %v6201, %v6307
      %v6394 = vmul.f32 %v6202, %v6307
      %v6395 = vmul.f32 %v6203, %v6311
      %v6396 = vmul.f32 %v6204, %v6311
      %v6397 = vmul.f32 %v6205, %v6315
      %v6398 = vmul.f32 %v6206, %v6315
      %v6399 = vmul.f32 %v6207, %v6319
      %v6400 = vmul.f32 %v6208, %v6319
      %v6401 = vmul.f32 %v6209, %v6323
      %v6402 = vmul.f32 %v6210, %v6323
      %v6403 = vmul.f32 %v6211, %v6327
      %v6404 = vmul.f32 %v6212, %v6327
      %v6405 = vmul.f32 %v6213, %v6331
      %v6406 = vmul.f32 %v6214, %v6331
      %v6407 = vmul.f32 %v6215, %v6335
      %v6408 = vmul.f32 %v6216, %v6335
      %v6409 = vmul.f32 %v6217, %v6339
      %v6410 = vmul.f32 %v6218, %v6339
      %v6411 = vmul.f32 %v6219, %v6343
      %v6412 = vmul.f32 %v6220, %v6343
      %v6413 = vmul.f32 %v6221, %v6347
      %v6414 = vmul.f32 %v6222, %v6347
      %v6415 = vmul.f32 %v6223, %v6351
      %v6416 = vmul.f32 %v6224, %v6351
      %v6417 = vadd.f32 %v5617, %v6353
      %v6418 = vadd.f32 %v5618, %v6354
      %v6419 = vadd.f32 %v5619, %v6355
      %v6420 = vadd.f32 %v5620, %v6356
      %v6421 = vadd.f32 %v5621, %v6357
      %v6422 = vadd.f32 %v5622, %v6358
      %v6423 = vadd.f32 %v5623, %v6359
      %v6424 = vadd.f32 %v5624, %v6360
      %v6425 = vadd.f32 %v5625, %v6361
      %v6426 = vadd.f32 %v5626, %v6362
      %v6427 = vadd.f32 %v5627, %v6363
      %v6428 = vadd.f32 %v5628, %v6364
      %v6429 = vadd.f32 %v5629, %v6365
      %v6430 = vadd.f32 %v5630, %v6366
      %v6431 = vadd.f32 %v5631, %v6367
      %v6432 = vadd.f32 %v5632, %v6368
      %v6433 = vadd.f32 %v5633, %v6369
      %v6434 = vadd.f32 %v5634, %v6370
      %v6435 = vadd.f32 %v5635, %v6371
      %v6436 = vadd.f32 %v5636, %v6372
      %v6437 = vadd.f32 %v5637, %v6373
      %v6438 = vadd.f32 %v5638, %v6374
      %v6439 = vadd.f32 %v5639, %v6375
      %v6440 = vadd.f32 %v5640, %v6376
      %v6441 = vadd.f32 %v5641, %v6377
      %v6442 = vadd.f32 %v5642, %v6378
      %v6443 = vadd.f32 %v5643, %v6379
      %v6444 = vadd.f32 %v5644, %v6380
      %v6445 = vadd.f32 %v5645, %v6381
      %v6446 = vadd.f32 %v5646, %v6382
      %v6447 = vadd.f32 %v5647, %v6383
      %v6448 = vadd.f32 %v5648, %v6384
      %v6449 = vadd.f32 %v5649, %v6385
      %v6450 = vadd.f32 %v5650, %v6386
      %v6451 = vadd.f32 %v5651, %v6387
      %v6452 = vadd.f32 %v5652, %v6388
      %v6453 = vadd.f32 %v5653, %v6389
      %v6454 = vadd.f32 %v5654, %v6390
      %v6455 = vadd.f32 %v5655, %v6391
      %v6456 = vadd.f32 %v5656, %v6392
      %v6457 = vadd.f32 %v5657, %v6393
      %v6458 = vadd.f32 %v5658, %v6394
      %v6459 = vadd.f32 %v5659, %v6395
      %v6460 = vadd.f32 %v5660, %v6396
      %v6461 = vadd.f32 %v5661, %v6397
      %v6462 = vadd.f32 %v5662, %v6398
      %v6463 = vadd.f32 %v5663, %v6399
      %v6464 = vadd.f32 %v5664, %v6400
      %v6465 = vadd.f32 %v5665, %v6401
      %v6466 = vadd.f32 %v5666, %v6402
      %v6467 = vadd.f32 %v5667, %v6403
      %v6468 = vadd.f32 %v5668, %v6404
      %v6469 = vadd.f32 %v5669, %v6405
      %v6470 = vadd.f32 %v5670, %v6406
      %v6471 = vadd.f32 %v5671, %v6407
      %v6472 = vadd.f32 %v5672, %v6408
      %v6473 = vadd.f32 %v5673, %v6409
      %v6474 = vadd.f32 %v5674, %v6410
      %v6475 = vadd.f32 %v5675, %v6411
      %v6476 = vadd.f32 %v5676, %v6412
      %v6477 = vadd.f32 %v5677, %v6413
      %v6478 = vadd.f32 %v5678, %v6414
      %v6479 = vadd.f32 %v5679, %v6415
      %v6480 = vadd.f32 %v5680, %v6416
      %vm6481 = vmand %vm4785, %vm2993
      %vm6482 = vmand %vm4786, %vm2994
      %vm6483 = vmand %vm4787, %vm2995
      %vm6484 = vmand %vm4788, %vm2996
      %vm6485 = vmand %vm4789, %vm2997
      %vm6486 = vmand %vm4790, %vm2998
      %vm6487 = vmand %vm4791, %vm2999
      %vm6488 = vmand %vm4792, %vm3000
      %vm6489 = vmand %vm4793, %vm3001
      %vm6490 = vmand %vm4794, %vm3002
      %vm6491 = vmand %vm4795, %vm3003
      %vm6492 = vmand %vm4796, %vm3004
      %vm6493 = vmand %vm4797, %vm3005
      %vm6494 = vmand %vm4798, %vm3006
      %vm6495 = vmand %vm4799, %vm3007
      %vm6496 = vmand %vm4800, %vm3008
      %vm6497 = vmand %vm4801, %vm3009
      %vm6498 = vmand %vm4802, %vm3010
      %vm6499 = vmand %vm4803, %vm3011
      %vm6500 = vmand %vm4804, %vm3012
      %vm6501 = vmand %vm4805, %vm3013
      %vm6502 = vmand %vm4806, %vm3014
      %vm6503 = vmand %vm4807, %vm3015
      %vm6504 = vmand %vm4808, %vm3016
      %vm6505 = vmand %vm4809, %vm3017
      %vm6506 = vmand %vm4810, %vm3018
      %vm6507 = vmand %vm4811, %vm3019
      %vm6508 = vmand %vm4812, %vm3020
      %vm6509 = vmand %vm4813, %vm3021
      %vm6510 = vmand %vm4814, %vm3022
      %vm6511 = vmand %vm4815, %vm3023
      %vm6512 = vmand %vm4816, %vm3024
      %vm6513 = vcmp.lt.s32.totalorder %v433, 8
      %vm6514 = vcmp.lt.s32.totalorder %v434, 8
      %vm6515 = vcmp.lt.s32.totalorder %v435, 8
      %vm6516 = vcmp.lt.s32.totalorder %v436, 8
      %vm6517 = vcmp.lt.s32.totalorder %v437, 8
      %vm6518 = vcmp.lt.s32.totalorder %v438, 8
      %vm6519 = vcmp.lt.s32.totalorder %v439, 8
      %vm6520 = vcmp.lt.s32.totalorder %v440, 8
      %vm6521 = vcmp.lt.s32.totalorder %v441, 8
      %vm6522 = vcmp.lt.s32.totalorder %v442, 8
      %vm6523 = vcmp.lt.s32.totalorder %v443, 8
      %vm6524 = vcmp.lt.s32.totalorder %v444, 8
      %vm6525 = vcmp.lt.s32.totalorder %v445, 8
      %vm6526 = vcmp.lt.s32.totalorder %v446, 8
      %vm6527 = vcmp.lt.s32.totalorder %v447, 8
      %vm6528 = vcmp.lt.s32.totalorder %v448, 8
      %vm6529 = vcmp.lt.s32.totalorder %v449, 8
      %vm6530 = vcmp.lt.s32.totalorder %v450, 8
      %vm6531 = vcmp.lt.s32.totalorder %v451, 8
      %vm6532 = vcmp.lt.s32.totalorder %v452, 8
      %vm6533 = vcmp.lt.s32.totalorder %v453, 8
      %vm6534 = vcmp.lt.s32.totalorder %v454, 8
      %vm6535 = vcmp.lt.s32.totalorder %v455, 8
      %vm6536 = vcmp.lt.s32.totalorder %v456, 8
      %vm6537 = vcmp.lt.s32.totalorder %v457, 8
      %vm6538 = vcmp.lt.s32.totalorder %v458, 8
      %vm6539 = vcmp.lt.s32.totalorder %v459, 8
      %vm6540 = vcmp.lt.s32.totalorder %v460, 8
      %vm6541 = vcmp.lt.s32.totalorder %v461, 8
      %vm6542 = vcmp.lt.s32.totalorder %v462, 8
      %vm6543 = vcmp.lt.s32.totalorder %v463, 8
      %vm6544 = vcmp.lt.s32.totalorder %v464, 8
      %v6545 = vsel %vm6513, 1, 0
      %v6546 = vsel %vm6514, 1, 0
      %v6547 = vsel %vm6515, 1, 0
      %v6548 = vsel %vm6516, 1, 0
      %v6549 = vsel %vm6517, 1, 0
      %v6550 = vsel %vm6518, 1, 0
      %v6551 = vsel %vm6519, 1, 0
      %v6552 = vsel %vm6520, 1, 0
      %v6553 = vsel %vm6521, 1, 0
      %v6554 = vsel %vm6522, 1, 0
      %v6555 = vsel %vm6523, 1, 0
      %v6556 = vsel %vm6524, 1, 0
      %v6557 = vsel %vm6525, 1, 0
      %v6558 = vsel %vm6526, 1, 0
      %v6559 = vsel %vm6527, 1, 0
      %v6560 = vsel %vm6528, 1, 0
      %v6561 = vsel %vm6529, 1, 0
      %v6562 = vsel %vm6530, 1, 0
      %v6563 = vsel %vm6531, 1, 0
      %v6564 = vsel %vm6532, 1, 0
      %v6565 = vsel %vm6533, 1, 0
      %v6566 = vsel %vm6534, 1, 0
      %v6567 = vsel %vm6535, 1, 0
      %v6568 = vsel %vm6536, 1, 0
      %v6569 = vsel %vm6537, 1, 0
      %v6570 = vsel %vm6538, 1, 0
      %v6571 = vsel %vm6539, 1, 0
      %v6572 = vsel %vm6540, 1, 0
      %v6573 = vsel %vm6541, 1, 0
      %v6574 = vsel %vm6542, 1, 0
      %v6575 = vsel %vm6543, 1, 0
      %v6576 = vsel %vm6544, 1, 0
      %6577 = vrot.lane.b32.xlu0 %v6545, 127
      %v6578 = vpop.permute.xlu0 %6577
      %6579 = vrot.lane.b32.xlu0 %v6546, 127
      %v6580 = vpop.permute.xlu0 %6579
      %6581 = vrot.lane.b32.xlu0 %v6547, 127
      %v6582 = vpop.permute.xlu0 %6581
      %6583 = vrot.lane.b32.xlu0 %v6548, 127
      %v6584 = vpop.permute.xlu0 %6583
      %6585 = vrot.lane.b32.xlu0 %v6549, 127
      %v6586 = vpop.permute.xlu0 %6585
      %6587 = vrot.lane.b32.xlu0 %v6550, 127
      %v6588 = vpop.permute.xlu0 %6587
      %6589 = vrot.lane.b32.xlu0 %v6551, 127
      %v6590 = vpop.permute.xlu0 %6589
      %6591 = vrot.lane.b32.xlu0 %v6552, 127
      %v6592 = vpop.permute.xlu0 %6591
      %6593 = vrot.lane.b32.xlu0 %v6553, 127
      %v6594 = vpop.permute.xlu0 %6593
      %6595 = vrot.lane.b32.xlu0 %v6554, 127
      %v6596 = vpop.permute.xlu0 %6595
      %6597 = vrot.lane.b32.xlu0 %v6555, 127
      %v6598 = vpop.permute.xlu0 %6597
      %6599 = vrot.lane.b32.xlu0 %v6556, 127
      %v6600 = vpop.permute.xlu0 %6599
      %6601 = vrot.lane.b32.xlu0 %v6557, 127
      %v6602 = vpop.permute.xlu0 %6601
      %6603 = vrot.lane.b32.xlu0 %v6558, 127
      %v6604 = vpop.permute.xlu0 %6603
      %6605 = vrot.lane.b32.xlu0 %v6559, 127
      %v6606 = vpop.permute.xlu0 %6605
      %6607 = vrot.lane.b32.xlu0 %v6560, 127
      %v6608 = vpop.permute.xlu0 %6607
      %6609 = vrot.lane.b32.xlu0 %v6561, 127
      %v6610 = vpop.permute.xlu0 %6609
      %6611 = vrot.lane.b32.xlu0 %v6562, 127
      %v6612 = vpop.permute.xlu0 %6611
      %6613 = vrot.lane.b32.xlu0 %v6563, 127
      %v6614 = vpop.permute.xlu0 %6613
      %6615 = vrot.lane.b32.xlu0 %v6564, 127
      %v6616 = vpop.permute.xlu0 %6615
      %6617 = vrot.lane.b32.xlu0 %v6565, 127
      %v6618 = vpop.permute.xlu0 %6617
      %6619 = vrot.lane.b32.xlu0 %v6566, 127
      %v6620 = vpop.permute.xlu0 %6619
      %6621 = vrot.lane.b32.xlu0 %v6567, 127
      %v6622 = vpop.permute.xlu0 %6621
      %6623 = vrot.lane.b32.xlu0 %v6568, 127
      %v6624 = vpop.permute.xlu0 %6623
      %6625 = vrot.lane.b32.xlu0 %v6569, 127
      %v6626 = vpop.permute.xlu0 %6625
      %6627 = vrot.lane.b32.xlu0 %v6570, 127
      %v6628 = vpop.permute.xlu0 %6627
      %6629 = vrot.lane.b32.xlu0 %v6571, 127
      %v6630 = vpop.permute.xlu0 %6629
      %6631 = vrot.lane.b32.xlu0 %v6572, 127
      %v6632 = vpop.permute.xlu0 %6631
      %6633 = vrot.lane.b32.xlu0 %v6573, 127
      %v6634 = vpop.permute.xlu0 %6633
      %6635 = vrot.lane.b32.xlu0 %v6574, 127
      %v6636 = vpop.permute.xlu0 %6635
      %6637 = vrot.lane.b32.xlu0 %v6575, 127
      %v6638 = vpop.permute.xlu0 %6637
      %6639 = vrot.lane.b32.xlu0 %v6576, 127
      %v6640 = vpop.permute.xlu0 %6639
      %vm6641 = vcmp.ne.s32.totalorder %v6578, 0
      %vm6642 = vcmp.ne.s32.totalorder %v6580, 0
      %vm6643 = vcmp.ne.s32.totalorder %v6582, 0
      %vm6644 = vcmp.ne.s32.totalorder %v6584, 0
      %vm6645 = vcmp.ne.s32.totalorder %v6586, 0
      %vm6646 = vcmp.ne.s32.totalorder %v6588, 0
      %vm6647 = vcmp.ne.s32.totalorder %v6590, 0
      %vm6648 = vcmp.ne.s32.totalorder %v6592, 0
      %vm6649 = vcmp.ne.s32.totalorder %v6594, 0
      %vm6650 = vcmp.ne.s32.totalorder %v6596, 0
      %vm6651 = vcmp.ne.s32.totalorder %v6598, 0
      %vm6652 = vcmp.ne.s32.totalorder %v6600, 0
      %vm6653 = vcmp.ne.s32.totalorder %v6602, 0
      %vm6654 = vcmp.ne.s32.totalorder %v6604, 0
      %vm6655 = vcmp.ne.s32.totalorder %v6606, 0
      %vm6656 = vcmp.ne.s32.totalorder %v6608, 0
      %vm6657 = vcmp.ne.s32.totalorder %v6610, 0
      %vm6658 = vcmp.ne.s32.totalorder %v6612, 0
      %vm6659 = vcmp.ne.s32.totalorder %v6614, 0
      %vm6660 = vcmp.ne.s32.totalorder %v6616, 0
      %vm6661 = vcmp.ne.s32.totalorder %v6618, 0
      %vm6662 = vcmp.ne.s32.totalorder %v6620, 0
      %vm6663 = vcmp.ne.s32.totalorder %v6622, 0
      %vm6664 = vcmp.ne.s32.totalorder %v6624, 0
      %vm6665 = vcmp.ne.s32.totalorder %v6626, 0
      %vm6666 = vcmp.ne.s32.totalorder %v6628, 0
      %vm6667 = vcmp.ne.s32.totalorder %v6630, 0
      %vm6668 = vcmp.ne.s32.totalorder %v6632, 0
      %vm6669 = vcmp.ne.s32.totalorder %v6634, 0
      %vm6670 = vcmp.ne.s32.totalorder %v6636, 0
      %vm6671 = vcmp.ne.s32.totalorder %v6638, 0
      %vm6672 = vcmp.ne.s32.totalorder %v6640, 0
      %vm6673 = vmand %vm6481, %vm6641
      %vm6674 = vmand %vm6482, %vm6642
      %vm6675 = vmand %vm6483, %vm6643
      %vm6676 = vmand %vm6484, %vm6644
      %vm6677 = vmand %vm6485, %vm6645
      %vm6678 = vmand %vm6486, %vm6646
      %vm6679 = vmand %vm6487, %vm6647
      %vm6680 = vmand %vm6488, %vm6648
      %vm6681 = vmand %vm6489, %vm6649
      %vm6682 = vmand %vm6490, %vm6650
      %vm6683 = vmand %vm6491, %vm6651
      %vm6684 = vmand %vm6492, %vm6652
      %vm6685 = vmand %vm6493, %vm6653
      %vm6686 = vmand %vm6494, %vm6654
      %vm6687 = vmand %vm6495, %vm6655
      %vm6688 = vmand %vm6496, %vm6656
      %vm6689 = vmand %vm6497, %vm6657
      %vm6690 = vmand %vm6498, %vm6658
      %vm6691 = vmand %vm6499, %vm6659
      %vm6692 = vmand %vm6500, %vm6660
      %vm6693 = vmand %vm6501, %vm6661
      %vm6694 = vmand %vm6502, %vm6662
      %vm6695 = vmand %vm6503, %vm6663
      %vm6696 = vmand %vm6504, %vm6664
      %vm6697 = vmand %vm6505, %vm6665
      %vm6698 = vmand %vm6506, %vm6666
      %vm6699 = vmand %vm6507, %vm6667
      %vm6700 = vmand %vm6508, %vm6668
      %vm6701 = vmand %vm6509, %vm6669
      %vm6702 = vmand %vm6510, %vm6670
      %vm6703 = vmand %vm6511, %vm6671
      %vm6704 = vmand %vm6512, %vm6672
      %v6705 = vmul.u32 %v433, 32
      %v6706 = vmul.u32 %v434, 32
      %v6707 = vmul.u32 %v435, 32
      %v6708 = vmul.u32 %v436, 32
      %v6709 = vmul.u32 %v437, 32
      %v6710 = vmul.u32 %v438, 32
      %v6711 = vmul.u32 %v439, 32
      %v6712 = vmul.u32 %v440, 32
      %v6713 = vmul.u32 %v441, 32
      %v6714 = vmul.u32 %v442, 32
      %v6715 = vmul.u32 %v443, 32
      %v6716 = vmul.u32 %v444, 32
      %v6717 = vmul.u32 %v445, 32
      %v6718 = vmul.u32 %v446, 32
      %v6719 = vmul.u32 %v447, 32
      %v6720 = vmul.u32 %v448, 32
      %v6721 = vmul.u32 %v449, 32
      %v6722 = vmul.u32 %v450, 32
      %v6723 = vmul.u32 %v451, 32
      %v6724 = vmul.u32 %v452, 32
      %v6725 = vmul.u32 %v453, 32
      %v6726 = vmul.u32 %v454, 32
      %v6727 = vmul.u32 %v455, 32
      %v6728 = vmul.u32 %v456, 32
      %v6729 = vmul.u32 %v457, 32
      %v6730 = vmul.u32 %v458, 32
      %v6731 = vmul.u32 %v459, 32
      %v6732 = vmul.u32 %v460, 32
      %v6733 = vmul.u32 %v461, 32
      %v6734 = vmul.u32 %v462, 32
      %v6735 = vmul.u32 %v463, 32
      %v6736 = vmul.u32 %v464, 32
      %v6737 = vadd.s32 %v6705, %v1074
      %v6738 = vadd.s32 %v6706, %v1076
      %v6739 = vadd.s32 %v6707, %v1078
      %v6740 = vadd.s32 %v6708, %v1080
      %v6741 = vadd.s32 %v6709, %v1082
      %v6742 = vadd.s32 %v6710, %v1084
      %v6743 = vadd.s32 %v6711, %v1086
      %v6744 = vadd.s32 %v6712, %v1088
      %v6745 = vadd.s32 %v6713, %v1090
      %v6746 = vadd.s32 %v6714, %v1092
      %v6747 = vadd.s32 %v6715, %v1094
      %v6748 = vadd.s32 %v6716, %v1096
      %v6749 = vadd.s32 %v6717, %v1098
      %v6750 = vadd.s32 %v6718, %v1100
      %v6751 = vadd.s32 %v6719, %v1102
      %v6752 = vadd.s32 %v6720, %v1104
      %v6753 = vadd.s32 %v6721, %v1106
      %v6754 = vadd.s32 %v6722, %v1108
      %v6755 = vadd.s32 %v6723, %v1110
      %v6756 = vadd.s32 %v6724, %v1112
      %v6757 = vadd.s32 %v6725, %v1114
      %v6758 = vadd.s32 %v6726, %v1116
      %v6759 = vadd.s32 %v6727, %v1118
      %v6760 = vadd.s32 %v6728, %v1120
      %v6761 = vadd.s32 %v6729, %v1122
      %v6762 = vadd.s32 %v6730, %v1124
      %v6763 = vadd.s32 %v6731, %v1126
      %v6764 = vadd.s32 %v6732, %v1128
      %v6765 = vadd.s32 %v6733, %v1130
      %v6766 = vadd.s32 %v6734, %v1132
      %v6767 = vadd.s32 %v6735, %v1134
      %v6768 = vadd.s32 %v6736, %v1136
      %6769 = vrot.lane.b32.xlu0 %v6737, 127
      %v6770 = vpop.permute.xlu0 %6769
      %6771 = vrot.lane.b32.xlu0 %v6738, 127
      %v6772 = vpop.permute.xlu0 %6771
      %6773 = vrot.lane.b32.xlu0 %v6739, 127
      %v6774 = vpop.permute.xlu0 %6773
      %6775 = vrot.lane.b32.xlu0 %v6740, 127
      %v6776 = vpop.permute.xlu0 %6775
      %6777 = vrot.lane.b32.xlu0 %v6741, 127
      %v6778 = vpop.permute.xlu0 %6777
      %6779 = vrot.lane.b32.xlu0 %v6742, 127
      %v6780 = vpop.permute.xlu0 %6779
      %6781 = vrot.lane.b32.xlu0 %v6743, 127
      %v6782 = vpop.permute.xlu0 %6781
      %6783 = vrot.lane.b32.xlu0 %v6744, 127
      %v6784 = vpop.permute.xlu0 %6783
      %6785 = vrot.lane.b32.xlu0 %v6745, 127
      %v6786 = vpop.permute.xlu0 %6785
      %6787 = vrot.lane.b32.xlu0 %v6746, 127
      %v6788 = vpop.permute.xlu0 %6787
      %6789 = vrot.lane.b32.xlu0 %v6747, 127
      %v6790 = vpop.permute.xlu0 %6789
      %6791 = vrot.lane.b32.xlu0 %v6748, 127
      %v6792 = vpop.permute.xlu0 %6791
      %6793 = vrot.lane.b32.xlu0 %v6749, 127
      %v6794 = vpop.permute.xlu0 %6793
      %6795 = vrot.lane.b32.xlu0 %v6750, 127
      %v6796 = vpop.permute.xlu0 %6795
      %6797 = vrot.lane.b32.xlu0 %v6751, 127
      %v6798 = vpop.permute.xlu0 %6797
      %6799 = vrot.lane.b32.xlu0 %v6752, 127
      %v6800 = vpop.permute.xlu0 %6799
      %6801 = vrot.lane.b32.xlu0 %v6753, 127
      %v6802 = vpop.permute.xlu0 %6801
      %6803 = vrot.lane.b32.xlu0 %v6754, 127
      %v6804 = vpop.permute.xlu0 %6803
      %6805 = vrot.lane.b32.xlu0 %v6755, 127
      %v6806 = vpop.permute.xlu0 %6805
      %6807 = vrot.lane.b32.xlu0 %v6756, 127
      %v6808 = vpop.permute.xlu0 %6807
      %6809 = vrot.lane.b32.xlu0 %v6757, 127
      %v6810 = vpop.permute.xlu0 %6809
      %6811 = vrot.lane.b32.xlu0 %v6758, 127
      %v6812 = vpop.permute.xlu0 %6811
      %6813 = vrot.lane.b32.xlu0 %v6759, 127
      %v6814 = vpop.permute.xlu0 %6813
      %6815 = vrot.lane.b32.xlu0 %v6760, 127
      %v6816 = vpop.permute.xlu0 %6815
      %6817 = vrot.lane.b32.xlu0 %v6761, 127
      %v6818 = vpop.permute.xlu0 %6817
      %6819 = vrot.lane.b32.xlu0 %v6762, 127
      %v6820 = vpop.permute.xlu0 %6819
      %6821 = vrot.lane.b32.xlu0 %v6763, 127
      %v6822 = vpop.permute.xlu0 %6821
      %6823 = vrot.lane.b32.xlu0 %v6764, 127
      %v6824 = vpop.permute.xlu0 %6823
      %6825 = vrot.lane.b32.xlu0 %v6765, 127
      %v6826 = vpop.permute.xlu0 %6825
      %6827 = vrot.lane.b32.xlu0 %v6766, 127
      %v6828 = vpop.permute.xlu0 %6827
      %6829 = vrot.lane.b32.xlu0 %v6767, 127
      %v6830 = vpop.permute.xlu0 %6829
      %6831 = vrot.lane.b32.xlu0 %v6768, 127
      %v6832 = vpop.permute.xlu0 %6831
      %v6833 = vsel %vm6673, %v6770, 4294967295
      %v6834 = vsel %vm6674, %v6772, 4294967295
      %v6835 = vsel %vm6675, %v6774, 4294967295
      %v6836 = vsel %vm6676, %v6776, 4294967295
      %v6837 = vsel %vm6677, %v6778, 4294967295
      %v6838 = vsel %vm6678, %v6780, 4294967295
      %v6839 = vsel %vm6679, %v6782, 4294967295
      %v6840 = vsel %vm6680, %v6784, 4294967295
      %v6841 = vsel %vm6681, %v6786, 4294967295
      %v6842 = vsel %vm6682, %v6788, 4294967295
      %v6843 = vsel %vm6683, %v6790, 4294967295
      %v6844 = vsel %vm6684, %v6792, 4294967295
      %v6845 = vsel %vm6685, %v6794, 4294967295
      %v6846 = vsel %vm6686, %v6796, 4294967295
      %v6847 = vsel %vm6687, %v6798, 4294967295
      %v6848 = vsel %vm6688, %v6800, 4294967295
      %v6849 = vsel %vm6689, %v6802, 4294967295
      %v6850 = vsel %vm6690, %v6804, 4294967295
      %v6851 = vsel %vm6691, %v6806, 4294967295
      %v6852 = vsel %vm6692, %v6808, 4294967295
      %v6853 = vsel %vm6693, %v6810, 4294967295
      %v6854 = vsel %vm6694, %v6812, 4294967295
      %v6855 = vsel %vm6695, %v6814, 4294967295
      %v6856 = vsel %vm6696, %v6816, 4294967295
      %v6857 = vsel %vm6697, %v6818, 4294967295
      %v6858 = vsel %vm6698, %v6820, 4294967295
      %v6859 = vsel %vm6699, %v6822, 4294967295
      %v6860 = vsel %vm6700, %v6824, 4294967295
      %v6861 = vsel %vm6701, %v6826, 4294967295
      %v6862 = vsel %vm6702, %v6828, 4294967295
      %v6863 = vsel %vm6703, %v6830, 4294967295
      %v6864 = vsel %vm6704, %v6832, 4294967295
      %6865 = vset.pattern.permute.xlu0 2
      %6866 = vperm.xlu0 %6865, %v6833
      %v6867 = vpop.permute.xlu0 %6866
      %6868 = vset.pattern.permute.xlu0 2
      %6869 = vperm.xlu0 %6868, %v6834
      %v6870 = vpop.permute.xlu0 %6869
      %6871 = vset.pattern.permute.xlu0 2
      %6872 = vperm.xlu0 %6871, %v6835
      %v6873 = vpop.permute.xlu0 %6872
      %6874 = vset.pattern.permute.xlu0 2
      %6875 = vperm.xlu0 %6874, %v6836
      %v6876 = vpop.permute.xlu0 %6875
      %6877 = vset.pattern.permute.xlu0 2
      %6878 = vperm.xlu0 %6877, %v6837
      %v6879 = vpop.permute.xlu0 %6878
      %6880 = vset.pattern.permute.xlu0 2
      %6881 = vperm.xlu0 %6880, %v6838
      %v6882 = vpop.permute.xlu0 %6881
      %6883 = vset.pattern.permute.xlu0 2
      %6884 = vperm.xlu0 %6883, %v6839
      %v6885 = vpop.permute.xlu0 %6884
      %6886 = vset.pattern.permute.xlu0 2
      %6887 = vperm.xlu0 %6886, %v6840
      %v6888 = vpop.permute.xlu0 %6887
      %6889 = vset.pattern.permute.xlu0 2
      %6890 = vperm.xlu0 %6889, %v6841
      %v6891 = vpop.permute.xlu0 %6890
      %6892 = vset.pattern.permute.xlu0 2
      %6893 = vperm.xlu0 %6892, %v6842
      %v6894 = vpop.permute.xlu0 %6893
      %6895 = vset.pattern.permute.xlu0 2
      %6896 = vperm.xlu0 %6895, %v6843
      %v6897 = vpop.permute.xlu0 %6896
      %6898 = vset.pattern.permute.xlu0 2
      %6899 = vperm.xlu0 %6898, %v6844
      %v6900 = vpop.permute.xlu0 %6899
      %6901 = vset.pattern.permute.xlu0 2
      %6902 = vperm.xlu0 %6901, %v6845
      %v6903 = vpop.permute.xlu0 %6902
      %6904 = vset.pattern.permute.xlu0 2
      %6905 = vperm.xlu0 %6904, %v6846
      %v6906 = vpop.permute.xlu0 %6905
      %6907 = vset.pattern.permute.xlu0 2
      %6908 = vperm.xlu0 %6907, %v6847
      %v6909 = vpop.permute.xlu0 %6908
      %6910 = vset.pattern.permute.xlu0 2
      %6911 = vperm.xlu0 %6910, %v6848
      %v6912 = vpop.permute.xlu0 %6911
      %6913 = vset.pattern.permute.xlu0 2
      %6914 = vperm.xlu0 %6913, %v6849
      %v6915 = vpop.permute.xlu0 %6914
      %6916 = vset.pattern.permute.xlu0 2
      %6917 = vperm.xlu0 %6916, %v6850
      %v6918 = vpop.permute.xlu0 %6917
      %6919 = vset.pattern.permute.xlu0 2
      %6920 = vperm.xlu0 %6919, %v6851
      %v6921 = vpop.permute.xlu0 %6920
      %6922 = vset.pattern.permute.xlu0 2
      %6923 = vperm.xlu0 %6922, %v6852
      %v6924 = vpop.permute.xlu0 %6923
      %6925 = vset.pattern.permute.xlu0 2
      %6926 = vperm.xlu0 %6925, %v6853
      %v6927 = vpop.permute.xlu0 %6926
      %6928 = vset.pattern.permute.xlu0 2
      %6929 = vperm.xlu0 %6928, %v6854
      %v6930 = vpop.permute.xlu0 %6929
      %6931 = vset.pattern.permute.xlu0 2
      %6932 = vperm.xlu0 %6931, %v6855
      %v6933 = vpop.permute.xlu0 %6932
      %6934 = vset.pattern.permute.xlu0 2
      %6935 = vperm.xlu0 %6934, %v6856
      %v6936 = vpop.permute.xlu0 %6935
      %6937 = vset.pattern.permute.xlu0 2
      %6938 = vperm.xlu0 %6937, %v6857
      %v6939 = vpop.permute.xlu0 %6938
      %6940 = vset.pattern.permute.xlu0 2
      %6941 = vperm.xlu0 %6940, %v6858
      %v6942 = vpop.permute.xlu0 %6941
      %6943 = vset.pattern.permute.xlu0 2
      %6944 = vperm.xlu0 %6943, %v6859
      %v6945 = vpop.permute.xlu0 %6944
      %6946 = vset.pattern.permute.xlu0 2
      %6947 = vperm.xlu0 %6946, %v6860
      %v6948 = vpop.permute.xlu0 %6947
      %6949 = vset.pattern.permute.xlu0 2
      %6950 = vperm.xlu0 %6949, %v6861
      %v6951 = vpop.permute.xlu0 %6950
      %6952 = vset.pattern.permute.xlu0 2
      %6953 = vperm.xlu0 %6952, %v6862
      %v6954 = vpop.permute.xlu0 %6953
      %6955 = vset.pattern.permute.xlu0 2
      %6956 = vperm.xlu0 %6955, %v6863
      %v6957 = vpop.permute.xlu0 %6956
      %6958 = vset.pattern.permute.xlu0 2
      %6959 = vperm.xlu0 %6958, %v6864
      %v6960 = vpop.permute.xlu0 %6959
      %vm6961 = vcmp.eq.s32.totalorder %v303, %v6867
      %vm6962 = vcmp.eq.s32.totalorder %v304, %v6867
      %vm6963 = vcmp.eq.s32.totalorder %v303, %v6870
      %vm6964 = vcmp.eq.s32.totalorder %v304, %v6870
      %vm6965 = vcmp.eq.s32.totalorder %v303, %v6873
      %vm6966 = vcmp.eq.s32.totalorder %v304, %v6873
      %vm6967 = vcmp.eq.s32.totalorder %v303, %v6876
      %vm6968 = vcmp.eq.s32.totalorder %v304, %v6876
      %vm6969 = vcmp.eq.s32.totalorder %v303, %v6879
      %vm6970 = vcmp.eq.s32.totalorder %v304, %v6879
      %vm6971 = vcmp.eq.s32.totalorder %v303, %v6882
      %vm6972 = vcmp.eq.s32.totalorder %v304, %v6882
      %vm6973 = vcmp.eq.s32.totalorder %v303, %v6885
      %vm6974 = vcmp.eq.s32.totalorder %v304, %v6885
      %vm6975 = vcmp.eq.s32.totalorder %v303, %v6888
      %vm6976 = vcmp.eq.s32.totalorder %v304, %v6888
      %vm6977 = vcmp.eq.s32.totalorder %v303, %v6891
      %vm6978 = vcmp.eq.s32.totalorder %v304, %v6891
      %vm6979 = vcmp.eq.s32.totalorder %v303, %v6894
      %vm6980 = vcmp.eq.s32.totalorder %v304, %v6894
      %vm6981 = vcmp.eq.s32.totalorder %v303, %v6897
      %vm6982 = vcmp.eq.s32.totalorder %v304, %v6897
      %vm6983 = vcmp.eq.s32.totalorder %v303, %v6900
      %vm6984 = vcmp.eq.s32.totalorder %v304, %v6900
      %vm6985 = vcmp.eq.s32.totalorder %v303, %v6903
      %vm6986 = vcmp.eq.s32.totalorder %v304, %v6903
      %vm6987 = vcmp.eq.s32.totalorder %v303, %v6906
      %vm6988 = vcmp.eq.s32.totalorder %v304, %v6906
      %vm6989 = vcmp.eq.s32.totalorder %v303, %v6909
      %vm6990 = vcmp.eq.s32.totalorder %v304, %v6909
      %vm6991 = vcmp.eq.s32.totalorder %v303, %v6912
      %vm6992 = vcmp.eq.s32.totalorder %v304, %v6912
      %vm6993 = vcmp.eq.s32.totalorder %v303, %v6915
      %vm6994 = vcmp.eq.s32.totalorder %v304, %v6915
      %vm6995 = vcmp.eq.s32.totalorder %v303, %v6918
      %vm6996 = vcmp.eq.s32.totalorder %v304, %v6918
      %vm6997 = vcmp.eq.s32.totalorder %v303, %v6921
      %vm6998 = vcmp.eq.s32.totalorder %v304, %v6921
      %vm6999 = vcmp.eq.s32.totalorder %v303, %v6924
      %vm7000 = vcmp.eq.s32.totalorder %v304, %v6924
      %vm7001 = vcmp.eq.s32.totalorder %v303, %v6927
      %vm7002 = vcmp.eq.s32.totalorder %v304, %v6927
      %vm7003 = vcmp.eq.s32.totalorder %v303, %v6930
      %vm7004 = vcmp.eq.s32.totalorder %v304, %v6930
      %vm7005 = vcmp.eq.s32.totalorder %v303, %v6933
      %vm7006 = vcmp.eq.s32.totalorder %v304, %v6933
      %vm7007 = vcmp.eq.s32.totalorder %v303, %v6936
      %vm7008 = vcmp.eq.s32.totalorder %v304, %v6936
      %vm7009 = vcmp.eq.s32.totalorder %v303, %v6939
      %vm7010 = vcmp.eq.s32.totalorder %v304, %v6939
      %vm7011 = vcmp.eq.s32.totalorder %v303, %v6942
      %vm7012 = vcmp.eq.s32.totalorder %v304, %v6942
      %vm7013 = vcmp.eq.s32.totalorder %v303, %v6945
      %vm7014 = vcmp.eq.s32.totalorder %v304, %v6945
      %vm7015 = vcmp.eq.s32.totalorder %v303, %v6948
      %vm7016 = vcmp.eq.s32.totalorder %v304, %v6948
      %vm7017 = vcmp.eq.s32.totalorder %v303, %v6951
      %vm7018 = vcmp.eq.s32.totalorder %v304, %v6951
      %vm7019 = vcmp.eq.s32.totalorder %v303, %v6954
      %vm7020 = vcmp.eq.s32.totalorder %v304, %v6954
      %vm7021 = vcmp.eq.s32.totalorder %v303, %v6957
      %vm7022 = vcmp.eq.s32.totalorder %v304, %v6957
      %vm7023 = vcmp.eq.s32.totalorder %v303, %v6960
      %vm7024 = vcmp.eq.s32.totalorder %v304, %v6960
      %v7025 = vsel %vm6961, 1, 0
      %v7026 = vsel %vm6962, 1, 0
      %v7027 = vsel %vm6963, 1, 0
      %v7028 = vsel %vm6964, 1, 0
      %v7029 = vsel %vm6965, 1, 0
      %v7030 = vsel %vm6966, 1, 0
      %v7031 = vsel %vm6967, 1, 0
      %v7032 = vsel %vm6968, 1, 0
      %v7033 = vsel %vm6969, 1, 0
      %v7034 = vsel %vm6970, 1, 0
      %v7035 = vsel %vm6971, 1, 0
      %v7036 = vsel %vm6972, 1, 0
      %v7037 = vsel %vm6973, 1, 0
      %v7038 = vsel %vm6974, 1, 0
      %v7039 = vsel %vm6975, 1, 0
      %v7040 = vsel %vm6976, 1, 0
      %v7041 = vsel %vm6977, 1, 0
      %v7042 = vsel %vm6978, 1, 0
      %v7043 = vsel %vm6979, 1, 0
      %v7044 = vsel %vm6980, 1, 0
      %v7045 = vsel %vm6981, 1, 0
      %v7046 = vsel %vm6982, 1, 0
      %v7047 = vsel %vm6983, 1, 0
      %v7048 = vsel %vm6984, 1, 0
      %v7049 = vsel %vm6985, 1, 0
      %v7050 = vsel %vm6986, 1, 0
      %v7051 = vsel %vm6987, 1, 0
      %v7052 = vsel %vm6988, 1, 0
      %v7053 = vsel %vm6989, 1, 0
      %v7054 = vsel %vm6990, 1, 0
      %v7055 = vsel %vm6991, 1, 0
      %v7056 = vsel %vm6992, 1, 0
      %v7057 = vsel %vm6993, 1, 0
      %v7058 = vsel %vm6994, 1, 0
      %v7059 = vsel %vm6995, 1, 0
      %v7060 = vsel %vm6996, 1, 0
      %v7061 = vsel %vm6997, 1, 0
      %v7062 = vsel %vm6998, 1, 0
      %v7063 = vsel %vm6999, 1, 0
      %v7064 = vsel %vm7000, 1, 0
      %v7065 = vsel %vm7001, 1, 0
      %v7066 = vsel %vm7002, 1, 0
      %v7067 = vsel %vm7003, 1, 0
      %v7068 = vsel %vm7004, 1, 0
      %v7069 = vsel %vm7005, 1, 0
      %v7070 = vsel %vm7006, 1, 0
      %v7071 = vsel %vm7007, 1, 0
      %v7072 = vsel %vm7008, 1, 0
      %v7073 = vsel %vm7009, 1, 0
      %v7074 = vsel %vm7010, 1, 0
      %v7075 = vsel %vm7011, 1, 0
      %v7076 = vsel %vm7012, 1, 0
      %v7077 = vsel %vm7013, 1, 0
      %v7078 = vsel %vm7014, 1, 0
      %v7079 = vsel %vm7015, 1, 0
      %v7080 = vsel %vm7016, 1, 0
      %v7081 = vsel %vm7017, 1, 0
      %v7082 = vsel %vm7018, 1, 0
      %v7083 = vsel %vm7019, 1, 0
      %v7084 = vsel %vm7020, 1, 0
      %v7085 = vsel %vm7021, 1, 0
      %v7086 = vsel %vm7022, 1, 0
      %v7087 = vsel %vm7023, 1, 0
      %v7088 = vsel %vm7024, 1, 0
      %v7089 = vcvt.s32.f32 %v7025
      %v7090 = vcvt.s32.f32 %v7026
      %v7091 = vcvt.s32.f32 %v7027
      %v7092 = vcvt.s32.f32 %v7028
      %v7093 = vcvt.s32.f32 %v7029
      %v7094 = vcvt.s32.f32 %v7030
      %v7095 = vcvt.s32.f32 %v7031
      %v7096 = vcvt.s32.f32 %v7032
      %v7097 = vcvt.s32.f32 %v7033
      %v7098 = vcvt.s32.f32 %v7034
      %v7099 = vcvt.s32.f32 %v7035
      %v7100 = vcvt.s32.f32 %v7036
      %v7101 = vcvt.s32.f32 %v7037
      %v7102 = vcvt.s32.f32 %v7038
      %v7103 = vcvt.s32.f32 %v7039
      %v7104 = vcvt.s32.f32 %v7040
      %v7105 = vcvt.s32.f32 %v7041
      %v7106 = vcvt.s32.f32 %v7042
      %v7107 = vcvt.s32.f32 %v7043
      %v7108 = vcvt.s32.f32 %v7044
      %v7109 = vcvt.s32.f32 %v7045
      %v7110 = vcvt.s32.f32 %v7046
      %v7111 = vcvt.s32.f32 %v7047
      %v7112 = vcvt.s32.f32 %v7048
      %v7113 = vcvt.s32.f32 %v7049
      %v7114 = vcvt.s32.f32 %v7050
      %v7115 = vcvt.s32.f32 %v7051
      %v7116 = vcvt.s32.f32 %v7052
      %v7117 = vcvt.s32.f32 %v7053
      %v7118 = vcvt.s32.f32 %v7054
      %v7119 = vcvt.s32.f32 %v7055
      %v7120 = vcvt.s32.f32 %v7056
      %v7121 = vcvt.s32.f32 %v7057
      %v7122 = vcvt.s32.f32 %v7058
      %v7123 = vcvt.s32.f32 %v7059
      %v7124 = vcvt.s32.f32 %v7060
      %v7125 = vcvt.s32.f32 %v7061
      %v7126 = vcvt.s32.f32 %v7062
      %v7127 = vcvt.s32.f32 %v7063
      %v7128 = vcvt.s32.f32 %v7064
      %v7129 = vcvt.s32.f32 %v7065
      %v7130 = vcvt.s32.f32 %v7066
      %v7131 = vcvt.s32.f32 %v7067
      %v7132 = vcvt.s32.f32 %v7068
      %v7133 = vcvt.s32.f32 %v7069
      %v7134 = vcvt.s32.f32 %v7070
      %v7135 = vcvt.s32.f32 %v7071
      %v7136 = vcvt.s32.f32 %v7072
      %v7137 = vcvt.s32.f32 %v7073
      %v7138 = vcvt.s32.f32 %v7074
      %v7139 = vcvt.s32.f32 %v7075
      %v7140 = vcvt.s32.f32 %v7076
      %v7141 = vcvt.s32.f32 %v7077
      %v7142 = vcvt.s32.f32 %v7078
      %v7143 = vcvt.s32.f32 %v7079
      %v7144 = vcvt.s32.f32 %v7080
      %v7145 = vcvt.s32.f32 %v7081
      %v7146 = vcvt.s32.f32 %v7082
      %v7147 = vcvt.s32.f32 %v7083
      %v7148 = vcvt.s32.f32 %v7084
      %v7149 = vcvt.s32.f32 %v7085
      %v7150 = vcvt.s32.f32 %v7086
      %v7151 = vcvt.s32.f32 %v7087
      %v7152 = vcvt.s32.f32 %v7088
      %7153 = vset.pattern.permute.xlu0 2
      %7154 = vperm.xlu0 %7153, %v2865
      %v7155 = vpop.permute.xlu0 %7154
      %7157 = vset.pattern.permute.xlu0 2
      %7158 = vperm.xlu0 %7157, %v2866
      %v7159 = vpop.permute.xlu0 %7158
      %7161 = vset.pattern.permute.xlu0 2
      %7162 = vperm.xlu0 %7161, %v2867
      %v7163 = vpop.permute.xlu0 %7162
      %7165 = vset.pattern.permute.xlu0 2
      %7166 = vperm.xlu0 %7165, %v2868
      %v7167 = vpop.permute.xlu0 %7166
      %7169 = vset.pattern.permute.xlu0 2
      %7170 = vperm.xlu0 %7169, %v2869
      %v7171 = vpop.permute.xlu0 %7170
      %7173 = vset.pattern.permute.xlu0 2
      %7174 = vperm.xlu0 %7173, %v2870
      %v7175 = vpop.permute.xlu0 %7174
      %7177 = vset.pattern.permute.xlu0 2
      %7178 = vperm.xlu0 %7177, %v2871
      %v7179 = vpop.permute.xlu0 %7178
      %7181 = vset.pattern.permute.xlu0 2
      %7182 = vperm.xlu0 %7181, %v2872
      %v7183 = vpop.permute.xlu0 %7182
      %7185 = vset.pattern.permute.xlu0 2
      %7186 = vperm.xlu0 %7185, %v2873
      %v7187 = vpop.permute.xlu0 %7186
      %7189 = vset.pattern.permute.xlu0 2
      %7190 = vperm.xlu0 %7189, %v2874
      %v7191 = vpop.permute.xlu0 %7190
      %7193 = vset.pattern.permute.xlu0 2
      %7194 = vperm.xlu0 %7193, %v2875
      %v7195 = vpop.permute.xlu0 %7194
      %7197 = vset.pattern.permute.xlu0 2
      %7198 = vperm.xlu0 %7197, %v2876
      %v7199 = vpop.permute.xlu0 %7198
      %7201 = vset.pattern.permute.xlu0 2
      %7202 = vperm.xlu0 %7201, %v2877
      %v7203 = vpop.permute.xlu0 %7202
      %7205 = vset.pattern.permute.xlu0 2
      %7206 = vperm.xlu0 %7205, %v2878
      %v7207 = vpop.permute.xlu0 %7206
      %7209 = vset.pattern.permute.xlu0 2
      %7210 = vperm.xlu0 %7209, %v2879
      %v7211 = vpop.permute.xlu0 %7210
      %7213 = vset.pattern.permute.xlu0 2
      %7214 = vperm.xlu0 %7213, %v2880
      %v7215 = vpop.permute.xlu0 %7214
      %7217 = vset.pattern.permute.xlu0 2
      %7218 = vperm.xlu0 %7217, %v2881
      %v7219 = vpop.permute.xlu0 %7218
      %7221 = vset.pattern.permute.xlu0 2
      %7222 = vperm.xlu0 %7221, %v2882
      %v7223 = vpop.permute.xlu0 %7222
      %7225 = vset.pattern.permute.xlu0 2
      %7226 = vperm.xlu0 %7225, %v2883
      %v7227 = vpop.permute.xlu0 %7226
      %7229 = vset.pattern.permute.xlu0 2
      %7230 = vperm.xlu0 %7229, %v2884
      %v7231 = vpop.permute.xlu0 %7230
      %7233 = vset.pattern.permute.xlu0 2
      %7234 = vperm.xlu0 %7233, %v2885
      %v7235 = vpop.permute.xlu0 %7234
      %7237 = vset.pattern.permute.xlu0 2
      %7238 = vperm.xlu0 %7237, %v2886
      %v7239 = vpop.permute.xlu0 %7238
      %7241 = vset.pattern.permute.xlu0 2
      %7242 = vperm.xlu0 %7241, %v2887
      %v7243 = vpop.permute.xlu0 %7242
      %7245 = vset.pattern.permute.xlu0 2
      %7246 = vperm.xlu0 %7245, %v2888
      %v7247 = vpop.permute.xlu0 %7246
      %7249 = vset.pattern.permute.xlu0 2
      %7250 = vperm.xlu0 %7249, %v2889
      %v7251 = vpop.permute.xlu0 %7250
      %7253 = vset.pattern.permute.xlu0 2
      %7254 = vperm.xlu0 %7253, %v2890
      %v7255 = vpop.permute.xlu0 %7254
      %7257 = vset.pattern.permute.xlu0 2
      %7258 = vperm.xlu0 %7257, %v2891
      %v7259 = vpop.permute.xlu0 %7258
      %7261 = vset.pattern.permute.xlu0 2
      %7262 = vperm.xlu0 %7261, %v2892
      %v7263 = vpop.permute.xlu0 %7262
      %7265 = vset.pattern.permute.xlu0 2
      %7266 = vperm.xlu0 %7265, %v2893
      %v7267 = vpop.permute.xlu0 %7266
      %7269 = vset.pattern.permute.xlu0 2
      %7270 = vperm.xlu0 %7269, %v2894
      %v7271 = vpop.permute.xlu0 %7270
      %7273 = vset.pattern.permute.xlu0 2
      %7274 = vperm.xlu0 %7273, %v2895
      %v7275 = vpop.permute.xlu0 %7274
      %7277 = vset.pattern.permute.xlu0 2
      %7278 = vperm.xlu0 %7277, %v2896
      %v7279 = vpop.permute.xlu0 %7278
      %v7281 = vmul.f32 %v7089, %v7155
      %v7282 = vmul.f32 %v7090, %v7155
      %v7283 = vmul.f32 %v7091, %v7159
      %v7284 = vmul.f32 %v7092, %v7159
      %v7285 = vmul.f32 %v7093, %v7163
      %v7286 = vmul.f32 %v7094, %v7163
      %v7287 = vmul.f32 %v7095, %v7167
      %v7288 = vmul.f32 %v7096, %v7167
      %v7289 = vmul.f32 %v7097, %v7171
      %v7290 = vmul.f32 %v7098, %v7171
      %v7291 = vmul.f32 %v7099, %v7175
      %v7292 = vmul.f32 %v7100, %v7175
      %v7293 = vmul.f32 %v7101, %v7179
      %v7294 = vmul.f32 %v7102, %v7179
      %v7295 = vmul.f32 %v7103, %v7183
      %v7296 = vmul.f32 %v7104, %v7183
      %v7297 = vmul.f32 %v7105, %v7187
      %v7298 = vmul.f32 %v7106, %v7187
      %v7299 = vmul.f32 %v7107, %v7191
      %v7300 = vmul.f32 %v7108, %v7191
      %v7301 = vmul.f32 %v7109, %v7195
      %v7302 = vmul.f32 %v7110, %v7195
      %v7303 = vmul.f32 %v7111, %v7199
      %v7304 = vmul.f32 %v7112, %v7199
      %v7305 = vmul.f32 %v7113, %v7203
      %v7306 = vmul.f32 %v7114, %v7203
      %v7307 = vmul.f32 %v7115, %v7207
      %v7308 = vmul.f32 %v7116, %v7207
      %v7309 = vmul.f32 %v7117, %v7211
      %v7310 = vmul.f32 %v7118, %v7211
      %v7311 = vmul.f32 %v7119, %v7215
      %v7312 = vmul.f32 %v7120, %v7215
      %v7313 = vmul.f32 %v7121, %v7219
      %v7314 = vmul.f32 %v7122, %v7219
      %v7315 = vmul.f32 %v7123, %v7223
      %v7316 = vmul.f32 %v7124, %v7223
      %v7317 = vmul.f32 %v7125, %v7227
      %v7318 = vmul.f32 %v7126, %v7227
      %v7319 = vmul.f32 %v7127, %v7231
      %v7320 = vmul.f32 %v7128, %v7231
      %v7321 = vmul.f32 %v7129, %v7235
      %v7322 = vmul.f32 %v7130, %v7235
      %v7323 = vmul.f32 %v7131, %v7239
      %v7324 = vmul.f32 %v7132, %v7239
      %v7325 = vmul.f32 %v7133, %v7243
      %v7326 = vmul.f32 %v7134, %v7243
      %v7327 = vmul.f32 %v7135, %v7247
      %v7328 = vmul.f32 %v7136, %v7247
      %v7329 = vmul.f32 %v7137, %v7251
      %v7330 = vmul.f32 %v7138, %v7251
      %v7331 = vmul.f32 %v7139, %v7255
      %v7332 = vmul.f32 %v7140, %v7255
      %v7333 = vmul.f32 %v7141, %v7259
      %v7334 = vmul.f32 %v7142, %v7259
      %v7335 = vmul.f32 %v7143, %v7263
      %v7336 = vmul.f32 %v7144, %v7263
      %v7337 = vmul.f32 %v7145, %v7267
      %v7338 = vmul.f32 %v7146, %v7267
      %v7339 = vmul.f32 %v7147, %v7271
      %v7340 = vmul.f32 %v7148, %v7271
      %v7341 = vmul.f32 %v7149, %v7275
      %v7342 = vmul.f32 %v7150, %v7275
      %v7343 = vmul.f32 %v7151, %v7279
      %v7344 = vmul.f32 %v7152, %v7279
      %v7345 = vadd.f32 %v6417, %v7281
      %v7346 = vadd.f32 %v6418, %v7282
      %v7347 = vadd.f32 %v6419, %v7283
      %v7348 = vadd.f32 %v6420, %v7284
      %v7349 = vadd.f32 %v6421, %v7285
      %v7350 = vadd.f32 %v6422, %v7286
      %v7351 = vadd.f32 %v6423, %v7287
      %v7352 = vadd.f32 %v6424, %v7288
      %v7353 = vadd.f32 %v6425, %v7289
      %v7354 = vadd.f32 %v6426, %v7290
      %v7355 = vadd.f32 %v6427, %v7291
      %v7356 = vadd.f32 %v6428, %v7292
      %v7357 = vadd.f32 %v6429, %v7293
      %v7358 = vadd.f32 %v6430, %v7294
      %v7359 = vadd.f32 %v6431, %v7295
      %v7360 = vadd.f32 %v6432, %v7296
      %v7361 = vadd.f32 %v6433, %v7297
      %v7362 = vadd.f32 %v6434, %v7298
      %v7363 = vadd.f32 %v6435, %v7299
      %v7364 = vadd.f32 %v6436, %v7300
      %v7365 = vadd.f32 %v6437, %v7301
      %v7366 = vadd.f32 %v6438, %v7302
      %v7367 = vadd.f32 %v6439, %v7303
      %v7368 = vadd.f32 %v6440, %v7304
      %v7369 = vadd.f32 %v6441, %v7305
      %v7370 = vadd.f32 %v6442, %v7306
      %v7371 = vadd.f32 %v6443, %v7307
      %v7372 = vadd.f32 %v6444, %v7308
      %v7373 = vadd.f32 %v6445, %v7309
      %v7374 = vadd.f32 %v6446, %v7310
      %v7375 = vadd.f32 %v6447, %v7311
      %v7376 = vadd.f32 %v6448, %v7312
      %v7377 = vadd.f32 %v6449, %v7313
      %v7378 = vadd.f32 %v6450, %v7314
      %v7379 = vadd.f32 %v6451, %v7315
      %v7380 = vadd.f32 %v6452, %v7316
      %v7381 = vadd.f32 %v6453, %v7317
      %v7382 = vadd.f32 %v6454, %v7318
      %v7383 = vadd.f32 %v6455, %v7319
      %v7384 = vadd.f32 %v6456, %v7320
      %v7385 = vadd.f32 %v6457, %v7321
      %v7386 = vadd.f32 %v6458, %v7322
      %v7387 = vadd.f32 %v6459, %v7323
      %v7388 = vadd.f32 %v6460, %v7324
      %v7389 = vadd.f32 %v6461, %v7325
      %v7390 = vadd.f32 %v6462, %v7326
      %v7391 = vadd.f32 %v6463, %v7327
      %v7392 = vadd.f32 %v6464, %v7328
      %v7393 = vadd.f32 %v6465, %v7329
      %v7394 = vadd.f32 %v6466, %v7330
      %v7395 = vadd.f32 %v6467, %v7331
      %v7396 = vadd.f32 %v6468, %v7332
      %v7397 = vadd.f32 %v6469, %v7333
      %v7398 = vadd.f32 %v6470, %v7334
      %v7399 = vadd.f32 %v6471, %v7335
      %v7400 = vadd.f32 %v6472, %v7336
      %v7401 = vadd.f32 %v6473, %v7337
      %v7402 = vadd.f32 %v6474, %v7338
      %v7403 = vadd.f32 %v6475, %v7339
      %v7404 = vadd.f32 %v6476, %v7340
      %v7405 = vadd.f32 %v6477, %v7341
      %v7406 = vadd.f32 %v6478, %v7342
      %v7407 = vadd.f32 %v6479, %v7343
      %v7408 = vadd.f32 %v6480, %v7344
      %vm7409 = vmand %vm5713, %vm2993
      %vm7410 = vmand %vm5714, %vm2994
      %vm7411 = vmand %vm5715, %vm2995
      %vm7412 = vmand %vm5716, %vm2996
      %vm7413 = vmand %vm5717, %vm2997
      %vm7414 = vmand %vm5718, %vm2998
      %vm7415 = vmand %vm5719, %vm2999
      %vm7416 = vmand %vm5720, %vm3000
      %vm7417 = vmand %vm5721, %vm3001
      %vm7418 = vmand %vm5722, %vm3002
      %vm7419 = vmand %vm5723, %vm3003
      %vm7420 = vmand %vm5724, %vm3004
      %vm7421 = vmand %vm5725, %vm3005
      %vm7422 = vmand %vm5726, %vm3006
      %vm7423 = vmand %vm5727, %vm3007
      %vm7424 = vmand %vm5728, %vm3008
      %vm7425 = vmand %vm5729, %vm3009
      %vm7426 = vmand %vm5730, %vm3010
      %vm7427 = vmand %vm5731, %vm3011
      %vm7428 = vmand %vm5732, %vm3012
      %vm7429 = vmand %vm5733, %vm3013
      %vm7430 = vmand %vm5734, %vm3014
      %vm7431 = vmand %vm5735, %vm3015
      %vm7432 = vmand %vm5736, %vm3016
      %vm7433 = vmand %vm5737, %vm3017
      %vm7434 = vmand %vm5738, %vm3018
      %vm7435 = vmand %vm5739, %vm3019
      %vm7436 = vmand %vm5740, %vm3020
      %vm7437 = vmand %vm5741, %vm3021
      %vm7438 = vmand %vm5742, %vm3022
      %vm7439 = vmand %vm5743, %vm3023
      %vm7440 = vmand %vm5744, %vm3024
      %vm7441 = vmand %vm7409, %vm6641
      %vm7442 = vmand %vm7410, %vm6642
      %vm7443 = vmand %vm7411, %vm6643
      %vm7444 = vmand %vm7412, %vm6644
      %vm7445 = vmand %vm7413, %vm6645
      %vm7446 = vmand %vm7414, %vm6646
      %vm7447 = vmand %vm7415, %vm6647
      %vm7448 = vmand %vm7416, %vm6648
      %vm7449 = vmand %vm7417, %vm6649
      %vm7450 = vmand %vm7418, %vm6650
      %vm7451 = vmand %vm7419, %vm6651
      %vm7452 = vmand %vm7420, %vm6652
      %vm7453 = vmand %vm7421, %vm6653
      %vm7454 = vmand %vm7422, %vm6654
      %vm7455 = vmand %vm7423, %vm6655
      %vm7456 = vmand %vm7424, %vm6656
      %vm7457 = vmand %vm7425, %vm6657
      %vm7458 = vmand %vm7426, %vm6658
      %vm7459 = vmand %vm7427, %vm6659
      %vm7460 = vmand %vm7428, %vm6660
      %vm7461 = vmand %vm7429, %vm6661
      %vm7462 = vmand %vm7430, %vm6662
      %vm7463 = vmand %vm7431, %vm6663
      %vm7464 = vmand %vm7432, %vm6664
      %vm7465 = vmand %vm7433, %vm6665
      %vm7466 = vmand %vm7434, %vm6666
      %vm7467 = vmand %vm7435, %vm6667
      %vm7468 = vmand %vm7436, %vm6668
      %vm7469 = vmand %vm7437, %vm6669
      %vm7470 = vmand %vm7438, %vm6670
      %vm7471 = vmand %vm7439, %vm6671
      %vm7472 = vmand %vm7440, %vm6672
      %v7473 = vadd.s32 %v6705, %v1970
      %v7474 = vadd.s32 %v6706, %v1972
      %v7475 = vadd.s32 %v6707, %v1974
      %v7476 = vadd.s32 %v6708, %v1976
      %v7477 = vadd.s32 %v6709, %v1978
      %v7478 = vadd.s32 %v6710, %v1980
      %v7479 = vadd.s32 %v6711, %v1982
      %v7480 = vadd.s32 %v6712, %v1984
      %v7481 = vadd.s32 %v6713, %v1986
      %v7482 = vadd.s32 %v6714, %v1988
      %v7483 = vadd.s32 %v6715, %v1990
      %v7484 = vadd.s32 %v6716, %v1992
      %v7485 = vadd.s32 %v6717, %v1994
      %v7486 = vadd.s32 %v6718, %v1996
      %v7487 = vadd.s32 %v6719, %v1998
      %v7488 = vadd.s32 %v6720, %v2000
      %v7489 = vadd.s32 %v6721, %v2002
      %v7490 = vadd.s32 %v6722, %v2004
      %v7491 = vadd.s32 %v6723, %v2006
      %v7492 = vadd.s32 %v6724, %v2008
      %v7493 = vadd.s32 %v6725, %v2010
      %v7494 = vadd.s32 %v6726, %v2012
      %v7495 = vadd.s32 %v6727, %v2014
      %v7496 = vadd.s32 %v6728, %v2016
      %v7497 = vadd.s32 %v6729, %v2018
      %v7498 = vadd.s32 %v6730, %v2020
      %v7499 = vadd.s32 %v6731, %v2022
      %v7500 = vadd.s32 %v6732, %v2024
      %v7501 = vadd.s32 %v6733, %v2026
      %v7502 = vadd.s32 %v6734, %v2028
      %v7503 = vadd.s32 %v6735, %v2030
      %v7504 = vadd.s32 %v6736, %v2032
      %7505 = vrot.lane.b32.xlu0 %v7473, 127
      %v7506 = vpop.permute.xlu0 %7505
      %7507 = vrot.lane.b32.xlu0 %v7474, 127
      %v7508 = vpop.permute.xlu0 %7507
      %7509 = vrot.lane.b32.xlu0 %v7475, 127
      %v7510 = vpop.permute.xlu0 %7509
      %7511 = vrot.lane.b32.xlu0 %v7476, 127
      %v7512 = vpop.permute.xlu0 %7511
      %7513 = vrot.lane.b32.xlu0 %v7477, 127
      %v7514 = vpop.permute.xlu0 %7513
      %7515 = vrot.lane.b32.xlu0 %v7478, 127
      %v7516 = vpop.permute.xlu0 %7515
      %7517 = vrot.lane.b32.xlu0 %v7479, 127
      %v7518 = vpop.permute.xlu0 %7517
      %7519 = vrot.lane.b32.xlu0 %v7480, 127
      %v7520 = vpop.permute.xlu0 %7519
      %7521 = vrot.lane.b32.xlu0 %v7481, 127
      %v7522 = vpop.permute.xlu0 %7521
      %7523 = vrot.lane.b32.xlu0 %v7482, 127
      %v7524 = vpop.permute.xlu0 %7523
      %7525 = vrot.lane.b32.xlu0 %v7483, 127
      %v7526 = vpop.permute.xlu0 %7525
      %7527 = vrot.lane.b32.xlu0 %v7484, 127
      %v7528 = vpop.permute.xlu0 %7527
      %7529 = vrot.lane.b32.xlu0 %v7485, 127
      %v7530 = vpop.permute.xlu0 %7529
      %7531 = vrot.lane.b32.xlu0 %v7486, 127
      %v7532 = vpop.permute.xlu0 %7531
      %7533 = vrot.lane.b32.xlu0 %v7487, 127
      %v7534 = vpop.permute.xlu0 %7533
      %7535 = vrot.lane.b32.xlu0 %v7488, 127
      %v7536 = vpop.permute.xlu0 %7535
      %7537 = vrot.lane.b32.xlu0 %v7489, 127
      %v7538 = vpop.permute.xlu0 %7537
      %7539 = vrot.lane.b32.xlu0 %v7490, 127
      %v7540 = vpop.permute.xlu0 %7539
      %7541 = vrot.lane.b32.xlu0 %v7491, 127
      %v7542 = vpop.permute.xlu0 %7541
      %7543 = vrot.lane.b32.xlu0 %v7492, 127
      %v7544 = vpop.permute.xlu0 %7543
      %7545 = vrot.lane.b32.xlu0 %v7493, 127
      %v7546 = vpop.permute.xlu0 %7545
      %7547 = vrot.lane.b32.xlu0 %v7494, 127
      %v7548 = vpop.permute.xlu0 %7547
      %7549 = vrot.lane.b32.xlu0 %v7495, 127
      %v7550 = vpop.permute.xlu0 %7549
      %7551 = vrot.lane.b32.xlu0 %v7496, 127
      %v7552 = vpop.permute.xlu0 %7551
      %7553 = vrot.lane.b32.xlu0 %v7497, 127
      %v7554 = vpop.permute.xlu0 %7553
      %7555 = vrot.lane.b32.xlu0 %v7498, 127
      %v7556 = vpop.permute.xlu0 %7555
      %7557 = vrot.lane.b32.xlu0 %v7499, 127
      %v7558 = vpop.permute.xlu0 %7557
      %7559 = vrot.lane.b32.xlu0 %v7500, 127
      %v7560 = vpop.permute.xlu0 %7559
      %7561 = vrot.lane.b32.xlu0 %v7501, 127
      %v7562 = vpop.permute.xlu0 %7561
      %7563 = vrot.lane.b32.xlu0 %v7502, 127
      %v7564 = vpop.permute.xlu0 %7563
      %7565 = vrot.lane.b32.xlu0 %v7503, 127
      %v7566 = vpop.permute.xlu0 %7565
      %7567 = vrot.lane.b32.xlu0 %v7504, 127
      %v7568 = vpop.permute.xlu0 %7567
      %v7569 = vsel %vm7441, %v7506, 4294967295
      %v7570 = vsel %vm7442, %v7508, 4294967295
      %v7571 = vsel %vm7443, %v7510, 4294967295
      %v7572 = vsel %vm7444, %v7512, 4294967295
      %v7573 = vsel %vm7445, %v7514, 4294967295
      %v7574 = vsel %vm7446, %v7516, 4294967295
      %v7575 = vsel %vm7447, %v7518, 4294967295
      %v7576 = vsel %vm7448, %v7520, 4294967295
      %v7577 = vsel %vm7449, %v7522, 4294967295
      %v7578 = vsel %vm7450, %v7524, 4294967295
      %v7579 = vsel %vm7451, %v7526, 4294967295
      %v7580 = vsel %vm7452, %v7528, 4294967295
      %v7581 = vsel %vm7453, %v7530, 4294967295
      %v7582 = vsel %vm7454, %v7532, 4294967295
      %v7583 = vsel %vm7455, %v7534, 4294967295
      %v7584 = vsel %vm7456, %v7536, 4294967295
      %v7585 = vsel %vm7457, %v7538, 4294967295
      %v7586 = vsel %vm7458, %v7540, 4294967295
      %v7587 = vsel %vm7459, %v7542, 4294967295
      %v7588 = vsel %vm7460, %v7544, 4294967295
      %v7589 = vsel %vm7461, %v7546, 4294967295
      %v7590 = vsel %vm7462, %v7548, 4294967295
      %v7591 = vsel %vm7463, %v7550, 4294967295
      %v7592 = vsel %vm7464, %v7552, 4294967295
      %v7593 = vsel %vm7465, %v7554, 4294967295
      %v7594 = vsel %vm7466, %v7556, 4294967295
      %v7595 = vsel %vm7467, %v7558, 4294967295
      %v7596 = vsel %vm7468, %v7560, 4294967295
      %v7597 = vsel %vm7469, %v7562, 4294967295
      %v7598 = vsel %vm7470, %v7564, 4294967295
      %v7599 = vsel %vm7471, %v7566, 4294967295
      %v7600 = vsel %vm7472, %v7568, 4294967295
      %7601 = vset.pattern.permute.xlu0 2
      %7602 = vperm.xlu0 %7601, %v7569
      %v7603 = vpop.permute.xlu0 %7602
      %7604 = vset.pattern.permute.xlu0 2
      %7605 = vperm.xlu0 %7604, %v7570
      %v7606 = vpop.permute.xlu0 %7605
      %7607 = vset.pattern.permute.xlu0 2
      %7608 = vperm.xlu0 %7607, %v7571
      %v7609 = vpop.permute.xlu0 %7608
      %7610 = vset.pattern.permute.xlu0 2
      %7611 = vperm.xlu0 %7610, %v7572
      %v7612 = vpop.permute.xlu0 %7611
      %7613 = vset.pattern.permute.xlu0 2
      %7614 = vperm.xlu0 %7613, %v7573
      %v7615 = vpop.permute.xlu0 %7614
      %7616 = vset.pattern.permute.xlu0 2
      %7617 = vperm.xlu0 %7616, %v7574
      %v7618 = vpop.permute.xlu0 %7617
      %7619 = vset.pattern.permute.xlu0 2
      %7620 = vperm.xlu0 %7619, %v7575
      %v7621 = vpop.permute.xlu0 %7620
      %7622 = vset.pattern.permute.xlu0 2
      %7623 = vperm.xlu0 %7622, %v7576
      %v7624 = vpop.permute.xlu0 %7623
      %7625 = vset.pattern.permute.xlu0 2
      %7626 = vperm.xlu0 %7625, %v7577
      %v7627 = vpop.permute.xlu0 %7626
      %7628 = vset.pattern.permute.xlu0 2
      %7629 = vperm.xlu0 %7628, %v7578
      %v7630 = vpop.permute.xlu0 %7629
      %7631 = vset.pattern.permute.xlu0 2
      %7632 = vperm.xlu0 %7631, %v7579
      %v7633 = vpop.permute.xlu0 %7632
      %7634 = vset.pattern.permute.xlu0 2
      %7635 = vperm.xlu0 %7634, %v7580
      %v7636 = vpop.permute.xlu0 %7635
      %7637 = vset.pattern.permute.xlu0 2
      %7638 = vperm.xlu0 %7637, %v7581
      %v7639 = vpop.permute.xlu0 %7638
      %7640 = vset.pattern.permute.xlu0 2
      %7641 = vperm.xlu0 %7640, %v7582
      %v7642 = vpop.permute.xlu0 %7641
      %7643 = vset.pattern.permute.xlu0 2
      %7644 = vperm.xlu0 %7643, %v7583
      %v7645 = vpop.permute.xlu0 %7644
      %7646 = vset.pattern.permute.xlu0 2
      %7647 = vperm.xlu0 %7646, %v7584
      %v7648 = vpop.permute.xlu0 %7647
      %7649 = vset.pattern.permute.xlu0 2
      %7650 = vperm.xlu0 %7649, %v7585
      %v7651 = vpop.permute.xlu0 %7650
      %7652 = vset.pattern.permute.xlu0 2
      %7653 = vperm.xlu0 %7652, %v7586
      %v7654 = vpop.permute.xlu0 %7653
      %7655 = vset.pattern.permute.xlu0 2
      %7656 = vperm.xlu0 %7655, %v7587
      %v7657 = vpop.permute.xlu0 %7656
      %7658 = vset.pattern.permute.xlu0 2
      %7659 = vperm.xlu0 %7658, %v7588
      %v7660 = vpop.permute.xlu0 %7659
      %7661 = vset.pattern.permute.xlu0 2
      %7662 = vperm.xlu0 %7661, %v7589
      %v7663 = vpop.permute.xlu0 %7662
      %7664 = vset.pattern.permute.xlu0 2
      %7665 = vperm.xlu0 %7664, %v7590
      %v7666 = vpop.permute.xlu0 %7665
      %7667 = vset.pattern.permute.xlu0 2
      %7668 = vperm.xlu0 %7667, %v7591
      %v7669 = vpop.permute.xlu0 %7668
      %7670 = vset.pattern.permute.xlu0 2
      %7671 = vperm.xlu0 %7670, %v7592
      %v7672 = vpop.permute.xlu0 %7671
      %7673 = vset.pattern.permute.xlu0 2
      %7674 = vperm.xlu0 %7673, %v7593
      %v7675 = vpop.permute.xlu0 %7674
      %7676 = vset.pattern.permute.xlu0 2
      %7677 = vperm.xlu0 %7676, %v7594
      %v7678 = vpop.permute.xlu0 %7677
      %7679 = vset.pattern.permute.xlu0 2
      %7680 = vperm.xlu0 %7679, %v7595
      %v7681 = vpop.permute.xlu0 %7680
      %7682 = vset.pattern.permute.xlu0 2
      %7683 = vperm.xlu0 %7682, %v7596
      %v7684 = vpop.permute.xlu0 %7683
      %7685 = vset.pattern.permute.xlu0 2
      %7686 = vperm.xlu0 %7685, %v7597
      %v7687 = vpop.permute.xlu0 %7686
      %7688 = vset.pattern.permute.xlu0 2
      %7689 = vperm.xlu0 %7688, %v7598
      %v7690 = vpop.permute.xlu0 %7689
      %7691 = vset.pattern.permute.xlu0 2
      %7692 = vperm.xlu0 %7691, %v7599
      %v7693 = vpop.permute.xlu0 %7692
      %7694 = vset.pattern.permute.xlu0 2
      %7695 = vperm.xlu0 %7694, %v7600
      %v7696 = vpop.permute.xlu0 %7695
      %vm7697 = vcmp.eq.s32.totalorder %v303, %v7603
      %vm7698 = vcmp.eq.s32.totalorder %v304, %v7603
      %vm7699 = vcmp.eq.s32.totalorder %v303, %v7606
      %vm7700 = vcmp.eq.s32.totalorder %v304, %v7606
      %vm7701 = vcmp.eq.s32.totalorder %v303, %v7609
      %vm7702 = vcmp.eq.s32.totalorder %v304, %v7609
      %vm7703 = vcmp.eq.s32.totalorder %v303, %v7612
      %vm7704 = vcmp.eq.s32.totalorder %v304, %v7612
      %vm7705 = vcmp.eq.s32.totalorder %v303, %v7615
      %vm7706 = vcmp.eq.s32.totalorder %v304, %v7615
      %vm7707 = vcmp.eq.s32.totalorder %v303, %v7618
      %vm7708 = vcmp.eq.s32.totalorder %v304, %v7618
      %vm7709 = vcmp.eq.s32.totalorder %v303, %v7621
      %vm7710 = vcmp.eq.s32.totalorder %v304, %v7621
      %vm7711 = vcmp.eq.s32.totalorder %v303, %v7624
      %vm7712 = vcmp.eq.s32.totalorder %v304, %v7624
      %vm7713 = vcmp.eq.s32.totalorder %v303, %v7627
      %vm7714 = vcmp.eq.s32.totalorder %v304, %v7627
      %vm7715 = vcmp.eq.s32.totalorder %v303, %v7630
      %vm7716 = vcmp.eq.s32.totalorder %v304, %v7630
      %vm7717 = vcmp.eq.s32.totalorder %v303, %v7633
      %vm7718 = vcmp.eq.s32.totalorder %v304, %v7633
      %vm7719 = vcmp.eq.s32.totalorder %v303, %v7636
      %vm7720 = vcmp.eq.s32.totalorder %v304, %v7636
      %vm7721 = vcmp.eq.s32.totalorder %v303, %v7639
      %vm7722 = vcmp.eq.s32.totalorder %v304, %v7639
      %vm7723 = vcmp.eq.s32.totalorder %v303, %v7642
      %vm7724 = vcmp.eq.s32.totalorder %v304, %v7642
      %vm7725 = vcmp.eq.s32.totalorder %v303, %v7645
      %vm7726 = vcmp.eq.s32.totalorder %v304, %v7645
      %vm7727 = vcmp.eq.s32.totalorder %v303, %v7648
      %vm7728 = vcmp.eq.s32.totalorder %v304, %v7648
      %vm7729 = vcmp.eq.s32.totalorder %v303, %v7651
      %vm7730 = vcmp.eq.s32.totalorder %v304, %v7651
      %vm7731 = vcmp.eq.s32.totalorder %v303, %v7654
      %vm7732 = vcmp.eq.s32.totalorder %v304, %v7654
      %vm7733 = vcmp.eq.s32.totalorder %v303, %v7657
      %vm7734 = vcmp.eq.s32.totalorder %v304, %v7657
      %vm7735 = vcmp.eq.s32.totalorder %v303, %v7660
      %vm7736 = vcmp.eq.s32.totalorder %v304, %v7660
      %vm7737 = vcmp.eq.s32.totalorder %v303, %v7663
      %vm7738 = vcmp.eq.s32.totalorder %v304, %v7663
      %vm7739 = vcmp.eq.s32.totalorder %v303, %v7666
      %vm7740 = vcmp.eq.s32.totalorder %v304, %v7666
      %vm7741 = vcmp.eq.s32.totalorder %v303, %v7669
      %vm7742 = vcmp.eq.s32.totalorder %v304, %v7669
      %vm7743 = vcmp.eq.s32.totalorder %v303, %v7672
      %vm7744 = vcmp.eq.s32.totalorder %v304, %v7672
      %vm7745 = vcmp.eq.s32.totalorder %v303, %v7675
      %vm7746 = vcmp.eq.s32.totalorder %v304, %v7675
      %vm7747 = vcmp.eq.s32.totalorder %v303, %v7678
      %vm7748 = vcmp.eq.s32.totalorder %v304, %v7678
      %vm7749 = vcmp.eq.s32.totalorder %v303, %v7681
      %vm7750 = vcmp.eq.s32.totalorder %v304, %v7681
      %vm7751 = vcmp.eq.s32.totalorder %v303, %v7684
      %vm7752 = vcmp.eq.s32.totalorder %v304, %v7684
      %vm7753 = vcmp.eq.s32.totalorder %v303, %v7687
      %vm7754 = vcmp.eq.s32.totalorder %v304, %v7687
      %vm7755 = vcmp.eq.s32.totalorder %v303, %v7690
      %vm7756 = vcmp.eq.s32.totalorder %v304, %v7690
      %vm7757 = vcmp.eq.s32.totalorder %v303, %v7693
      %vm7758 = vcmp.eq.s32.totalorder %v304, %v7693
      %vm7759 = vcmp.eq.s32.totalorder %v303, %v7696
      %vm7760 = vcmp.eq.s32.totalorder %v304, %v7696
      %v7761 = vsel %vm7697, 1, 0
      %v7762 = vsel %vm7698, 1, 0
      %v7763 = vsel %vm7699, 1, 0
      %v7764 = vsel %vm7700, 1, 0
      %v7765 = vsel %vm7701, 1, 0
      %v7766 = vsel %vm7702, 1, 0
      %v7767 = vsel %vm7703, 1, 0
      %v7768 = vsel %vm7704, 1, 0
      %v7769 = vsel %vm7705, 1, 0
      %v7770 = vsel %vm7706, 1, 0
      %v7771 = vsel %vm7707, 1, 0
      %v7772 = vsel %vm7708, 1, 0
      %v7773 = vsel %vm7709, 1, 0
      %v7774 = vsel %vm7710, 1, 0
      %v7775 = vsel %vm7711, 1, 0
      %v7776 = vsel %vm7712, 1, 0
      %v7777 = vsel %vm7713, 1, 0
      %v7778 = vsel %vm7714, 1, 0
      %v7779 = vsel %vm7715, 1, 0
      %v7780 = vsel %vm7716, 1, 0
      %v7781 = vsel %vm7717, 1, 0
      %v7782 = vsel %vm7718, 1, 0
      %v7783 = vsel %vm7719, 1, 0
      %v7784 = vsel %vm7720, 1, 0
      %v7785 = vsel %vm7721, 1, 0
      %v7786 = vsel %vm7722, 1, 0
      %v7787 = vsel %vm7723, 1, 0
      %v7788 = vsel %vm7724, 1, 0
      %v7789 = vsel %vm7725, 1, 0
      %v7790 = vsel %vm7726, 1, 0
      %v7791 = vsel %vm7727, 1, 0
      %v7792 = vsel %vm7728, 1, 0
      %v7793 = vsel %vm7729, 1, 0
      %v7794 = vsel %vm7730, 1, 0
      %v7795 = vsel %vm7731, 1, 0
      %v7796 = vsel %vm7732, 1, 0
      %v7797 = vsel %vm7733, 1, 0
      %v7798 = vsel %vm7734, 1, 0
      %v7799 = vsel %vm7735, 1, 0
      %v7800 = vsel %vm7736, 1, 0
      %v7801 = vsel %vm7737, 1, 0
      %v7802 = vsel %vm7738, 1, 0
      %v7803 = vsel %vm7739, 1, 0
      %v7804 = vsel %vm7740, 1, 0
      %v7805 = vsel %vm7741, 1, 0
      %v7806 = vsel %vm7742, 1, 0
      %v7807 = vsel %vm7743, 1, 0
      %v7808 = vsel %vm7744, 1, 0
      %v7809 = vsel %vm7745, 1, 0
      %v7810 = vsel %vm7746, 1, 0
      %v7811 = vsel %vm7747, 1, 0
      %v7812 = vsel %vm7748, 1, 0
      %v7813 = vsel %vm7749, 1, 0
      %v7814 = vsel %vm7750, 1, 0
      %v7815 = vsel %vm7751, 1, 0
      %v7816 = vsel %vm7752, 1, 0
      %v7817 = vsel %vm7753, 1, 0
      %v7818 = vsel %vm7754, 1, 0
      %v7819 = vsel %vm7755, 1, 0
      %v7820 = vsel %vm7756, 1, 0
      %v7821 = vsel %vm7757, 1, 0
      %v7822 = vsel %vm7758, 1, 0
      %v7823 = vsel %vm7759, 1, 0
      %v7824 = vsel %vm7760, 1, 0
      %v7825 = vcvt.s32.f32 %v7761
      %v7826 = vcvt.s32.f32 %v7762
      %v7827 = vcvt.s32.f32 %v7763
      %v7828 = vcvt.s32.f32 %v7764
      %v7829 = vcvt.s32.f32 %v7765
      %v7830 = vcvt.s32.f32 %v7766
      %v7831 = vcvt.s32.f32 %v7767
      %v7832 = vcvt.s32.f32 %v7768
      %v7833 = vcvt.s32.f32 %v7769
      %v7834 = vcvt.s32.f32 %v7770
      %v7835 = vcvt.s32.f32 %v7771
      %v7836 = vcvt.s32.f32 %v7772
      %v7837 = vcvt.s32.f32 %v7773
      %v7838 = vcvt.s32.f32 %v7774
      %v7839 = vcvt.s32.f32 %v7775
      %v7840 = vcvt.s32.f32 %v7776
      %v7841 = vcvt.s32.f32 %v7777
      %v7842 = vcvt.s32.f32 %v7778
      %v7843 = vcvt.s32.f32 %v7779
      %v7844 = vcvt.s32.f32 %v7780
      %v7845 = vcvt.s32.f32 %v7781
      %v7846 = vcvt.s32.f32 %v7782
      %v7847 = vcvt.s32.f32 %v7783
      %v7848 = vcvt.s32.f32 %v7784
      %v7849 = vcvt.s32.f32 %v7785
      %v7850 = vcvt.s32.f32 %v7786
      %v7851 = vcvt.s32.f32 %v7787
      %v7852 = vcvt.s32.f32 %v7788
      %v7853 = vcvt.s32.f32 %v7789
      %v7854 = vcvt.s32.f32 %v7790
      %v7855 = vcvt.s32.f32 %v7791
      %v7856 = vcvt.s32.f32 %v7792
      %v7857 = vcvt.s32.f32 %v7793
      %v7858 = vcvt.s32.f32 %v7794
      %v7859 = vcvt.s32.f32 %v7795
      %v7860 = vcvt.s32.f32 %v7796
      %v7861 = vcvt.s32.f32 %v7797
      %v7862 = vcvt.s32.f32 %v7798
      %v7863 = vcvt.s32.f32 %v7799
      %v7864 = vcvt.s32.f32 %v7800
      %v7865 = vcvt.s32.f32 %v7801
      %v7866 = vcvt.s32.f32 %v7802
      %v7867 = vcvt.s32.f32 %v7803
      %v7868 = vcvt.s32.f32 %v7804
      %v7869 = vcvt.s32.f32 %v7805
      %v7870 = vcvt.s32.f32 %v7806
      %v7871 = vcvt.s32.f32 %v7807
      %v7872 = vcvt.s32.f32 %v7808
      %v7873 = vcvt.s32.f32 %v7809
      %v7874 = vcvt.s32.f32 %v7810
      %v7875 = vcvt.s32.f32 %v7811
      %v7876 = vcvt.s32.f32 %v7812
      %v7877 = vcvt.s32.f32 %v7813
      %v7878 = vcvt.s32.f32 %v7814
      %v7879 = vcvt.s32.f32 %v7815
      %v7880 = vcvt.s32.f32 %v7816
      %v7881 = vcvt.s32.f32 %v7817
      %v7882 = vcvt.s32.f32 %v7818
      %v7883 = vcvt.s32.f32 %v7819
      %v7884 = vcvt.s32.f32 %v7820
      %v7885 = vcvt.s32.f32 %v7821
      %v7886 = vcvt.s32.f32 %v7822
      %v7887 = vcvt.s32.f32 %v7823
      %v7888 = vcvt.s32.f32 %v7824
      %7889 = vset.pattern.permute.xlu0 2
      %7890 = vperm.xlu0 %7889, %v3953
      %v7891 = vpop.permute.xlu0 %7890
      %7893 = vset.pattern.permute.xlu0 2
      %7894 = vperm.xlu0 %7893, %v3954
      %v7895 = vpop.permute.xlu0 %7894
      %7897 = vset.pattern.permute.xlu0 2
      %7898 = vperm.xlu0 %7897, %v3955
      %v7899 = vpop.permute.xlu0 %7898
      %7901 = vset.pattern.permute.xlu0 2
      %7902 = vperm.xlu0 %7901, %v3956
      %v7903 = vpop.permute.xlu0 %7902
      %7905 = vset.pattern.permute.xlu0 2
      %7906 = vperm.xlu0 %7905, %v3957
      %v7907 = vpop.permute.xlu0 %7906
      %7909 = vset.pattern.permute.xlu0 2
      %7910 = vperm.xlu0 %7909, %v3958
      %v7911 = vpop.permute.xlu0 %7910
      %7913 = vset.pattern.permute.xlu0 2
      %7914 = vperm.xlu0 %7913, %v3959
      %v7915 = vpop.permute.xlu0 %7914
      %7917 = vset.pattern.permute.xlu0 2
      %7918 = vperm.xlu0 %7917, %v3960
      %v7919 = vpop.permute.xlu0 %7918
      %7921 = vset.pattern.permute.xlu0 2
      %7922 = vperm.xlu0 %7921, %v3961
      %v7923 = vpop.permute.xlu0 %7922
      %7925 = vset.pattern.permute.xlu0 2
      %7926 = vperm.xlu0 %7925, %v3962
      %v7927 = vpop.permute.xlu0 %7926
      %7929 = vset.pattern.permute.xlu0 2
      %7930 = vperm.xlu0 %7929, %v3963
      %v7931 = vpop.permute.xlu0 %7930
      %7933 = vset.pattern.permute.xlu0 2
      %7934 = vperm.xlu0 %7933, %v3964
      %v7935 = vpop.permute.xlu0 %7934
      %7937 = vset.pattern.permute.xlu0 2
      %7938 = vperm.xlu0 %7937, %v3965
      %v7939 = vpop.permute.xlu0 %7938
      %7941 = vset.pattern.permute.xlu0 2
      %7942 = vperm.xlu0 %7941, %v3966
      %v7943 = vpop.permute.xlu0 %7942
      %7945 = vset.pattern.permute.xlu0 2
      %7946 = vperm.xlu0 %7945, %v3967
      %v7947 = vpop.permute.xlu0 %7946
      %7949 = vset.pattern.permute.xlu0 2
      %7950 = vperm.xlu0 %7949, %v3968
      %v7951 = vpop.permute.xlu0 %7950
      %7953 = vset.pattern.permute.xlu0 2
      %7954 = vperm.xlu0 %7953, %v3969
      %v7955 = vpop.permute.xlu0 %7954
      %7957 = vset.pattern.permute.xlu0 2
      %7958 = vperm.xlu0 %7957, %v3970
      %v7959 = vpop.permute.xlu0 %7958
      %7961 = vset.pattern.permute.xlu0 2
      %7962 = vperm.xlu0 %7961, %v3971
      %v7963 = vpop.permute.xlu0 %7962
      %7965 = vset.pattern.permute.xlu0 2
      %7966 = vperm.xlu0 %7965, %v3972
      %v7967 = vpop.permute.xlu0 %7966
      %7969 = vset.pattern.permute.xlu0 2
      %7970 = vperm.xlu0 %7969, %v3973
      %v7971 = vpop.permute.xlu0 %7970
      %7973 = vset.pattern.permute.xlu0 2
      %7974 = vperm.xlu0 %7973, %v3974
      %v7975 = vpop.permute.xlu0 %7974
      %7977 = vset.pattern.permute.xlu0 2
      %7978 = vperm.xlu0 %7977, %v3975
      %v7979 = vpop.permute.xlu0 %7978
      %7981 = vset.pattern.permute.xlu0 2
      %7982 = vperm.xlu0 %7981, %v3976
      %v7983 = vpop.permute.xlu0 %7982
      %7985 = vset.pattern.permute.xlu0 2
      %7986 = vperm.xlu0 %7985, %v3977
      %v7987 = vpop.permute.xlu0 %7986
      %7989 = vset.pattern.permute.xlu0 2
      %7990 = vperm.xlu0 %7989, %v3978
      %v7991 = vpop.permute.xlu0 %7990
      %7993 = vset.pattern.permute.xlu0 2
      %7994 = vperm.xlu0 %7993, %v3979
      %v7995 = vpop.permute.xlu0 %7994
      %7997 = vset.pattern.permute.xlu0 2
      %7998 = vperm.xlu0 %7997, %v3980
      %v7999 = vpop.permute.xlu0 %7998
      %8001 = vset.pattern.permute.xlu0 2
      %8002 = vperm.xlu0 %8001, %v3981
      %v8003 = vpop.permute.xlu0 %8002
      %8005 = vset.pattern.permute.xlu0 2
      %8006 = vperm.xlu0 %8005, %v3982
      %v8007 = vpop.permute.xlu0 %8006
      %8009 = vset.pattern.permute.xlu0 2
      %8010 = vperm.xlu0 %8009, %v3983
      %v8011 = vpop.permute.xlu0 %8010
      %8013 = vset.pattern.permute.xlu0 2
      %8014 = vperm.xlu0 %8013, %v3984
      %v8015 = vpop.permute.xlu0 %8014
      %v8017 = vmul.f32 %v7825, %v7891
      %v8018 = vmul.f32 %v7826, %v7891
      %v8019 = vmul.f32 %v7827, %v7895
      %v8020 = vmul.f32 %v7828, %v7895
      %v8021 = vmul.f32 %v7829, %v7899
      %v8022 = vmul.f32 %v7830, %v7899
      %v8023 = vmul.f32 %v7831, %v7903
      %v8024 = vmul.f32 %v7832, %v7903
      %v8025 = vmul.f32 %v7833, %v7907
      %v8026 = vmul.f32 %v7834, %v7907
      %v8027 = vmul.f32 %v7835, %v7911
      %v8028 = vmul.f32 %v7836, %v7911
      %v8029 = vmul.f32 %v7837, %v7915
      %v8030 = vmul.f32 %v7838, %v7915
      %v8031 = vmul.f32 %v7839, %v7919
      %v8032 = vmul.f32 %v7840, %v7919
      %v8033 = vmul.f32 %v7841, %v7923
      %v8034 = vmul.f32 %v7842, %v7923
      %v8035 = vmul.f32 %v7843, %v7927
      %v8036 = vmul.f32 %v7844, %v7927
      %v8037 = vmul.f32 %v7845, %v7931
      %v8038 = vmul.f32 %v7846, %v7931
      %v8039 = vmul.f32 %v7847, %v7935
      %v8040 = vmul.f32 %v7848, %v7935
      %v8041 = vmul.f32 %v7849, %v7939
      %v8042 = vmul.f32 %v7850, %v7939
      %v8043 = vmul.f32 %v7851, %v7943
      %v8044 = vmul.f32 %v7852, %v7943
      %v8045 = vmul.f32 %v7853, %v7947
      %v8046 = vmul.f32 %v7854, %v7947
      %v8047 = vmul.f32 %v7855, %v7951
      %v8048 = vmul.f32 %v7856, %v7951
      %v8049 = vmul.f32 %v7857, %v7955
      %v8050 = vmul.f32 %v7858, %v7955
      %v8051 = vmul.f32 %v7859, %v7959
      %v8052 = vmul.f32 %v7860, %v7959
      %v8053 = vmul.f32 %v7861, %v7963
      %v8054 = vmul.f32 %v7862, %v7963
      %v8055 = vmul.f32 %v7863, %v7967
      %v8056 = vmul.f32 %v7864, %v7967
      %v8057 = vmul.f32 %v7865, %v7971
      %v8058 = vmul.f32 %v7866, %v7971
      %v8059 = vmul.f32 %v7867, %v7975
      %v8060 = vmul.f32 %v7868, %v7975
      %v8061 = vmul.f32 %v7869, %v7979
      %v8062 = vmul.f32 %v7870, %v7979
      %v8063 = vmul.f32 %v7871, %v7983
      %v8064 = vmul.f32 %v7872, %v7983
      %v8065 = vmul.f32 %v7873, %v7987
      %v8066 = vmul.f32 %v7874, %v7987
      %v8067 = vmul.f32 %v7875, %v7991
      %v8068 = vmul.f32 %v7876, %v7991
      %v8069 = vmul.f32 %v7877, %v7995
      %v8070 = vmul.f32 %v7878, %v7995
      %v8071 = vmul.f32 %v7879, %v7999
      %v8072 = vmul.f32 %v7880, %v7999
      %v8073 = vmul.f32 %v7881, %v8003
      %v8074 = vmul.f32 %v7882, %v8003
      %v8075 = vmul.f32 %v7883, %v8007
      %v8076 = vmul.f32 %v7884, %v8007
      %v8077 = vmul.f32 %v7885, %v8011
      %v8078 = vmul.f32 %v7886, %v8011
      %v8079 = vmul.f32 %v7887, %v8015
      %v8080 = vmul.f32 %v7888, %v8015
      %v8081 = vadd.f32 %v7345, %v8017
      %v8082 = vadd.f32 %v7346, %v8018
      %v8083 = vadd.f32 %v7347, %v8019
      %v8084 = vadd.f32 %v7348, %v8020
      %v8085 = vadd.f32 %v7349, %v8021
      %v8086 = vadd.f32 %v7350, %v8022
      %v8087 = vadd.f32 %v7351, %v8023
      %v8088 = vadd.f32 %v7352, %v8024
      %v8089 = vadd.f32 %v7353, %v8025
      %v8090 = vadd.f32 %v7354, %v8026
      %v8091 = vadd.f32 %v7355, %v8027
      %v8092 = vadd.f32 %v7356, %v8028
      %v8093 = vadd.f32 %v7357, %v8029
      %v8094 = vadd.f32 %v7358, %v8030
      %v8095 = vadd.f32 %v7359, %v8031
      %v8096 = vadd.f32 %v7360, %v8032
      %v8097 = vadd.f32 %v7361, %v8033
      %v8098 = vadd.f32 %v7362, %v8034
      %v8099 = vadd.f32 %v7363, %v8035
      %v8100 = vadd.f32 %v7364, %v8036
      %v8101 = vadd.f32 %v7365, %v8037
      %v8102 = vadd.f32 %v7366, %v8038
      %v8103 = vadd.f32 %v7367, %v8039
      %v8104 = vadd.f32 %v7368, %v8040
      %v8105 = vadd.f32 %v7369, %v8041
      %v8106 = vadd.f32 %v7370, %v8042
      %v8107 = vadd.f32 %v7371, %v8043
      %v8108 = vadd.f32 %v7372, %v8044
      %v8109 = vadd.f32 %v7373, %v8045
      %v8110 = vadd.f32 %v7374, %v8046
      %v8111 = vadd.f32 %v7375, %v8047
      %v8112 = vadd.f32 %v7376, %v8048
      %v8113 = vadd.f32 %v7377, %v8049
      %v8114 = vadd.f32 %v7378, %v8050
      %v8115 = vadd.f32 %v7379, %v8051
      %v8116 = vadd.f32 %v7380, %v8052
      %v8117 = vadd.f32 %v7381, %v8053
      %v8118 = vadd.f32 %v7382, %v8054
      %v8119 = vadd.f32 %v7383, %v8055
      %v8120 = vadd.f32 %v7384, %v8056
      %v8121 = vadd.f32 %v7385, %v8057
      %v8122 = vadd.f32 %v7386, %v8058
      %v8123 = vadd.f32 %v7387, %v8059
      %v8124 = vadd.f32 %v7388, %v8060
      %v8125 = vadd.f32 %v7389, %v8061
      %v8126 = vadd.f32 %v7390, %v8062
      %v8127 = vadd.f32 %v7391, %v8063
      %v8128 = vadd.f32 %v7392, %v8064
      %v8129 = vadd.f32 %v7393, %v8065
      %v8130 = vadd.f32 %v7394, %v8066
      %v8131 = vadd.f32 %v7395, %v8067
      %v8132 = vadd.f32 %v7396, %v8068
      %v8133 = vadd.f32 %v7397, %v8069
      %v8134 = vadd.f32 %v7398, %v8070
      %v8135 = vadd.f32 %v7399, %v8071
      %v8136 = vadd.f32 %v7400, %v8072
      %v8137 = vadd.f32 %v7401, %v8073
      %v8138 = vadd.f32 %v7402, %v8074
      %v8139 = vadd.f32 %v7403, %v8075
      %v8140 = vadd.f32 %v7404, %v8076
      %v8141 = vadd.f32 %v7405, %v8077
      %v8142 = vadd.f32 %v7406, %v8078
      %v8143 = vadd.f32 %v7407, %v8079
      %v8144 = vadd.f32 %v7408, %v8080
      %v8145 = vld [vmem:[%s3] sm:$0xff]
      %v8146 = vld [vmem:[%s3 + $0x8] sm:$0xff]
      %v8147 = vld [vmem:[%s3 + $0x10] sm:$0xff]
      %v8148 = vld [vmem:[%s3 + $0x18] sm:$0xff]
      %v8149 = vld [vmem:[%s3 + $0x20] sm:$0x1]
      %v8150 = vld [vmem:[%s3 + $0x28] sm:$0xff]
      %v8151 = vld [vmem:[%s3 + $0x30] sm:$0xff]
      %v8152 = vld [vmem:[%s3 + $0x38] sm:$0xff]
      %v8153 = vld [vmem:[%s3 + $0x40] sm:$0xff]
      %v8154 = vld [vmem:[%s3 + $0x48] sm:$0xff]
      %v8155 = vld [vmem:[%s3 + $0x50] sm:$0xff]
      %v8156 = vld [vmem:[%s3 + $0x58] sm:$0xff]
      %v8157 = vld [vmem:[%s3 + $0x60] sm:$0xff]
      %v8158 = vld [vmem:[%s3 + $0x68] sm:$0xff]
      %v8159 = vld [vmem:[%s3 + $0x70] sm:$0xff]
      %v8160 = vld [vmem:[%s3 + $0x78] sm:$0xff]
      %v8161 = vld [vmem:[%s3 + $0x80] sm:$0xff]
      %v8162 = vld [vmem:[%s3 + $0x88] sm:$0xff]
      %v8163 = vld [vmem:[%s3 + $0x90] sm:$0xff]
      %v8164 = vld [vmem:[%s3 + $0x98] sm:$0xff]
      %v8165 = vld [vmem:[%s3 + $0xa0] sm:$0xff]
      %v8166 = vld [vmem:[%s3 + $0xa8] sm:$0x1]
      %v8167 = vld [vmem:[%s232] sm:$0xff]
      %v8168 = vld [vmem:[%s232 + $0x8] sm:$0xff]
      %v8169 = vld [vmem:[%s232 + $0x10] sm:$0xff]
      %v8170 = vld [vmem:[%s232 + $0x18] sm:$0xff]
      %v8171 = vld [vmem:[%s232 + $0x20] sm:$0xff]
      %v8172 = vld [vmem:[%s232 + $0x28] sm:$0xff]
      %v8173 = vld [vmem:[%s232 + $0x30] sm:$0xff]
      %v8174 = vld [vmem:[%s232 + $0x38] sm:$0xff]
      %v8175 = vld [vmem:[%s232 + $0x40] sm:$0xff]
      %v8176 = vld [vmem:[%s232 + $0x48] sm:$0xff]
      %v8177 = vld [vmem:[%s232 + $0x50] sm:$0xff]
      %v8178 = vld [vmem:[%s232 + $0x58] sm:$0xff]
      %v8179 = vld [vmem:[%s232 + $0x60] sm:$0xff]
      %v8180 = vld [vmem:[%s232 + $0x68] sm:$0xff]
      %v8181 = vld [vmem:[%s232 + $0x70] sm:$0xff]
      %v8182 = vld [vmem:[%s232 + $0x78] sm:$0xff]
      %v8183 = vld [vmem:[%s232 + $0x80] sm:$0xff]
      %v8184 = vld [vmem:[%s232 + $0x88] sm:$0xff]
      %v8185 = vld [vmem:[%s232 + $0x90] sm:$0xff]
      %v8186 = vld [vmem:[%s232 + $0x98] sm:$0xff]
      %v8187 = vld [vmem:[%s232 + $0xa0] sm:$0xff]
      %v8188 = vld [vmem:[%s232 + $0xa8] sm:$0xff]
      %v8189 = vld [vmem:[%s232 + $0xb0] sm:$0xff]
      %v8190 = vld [vmem:[%s232 + $0xb8] sm:$0xff]
      %v8191 = vld [vmem:[%s232 + $0xc0] sm:$0xff]
      %v8192 = vld [vmem:[%s232 + $0xc8] sm:$0xff]
      %v8193 = vld [vmem:[%s232 + $0xd0] sm:$0xff]
      %v8194 = vld [vmem:[%s232 + $0xd8] sm:$0xff]
      %v8195 = vld [vmem:[%s232 + $0xe0] sm:$0xff]
      %v8196 = vld [vmem:[%s232 + $0xe8] sm:$0xff]
      %v8197 = vld [vmem:[%s232 + $0xf0] sm:$0xff]
      %v8198 = vld [vmem:[%s232 + $0xf8] sm:$0xff]
      %8199 = vmatpush.msra.mxu0 %v8182
      %8200 = vmatpush.msra.mxu0 %v8181
      %8201 = vmatpush.msra.mxu0 %v8180
      %8202 = vmatpush.msra.mxu0 %v8179
      %8203 = vmatpush.msra.mxu0 %v8178
      %8204 = vmatpush.msra.mxu0 %v8177
      %8205 = vmatpush.msra.mxu0 %v8176
      %8206 = vmatpush.msra.mxu0 %v8175
      %8207 = vmatpush.msra.mxu0 %v8174
      %8208 = vmatpush.msra.mxu0 %v8173
      %8209 = vmatpush.msra.mxu0 %v8172
      %8210 = vmatpush.msra.mxu0 %v8171
      %8211 = vmatpush.msra.mxu0 %v8170
      %8212 = vmatpush.msra.mxu0 %v8169
      %8213 = vmatpush.msra.mxu0 %v8168
      %8214 = vmatpush.msra.mxu0 %v8167
      %8215 = vmatmul.f32.gmra.mxu0 %v4689
      %v8216 = vpop.f32.mrf.mxu0
      %v8217 = vadd.f32 0.0, %v8216
      %8218 = vmatmul.f32.gmra.mxu0 %v4691
      %v8219 = vpop.f32.mrf.mxu0
      %v8220 = vadd.f32 0.0, %v8219
      %8221 = vmatmul.f32.gmra.mxu0 %v4693
      %v8222 = vpop.f32.mrf.mxu0
      %v8223 = vadd.f32 0.0, %v8222
      %8224 = vmatmul.f32.gmra.mxu0 %v4695
      %v8225 = vpop.f32.mrf.mxu0
      %v8226 = vadd.f32 0.0, %v8225
      %8227 = vmatmul.f32.gmra.mxu0 %v4697
      %v8228 = vpop.f32.mrf.mxu0
      %v8229 = vadd.f32 0.0, %v8228
      %8230 = vmatmul.f32.gmra.mxu0 %v4699
      %v8231 = vpop.f32.mrf.mxu0
      %v8232 = vadd.f32 0.0, %v8231
      %8233 = vmatmul.f32.gmra.mxu0 %v4701
      %v8234 = vpop.f32.mrf.mxu0
      %v8235 = vadd.f32 0.0, %v8234
      %8236 = vmatmul.f32.gmra.mxu0 %v4703
      %v8237 = vpop.f32.mrf.mxu0
      %v8238 = vadd.f32 0.0, %v8237
      %8239 = vmatmul.f32.gmra.mxu0 %v4705
      %v8240 = vpop.f32.mrf.mxu0
      %v8241 = vadd.f32 0.0, %v8240
      %8242 = vmatmul.f32.gmra.mxu0 %v4707
      %v8243 = vpop.f32.mrf.mxu0
      %v8244 = vadd.f32 0.0, %v8243
      %8245 = vmatmul.f32.gmra.mxu0 %v4709
      %v8246 = vpop.f32.mrf.mxu0
      %v8247 = vadd.f32 0.0, %v8246
      %8248 = vmatmul.f32.gmra.mxu0 %v4711
      %v8249 = vpop.f32.mrf.mxu0
      %v8250 = vadd.f32 0.0, %v8249
      %8251 = vmatmul.f32.gmra.mxu0 %v4713
      %v8252 = vpop.f32.mrf.mxu0
      %v8253 = vadd.f32 0.0, %v8252
      %8254 = vmatmul.f32.gmra.mxu0 %v4715
      %v8255 = vpop.f32.mrf.mxu0
      %v8256 = vadd.f32 0.0, %v8255
      %8257 = vmatmul.f32.gmra.mxu0 %v4717
      %v8258 = vpop.f32.mrf.mxu0
      %v8259 = vadd.f32 0.0, %v8258
      %8260 = vmatmul.f32.gmra.mxu0 %v4719
      %v8261 = vpop.f32.mrf.mxu0
      %v8262 = vadd.f32 0.0, %v8261
      %8263 = vmatmul.f32.gmra.mxu0 %v4721
      %v8264 = vpop.f32.mrf.mxu0
      %v8265 = vadd.f32 0.0, %v8264
      %8266 = vmatmul.f32.gmra.mxu0 %v4723
      %v8267 = vpop.f32.mrf.mxu0
      %v8268 = vadd.f32 0.0, %v8267
      %8269 = vmatmul.f32.gmra.mxu0 %v4725
      %v8270 = vpop.f32.mrf.mxu0
      %v8271 = vadd.f32 0.0, %v8270
      %8272 = vmatmul.f32.gmra.mxu0 %v4727
      %v8273 = vpop.f32.mrf.mxu0
      %v8274 = vadd.f32 0.0, %v8273
      %8275 = vmatmul.f32.gmra.mxu0 %v4729
      %v8276 = vpop.f32.mrf.mxu0
      %v8277 = vadd.f32 0.0, %v8276
      %8278 = vmatmul.f32.gmra.mxu0 %v4731
      %v8279 = vpop.f32.mrf.mxu0
      %v8280 = vadd.f32 0.0, %v8279
      %8281 = vmatmul.f32.gmra.mxu0 %v4733
      %v8282 = vpop.f32.mrf.mxu0
      %v8283 = vadd.f32 0.0, %v8282
      %8284 = vmatmul.f32.gmra.mxu0 %v4735
      %v8285 = vpop.f32.mrf.mxu0
      %v8286 = vadd.f32 0.0, %v8285
      %8287 = vmatmul.f32.gmra.mxu0 %v4737
      %v8288 = vpop.f32.mrf.mxu0
      %v8289 = vadd.f32 0.0, %v8288
      %8290 = vmatmul.f32.gmra.mxu0 %v4739
      %v8291 = vpop.f32.mrf.mxu0
      %v8292 = vadd.f32 0.0, %v8291
      %8293 = vmatmul.f32.gmra.mxu0 %v4741
      %v8294 = vpop.f32.mrf.mxu0
      %v8295 = vadd.f32 0.0, %v8294
      %8296 = vmatmul.f32.gmra.mxu0 %v4743
      %v8297 = vpop.f32.mrf.mxu0
      %v8298 = vadd.f32 0.0, %v8297
      %8299 = vmatmul.f32.gmra.mxu0 %v4745
      %v8300 = vpop.f32.mrf.mxu0
      %v8301 = vadd.f32 0.0, %v8300
      %8302 = vmatmul.f32.gmra.mxu0 %v4747
      %v8303 = vpop.f32.mrf.mxu0
      %v8304 = vadd.f32 0.0, %v8303
      %8305 = vmatmul.f32.gmra.mxu0 %v4749
      %v8306 = vpop.f32.mrf.mxu0
      %v8307 = vadd.f32 0.0, %v8306
      %8308 = vmatmul.f32.gmra.mxu0 %v4751
      %v8309 = vpop.f32.mrf.mxu0
      %v8310 = vadd.f32 0.0, %v8309
      %8311 = vdwg.mxu0
      %8312 = vmatpush.msra.mxu0 %v8198
      %8313 = vmatpush.msra.mxu0 %v8197
      %8314 = vmatpush.msra.mxu0 %v8196
      %8315 = vmatpush.msra.mxu0 %v8195
      %8316 = vmatpush.msra.mxu0 %v8194
      %8317 = vmatpush.msra.mxu0 %v8193
      %8318 = vmatpush.msra.mxu0 %v8192
      %8319 = vmatpush.msra.mxu0 %v8191
      %8320 = vmatpush.msra.mxu0 %v8190
      %8321 = vmatpush.msra.mxu0 %v8189
      %8322 = vmatpush.msra.mxu0 %v8188
      %8323 = vmatpush.msra.mxu0 %v8187
      %8324 = vmatpush.msra.mxu0 %v8186
      %8325 = vmatpush.msra.mxu0 %v8185
      %8326 = vmatpush.msra.mxu0 %v8184
      %8327 = vmatpush.msra.mxu0 %v8183
      %8328 = vmatmul.f32.gmra.mxu0 %v4690
      %v8329 = vpop.f32.mrf.mxu0
      %v8330 = vadd.f32 %v8217, %v8329
      %8331 = vmatmul.f32.gmra.mxu0 %v4692
      %v8332 = vpop.f32.mrf.mxu0
      %v8333 = vadd.f32 %v8220, %v8332
      %8334 = vmatmul.f32.gmra.mxu0 %v4694
      %v8335 = vpop.f32.mrf.mxu0
      %v8336 = vadd.f32 %v8223, %v8335
      %8337 = vmatmul.f32.gmra.mxu0 %v4696
      %v8338 = vpop.f32.mrf.mxu0
      %v8339 = vadd.f32 %v8226, %v8338
      %8340 = vmatmul.f32.gmra.mxu0 %v4698
      %v8341 = vpop.f32.mrf.mxu0
      %v8342 = vadd.f32 %v8229, %v8341
      %8343 = vmatmul.f32.gmra.mxu0 %v4700
      %v8344 = vpop.f32.mrf.mxu0
      %v8345 = vadd.f32 %v8232, %v8344
      %8346 = vmatmul.f32.gmra.mxu0 %v4702
      %v8347 = vpop.f32.mrf.mxu0
      %v8348 = vadd.f32 %v8235, %v8347
      %8349 = vmatmul.f32.gmra.mxu0 %v4704
      %v8350 = vpop.f32.mrf.mxu0
      %v8351 = vadd.f32 %v8238, %v8350
      %8352 = vmatmul.f32.gmra.mxu0 %v4706
      %v8353 = vpop.f32.mrf.mxu0
      %v8354 = vadd.f32 %v8241, %v8353
      %8355 = vmatmul.f32.gmra.mxu0 %v4708
      %v8356 = vpop.f32.mrf.mxu0
      %v8357 = vadd.f32 %v8244, %v8356
      %8358 = vmatmul.f32.gmra.mxu0 %v4710
      %v8359 = vpop.f32.mrf.mxu0
      %v8360 = vadd.f32 %v8247, %v8359
      %8361 = vmatmul.f32.gmra.mxu0 %v4712
      %v8362 = vpop.f32.mrf.mxu0
      %v8363 = vadd.f32 %v8250, %v8362
      %8364 = vmatmul.f32.gmra.mxu0 %v4714
      %v8365 = vpop.f32.mrf.mxu0
      %v8366 = vadd.f32 %v8253, %v8365
      %8367 = vmatmul.f32.gmra.mxu0 %v4716
      %v8368 = vpop.f32.mrf.mxu0
      %v8369 = vadd.f32 %v8256, %v8368
      %8370 = vmatmul.f32.gmra.mxu0 %v4718
      %v8371 = vpop.f32.mrf.mxu0
      %v8372 = vadd.f32 %v8259, %v8371
      %8373 = vmatmul.f32.gmra.mxu0 %v4720
      %v8374 = vpop.f32.mrf.mxu0
      %v8375 = vadd.f32 %v8262, %v8374
      %8376 = vmatmul.f32.gmra.mxu0 %v4722
      %v8377 = vpop.f32.mrf.mxu0
      %v8378 = vadd.f32 %v8265, %v8377
      %8379 = vmatmul.f32.gmra.mxu0 %v4724
      %v8380 = vpop.f32.mrf.mxu0
      %v8381 = vadd.f32 %v8268, %v8380
      %8382 = vmatmul.f32.gmra.mxu0 %v4726
      %v8383 = vpop.f32.mrf.mxu0
      %v8384 = vadd.f32 %v8271, %v8383
      %8385 = vmatmul.f32.gmra.mxu0 %v4728
      %v8386 = vpop.f32.mrf.mxu0
      %v8387 = vadd.f32 %v8274, %v8386
      %8388 = vmatmul.f32.gmra.mxu0 %v4730
      %v8389 = vpop.f32.mrf.mxu0
      %v8390 = vadd.f32 %v8277, %v8389
      %8391 = vmatmul.f32.gmra.mxu0 %v4732
      %v8392 = vpop.f32.mrf.mxu0
      %v8393 = vadd.f32 %v8280, %v8392
      %8394 = vmatmul.f32.gmra.mxu0 %v4734
      %v8395 = vpop.f32.mrf.mxu0
      %v8396 = vadd.f32 %v8283, %v8395
      %8397 = vmatmul.f32.gmra.mxu0 %v4736
      %v8398 = vpop.f32.mrf.mxu0
      %v8399 = vadd.f32 %v8286, %v8398
      %8400 = vmatmul.f32.gmra.mxu0 %v4738
      %v8401 = vpop.f32.mrf.mxu0
      %v8402 = vadd.f32 %v8289, %v8401
      %8403 = vmatmul.f32.gmra.mxu0 %v4740
      %v8404 = vpop.f32.mrf.mxu0
      %v8405 = vadd.f32 %v8292, %v8404
      %8406 = vmatmul.f32.gmra.mxu0 %v4742
      %v8407 = vpop.f32.mrf.mxu0
      %v8408 = vadd.f32 %v8295, %v8407
      %8409 = vmatmul.f32.gmra.mxu0 %v4744
      %v8410 = vpop.f32.mrf.mxu0
      %v8411 = vadd.f32 %v8298, %v8410
      %8412 = vmatmul.f32.gmra.mxu0 %v4746
      %v8413 = vpop.f32.mrf.mxu0
      %v8414 = vadd.f32 %v8301, %v8413
      %8415 = vmatmul.f32.gmra.mxu0 %v4748
      %v8416 = vpop.f32.mrf.mxu0
      %v8417 = vadd.f32 %v8304, %v8416
      %8418 = vmatmul.f32.gmra.mxu0 %v4750
      %v8419 = vpop.f32.mrf.mxu0
      %v8420 = vadd.f32 %v8307, %v8419
      %8421 = vmatmul.f32.gmra.mxu0 %v4752
      %v8422 = vpop.f32.mrf.mxu0
      %v8423 = vadd.f32 %v8310, %v8422
      %8424 = vdwg.mxu0
      %vm8425 = vcmask 261120
      %v8427 = vsel %vm8425, %v238, 0
      %v8430 = vsel %vm8425, %v239, 0
      %v8433 = vsel %vm8425, %v240, 0
      %v8436 = vsel %vm8425, %v241, 0
      %v8439 = vsel %vm8425, %v242, 0
      %v8442 = vsel %vm8425, %v243, 0
      %v8445 = vsel %vm8425, %v244, 0
      %v8448 = vsel %vm8425, %v245, 0
      %v8451 = vsel %vm8425, %v246, 0
      %v8454 = vsel %vm8425, %v247, 0
      %v8457 = vsel %vm8425, %v248, 0
      %v8460 = vsel %vm8425, %v249, 0
      %v8463 = vsel %vm8425, %v250, 0
      %v8466 = vsel %vm8425, %v251, 0
      %v8469 = vsel %vm8425, %v252, 0
      %v8472 = vsel %vm8425, %v253, 0
      %v8475 = vsel %vm8425, %v254, 0
      %v8478 = vsel %vm8425, %v255, 0
      %v8481 = vsel %vm8425, %v256, 0
      %v8484 = vsel %vm8425, %v257, 0
      %v8487 = vsel %vm8425, %v258, 0
      %v8490 = vsel %vm8425, %v259, 0
      %v8493 = vsel %vm8425, %v260, 0
      %v8496 = vsel %vm8425, %v261, 0
      %v8499 = vsel %vm8425, %v262, 0
      %v8502 = vsel %vm8425, %v263, 0
      %v8505 = vsel %vm8425, %v264, 0
      %v8508 = vsel %vm8425, %v265, 0
      %v8511 = vsel %vm8425, %v266, 0
      %v8514 = vsel %vm8425, %v267, 0
      %v8517 = vsel %vm8425, %v268, 0
      %v8520 = vsel %vm8425, %v269, 0
      %8522 = vmatpush.msra.mxu0 0.0
      %8523 = vmatpush.msra.mxu0 0.0
      %8524 = vmatpush.msra.mxu0 0.0
      %8525 = vmatpush.msra.mxu0 0.0
      %8526 = vmatpush.msra.mxu0 0.0
      %8527 = vmatpush.msra.mxu0 0.0
      %8528 = vmatpush.msra.mxu0 0.0
      %8529 = vmatpush.msra.mxu0 0.0
      %8530 = vmatpush.msra.mxu0 0.0
      %8531 = vmatpush.msra.mxu0 0.0
      %8532 = vmatpush.msra.mxu0 0.0
      %8533 = vmatpush.msra.mxu0 0.0
      %8534 = vmatpush.msra.mxu0 %v8148
      %8535 = vmatpush.msra.mxu0 %v8147
      %8536 = vmatpush.msra.mxu0 %v8146
      %8537 = vmatpush.msra.mxu0 %v8145
      %8538 = vmatmul.f32.gmra.mxu0 %v8427
      %v8539 = vpop.f32.mrf.mxu0
      %v8540 = vadd.f32 %v8330, %v8539
      %8541 = vmatmul.f32.gmra.mxu0 %v8430
      %v8542 = vpop.f32.mrf.mxu0
      %v8543 = vadd.f32 %v8333, %v8542
      %8544 = vmatmul.f32.gmra.mxu0 %v8433
      %v8545 = vpop.f32.mrf.mxu0
      %v8546 = vadd.f32 %v8336, %v8545
      %8547 = vmatmul.f32.gmra.mxu0 %v8436
      %v8548 = vpop.f32.mrf.mxu0
      %v8549 = vadd.f32 %v8339, %v8548
      %8550 = vmatmul.f32.gmra.mxu0 %v8439
      %v8551 = vpop.f32.mrf.mxu0
      %v8552 = vadd.f32 %v8342, %v8551
      %8553 = vmatmul.f32.gmra.mxu0 %v8442
      %v8554 = vpop.f32.mrf.mxu0
      %v8555 = vadd.f32 %v8345, %v8554
      %8556 = vmatmul.f32.gmra.mxu0 %v8445
      %v8557 = vpop.f32.mrf.mxu0
      %v8558 = vadd.f32 %v8348, %v8557
      %8559 = vmatmul.f32.gmra.mxu0 %v8448
      %v8560 = vpop.f32.mrf.mxu0
      %v8561 = vadd.f32 %v8351, %v8560
      %8562 = vmatmul.f32.gmra.mxu0 %v8451
      %v8563 = vpop.f32.mrf.mxu0
      %v8564 = vadd.f32 %v8354, %v8563
      %8565 = vmatmul.f32.gmra.mxu0 %v8454
      %v8566 = vpop.f32.mrf.mxu0
      %v8567 = vadd.f32 %v8357, %v8566
      %8568 = vmatmul.f32.gmra.mxu0 %v8457
      %v8569 = vpop.f32.mrf.mxu0
      %v8570 = vadd.f32 %v8360, %v8569
      %8571 = vmatmul.f32.gmra.mxu0 %v8460
      %v8572 = vpop.f32.mrf.mxu0
      %v8573 = vadd.f32 %v8363, %v8572
      %8574 = vmatmul.f32.gmra.mxu0 %v8463
      %v8575 = vpop.f32.mrf.mxu0
      %v8576 = vadd.f32 %v8366, %v8575
      %8577 = vmatmul.f32.gmra.mxu0 %v8466
      %v8578 = vpop.f32.mrf.mxu0
      %v8579 = vadd.f32 %v8369, %v8578
      %8580 = vmatmul.f32.gmra.mxu0 %v8469
      %v8581 = vpop.f32.mrf.mxu0
      %v8582 = vadd.f32 %v8372, %v8581
      %8583 = vmatmul.f32.gmra.mxu0 %v8472
      %v8584 = vpop.f32.mrf.mxu0
      %v8585 = vadd.f32 %v8375, %v8584
      %8586 = vmatmul.f32.gmra.mxu0 %v8475
      %v8587 = vpop.f32.mrf.mxu0
      %v8588 = vadd.f32 %v8378, %v8587
      %8589 = vmatmul.f32.gmra.mxu0 %v8478
      %v8590 = vpop.f32.mrf.mxu0
      %v8591 = vadd.f32 %v8381, %v8590
      %8592 = vmatmul.f32.gmra.mxu0 %v8481
      %v8593 = vpop.f32.mrf.mxu0
      %v8594 = vadd.f32 %v8384, %v8593
      %8595 = vmatmul.f32.gmra.mxu0 %v8484
      %v8596 = vpop.f32.mrf.mxu0
      %v8597 = vadd.f32 %v8387, %v8596
      %8598 = vmatmul.f32.gmra.mxu0 %v8487
      %v8599 = vpop.f32.mrf.mxu0
      %v8600 = vadd.f32 %v8390, %v8599
      %8601 = vmatmul.f32.gmra.mxu0 %v8490
      %v8602 = vpop.f32.mrf.mxu0
      %v8603 = vadd.f32 %v8393, %v8602
      %8604 = vmatmul.f32.gmra.mxu0 %v8493
      %v8605 = vpop.f32.mrf.mxu0
      %v8606 = vadd.f32 %v8396, %v8605
      %8607 = vmatmul.f32.gmra.mxu0 %v8496
      %v8608 = vpop.f32.mrf.mxu0
      %v8609 = vadd.f32 %v8399, %v8608
      %8610 = vmatmul.f32.gmra.mxu0 %v8499
      %v8611 = vpop.f32.mrf.mxu0
      %v8612 = vadd.f32 %v8402, %v8611
      %8613 = vmatmul.f32.gmra.mxu0 %v8502
      %v8614 = vpop.f32.mrf.mxu0
      %v8615 = vadd.f32 %v8405, %v8614
      %8616 = vmatmul.f32.gmra.mxu0 %v8505
      %v8617 = vpop.f32.mrf.mxu0
      %v8618 = vadd.f32 %v8408, %v8617
      %8619 = vmatmul.f32.gmra.mxu0 %v8508
      %v8620 = vpop.f32.mrf.mxu0
      %v8621 = vadd.f32 %v8411, %v8620
      %8622 = vmatmul.f32.gmra.mxu0 %v8511
      %v8623 = vpop.f32.mrf.mxu0
      %v8624 = vadd.f32 %v8414, %v8623
      %8625 = vmatmul.f32.gmra.mxu0 %v8514
      %v8626 = vpop.f32.mrf.mxu0
      %v8627 = vadd.f32 %v8417, %v8626
      %8628 = vmatmul.f32.gmra.mxu0 %v8517
      %v8629 = vpop.f32.mrf.mxu0
      %v8630 = vadd.f32 %v8420, %v8629
      %8631 = vmatmul.f32.gmra.mxu0 %v8520
      %v8632 = vpop.f32.mrf.mxu0
      %v8633 = vadd.f32 %v8423, %v8632
      %8634 = vdwg.mxu0
      %v8635 = vld [vmem:[%s232 + $0x100] sm:$0xff]
      %v8636 = vld [vmem:[%s232 + $0x108] sm:$0xff]
      %v8637 = vld [vmem:[%s232 + $0x110] sm:$0xff]
      %v8638 = vld [vmem:[%s232 + $0x118] sm:$0xff]
      %v8639 = vld [vmem:[%s232 + $0x120] sm:$0xff]
      %v8640 = vld [vmem:[%s232 + $0x128] sm:$0xff]
      %v8641 = vld [vmem:[%s232 + $0x130] sm:$0xff]
      %v8642 = vld [vmem:[%s232 + $0x138] sm:$0xff]
      %v8643 = vld [vmem:[%s232 + $0x140] sm:$0xff]
      %v8644 = vld [vmem:[%s232 + $0x148] sm:$0xff]
      %v8645 = vld [vmem:[%s232 + $0x150] sm:$0xff]
      %v8646 = vld [vmem:[%s232 + $0x158] sm:$0xff]
      %v8647 = vld [vmem:[%s232 + $0x160] sm:$0xff]
      %v8648 = vld [vmem:[%s232 + $0x168] sm:$0xff]
      %v8649 = vld [vmem:[%s232 + $0x170] sm:$0xff]
      %v8650 = vld [vmem:[%s232 + $0x178] sm:$0xff]
      %v8651 = vld [vmem:[%s232 + $0x180] sm:$0xff]
      %v8652 = vld [vmem:[%s232 + $0x188] sm:$0xff]
      %v8653 = vld [vmem:[%s232 + $0x190] sm:$0xff]
      %v8654 = vld [vmem:[%s232 + $0x198] sm:$0xff]
      %v8655 = vld [vmem:[%s232 + $0x1a0] sm:$0xff]
      %v8656 = vld [vmem:[%s232 + $0x1a8] sm:$0xff]
      %v8657 = vld [vmem:[%s232 + $0x1b0] sm:$0xff]
      %v8658 = vld [vmem:[%s232 + $0x1b8] sm:$0xff]
      %v8659 = vld [vmem:[%s232 + $0x1c0] sm:$0xff]
      %v8660 = vld [vmem:[%s232 + $0x1c8] sm:$0xff]
      %v8661 = vld [vmem:[%s232 + $0x1d0] sm:$0xff]
      %v8662 = vld [vmem:[%s232 + $0x1d8] sm:$0xff]
      %v8663 = vld [vmem:[%s232 + $0x1e0] sm:$0xff]
      %v8664 = vld [vmem:[%s232 + $0x1e8] sm:$0xff]
      %v8665 = vld [vmem:[%s232 + $0x1f0] sm:$0xff]
      %v8666 = vld [vmem:[%s232 + $0x1f8] sm:$0xff]
      %8667 = vmatpush.msra.mxu0 %v8650
      %8668 = vmatpush.msra.mxu0 %v8649
      %8669 = vmatpush.msra.mxu0 %v8648
      %8670 = vmatpush.msra.mxu0 %v8647
      %8671 = vmatpush.msra.mxu0 %v8646
      %8672 = vmatpush.msra.mxu0 %v8645
      %8673 = vmatpush.msra.mxu0 %v8644
      %8674 = vmatpush.msra.mxu0 %v8643
      %8675 = vmatpush.msra.mxu0 %v8642
      %8676 = vmatpush.msra.mxu0 %v8641
      %8677 = vmatpush.msra.mxu0 %v8640
      %8678 = vmatpush.msra.mxu0 %v8639
      %8679 = vmatpush.msra.mxu0 %v8638
      %8680 = vmatpush.msra.mxu0 %v8637
      %8681 = vmatpush.msra.mxu0 %v8636
      %8682 = vmatpush.msra.mxu0 %v8635
      %8683 = vmatmul.f32.gmra.mxu0 %v8081
      %v8684 = vpop.f32.mrf.mxu0
      %v8685 = vadd.f32 0.0, %v8684
      %8686 = vmatmul.f32.gmra.mxu0 %v8083
      %v8687 = vpop.f32.mrf.mxu0
      %v8688 = vadd.f32 0.0, %v8687
      %8689 = vmatmul.f32.gmra.mxu0 %v8085
      %v8690 = vpop.f32.mrf.mxu0
      %v8691 = vadd.f32 0.0, %v8690
      %8692 = vmatmul.f32.gmra.mxu0 %v8087
      %v8693 = vpop.f32.mrf.mxu0
      %v8694 = vadd.f32 0.0, %v8693
      %8695 = vmatmul.f32.gmra.mxu0 %v8089
      %v8696 = vpop.f32.mrf.mxu0
      %v8697 = vadd.f32 0.0, %v8696
      %8698 = vmatmul.f32.gmra.mxu0 %v8091
      %v8699 = vpop.f32.mrf.mxu0
      %v8700 = vadd.f32 0.0, %v8699
      %8701 = vmatmul.f32.gmra.mxu0 %v8093
      %v8702 = vpop.f32.mrf.mxu0
      %v8703 = vadd.f32 0.0, %v8702
      %8704 = vmatmul.f32.gmra.mxu0 %v8095
      %v8705 = vpop.f32.mrf.mxu0
      %v8706 = vadd.f32 0.0, %v8705
      %8707 = vmatmul.f32.gmra.mxu0 %v8097
      %v8708 = vpop.f32.mrf.mxu0
      %v8709 = vadd.f32 0.0, %v8708
      %8710 = vmatmul.f32.gmra.mxu0 %v8099
      %v8711 = vpop.f32.mrf.mxu0
      %v8712 = vadd.f32 0.0, %v8711
      %8713 = vmatmul.f32.gmra.mxu0 %v8101
      %v8714 = vpop.f32.mrf.mxu0
      %v8715 = vadd.f32 0.0, %v8714
      %8716 = vmatmul.f32.gmra.mxu0 %v8103
      %v8717 = vpop.f32.mrf.mxu0
      %v8718 = vadd.f32 0.0, %v8717
      %8719 = vmatmul.f32.gmra.mxu0 %v8105
      %v8720 = vpop.f32.mrf.mxu0
      %v8721 = vadd.f32 0.0, %v8720
      %8722 = vmatmul.f32.gmra.mxu0 %v8107
      %v8723 = vpop.f32.mrf.mxu0
      %v8724 = vadd.f32 0.0, %v8723
      %8725 = vmatmul.f32.gmra.mxu0 %v8109
      %v8726 = vpop.f32.mrf.mxu0
      %v8727 = vadd.f32 0.0, %v8726
      %8728 = vmatmul.f32.gmra.mxu0 %v8111
      %v8729 = vpop.f32.mrf.mxu0
      %v8730 = vadd.f32 0.0, %v8729
      %8731 = vmatmul.f32.gmra.mxu0 %v8113
      %v8732 = vpop.f32.mrf.mxu0
      %v8733 = vadd.f32 0.0, %v8732
      %8734 = vmatmul.f32.gmra.mxu0 %v8115
      %v8735 = vpop.f32.mrf.mxu0
      %v8736 = vadd.f32 0.0, %v8735
      %8737 = vmatmul.f32.gmra.mxu0 %v8117
      %v8738 = vpop.f32.mrf.mxu0
      %v8739 = vadd.f32 0.0, %v8738
      %8740 = vmatmul.f32.gmra.mxu0 %v8119
      %v8741 = vpop.f32.mrf.mxu0
      %v8742 = vadd.f32 0.0, %v8741
      %8743 = vmatmul.f32.gmra.mxu0 %v8121
      %v8744 = vpop.f32.mrf.mxu0
      %v8745 = vadd.f32 0.0, %v8744
      %8746 = vmatmul.f32.gmra.mxu0 %v8123
      %v8747 = vpop.f32.mrf.mxu0
      %v8748 = vadd.f32 0.0, %v8747
      %8749 = vmatmul.f32.gmra.mxu0 %v8125
      %v8750 = vpop.f32.mrf.mxu0
      %v8751 = vadd.f32 0.0, %v8750
      %8752 = vmatmul.f32.gmra.mxu0 %v8127
      %v8753 = vpop.f32.mrf.mxu0
      %v8754 = vadd.f32 0.0, %v8753
      %8755 = vmatmul.f32.gmra.mxu0 %v8129
      %v8756 = vpop.f32.mrf.mxu0
      %v8757 = vadd.f32 0.0, %v8756
      %8758 = vmatmul.f32.gmra.mxu0 %v8131
      %v8759 = vpop.f32.mrf.mxu0
      %v8760 = vadd.f32 0.0, %v8759
      %8761 = vmatmul.f32.gmra.mxu0 %v8133
      %v8762 = vpop.f32.mrf.mxu0
      %v8763 = vadd.f32 0.0, %v8762
      %8764 = vmatmul.f32.gmra.mxu0 %v8135
      %v8765 = vpop.f32.mrf.mxu0
      %v8766 = vadd.f32 0.0, %v8765
      %8767 = vmatmul.f32.gmra.mxu0 %v8137
      %v8768 = vpop.f32.mrf.mxu0
      %v8769 = vadd.f32 0.0, %v8768
      %8770 = vmatmul.f32.gmra.mxu0 %v8139
      %v8771 = vpop.f32.mrf.mxu0
      %v8772 = vadd.f32 0.0, %v8771
      %8773 = vmatmul.f32.gmra.mxu0 %v8141
      %v8774 = vpop.f32.mrf.mxu0
      %v8775 = vadd.f32 0.0, %v8774
      %8776 = vmatmul.f32.gmra.mxu0 %v8143
      %v8777 = vpop.f32.mrf.mxu0
      %v8778 = vadd.f32 0.0, %v8777
      %8779 = vdwg.mxu0
      %8780 = vmatpush.msra.mxu0 %v8666
      %8781 = vmatpush.msra.mxu0 %v8665
      %8782 = vmatpush.msra.mxu0 %v8664
      %8783 = vmatpush.msra.mxu0 %v8663
      %8784 = vmatpush.msra.mxu0 %v8662
      %8785 = vmatpush.msra.mxu0 %v8661
      %8786 = vmatpush.msra.mxu0 %v8660
      %8787 = vmatpush.msra.mxu0 %v8659
      %8788 = vmatpush.msra.mxu0 %v8658
      %8789 = vmatpush.msra.mxu0 %v8657
      %8790 = vmatpush.msra.mxu0 %v8656
      %8791 = vmatpush.msra.mxu0 %v8655
      %8792 = vmatpush.msra.mxu0 %v8654
      %8793 = vmatpush.msra.mxu0 %v8653
      %8794 = vmatpush.msra.mxu0 %v8652
      %8795 = vmatpush.msra.mxu0 %v8651
      %8796 = vmatmul.f32.gmra.mxu0 %v8082
      %v8797 = vpop.f32.mrf.mxu0
      %v8798 = vadd.f32 %v8685, %v8797
      %8799 = vmatmul.f32.gmra.mxu0 %v8084
      %v8800 = vpop.f32.mrf.mxu0
      %v8801 = vadd.f32 %v8688, %v8800
      %8802 = vmatmul.f32.gmra.mxu0 %v8086
      %v8803 = vpop.f32.mrf.mxu0
      %v8804 = vadd.f32 %v8691, %v8803
      %8805 = vmatmul.f32.gmra.mxu0 %v8088
      %v8806 = vpop.f32.mrf.mxu0
      %v8807 = vadd.f32 %v8694, %v8806
      %8808 = vmatmul.f32.gmra.mxu0 %v8090
      %v8809 = vpop.f32.mrf.mxu0
      %v8810 = vadd.f32 %v8697, %v8809
      %8811 = vmatmul.f32.gmra.mxu0 %v8092
      %v8812 = vpop.f32.mrf.mxu0
      %v8813 = vadd.f32 %v8700, %v8812
      %8814 = vmatmul.f32.gmra.mxu0 %v8094
      %v8815 = vpop.f32.mrf.mxu0
      %v8816 = vadd.f32 %v8703, %v8815
      %8817 = vmatmul.f32.gmra.mxu0 %v8096
      %v8818 = vpop.f32.mrf.mxu0
      %v8819 = vadd.f32 %v8706, %v8818
      %8820 = vmatmul.f32.gmra.mxu0 %v8098
      %v8821 = vpop.f32.mrf.mxu0
      %v8822 = vadd.f32 %v8709, %v8821
      %8823 = vmatmul.f32.gmra.mxu0 %v8100
      %v8824 = vpop.f32.mrf.mxu0
      %v8825 = vadd.f32 %v8712, %v8824
      %8826 = vmatmul.f32.gmra.mxu0 %v8102
      %v8827 = vpop.f32.mrf.mxu0
      %v8828 = vadd.f32 %v8715, %v8827
      %8829 = vmatmul.f32.gmra.mxu0 %v8104
      %v8830 = vpop.f32.mrf.mxu0
      %v8831 = vadd.f32 %v8718, %v8830
      %8832 = vmatmul.f32.gmra.mxu0 %v8106
      %v8833 = vpop.f32.mrf.mxu0
      %v8834 = vadd.f32 %v8721, %v8833
      %8835 = vmatmul.f32.gmra.mxu0 %v8108
      %v8836 = vpop.f32.mrf.mxu0
      %v8837 = vadd.f32 %v8724, %v8836
      %8838 = vmatmul.f32.gmra.mxu0 %v8110
      %v8839 = vpop.f32.mrf.mxu0
      %v8840 = vadd.f32 %v8727, %v8839
      %8841 = vmatmul.f32.gmra.mxu0 %v8112
      %v8842 = vpop.f32.mrf.mxu0
      %v8843 = vadd.f32 %v8730, %v8842
      %8844 = vmatmul.f32.gmra.mxu0 %v8114
      %v8845 = vpop.f32.mrf.mxu0
      %v8846 = vadd.f32 %v8733, %v8845
      %8847 = vmatmul.f32.gmra.mxu0 %v8116
      %v8848 = vpop.f32.mrf.mxu0
      %v8849 = vadd.f32 %v8736, %v8848
      %8850 = vmatmul.f32.gmra.mxu0 %v8118
      %v8851 = vpop.f32.mrf.mxu0
      %v8852 = vadd.f32 %v8739, %v8851
      %8853 = vmatmul.f32.gmra.mxu0 %v8120
      %v8854 = vpop.f32.mrf.mxu0
      %v8855 = vadd.f32 %v8742, %v8854
      %8856 = vmatmul.f32.gmra.mxu0 %v8122
      %v8857 = vpop.f32.mrf.mxu0
      %v8858 = vadd.f32 %v8745, %v8857
      %8859 = vmatmul.f32.gmra.mxu0 %v8124
      %v8860 = vpop.f32.mrf.mxu0
      %v8861 = vadd.f32 %v8748, %v8860
      %8862 = vmatmul.f32.gmra.mxu0 %v8126
      %v8863 = vpop.f32.mrf.mxu0
      %v8864 = vadd.f32 %v8751, %v8863
      %8865 = vmatmul.f32.gmra.mxu0 %v8128
      %v8866 = vpop.f32.mrf.mxu0
      %v8867 = vadd.f32 %v8754, %v8866
      %8868 = vmatmul.f32.gmra.mxu0 %v8130
      %v8869 = vpop.f32.mrf.mxu0
      %v8870 = vadd.f32 %v8757, %v8869
      %8871 = vmatmul.f32.gmra.mxu0 %v8132
      %v8872 = vpop.f32.mrf.mxu0
      %v8873 = vadd.f32 %v8760, %v8872
      %8874 = vmatmul.f32.gmra.mxu0 %v8134
      %v8875 = vpop.f32.mrf.mxu0
      %v8876 = vadd.f32 %v8763, %v8875
      %8877 = vmatmul.f32.gmra.mxu0 %v8136
      %v8878 = vpop.f32.mrf.mxu0
      %v8879 = vadd.f32 %v8766, %v8878
      %8880 = vmatmul.f32.gmra.mxu0 %v8138
      %v8881 = vpop.f32.mrf.mxu0
      %v8882 = vadd.f32 %v8769, %v8881
      %8883 = vmatmul.f32.gmra.mxu0 %v8140
      %v8884 = vpop.f32.mrf.mxu0
      %v8885 = vadd.f32 %v8772, %v8884
      %8886 = vmatmul.f32.gmra.mxu0 %v8142
      %v8887 = vpop.f32.mrf.mxu0
      %v8888 = vadd.f32 %v8775, %v8887
      %8889 = vmatmul.f32.gmra.mxu0 %v8144
      %v8890 = vpop.f32.mrf.mxu0
      %v8891 = vadd.f32 %v8778, %v8890
      %8892 = vdwg.mxu0
      %v8893 = vadd.f32 %v8540, %v8798
      %v8894 = vadd.f32 %v8543, %v8801
      %v8895 = vadd.f32 %v8546, %v8804
      %v8896 = vadd.f32 %v8549, %v8807
      %v8897 = vadd.f32 %v8552, %v8810
      %v8898 = vadd.f32 %v8555, %v8813
      %v8899 = vadd.f32 %v8558, %v8816
      %v8900 = vadd.f32 %v8561, %v8819
      %v8901 = vadd.f32 %v8564, %v8822
      %v8902 = vadd.f32 %v8567, %v8825
      %v8903 = vadd.f32 %v8570, %v8828
      %v8904 = vadd.f32 %v8573, %v8831
      %v8905 = vadd.f32 %v8576, %v8834
      %v8906 = vadd.f32 %v8579, %v8837
      %v8907 = vadd.f32 %v8582, %v8840
      %v8908 = vadd.f32 %v8585, %v8843
      %v8909 = vadd.f32 %v8588, %v8846
      %v8910 = vadd.f32 %v8591, %v8849
      %v8911 = vadd.f32 %v8594, %v8852
      %v8912 = vadd.f32 %v8597, %v8855
      %v8913 = vadd.f32 %v8600, %v8858
      %v8914 = vadd.f32 %v8603, %v8861
      %v8915 = vadd.f32 %v8606, %v8864
      %v8916 = vadd.f32 %v8609, %v8867
      %v8917 = vadd.f32 %v8612, %v8870
      %v8918 = vadd.f32 %v8615, %v8873
      %v8919 = vadd.f32 %v8618, %v8876
      %v8920 = vadd.f32 %v8621, %v8879
      %v8921 = vadd.f32 %v8624, %v8882
      %v8922 = vadd.f32 %v8627, %v8885
      %v8923 = vadd.f32 %v8630, %v8888
      %v8924 = vadd.f32 %v8633, %v8891
      %v8925 = vperm.slane %v8149, 0
      %v8926 = vadd.f32 %v8893, %v8925
      %v8927 = vadd.f32 %v8894, %v8925
      %v8928 = vadd.f32 %v8895, %v8925
      %v8929 = vadd.f32 %v8896, %v8925
      %v8930 = vadd.f32 %v8897, %v8925
      %v8931 = vadd.f32 %v8898, %v8925
      %v8932 = vadd.f32 %v8899, %v8925
      %v8933 = vadd.f32 %v8900, %v8925
      %v8934 = vadd.f32 %v8901, %v8925
      %v8935 = vadd.f32 %v8902, %v8925
      %v8936 = vadd.f32 %v8903, %v8925
      %v8937 = vadd.f32 %v8904, %v8925
      %v8938 = vadd.f32 %v8905, %v8925
      %v8939 = vadd.f32 %v8906, %v8925
      %v8940 = vadd.f32 %v8907, %v8925
      %v8941 = vadd.f32 %v8908, %v8925
      %v8942 = vadd.f32 %v8909, %v8925
      %v8943 = vadd.f32 %v8910, %v8925
      %v8944 = vadd.f32 %v8911, %v8925
      %v8945 = vadd.f32 %v8912, %v8925
      %v8946 = vadd.f32 %v8913, %v8925
      %v8947 = vadd.f32 %v8914, %v8925
      %v8948 = vadd.f32 %v8915, %v8925
      %v8949 = vadd.f32 %v8916, %v8925
      %v8950 = vadd.f32 %v8917, %v8925
      %v8951 = vadd.f32 %v8918, %v8925
      %v8952 = vadd.f32 %v8919, %v8925
      %v8953 = vadd.f32 %v8920, %v8925
      %v8954 = vadd.f32 %v8921, %v8925
      %v8955 = vadd.f32 %v8922, %v8925
      %v8956 = vadd.f32 %v8923, %v8925
      %v8957 = vadd.f32 %v8924, %v8925
      %v8958 = vmax.f32 %v8926, 0.0
      %v8959 = vmax.f32 %v8927, 0.0
      %v8960 = vmax.f32 %v8928, 0.0
      %v8961 = vmax.f32 %v8929, 0.0
      %v8962 = vmax.f32 %v8930, 0.0
      %v8963 = vmax.f32 %v8931, 0.0
      %v8964 = vmax.f32 %v8932, 0.0
      %v8965 = vmax.f32 %v8933, 0.0
      %v8966 = vmax.f32 %v8934, 0.0
      %v8967 = vmax.f32 %v8935, 0.0
      %v8968 = vmax.f32 %v8936, 0.0
      %v8969 = vmax.f32 %v8937, 0.0
      %v8970 = vmax.f32 %v8938, 0.0
      %v8971 = vmax.f32 %v8939, 0.0
      %v8972 = vmax.f32 %v8940, 0.0
      %v8973 = vmax.f32 %v8941, 0.0
      %v8974 = vmax.f32 %v8942, 0.0
      %v8975 = vmax.f32 %v8943, 0.0
      %v8976 = vmax.f32 %v8944, 0.0
      %v8977 = vmax.f32 %v8945, 0.0
      %v8978 = vmax.f32 %v8946, 0.0
      %v8979 = vmax.f32 %v8947, 0.0
      %v8980 = vmax.f32 %v8948, 0.0
      %v8981 = vmax.f32 %v8949, 0.0
      %v8982 = vmax.f32 %v8950, 0.0
      %v8983 = vmax.f32 %v8951, 0.0
      %v8984 = vmax.f32 %v8952, 0.0
      %v8985 = vmax.f32 %v8953, 0.0
      %v8986 = vmax.f32 %v8954, 0.0
      %v8987 = vmax.f32 %v8955, 0.0
      %v8988 = vmax.f32 %v8956, 0.0
      %v8989 = vmax.f32 %v8957, 0.0
      %v8990 = vperm.slane %v8166, 0
      %8991 = vmatpush.msra.mxu0 %v8165
      %8992 = vmatpush.msra.mxu0 %v8164
      %8993 = vmatpush.msra.mxu0 %v8163
      %8994 = vmatpush.msra.mxu0 %v8162
      %8995 = vmatpush.msra.mxu0 %v8161
      %8996 = vmatpush.msra.mxu0 %v8160
      %8997 = vmatpush.msra.mxu0 %v8159
      %8998 = vmatpush.msra.mxu0 %v8158
      %8999 = vmatpush.msra.mxu0 %v8157
      %9000 = vmatpush.msra.mxu0 %v8156
      %9001 = vmatpush.msra.mxu0 %v8155
      %9002 = vmatpush.msra.mxu0 %v8154
      %9003 = vmatpush.msra.mxu0 %v8153
      %9004 = vmatpush.msra.mxu0 %v8152
      %9005 = vmatpush.msra.mxu0 %v8151
      %9006 = vmatpush.msra.mxu0 %v8150
      %9007 = vmatmul.f32.gmra.mxu0 %v8958
      %v9008 = vpop.f32.mrf.mxu0
      %v9009 = vadd.f32 %v8990, %v9008
      %9010 = vmatmul.f32.gmra.mxu0 %v8959
      %v9011 = vpop.f32.mrf.mxu0
      %v9012 = vadd.f32 %v8990, %v9011
      %9013 = vmatmul.f32.gmra.mxu0 %v8960
      %v9014 = vpop.f32.mrf.mxu0
      %v9015 = vadd.f32 %v8990, %v9014
      %9016 = vmatmul.f32.gmra.mxu0 %v8961
      %v9017 = vpop.f32.mrf.mxu0
      %v9018 = vadd.f32 %v8990, %v9017
      %9019 = vmatmul.f32.gmra.mxu0 %v8962
      %v9020 = vpop.f32.mrf.mxu0
      %v9021 = vadd.f32 %v8990, %v9020
      %9022 = vmatmul.f32.gmra.mxu0 %v8963
      %v9023 = vpop.f32.mrf.mxu0
      %v9024 = vadd.f32 %v8990, %v9023
      %9025 = vmatmul.f32.gmra.mxu0 %v8964
      %v9026 = vpop.f32.mrf.mxu0
      %v9027 = vadd.f32 %v8990, %v9026
      %9028 = vmatmul.f32.gmra.mxu0 %v8965
      %v9029 = vpop.f32.mrf.mxu0
      %v9030 = vadd.f32 %v8990, %v9029
      %9031 = vmatmul.f32.gmra.mxu0 %v8966
      %v9032 = vpop.f32.mrf.mxu0
      %v9033 = vadd.f32 %v8990, %v9032
      %9034 = vmatmul.f32.gmra.mxu0 %v8967
      %v9035 = vpop.f32.mrf.mxu0
      %v9036 = vadd.f32 %v8990, %v9035
      %9037 = vmatmul.f32.gmra.mxu0 %v8968
      %v9038 = vpop.f32.mrf.mxu0
      %v9039 = vadd.f32 %v8990, %v9038
      %9040 = vmatmul.f32.gmra.mxu0 %v8969
      %v9041 = vpop.f32.mrf.mxu0
      %v9042 = vadd.f32 %v8990, %v9041
      %9043 = vmatmul.f32.gmra.mxu0 %v8970
      %v9044 = vpop.f32.mrf.mxu0
      %v9045 = vadd.f32 %v8990, %v9044
      %9046 = vmatmul.f32.gmra.mxu0 %v8971
      %v9047 = vpop.f32.mrf.mxu0
      %v9048 = vadd.f32 %v8990, %v9047
      %9049 = vmatmul.f32.gmra.mxu0 %v8972
      %v9050 = vpop.f32.mrf.mxu0
      %v9051 = vadd.f32 %v8990, %v9050
      %9052 = vmatmul.f32.gmra.mxu0 %v8973
      %v9053 = vpop.f32.mrf.mxu0
      %v9054 = vadd.f32 %v8990, %v9053
      %9055 = vmatmul.f32.gmra.mxu0 %v8974
      %v9056 = vpop.f32.mrf.mxu0
      %v9057 = vadd.f32 %v8990, %v9056
      %9058 = vmatmul.f32.gmra.mxu0 %v8975
      %v9059 = vpop.f32.mrf.mxu0
      %v9060 = vadd.f32 %v8990, %v9059
      %9061 = vmatmul.f32.gmra.mxu0 %v8976
      %v9062 = vpop.f32.mrf.mxu0
      %v9063 = vadd.f32 %v8990, %v9062
      %9064 = vmatmul.f32.gmra.mxu0 %v8977
      %v9065 = vpop.f32.mrf.mxu0
      %v9066 = vadd.f32 %v8990, %v9065
      %9067 = vmatmul.f32.gmra.mxu0 %v8978
      %v9068 = vpop.f32.mrf.mxu0
      %v9069 = vadd.f32 %v8990, %v9068
      %9070 = vmatmul.f32.gmra.mxu0 %v8979
      %v9071 = vpop.f32.mrf.mxu0
      %v9072 = vadd.f32 %v8990, %v9071
      %9073 = vmatmul.f32.gmra.mxu0 %v8980
      %v9074 = vpop.f32.mrf.mxu0
      %v9075 = vadd.f32 %v8990, %v9074
      %9076 = vmatmul.f32.gmra.mxu0 %v8981
      %v9077 = vpop.f32.mrf.mxu0
      %v9078 = vadd.f32 %v8990, %v9077
      %9079 = vmatmul.f32.gmra.mxu0 %v8982
      %v9080 = vpop.f32.mrf.mxu0
      %v9081 = vadd.f32 %v8990, %v9080
      %9082 = vmatmul.f32.gmra.mxu0 %v8983
      %v9083 = vpop.f32.mrf.mxu0
      %v9084 = vadd.f32 %v8990, %v9083
      %9085 = vmatmul.f32.gmra.mxu0 %v8984
      %v9086 = vpop.f32.mrf.mxu0
      %v9087 = vadd.f32 %v8990, %v9086
      %9088 = vmatmul.f32.gmra.mxu0 %v8985
      %v9089 = vpop.f32.mrf.mxu0
      %v9090 = vadd.f32 %v8990, %v9089
      %9091 = vmatmul.f32.gmra.mxu0 %v8986
      %v9092 = vpop.f32.mrf.mxu0
      %v9093 = vadd.f32 %v8990, %v9092
      %9094 = vmatmul.f32.gmra.mxu0 %v8987
      %v9095 = vpop.f32.mrf.mxu0
      %v9096 = vadd.f32 %v8990, %v9095
      %9097 = vmatmul.f32.gmra.mxu0 %v8988
      %v9098 = vpop.f32.mrf.mxu0
      %v9099 = vadd.f32 %v8990, %v9098
      %9100 = vmatmul.f32.gmra.mxu0 %v8989
      %v9101 = vpop.f32.mrf.mxu0
      %v9102 = vadd.f32 %v8990, %v9101
      %9103 = vdwg.mxu0
      %v9104 = vmul.f32 %v9009, 0.5
      %v9105 = vmul.f32 %v9012, 0.5
      %v9106 = vmul.f32 %v9015, 0.5
      %v9107 = vmul.f32 %v9018, 0.5
      %v9108 = vmul.f32 %v9021, 0.5
      %v9109 = vmul.f32 %v9024, 0.5
      %v9110 = vmul.f32 %v9027, 0.5
      %v9111 = vmul.f32 %v9030, 0.5
      %v9112 = vmul.f32 %v9033, 0.5
      %v9113 = vmul.f32 %v9036, 0.5
      %v9114 = vmul.f32 %v9039, 0.5
      %v9115 = vmul.f32 %v9042, 0.5
      %v9116 = vmul.f32 %v9045, 0.5
      %v9117 = vmul.f32 %v9048, 0.5
      %v9118 = vmul.f32 %v9051, 0.5
      %v9119 = vmul.f32 %v9054, 0.5
      %v9120 = vmul.f32 %v9057, 0.5
      %v9121 = vmul.f32 %v9060, 0.5
      %v9122 = vmul.f32 %v9063, 0.5
      %v9123 = vmul.f32 %v9066, 0.5
      %v9124 = vmul.f32 %v9069, 0.5
      %v9125 = vmul.f32 %v9072, 0.5
      %v9126 = vmul.f32 %v9075, 0.5
      %v9127 = vmul.f32 %v9078, 0.5
      %v9128 = vmul.f32 %v9081, 0.5
      %v9129 = vmul.f32 %v9084, 0.5
      %v9130 = vmul.f32 %v9087, 0.5
      %v9131 = vmul.f32 %v9090, 0.5
      %v9132 = vmul.f32 %v9093, 0.5
      %v9133 = vmul.f32 %v9096, 0.5
      %v9134 = vmul.f32 %v9099, 0.5
      %v9135 = vmul.f32 %v9102, 0.5
      %v9136 = vtanh.pop %v9104
      %v9137 = vtanh.pop %v9105
      %v9138 = vtanh.pop %v9106
      %v9139 = vtanh.pop %v9107
      %v9140 = vtanh.pop %v9108
      %v9141 = vtanh.pop %v9109
      %v9142 = vtanh.pop %v9110
      %v9143 = vtanh.pop %v9111
      %v9144 = vtanh.pop %v9112
      %v9145 = vtanh.pop %v9113
      %v9146 = vtanh.pop %v9114
      %v9147 = vtanh.pop %v9115
      %v9148 = vtanh.pop %v9116
      %v9149 = vtanh.pop %v9117
      %v9150 = vtanh.pop %v9118
      %v9151 = vtanh.pop %v9119
      %v9152 = vtanh.pop %v9120
      %v9153 = vtanh.pop %v9121
      %v9154 = vtanh.pop %v9122
      %v9155 = vtanh.pop %v9123
      %v9156 = vtanh.pop %v9124
      %v9157 = vtanh.pop %v9125
      %v9158 = vtanh.pop %v9126
      %v9159 = vtanh.pop %v9127
      %v9160 = vtanh.pop %v9128
      %v9161 = vtanh.pop %v9129
      %v9162 = vtanh.pop %v9130
      %v9163 = vtanh.pop %v9131
      %v9164 = vtanh.pop %v9132
      %v9165 = vtanh.pop %v9133
      %v9166 = vtanh.pop %v9134
      %v9167 = vtanh.pop %v9135
      %v9168 = vadd.f32 %v9136, 1.0
      %v9169 = vadd.f32 %v9137, 1.0
      %v9170 = vadd.f32 %v9138, 1.0
      %v9171 = vadd.f32 %v9139, 1.0
      %v9172 = vadd.f32 %v9140, 1.0
      %v9173 = vadd.f32 %v9141, 1.0
      %v9174 = vadd.f32 %v9142, 1.0
      %v9175 = vadd.f32 %v9143, 1.0
      %v9176 = vadd.f32 %v9144, 1.0
      %v9177 = vadd.f32 %v9145, 1.0
      %v9178 = vadd.f32 %v9146, 1.0
      %v9179 = vadd.f32 %v9147, 1.0
      %v9180 = vadd.f32 %v9148, 1.0
      %v9181 = vadd.f32 %v9149, 1.0
      %v9182 = vadd.f32 %v9150, 1.0
      %v9183 = vadd.f32 %v9151, 1.0
      %v9184 = vadd.f32 %v9152, 1.0
      %v9185 = vadd.f32 %v9153, 1.0
      %v9186 = vadd.f32 %v9154, 1.0
      %v9187 = vadd.f32 %v9155, 1.0
      %v9188 = vadd.f32 %v9156, 1.0
      %v9189 = vadd.f32 %v9157, 1.0
      %v9190 = vadd.f32 %v9158, 1.0
      %v9191 = vadd.f32 %v9159, 1.0
      %v9192 = vadd.f32 %v9160, 1.0
      %v9193 = vadd.f32 %v9161, 1.0
      %v9194 = vadd.f32 %v9162, 1.0
      %v9195 = vadd.f32 %v9163, 1.0
      %v9196 = vadd.f32 %v9164, 1.0
      %v9197 = vadd.f32 %v9165, 1.0
      %v9198 = vadd.f32 %v9166, 1.0
      %v9199 = vadd.f32 %v9167, 1.0
      %v9200 = vmul.f32 %v9168, 0.5
      %v9201 = vmul.f32 %v9169, 0.5
      %v9202 = vmul.f32 %v9170, 0.5
      %v9203 = vmul.f32 %v9171, 0.5
      %v9204 = vmul.f32 %v9172, 0.5
      %v9205 = vmul.f32 %v9173, 0.5
      %v9206 = vmul.f32 %v9174, 0.5
      %v9207 = vmul.f32 %v9175, 0.5
      %v9208 = vmul.f32 %v9176, 0.5
      %v9209 = vmul.f32 %v9177, 0.5
      %v9210 = vmul.f32 %v9178, 0.5
      %v9211 = vmul.f32 %v9179, 0.5
      %v9212 = vmul.f32 %v9180, 0.5
      %v9213 = vmul.f32 %v9181, 0.5
      %v9214 = vmul.f32 %v9182, 0.5
      %v9215 = vmul.f32 %v9183, 0.5
      %v9216 = vmul.f32 %v9184, 0.5
      %v9217 = vmul.f32 %v9185, 0.5
      %v9218 = vmul.f32 %v9186, 0.5
      %v9219 = vmul.f32 %v9187, 0.5
      %v9220 = vmul.f32 %v9188, 0.5
      %v9221 = vmul.f32 %v9189, 0.5
      %v9222 = vmul.f32 %v9190, 0.5
      %v9223 = vmul.f32 %v9191, 0.5
      %v9224 = vmul.f32 %v9192, 0.5
      %v9225 = vmul.f32 %v9193, 0.5
      %v9226 = vmul.f32 %v9194, 0.5
      %v9227 = vmul.f32 %v9195, 0.5
      %v9228 = vmul.f32 %v9196, 0.5
      %v9229 = vmul.f32 %v9197, 0.5
      %v9230 = vmul.f32 %v9198, 0.5
      %v9231 = vmul.f32 %v9199, 0.5
      %vm9232 = vcmp.eq.s32.totalorder %v303, 75
      %v9233 = vsel %vm9232, %v9200, %v9009
      %v9234 = vsel %vm9232, %v9201, %v9012
      %v9235 = vsel %vm9232, %v9202, %v9015
      %v9236 = vsel %vm9232, %v9203, %v9018
      %v9237 = vsel %vm9232, %v9204, %v9021
      %v9238 = vsel %vm9232, %v9205, %v9024
      %v9239 = vsel %vm9232, %v9206, %v9027
      %v9240 = vsel %vm9232, %v9207, %v9030
      %v9241 = vsel %vm9232, %v9208, %v9033
      %v9242 = vsel %vm9232, %v9209, %v9036
      %v9243 = vsel %vm9232, %v9210, %v9039
      %v9244 = vsel %vm9232, %v9211, %v9042
      %v9245 = vsel %vm9232, %v9212, %v9045
      %v9246 = vsel %vm9232, %v9213, %v9048
      %v9247 = vsel %vm9232, %v9214, %v9051
      %v9248 = vsel %vm9232, %v9215, %v9054
      %v9249 = vsel %vm9232, %v9216, %v9057
      %v9250 = vsel %vm9232, %v9217, %v9060
      %v9251 = vsel %vm9232, %v9218, %v9063
      %v9252 = vsel %vm9232, %v9219, %v9066
      %v9253 = vsel %vm9232, %v9220, %v9069
      %v9254 = vsel %vm9232, %v9221, %v9072
      %v9255 = vsel %vm9232, %v9222, %v9075
      %v9256 = vsel %vm9232, %v9223, %v9078
      %v9257 = vsel %vm9232, %v9224, %v9081
      %v9258 = vsel %vm9232, %v9225, %v9084
      %v9259 = vsel %vm9232, %v9226, %v9087
      %v9260 = vsel %vm9232, %v9227, %v9090
      %v9261 = vsel %vm9232, %v9228, %v9093
      %v9262 = vsel %vm9232, %v9229, %v9096
      %v9263 = vsel %vm9232, %v9230, %v9099
      %v9264 = vsel %vm9232, %v9231, %v9102
      %9265 = vst [vmem:[%s237] sm:$0xff] %v9233
      %9266 = vst [vmem:[%s237 + $0x8] sm:$0xff] %v9234
      %9267 = vst [vmem:[%s237 + $0x10] sm:$0xff] %v9235
      %9268 = vst [vmem:[%s237 + $0x18] sm:$0xff] %v9236
      %9269 = vst [vmem:[%s237 + $0x20] sm:$0xff] %v9237
      %9270 = vst [vmem:[%s237 + $0x28] sm:$0xff] %v9238
      %9271 = vst [vmem:[%s237 + $0x30] sm:$0xff] %v9239
      %9272 = vst [vmem:[%s237 + $0x38] sm:$0xff] %v9240
      %9273 = vst [vmem:[%s237 + $0x40] sm:$0xff] %v9241
      %9274 = vst [vmem:[%s237 + $0x48] sm:$0xff] %v9242
      %9275 = vst [vmem:[%s237 + $0x50] sm:$0xff] %v9243
      %9276 = vst [vmem:[%s237 + $0x58] sm:$0xff] %v9244
      %9277 = vst [vmem:[%s237 + $0x60] sm:$0xff] %v9245
      %9278 = vst [vmem:[%s237 + $0x68] sm:$0xff] %v9246
      %9279 = vst [vmem:[%s237 + $0x70] sm:$0xff] %v9247
      %9280 = vst [vmem:[%s237 + $0x78] sm:$0xff] %v9248
      %9281 = vst [vmem:[%s237 + $0x80] sm:$0xff] %v9249
      %9282 = vst [vmem:[%s237 + $0x88] sm:$0xff] %v9250
      %9283 = vst [vmem:[%s237 + $0x90] sm:$0xff] %v9251
      %9284 = vst [vmem:[%s237 + $0x98] sm:$0xff] %v9252
      %9285 = vst [vmem:[%s237 + $0xa0] sm:$0xff] %v9253
      %9286 = vst [vmem:[%s237 + $0xa8] sm:$0xff] %v9254
      %9287 = vst [vmem:[%s237 + $0xb0] sm:$0xff] %v9255
      %9288 = vst [vmem:[%s237 + $0xb8] sm:$0xff] %v9256
      %9289 = vst [vmem:[%s237 + $0xc0] sm:$0xff] %v9257
      %9290 = vst [vmem:[%s237 + $0xc8] sm:$0xff] %v9258
      %9291 = vst [vmem:[%s237 + $0xd0] sm:$0xff] %v9259
      %9292 = vst [vmem:[%s237 + $0xd8] sm:$0xff] %v9260
      %9293 = vst [vmem:[%s237 + $0xe0] sm:$0xff] %v9261
      %9294 = vst [vmem:[%s237 + $0xe8] sm:$0xff] %v9262
      %9295 = vst [vmem:[%s237 + $0xf0] sm:$0xff] %v9263
      %9296 = vst [vmem:[%s237 + $0xf8] sm:$0xff] %v9264
      %p9297 = scmp.lt.s32.totalorder %s15, 1
      %s9298 = scalar_select %p9297, %s15, 1
      %s9299 = smul.addr %s9298, 32
      %s9300 = smul.addr %s9299, 8
      %s9301 = scalar_lea.vmem %s4, %s9300
      // Predicated region
      $region37: #{mvfuse_forward.1} parent=35 // pred_check
        %p9302 = pneg %p132
      $region38: #{mvfuse_forward.1} parent=35 // pred_check_branch
        %9304 = sbr.rel (%p9302) target = $region40
      $region39: #{mvfuse_forward.1} parent=35 // pred_region
        _
      $region40: #{mvfuse_forward.1} parent=35 // pred_fallthru
        _
    $region36: #{mvfuse_forward.1} parent=5 // pred_fallthru
      _
    %p9305 = scmp.le.s32.totalorder 2, %s10
    // Predicated region
    $region41: #{mvfuse_forward.1} parent=5 // pred_check
      %p9306 = pneg %p9305
    $region42: #{mvfuse_forward.1} parent=5 // pred_check_branch
      %9308 = sbr.rel (%p9306) target = $region44
    $region43: #{mvfuse_forward.1} parent=5 // pred_region
      %s9309 = ssub.s32 %s10, 2
      // Predicated region
      $region45: #{mvfuse_forward.1} parent=43 // pred_check
        %p9310 = pneg %p138
      $region46: #{mvfuse_forward.1} parent=43 // pred_check_branch
        %9312 = sbr.rel (%p9310) target = $region48
      $region47: #{mvfuse_forward.1} parent=43 // pred_region
        %p9313 = scmp.lt.s32.totalorder %s16, 1
        %s9314 = scalar_select %p9313, %s16, 1
        %s9315 = smul.addr %s9314, 32
        %s9316 = smul.addr %s9315, 8
        %s9317 = scalar_lea.vmem %s4, %s9316
      $region48: #{mvfuse_forward.1} parent=43 // pred_fallthru
        _
    $region44: #{mvfuse_forward.1} parent=5 // pred_fallthru
      _
  $region6: #{mvfuse_forward.1} parent=0 // loop_footer
    %s14 = sadd.s32 1, %s10
  $region7: #{mvfuse_forward.1} parent=0 // loop_footer_branch
    %9 = sbr.rel target = $region3
  $region8: #{mvfuse_forward.1} parent=0 // loop_exit
    _

</llo_original>
